<compile_context>
chip_gen: v5e
topology: v5e:2x2
jax: 0.10.0
libtpu: 0.0.40
codegen_flags: <defaults>
</compile_context>

<pallas_src>
import jax
import jax.numpy as jnp
from jax.experimental import pallas as pl
from jax.experimental.pallas import tpu as pltpu

N_KP = 9        # keypoints / graph nodes (labels 1..9)
IN_F = 8        # [x, y, conf, label, dist_next, angle_next, dist_prev, angle_prev]
HID = 1024      # GraphGCN hidden_channels
OUT_F = 4       # GraphGCN out_channels
OUT_PAD = 128   # lane-padded output width (dense vst); sliced back to OUT_F
TB_MAX = 128    # max images per grid step; 128*9 = 1152 rows (multiple of 128)
IMG_W, IMG_H = 640.0, 480.0


# ----------------------------- Pallas kernel ------------------------------ #
def _make_gcn_kernel(tb):
    """Build the GCN kernel for a batch tile of `tb` images (tb % 8 == 0).

    Rows are node-major: row = node*tb + image_in_tile.  For the 9-node
    bidirectional ring with self-loops every degree is 3, so
    Â = (A+I)/3 and Â·h == (h + roll(h, tb, rows) + roll(h, 8*tb, rows)) / 3.
    The 1/3 is folded into w2/w3 in the wrapper, so propagate() is just
    two XLU sublane rolls + VPU adds.
    """

    def kernel(x_ref, w1_ref, b1_ref, w2_ref, b2_ref, w3_ref, b3_ref,
               wf_ref, bf_ref, out_ref):
        def propagate(z):
            return (z
                    + pltpu.roll(z, tb, axis=0)
                    + pltpu.roll(z, (N_KP - 1) * tb, axis=0))

        x = x_ref[0]                                   # (rows, 8) bf16, Â·X pre-applied

        # GCNConv 1:  relu( (Â X) W1 + b1 )   (layer-1 propagation folded outside)
        h = jnp.dot(x, w1_ref[...], preferred_element_type=jnp.float32) + b1_ref[...]
        h = jnp.maximum(h, 0.0).astype(jnp.bfloat16)
        # TODO(synk): dropout(p=0.5) is a no-op in eval mode; training-mode
        # stochastic dropout not reproduced here.

        # GCNConv 2:  relu( Â (h W2) + b2 )    (1/3 pre-folded into W2)
        z = jnp.dot(h, w2_ref[...], preferred_element_type=jnp.float32)
        h = jnp.maximum(propagate(z) + b2_ref[...], 0.0).astype(jnp.bfloat16)

        # GCNConv 3
        z = jnp.dot(h, w3_ref[...], preferred_element_type=jnp.float32)
        h = jnp.maximum(propagate(z) + b3_ref[...], 0.0).astype(jnp.bfloat16)

        # Final Linear(hidden -> 4), lane-padded to 128 output columns.
        out = jnp.dot(h, wf_ref[...], preferred_element_type=jnp.float32) + bf_ref[...]
        out_ref[0] = out

    return kernel


def graph_gcn_forward(node_feats, params):
    """node_feats: (B, 9, 8) f32 -> (B, 9, 4) f32 via the Pallas GCN kernel."""
    B = node_feats.shape[0]

    # Adaptive batch tile: multiple of 8 (whole-vreg rolls), capped at TB_MAX.
    tb = min(TB_MAX, ((B + 7) // 8) * 8)
    nt = -(-B // tb)
    b_pad = nt * tb
    rows = N_KP * tb

    # Fold layer-1 ring propagation Â·X into the wrapper (exact: Â = (A+I)/3).
    xp = (node_feats
          + jnp.roll(node_feats, 1, axis=1)
          + jnp.roll(node_feats, -1, axis=1)) / 3.0

    # Pad batch, lay out node-major rows within each tile, pre-cast to bf16.
    xp = jnp.pad(xp, ((0, b_pad - B), (0, 0), (0, 0)))
    xp = xp.reshape(nt, tb, N_KP, IN_F).transpose(0, 2, 1, 3)
    xp = xp.reshape(nt, rows, IN_F).astype(jnp.bfloat16)

    # bf16 weights (MXU-native), f32 accumulation.  1/3 ring normalization for
    # layers 2/3 is folded into the weights IN F32 before the bf16 cast.
    third = jnp.float32(1.0 / 3.0)
    w1 = params["w1"].astype(jnp.bfloat16)
    w2 = (params["w2"] * third).astype(jnp.bfloat16)
    w3 = (params["w3"] * third).astype(jnp.bfloat16)
    wf = jnp.zeros((HID, OUT_PAD), jnp.float32).at[:, :OUT_F].set(params["wf"])
    wf = wf.astype(jnp.bfloat16)
    bf = jnp.zeros((1, OUT_PAD), jnp.float32).at[:, :OUT_F].set(params["bf"])

    out = pl.pallas_call(
        _make_gcn_kernel(tb),
        out_shape=jax.ShapeDtypeStruct((nt, rows, OUT_PAD), jnp.float32),
        grid_spec=pltpu.PrefetchScalarGridSpec(
            num_scalar_prefetch=0,
            grid=(nt,),
            in_specs=[
                pl.BlockSpec((1, rows, IN_F), lambda t: (t, 0, 0)),   # x
                pl.BlockSpec((IN_F, HID),     lambda t: (0, 0)),      # w1
                pl.BlockSpec((1, HID),        lambda t: (0, 0)),      # b1
                pl.BlockSpec((HID, HID),      lambda t: (0, 0)),      # w2 (pre-scaled)
                pl.BlockSpec((1, HID),        lambda t: (0, 0)),      # b2
                pl.BlockSpec((HID, HID),      lambda t: (0, 0)),      # w3 (pre-scaled)
                pl.BlockSpec((1, HID),        lambda t: (0, 0)),      # b3
                pl.BlockSpec((HID, OUT_PAD),  lambda t: (0, 0)),      # wf
                pl.BlockSpec((1, OUT_PAD),    lambda t: (0, 0)),      # bf
            ],
            out_specs=pl.BlockSpec((1, rows, OUT_PAD), lambda t: (t, 0, 0)),
        ),
        compiler_params=pltpu.CompilerParams(
            dimension_semantics=("parallel",),
            vmem_limit_bytes=48 << 20,
        ),
    )(xp, w1, params["b1"], w2, params["b2"], w3, params["b3"], wf, bf)

    # Slice the padded lanes away FIRST, then undo the node-major layout.
    out = out[..., :OUT_F]                                     # (nt, rows, 4)
    out = out.reshape(nt, N_KP, tb, OUT_F).transpose(0, 2, 1, 3)
    out = out.reshape(b_pad, N_KP, OUT_F)
    return out[:B]


# ------------------------------- JAX glue --------------------------------- #
def synth_detect_keypoints(imgs, key):
    """Stand-in for self.keypoint_model + process_model_output.

    TODO(synk): torchvision Keypoint R-CNN (loaded from .pth) plus its NMS /
    score-threshold post-processing has no clean Pallas equivalent; replaced
    by a deterministic synthetic detector emitting one keypoint per label 1..9.
    """
    B = imgs.shape[0]
    kx, ky, kc = jax.random.split(key, 3)
    xs = jax.random.uniform(kx, (B, N_KP), minval=0.0, maxval=IMG_W)
    ys = jax.random.uniform(ky, (B, N_KP), minval=0.0, maxval=IMG_H)
    conf = jax.random.uniform(kc, (B, N_KP), minval=0.5, maxval=1.0)
    labels = jnp.broadcast_to(
        jnp.arange(1, N_KP + 1, dtype=jnp.float32), (B, N_KP))
    return jnp.stack([xs, ys, conf, labels], axis=-1).astype(jnp.float32)


def fill_missing_keypoints(kps):
    # All 9 labels are present by construction, so the fill is the identity.
    # TODO(synk): data-dependent dict-based neighbor averaging for missing
    # labels not reproduced (requires per-image dynamic control flow).
    return kps


def normalize_keypoints(kps, image_width, image_height):
    x = (kps[..., 0] - image_width / 2.0) / (image_width / 2.0)
    y = (kps[..., 1] - image_height / 2.0) / (image_height / 2.0)
    return kps.at[..., 0].set(x).at[..., 1].set(y)


def keypoints_to_node_features(kps):
    """(B, 9, 4) -> (B, 9, 8): [x, y, conf, label, d_next, a_next, d_prev, a_prev]."""
    nxt = jnp.roll(kps, shift=-1, axis=1)
    prv = jnp.roll(kps, shift=1, axis=1)
    dxn = nxt[..., 0] - kps[..., 0]
    dyn = nxt[..., 1] - kps[..., 1]
    dxp = prv[..., 0] - kps[..., 0]
    dyp = prv[..., 1] - kps[..., 1]
    dist_n = jnp.sqrt(dxn * dxn + dyn * dyn)
    ang_n = jnp.arctan2(dyn, dxn)
    dist_p = jnp.sqrt(dxp * dxp + dyp * dyp)
    ang_p = jnp.arctan2(dyp, dxp)
    return jnp.stack(
        [kps[..., 0], kps[..., 1], kps[..., 2], kps[..., 3],
         dist_n, ang_n, dist_p, ang_p], axis=-1).astype(jnp.float32)


def init_graph_gcn_params(key):
    ks = jax.random.split(key, 5)

    def glorot(k, shape):
        lim = jnp.sqrt(6.0 / (shape[0] + shape[1]))
        return jax.random.uniform(k, shape, minval=-lim, maxval=lim,
                                  dtype=jnp.float32)

    return {
        "w1": glorot(ks[0], (IN_F, HID)),  "b1": jnp.zeros((1, HID), jnp.float32),
        "w2": glorot(ks[1], (HID, HID)),   "b2": jnp.zeros((1, HID), jnp.float32),
        "w3": glorot(ks[2], (HID, HID)),   "b3": jnp.zeros((1, HID), jnp.float32),
        "wf": glorot(ks[3], (HID, OUT_F)), "bf": glorot(ks[4], (1, OUT_F)),
    }


def keypoint_pipeline_forward(imgs, params, det_key):
    kps = synth_detect_keypoints(imgs, det_key)            # (B, 9, 4)
    kps = fill_missing_keypoints(kps)
    kps = normalize_keypoints(kps, IMG_W, IMG_H)
    feats = keypoints_to_node_features(kps)                 # (B, 9, 8)
    return graph_gcn_forward(feats, params)                 # (B, 9, 4)


# --------------------------------- main ------------------------------------ #
if __name__ == "__main__":
    key = jax.random.PRNGKey(0)
    k_img, k_det, k_par = jax.random.split(key, 3)

    B = 2
    imgs = jax.random.normal(k_img, (B, 3, 32, 32), dtype=jnp.float32)  # NCHW

    params = init_graph_gcn_params(k_par)

    out = keypoint_pipeline_forward(imgs, params, k_det)
    out = jax.block_until_ready(out)

    assert out.shape == (B, N_KP, OUT_F), out.shape
    assert bool(jnp.all(jnp.isfinite(out)))
    print("KERNEL_OK")
</pallas_src>

<mosaic_0001>
module attributes {stable_mosaic.version = 11 : i64} {
  func.func @kernel(%arg0: i32, %arg1: memref<1x72x8xbf16, #tpu.memory_space<vmem>>, %arg2: memref<8x1024xbf16, #tpu.memory_space<vmem>>, %arg3: memref<1x1024xf32, #tpu.memory_space<vmem>>, %arg4: memref<1024x1024xbf16, #tpu.memory_space<vmem>>, %arg5: memref<1x1024xf32, #tpu.memory_space<vmem>>, %arg6: memref<1024x1024xbf16, #tpu.memory_space<vmem>>, %arg7: memref<1x1024xf32, #tpu.memory_space<vmem>>, %arg8: memref<1024x128xbf16, #tpu.memory_space<vmem>>, %arg9: memref<1x128xf32, #tpu.memory_space<vmem>>, %arg10: memref<1x72x128xf32, #tpu.memory_space<vmem>>) attributes {dimension_semantics = [#tpu.dimension_semantics<parallel>], iteration_bounds = array<i64: 1>, scalar_prefetch = 0 : i64, scratch_operands = 0 : i64, tpu.core_type = #tpu.core_type<tc>, window_params = [{transform_indices = @transform_0, window_bounds = array<i64: 1, 72, 8>}, {pipeline_mode = #tpu.pipeline_mode<synchronous>, transform_indices = @transform_1, window_bounds = array<i64: 8, 1024>}, {pipeline_mode = #tpu.pipeline_mode<synchronous>, transform_indices = @transform_2, window_bounds = array<i64: 1, 1024>}, {pipeline_mode = #tpu.pipeline_mode<synchronous>, transform_indices = @transform_3, window_bounds = array<i64: 1024, 1024>}, {pipeline_mode = #tpu.pipeline_mode<synchronous>, transform_indices = @transform_4, window_bounds = array<i64: 1, 1024>}, {pipeline_mode = #tpu.pipeline_mode<synchronous>, transform_indices = @transform_5, window_bounds = array<i64: 1024, 1024>}, {pipeline_mode = #tpu.pipeline_mode<synchronous>, transform_indices = @transform_6, window_bounds = array<i64: 1, 1024>}, {pipeline_mode = #tpu.pipeline_mode<synchronous>, transform_indices = @transform_7, window_bounds = array<i64: 1024, 128>}, {pipeline_mode = #tpu.pipeline_mode<synchronous>, transform_indices = @transform_8, window_bounds = array<i64: 1, 128>}, {transform_indices = @transform_9, window_bounds = array<i64: 1, 72, 128>}]} {
    %c0 = arith.constant 0 : index
    %c0_0 = arith.constant 0 : index
    %c0_1 = arith.constant 0 : index
    %0 = vector.load %arg1[%c0, %c0_0, %c0_1] : memref<1x72x8xbf16, #tpu.memory_space<vmem>>, vector<1x72x8xbf16>
    %1 = vector.shape_cast %0 : vector<1x72x8xbf16> to vector<72x8xbf16>
    %c0_2 = arith.constant 0 : index
    %c0_3 = arith.constant 0 : index
    %2 = vector.load %arg2[%c0_2, %c0_3] : memref<8x1024xbf16, #tpu.memory_space<vmem>>, vector<8x1024xbf16>
    %cst = arith.constant dense<0.000000e+00> : vector<72x1024xf32>
    %3 = tpu.matmul %1, %2, %cst {dimension_numbers = #tpu.dot_dimension_numbers<[1], [0], [0], [1], [0, 0, 1, 1], [], []>} : vector<72x8xbf16>, vector<8x1024xbf16>, vector<72x1024xf32> -> vector<72x1024xf32>
    %c0_4 = arith.constant 0 : index
    %c0_5 = arith.constant 0 : index
    %4 = vector.load %arg3[%c0_4, %c0_5] : memref<1x1024xf32, #tpu.memory_space<vmem>>, vector<1x1024xf32>
    %5 = vector.broadcast %4 : vector<1x1024xf32> to vector<72x1024xf32>
    %6 = arith.addf %3, %5 : vector<72x1024xf32>
    %cst_6 = arith.constant 0.000000e+00 : f32
    %7 = vector.broadcast %cst_6 : f32 to vector<72x1024xf32>
    %8 = arith.maximumf %6, %7 : vector<72x1024xf32>
    %9 = arith.truncf %8 : vector<72x1024xf32> to vector<72x1024xbf16>
    %c0_7 = arith.constant 0 : index
    %c0_8 = arith.constant 0 : index
    %10 = vector.load %arg4[%c0_7, %c0_8] : memref<1024x1024xbf16, #tpu.memory_space<vmem>>, vector<1024x1024xbf16>
    %cst_9 = arith.constant dense<0.000000e+00> : vector<72x1024xf32>
    %11 = tpu.matmul %9, %10, %cst_9 {dimension_numbers = #tpu.dot_dimension_numbers<[1], [0], [0], [1], [0, 0, 1, 1], [], []>} : vector<72x1024xbf16>, vector<1024x1024xbf16>, vector<72x1024xf32> -> vector<72x1024xf32>
    %c8_i32 = arith.constant 8 : i32
    %12 = tpu.dynamic_rotate %11 by %c8_i32 dim 0 : vector<72x1024xf32>, i32 -> vector<72x1024xf32>
    %13 = arith.addf %11, %12 : vector<72x1024xf32>
    %c64_i32 = arith.constant 64 : i32
    %14 = tpu.dynamic_rotate %11 by %c64_i32 dim 0 : vector<72x1024xf32>, i32 -> vector<72x1024xf32>
    %15 = arith.addf %13, %14 : vector<72x1024xf32>
    %c0_10 = arith.constant 0 : index
    %c0_11 = arith.constant 0 : index
    %16 = vector.load %arg5[%c0_10, %c0_11] : memref<1x1024xf32, #tpu.memory_space<vmem>>, vector<1x1024xf32>
    %17 = vector.broadcast %16 : vector<1x1024xf32> to vector<72x1024xf32>
    %18 = arith.addf %15, %17 : vector<72x1024xf32>
    %cst_12 = arith.constant 0.000000e+00 : f32
    %19 = vector.broadcast %cst_12 : f32 to vector<72x1024xf32>
    %20 = arith.maximumf %18, %19 : vector<72x1024xf32>
    %21 = arith.truncf %20 : vector<72x1024xf32> to vector<72x1024xbf16>
    %c0_13 = arith.constant 0 : index
    %c0_14 = arith.constant 0 : index
    %22 = vector.load %arg6[%c0_13, %c0_14] : memref<1024x1024xbf16, #tpu.memory_space<vmem>>, vector<1024x1024xbf16>
    %cst_15 = arith.constant dense<0.000000e+00> : vector<72x1024xf32>
    %23 = tpu.matmul %21, %22, %cst_15 {dimension_numbers = #tpu.dot_dimension_numbers<[1], [0], [0], [1], [0, 0, 1, 1], [], []>} : vector<72x1024xbf16>, vector<1024x1024xbf16>, vector<72x1024xf32> -> vector<72x1024xf32>
    %c8_i32_16 = arith.constant 8 : i32
    %24 = tpu.dynamic_rotate %23 by %c8_i32_16 dim 0 : vector<72x1024xf32>, i32 -> vector<72x1024xf32>
    %25 = arith.addf %23, %24 : vector<72x1024xf32>
    %c64_i32_17 = arith.constant 64 : i32
    %26 = tpu.dynamic_rotate %23 by %c64_i32_17 dim 0 : vector<72x1024xf32>, i32 -> vector<72x1024xf32>
    %27 = arith.addf %25, %26 : vector<72x1024xf32>
    %c0_18 = arith.constant 0 : index
    %c0_19 = arith.constant 0 : index
    %28 = vector.load %arg7[%c0_18, %c0_19] : memref<1x1024xf32, #tpu.memory_space<vmem>>, vector<1x1024xf32>
    %29 = vector.broadcast %28 : vector<1x1024xf32> to vector<72x1024xf32>
    %30 = arith.addf %27, %29 : vector<72x1024xf32>
    %cst_20 = arith.constant 0.000000e+00 : f32
    %31 = vector.broadcast %cst_20 : f32 to vector<72x1024xf32>
    %32 = arith.maximumf %30, %31 : vector<72x1024xf32>
    %33 = arith.truncf %32 : vector<72x1024xf32> to vector<72x1024xbf16>
    %c0_21 = arith.constant 0 : index
    %c0_22 = arith.constant 0 : index
    %34 = vector.load %arg8[%c0_21, %c0_22] : memref<1024x128xbf16, #tpu.memory_space<vmem>>, vector<1024x128xbf16>
    %cst_23 = arith.constant dense<0.000000e+00> : vector<72x128xf32>
    %35 = tpu.matmul %33, %34, %cst_23 {dimension_numbers = #tpu.dot_dimension_numbers<[1], [0], [0], [1], [0, 0, 1, 1], [], []>} : vector<72x1024xbf16>, vector<1024x128xbf16>, vector<72x128xf32> -> vector<72x128xf32>
    %c0_24 = arith.constant 0 : index
    %c0_25 = arith.constant 0 : index
    %36 = vector.load %arg9[%c0_24, %c0_25] : memref<1x128xf32, #tpu.memory_space<vmem>>, vector<1x128xf32>
    %37 = vector.broadcast %36 : vector<1x128xf32> to vector<72x128xf32>
    %38 = arith.addf %35, %37 : vector<72x128xf32>
    %c0_26 = arith.constant 0 : index
    %c0_27 = arith.constant 0 : index
    %c0_28 = arith.constant 0 : index
    %39 = vector.load %arg10[%c0_26, %c0_27, %c0_28] : memref<1x72x128xf32, #tpu.memory_space<vmem>>, vector<1x72x128xf32>
    %40 = vector.shape_cast %39 : vector<1x72x128xf32> to vector<72x128xf32>
    %41 = vector.shape_cast %38 : vector<72x128xf32> to vector<1x72x128xf32>
    tpu.vector_store %arg10[%c0_26, %c0_27, %c0_28], %41 {strides = array<i32>} : memref<1x72x128xf32, #tpu.memory_space<vmem>>, vector<1x72x128xf32>,
    return
  }
  func.func @transform_0(%arg0: i32) -> (i32, i32, i32) {
    %c0_i32 = arith.constant 0 : i32
    %c0_i32_0 = arith.constant 0 : i32
    %c0_i32_1 = arith.constant 0 : i32
    return %arg0, %c0_i32, %c0_i32_0 : i32, i32, i32
  }
  func.func @transform_1(%arg0: i32) -> (i32, i32) {
    %c0_i32 = arith.constant 0 : i32
    %c0_i32_0 = arith.constant 0 : i32
    %c0_i32_1 = arith.constant 0 : i32
    return %c0_i32, %c0_i32_0 : i32, i32
  }
  func.func @transform_2(%arg0: i32) -> (i32, i32) {
    %c0_i32 = arith.constant 0 : i32
    %c0_i32_0 = arith.constant 0 : i32
    %c0_i32_1 = arith.constant 0 : i32
    return %c0_i32, %c0_i32_0 : i32, i32
  }
  func.func @transform_3(%arg0: i32) -> (i32, i32) {
    %c0_i32 = arith.constant 0 : i32
    %c0_i32_0 = arith.constant 0 : i32
    %c0_i32_1 = arith.constant 0 : i32
    return %c0_i32, %c0_i32_0 : i32, i32
  }
  func.func @transform_4(%arg0: i32) -> (i32, i32) {
    %c0_i32 = arith.constant 0 : i32
    %c0_i32_0 = arith.constant 0 : i32
    %c0_i32_1 = arith.constant 0 : i32
    return %c0_i32, %c0_i32_0 : i32, i32
  }
  func.func @transform_5(%arg0: i32) -> (i32, i32) {
    %c0_i32 = arith.constant 0 : i32
    %c0_i32_0 = arith.constant 0 : i32
    %c0_i32_1 = arith.constant 0 : i32
    return %c0_i32, %c0_i32_0 : i32, i32
  }
  func.func @transform_6(%arg0: i32) -> (i32, i32) {
    %c0_i32 = arith.constant 0 : i32
    %c0_i32_0 = arith.constant 0 : i32
    %c0_i32_1 = arith.constant 0 : i32
    return %c0_i32, %c0_i32_0 : i32, i32
  }
  func.func @transform_7(%arg0: i32) -> (i32, i32) {
    %c0_i32 = arith.constant 0 : i32
    %c0_i32_0 = arith.constant 0 : i32
    %c0_i32_1 = arith.constant 0 : i32
    return %c0_i32, %c0_i32_0 : i32, i32
  }
  func.func @transform_8(%arg0: i32) -> (i32, i32) {
    %c0_i32 = arith.constant 0 : i32
    %c0_i32_0 = arith.constant 0 : i32
    %c0_i32_1 = arith.constant 0 : i32
    return %c0_i32, %c0_i32_0 : i32, i32
  }
  func.func @transform_9(%arg0: i32) -> (i32, i32, i32) {
    %c0_i32 = arith.constant 0 : i32
    %c0_i32_0 = arith.constant 0 : i32
    %c0_i32_1 = arith.constant 0 : i32
    return %arg0, %c0_i32, %c0_i32_0 : i32, i32, i32
  }
}

</mosaic_0001>

<llo_original>
// kernel: tpu_custom_call.1
$region0: #{tpu_custom_call.1}
  #allocation0 [shape = 'u32[]', space=smem, size = 0x4, offset = 0x4, fixed_abs, tag = 'smem constant byte address 0x4 - core index']
  #allocation1 [shape = 'u32[72,128]{1,0:T(1,128)}', space=vmem, size = 0x9000, scoped, tag = 'internal scratch']
  %s0 = inlined_call_operand.vmem [shape: bf16[1,72,8], index: 0, kind: input, shape index: {}]
  %s1 = inlined_call_operand.hbm [shape: bf16[8,1024], index: 1, kind: input, shape index: {}]
  %s2 = inlined_call_operand.hbm [shape: f32[1,1024], index: 2, kind: input, shape index: {}]
  %s3 = inlined_call_operand.hbm [shape: bf16[1024,1024], index: 3, kind: input, shape index: {}]
  %s4 = inlined_call_operand.hbm [shape: f32[1,1024], index: 4, kind: input, shape index: {}]
  %s5 = inlined_call_operand.hbm [shape: bf16[1024,1024], index: 5, kind: input, shape index: {}]
  %s6 = inlined_call_operand.hbm [shape: f32[1,1024], index: 6, kind: input, shape index: {}]
  %s7 = inlined_call_operand.hbm [shape: bf16[1024,128], index: 7, kind: input, shape index: {}]
  %s8 = inlined_call_operand.hbm [shape: f32[1,128], index: 8, kind: input, shape index: {}]
  %s9 = inlined_call_operand.hbm [shape: f32[1,72,128], index: 9, kind: output, shape index: {}]
  %s10 = sld [smem:[#allocation0]]
  $region78: #{tpu_custom_call.1} parent=0
    _
  %s12 = ssub.s32 1, %s10
  %s13 = scalar_select 0, %s12, %s10
  $region1: #{tpu_custom_call.1} parent=0
    #allocation2 [shape = 'u8[16384]{0}', space=vmem, size = 0x4000, scoped, tag = 'input window, operand 1, single buffered']
    #allocation3 [shape = 's32[1]{0}', space=sflag, size = 0x4, scoped, tag = 'scoped memory for tpu_custom_call.1']
    #allocation4 [shape = 's32[1]{0}', space=sflag, size = 0x4, scoped, tag = 'scoped memory for tpu_custom_call.1']
    #allocation5 [shape = 'u8[4096]{0}', space=vmem, size = 0x1000, scoped, tag = 'input window, operand 2, single buffered']
    #allocation6 [shape = 's32[1]{0}', space=sflag, size = 0x4, scoped, tag = 'scoped memory for tpu_custom_call.1']
    #allocation7 [shape = 'u8[2097152]{0}', space=vmem, size = 0x200000, scoped, tag = 'input window, operand 3, single buffered']
    #allocation8 [shape = 'u8[4096]{0}', space=vmem, size = 0x1000, scoped, tag = 'input window, operand 4, single buffered']
    #allocation9 [shape = 's32[1]{0}', space=sflag, size = 0x4, scoped, tag = 'scoped memory for tpu_custom_call.1']
    #allocation10 [shape = 'u8[2097152]{0}', space=vmem, size = 0x200000, scoped, tag = 'input window, operand 5, single buffered']
    #allocation11 [shape = 'u8[4096]{0}', space=vmem, size = 0x1000, scoped, tag = 'input window, operand 6, single buffered']
    #allocation12 [shape = 's32[1]{0}', space=sflag, size = 0x4, scoped, tag = 'scoped memory for tpu_custom_call.1']
    #allocation13 [shape = 'u8[262144]{0}', space=vmem, size = 0x40000, scoped, tag = 'input window, operand 7, single buffered']
    #allocation14 [shape = 'u8[512]{0}', space=vmem, size = 0x400, scoped, tag = 'input window, operand 8, single buffered']
    #allocation15 [shape = 's32[1]{0}', space=sflag, size = 0x4, scoped, tag = 'scoped memory for tpu_custom_call.1']
    #allocation16 [shape = 'u8[36864]{0}', space=vmem, size = 0x9000, scoped, tag = 'output window, operand 0, single buffered']
    %14 = vsyncpa [#allocation3], 0
    %15 = vsyncpa [#allocation6], 0
    %16 = vsyncpa [#allocation9], 0
    %17 = vsyncpa [#allocation12], 0
    %18 = vsyncpa [#allocation15], 0
    %19 = vsyncpa [#allocation4], 0
    // Predicated region
    $region2: #{tpu_custom_call.1} parent=1 // pred_check
      _
    $region3: #{tpu_custom_call.1} parent=1 // pred_check_branch
      %21 = sbr.rel (0) target = $region5
    $region4: #{tpu_custom_call.1} parent=1 // pred_region
      _
    $region5: #{tpu_custom_call.1} parent=1 // pred_fallthru
      _
    // Predicated region
    $region6: #{tpu_custom_call.1} parent=1 // pred_check
      _
    $region7: #{tpu_custom_call.1} parent=1 // pred_check_branch
      %23 = sbr.rel (0) target = $region9
    $region8: #{tpu_custom_call.1} parent=1 // pred_region
      %25 = vsyncadd [#allocation3], 0
      %s27 = sshll.u32 %s1, 4
      %s28 = int_to_ptr.hbm [resolvable:$true] %s27
      %s29 = sshll.u32 [#allocation2], 4
      %s30 = int_to_ptr.vmem [resolvable:$true] %s29
      %32 = dma.hbm_to_vmem [thread:$0]  %s28, 512, %s30, [#allocation3]
    $region9: #{tpu_custom_call.1} parent=1 // pred_fallthru
      _
    // Predicated region
    $region10: #{tpu_custom_call.1} parent=1 // pred_check
      _
    $region11: #{tpu_custom_call.1} parent=1 // pred_check_branch
      %34 = sbr.rel (0) target = $region13
    $region12: #{tpu_custom_call.1} parent=1 // pred_region
      %36 = vsyncadd [#allocation6], 0
      %s38 = sshll.u32 %s2, 4
      %s39 = int_to_ptr.hbm [resolvable:$true] %s38
      %s40 = sshll.u32 [#allocation5], 4
      %s41 = int_to_ptr.vmem [resolvable:$true] %s40
      %43 = dma.hbm_to_vmem [thread:$0]  %s39, 128, %s41, [#allocation6]
    $region13: #{tpu_custom_call.1} parent=1 // pred_fallthru
      _
    // Predicated region
    $region14: #{tpu_custom_call.1} parent=1 // pred_check
      _
    $region15: #{tpu_custom_call.1} parent=1 // pred_check_branch
      %45 = sbr.rel (0) target = $region17
    $region16: #{tpu_custom_call.1} parent=1 // pred_region
      %47 = vsyncadd [#allocation6], 0
      %s48 = sshll.u32 %s3, 4
      %s49 = int_to_ptr.hbm [resolvable:$true] %s48
      %s50 = sshll.u32 [#allocation7], 4
      %s51 = int_to_ptr.vmem [resolvable:$true] %s50
      %56 = dma.hbm_to_vmem [thread:$0]  %s49, 65536, %s51, [#allocation6], 512, 512, 32
    $region17: #{tpu_custom_call.1} parent=1 // pred_fallthru
      _
    // Predicated region
    $region18: #{tpu_custom_call.1} parent=1 // pred_check
      _
    $region19: #{tpu_custom_call.1} parent=1 // pred_check_branch
      %58 = sbr.rel (0) target = $region21
    $region20: #{tpu_custom_call.1} parent=1 // pred_region
      %60 = vsyncadd [#allocation9], 0
      %s62 = sshll.u32 %s4, 4
      %s63 = int_to_ptr.hbm [resolvable:$true] %s62
      %s64 = sshll.u32 [#allocation8], 4
      %s65 = int_to_ptr.vmem [resolvable:$true] %s64
      %67 = dma.hbm_to_vmem [thread:$0]  %s63, 128, %s65, [#allocation9]
    $region21: #{tpu_custom_call.1} parent=1 // pred_fallthru
      _
    // Predicated region
    $region22: #{tpu_custom_call.1} parent=1 // pred_check
      _
    $region23: #{tpu_custom_call.1} parent=1 // pred_check_branch
      %69 = sbr.rel (0) target = $region25
    $region24: #{tpu_custom_call.1} parent=1 // pred_region
      %71 = vsyncadd [#allocation9], 0
      %s72 = sshll.u32 %s5, 4
      %s73 = int_to_ptr.hbm [resolvable:$true] %s72
      %s74 = sshll.u32 [#allocation10], 4
      %s75 = int_to_ptr.vmem [resolvable:$true] %s74
      %80 = dma.hbm_to_vmem [thread:$0]  %s73, 65536, %s75, [#allocation9], 512, 512, 32
    $region25: #{tpu_custom_call.1} parent=1 // pred_fallthru
      _
    // Predicated region
    $region26: #{tpu_custom_call.1} parent=1 // pred_check
      _
    $region27: #{tpu_custom_call.1} parent=1 // pred_check_branch
      %82 = sbr.rel (0) target = $region29
    $region28: #{tpu_custom_call.1} parent=1 // pred_region
      %84 = vsyncadd [#allocation12], 0
      %s86 = sshll.u32 %s6, 4
      %s87 = int_to_ptr.hbm [resolvable:$true] %s86
      %s88 = sshll.u32 [#allocation11], 4
      %s89 = int_to_ptr.vmem [resolvable:$true] %s88
      %91 = dma.hbm_to_vmem [thread:$0]  %s87, 128, %s89, [#allocation12]
    $region29: #{tpu_custom_call.1} parent=1 // pred_fallthru
      _
    // Predicated region
    $region30: #{tpu_custom_call.1} parent=1 // pred_check
      _
    $region31: #{tpu_custom_call.1} parent=1 // pred_check_branch
      %93 = sbr.rel (0) target = $region33
    $region32: #{tpu_custom_call.1} parent=1 // pred_region
      %95 = vsyncadd [#allocation12], 0
      %s96 = sshll.u32 %s7, 4
      %s97 = int_to_ptr.hbm [resolvable:$true] %s96
      %s98 = sshll.u32 [#allocation13], 4
      %s99 = int_to_ptr.vmem [resolvable:$true] %s98
      %104 = dma.hbm_to_vmem [thread:$0]  %s97, 8192, %s99, [#allocation12], 64, 64, 4
    $region33: #{tpu_custom_call.1} parent=1 // pred_fallthru
      _
    // Predicated region
    $region34: #{tpu_custom_call.1} parent=1 // pred_check
      _
    $region35: #{tpu_custom_call.1} parent=1 // pred_check_branch
      %106 = sbr.rel (0) target = $region37
    $region36: #{tpu_custom_call.1} parent=1 // pred_region
      %108 = vsyncadd [#allocation15], 0
      %s110 = sshll.u32 %s8, 4
      %s111 = int_to_ptr.hbm [resolvable:$true] %s110
      %s112 = sshll.u32 [#allocation14], 4
      %s113 = int_to_ptr.vmem [resolvable:$true] %s112
      %115 = dma.hbm_to_vmem [thread:$0]  %s111, 16, %s113, [#allocation15]
    $region37: #{tpu_custom_call.1} parent=1 // pred_fallthru
      _
    // Predicated region
    $region38: #{tpu_custom_call.1} parent=1 // pred_check
      _
    $region39: #{tpu_custom_call.1} parent=1 // pred_check_branch
      %117 = sbr.rel (0) target = $region41
    $region40: #{tpu_custom_call.1} parent=1 // pred_region
      %119 = dma.done [#allocation3], 512
    $region41: #{tpu_custom_call.1} parent=1 // pred_fallthru
      _
    // Predicated region
    $region42: #{tpu_custom_call.1} parent=1 // pred_check
      _
    $region43: #{tpu_custom_call.1} parent=1 // pred_check_branch
      %121 = sbr.rel (0) target = $region45
    $region44: #{tpu_custom_call.1} parent=1 // pred_region
      %123 = dma.done [#allocation6], 128
    $region45: #{tpu_custom_call.1} parent=1 // pred_fallthru
      _
    // Predicated region
    $region46: #{tpu_custom_call.1} parent=1 // pred_check
      _
    $region47: #{tpu_custom_call.1} parent=1 // pred_check_branch
      %125 = sbr.rel (0) target = $region49
    $region48: #{tpu_custom_call.1} parent=1 // pred_region
      %127 = dma.done [#allocation6], 65536
    $region49: #{tpu_custom_call.1} parent=1 // pred_fallthru
      _
    // Predicated region
    $region50: #{tpu_custom_call.1} parent=1 // pred_check
      _
    $region51: #{tpu_custom_call.1} parent=1 // pred_check_branch
      %129 = sbr.rel (0) target = $region53
    $region52: #{tpu_custom_call.1} parent=1 // pred_region
      %131 = dma.done [#allocation9], 128
    $region53: #{tpu_custom_call.1} parent=1 // pred_fallthru
      _
    // Predicated region
    $region54: #{tpu_custom_call.1} parent=1 // pred_check
      _
    $region55: #{tpu_custom_call.1} parent=1 // pred_check_branch
      %133 = sbr.rel (0) target = $region57
    $region56: #{tpu_custom_call.1} parent=1 // pred_region
      %135 = dma.done [#allocation9], 65536
    $region57: #{tpu_custom_call.1} parent=1 // pred_fallthru
      _
    // Predicated region
    $region58: #{tpu_custom_call.1} parent=1 // pred_check
      _
    $region59: #{tpu_custom_call.1} parent=1 // pred_check_branch
      %137 = sbr.rel (0) target = $region61
    $region60: #{tpu_custom_call.1} parent=1 // pred_region
      %139 = dma.done [#allocation12], 128
    $region61: #{tpu_custom_call.1} parent=1 // pred_fallthru
      _
    // Predicated region
    $region62: #{tpu_custom_call.1} parent=1 // pred_check
      _
    $region63: #{tpu_custom_call.1} parent=1 // pred_check_branch
      %141 = sbr.rel (0) target = $region65
    $region64: #{tpu_custom_call.1} parent=1 // pred_region
      %143 = dma.done [#allocation12], 8192
    $region65: #{tpu_custom_call.1} parent=1 // pred_fallthru
      _
    // Predicated region
    $region66: #{tpu_custom_call.1} parent=1 // pred_check
      _
    $region67: #{tpu_custom_call.1} parent=1 // pred_check_branch
      %145 = sbr.rel (0) target = $region69
    $region68: #{tpu_custom_call.1} parent=1 // pred_region
      %147 = dma.done [#allocation15], 16
    $region69: #{tpu_custom_call.1} parent=1 // pred_fallthru
      _
    %v149 = vld [vmem:[%s0] sm:$0xf]
    %v150 = vld [vmem:[%s0 + $0x4] sm:$0xf]
    %v151 = vld [vmem:[%s0 + $0x8] sm:$0xf]
    %v152 = vld [vmem:[%s0 + $0xc] sm:$0xf]
    %v153 = vld [vmem:[%s0 + $0x10] sm:$0xf]
    %v154 = vld [vmem:[%s0 + $0x14] sm:$0xf]
    %v155 = vld [vmem:[%s0 + $0x18] sm:$0xf]
    %v156 = vld [vmem:[%s0 + $0x1c] sm:$0xf]
    %v157 = vld [vmem:[%s0 + $0x20] sm:$0xf]
    %v158 = vld [vmem:[#allocation2] sm:$0xff]
    %v159 = vld [vmem:[#allocation2 + $0x8] sm:$0xff]
    %v160 = vld [vmem:[#allocation2 + $0x10] sm:$0xff]
    %v161 = vld [vmem:[#allocation2 + $0x18] sm:$0xff]
    %v162 = vld [vmem:[#allocation5] sm:$0xff]
    %v164 = vperm.slane %v162, 0
    %v165 = vperm.slane %v162, 1
    %v166 = vperm.slane %v162, 2
    %v167 = vperm.slane %v162, 3
    %v168 = vperm.slane %v162, 4
    %v169 = vperm.slane %v162, 5
    %v170 = vperm.slane %v162, 6
    %v171 = vperm.slane %v162, 7
    %v189 = vunpack.c.l.b16 %v149
    %v190 = vunpack.c.l.b16 %v150
    %v191 = vunpack.c.l.b16 %v151
    %v192 = vunpack.c.l.b16 %v152
    %v193 = vunpack.c.l.b16 %v153
    %v194 = vunpack.c.l.b16 %v154
    %v195 = vunpack.c.l.b16 %v155
    %v196 = vunpack.c.l.b16 %v156
    %v197 = vunpack.c.l.b16 %v157
    %v198 = vpack.c.b16 %v190, %v189
    %v199 = vpack.c.b16 %v192, %v191
    %v200 = vpack.c.b16 %v194, %v193
    %v201 = vpack.c.b16 %v196, %v195
    %v202 = vpack.c.b16 %v197, %v197
    %v207 = vunpack.c.l.b16 %v158
    %v208 = vunpack.c.h.b16 %v158
    %v209 = vunpack.c.l.b16 %v159
    %v210 = vunpack.c.h.b16 %v159
    %v211 = vunpack.c.l.b16 %v160
    %v212 = vunpack.c.h.b16 %v160
    %v213 = vunpack.c.l.b16 %v161
    %v214 = vunpack.c.h.b16 %v161
    %v215 = vpack.c.b16 %v207, %v207
    %v216 = vpack.c.b16 %v208, %v208
    %v217 = vpack.c.b16 %v209, %v209
    %v218 = vpack.c.b16 %v210, %v210
    %v219 = vpack.c.b16 %v211, %v211
    %v220 = vpack.c.b16 %v212, %v212
    %v221 = vpack.c.b16 %v213, %v213
    %v222 = vpack.c.b16 %v214, %v214
    %vm223 = vcmask 64512
    %v225 = vsel %vm223, %v198, 0
    %v228 = vsel %vm223, %v199, 0
    %v231 = vsel %vm223, %v200, 0
    %v234 = vsel %vm223, %v201, 0
    %v237 = vsel %vm223, %v202, 0
    %vm239 = vcmask 1043456
    %v241 = vsel %vm239, %v215, 0
    %v244 = vsel %vm239, %v216, 0
    %v247 = vsel %vm239, %v217, 0
    %v250 = vsel %vm239, %v218, 0
    %v253 = vsel %vm239, %v219, 0
    %v256 = vsel %vm239, %v220, 0
    %v259 = vsel %vm239, %v221, 0
    %v262 = vsel %vm239, %v222, 0
    %264 = vmatpush.bf16.msra.mxu0 0
    %265 = vmatpush.bf16.msra.mxu0 0
    %266 = vmatpush.bf16.msra.mxu0 0
    %267 = vmatpush.bf16.msra.mxu0 0
    %268 = vmatpush.bf16.msra.mxu0 0
    %269 = vmatpush.bf16.msra.mxu0 0
    %270 = vmatpush.bf16.msra.mxu0 0
    %271 = vmatpush.bf16.msra.mxu0 %v241
    %272 = vmatmul.bf16.gmra.mxu0 %v225
    %v273 = vpop.f32.mrf.mxu0
    %v274 = vadd.f32 %v164, %v273
    %v275 = vpop.f32.mrf.mxu0
    %v276 = vadd.f32 %v164, %v275
    %277 = vmatmul.bf16.gmra.mxu0 %v228
    %v278 = vpop.f32.mrf.mxu0
    %v279 = vadd.f32 %v164, %v278
    %v280 = vpop.f32.mrf.mxu0
    %v281 = vadd.f32 %v164, %v280
    %282 = vmatmul.bf16.gmra.mxu0 %v231
    %v283 = vpop.f32.mrf.mxu0
    %v284 = vadd.f32 %v164, %v283
    %v285 = vpop.f32.mrf.mxu0
    %v286 = vadd.f32 %v164, %v285
    %287 = vmatmul.bf16.gmra.mxu0 %v234
    %v288 = vpop.f32.mrf.mxu0
    %v289 = vadd.f32 %v164, %v288
    %v290 = vpop.f32.mrf.mxu0
    %v291 = vadd.f32 %v164, %v290
    %292 = vmatmul.bf16.gmra.mxu0 %v237
    %v293 = vpop.f32.mrf.mxu0
    %v294 = vadd.f32 %v164, %v293
    %v295 = vpop.f32.mrf.mxu0
    %296 = vdwg.mxu0
    %297 = vmatpush.bf16.msra.mxu0 0
    %298 = vmatpush.bf16.msra.mxu0 0
    %299 = vmatpush.bf16.msra.mxu0 0
    %300 = vmatpush.bf16.msra.mxu0 0
    %301 = vmatpush.bf16.msra.mxu0 0
    %302 = vmatpush.bf16.msra.mxu0 0
    %303 = vmatpush.bf16.msra.mxu0 0
    %304 = vmatpush.bf16.msra.mxu0 %v244
    %305 = vmatmul.bf16.gmra.mxu0 %v225
    %v306 = vpop.f32.mrf.mxu0
    %v307 = vadd.f32 %v165, %v306
    %v308 = vpop.f32.mrf.mxu0
    %v309 = vadd.f32 %v165, %v308
    %310 = vmatmul.bf16.gmra.mxu0 %v228
    %v311 = vpop.f32.mrf.mxu0
    %v312 = vadd.f32 %v165, %v311
    %v313 = vpop.f32.mrf.mxu0
    %v314 = vadd.f32 %v165, %v313
    %315 = vmatmul.bf16.gmra.mxu0 %v231
    %v316 = vpop.f32.mrf.mxu0
    %v317 = vadd.f32 %v165, %v316
    %v318 = vpop.f32.mrf.mxu0
    %v319 = vadd.f32 %v165, %v318
    %320 = vmatmul.bf16.gmra.mxu0 %v234
    %v321 = vpop.f32.mrf.mxu0
    %v322 = vadd.f32 %v165, %v321
    %v323 = vpop.f32.mrf.mxu0
    %v324 = vadd.f32 %v165, %v323
    %325 = vmatmul.bf16.gmra.mxu0 %v237
    %v326 = vpop.f32.mrf.mxu0
    %v327 = vadd.f32 %v165, %v326
    %v328 = vpop.f32.mrf.mxu0
    %329 = vdwg.mxu0
    %330 = vmatpush.bf16.msra.mxu0 0
    %331 = vmatpush.bf16.msra.mxu0 0
    %332 = vmatpush.bf16.msra.mxu0 0
    %333 = vmatpush.bf16.msra.mxu0 0
    %334 = vmatpush.bf16.msra.mxu0 0
    %335 = vmatpush.bf16.msra.mxu0 0
    %336 = vmatpush.bf16.msra.mxu0 0
    %337 = vmatpush.bf16.msra.mxu0 %v247
    %338 = vmatmul.bf16.gmra.mxu0 %v225
    %v339 = vpop.f32.mrf.mxu0
    %v340 = vadd.f32 %v166, %v339
    %v341 = vpop.f32.mrf.mxu0
    %v342 = vadd.f32 %v166, %v341
    %343 = vmatmul.bf16.gmra.mxu0 %v228
    %v344 = vpop.f32.mrf.mxu0
    %v345 = vadd.f32 %v166, %v344
    %v346 = vpop.f32.mrf.mxu0
    %v347 = vadd.f32 %v166, %v346
    %348 = vmatmul.bf16.gmra.mxu0 %v231
    %v349 = vpop.f32.mrf.mxu0
    %v350 = vadd.f32 %v166, %v349
    %v351 = vpop.f32.mrf.mxu0
    %v352 = vadd.f32 %v166, %v351
    %353 = vmatmul.bf16.gmra.mxu0 %v234
    %v354 = vpop.f32.mrf.mxu0
    %v355 = vadd.f32 %v166, %v354
    %v356 = vpop.f32.mrf.mxu0
    %v357 = vadd.f32 %v166, %v356
    %358 = vmatmul.bf16.gmra.mxu0 %v237
    %v359 = vpop.f32.mrf.mxu0
    %v360 = vadd.f32 %v166, %v359
    %v361 = vpop.f32.mrf.mxu0
    %362 = vdwg.mxu0
    %363 = vmatpush.bf16.msra.mxu0 0
    %364 = vmatpush.bf16.msra.mxu0 0
    %365 = vmatpush.bf16.msra.mxu0 0
    %366 = vmatpush.bf16.msra.mxu0 0
    %367 = vmatpush.bf16.msra.mxu0 0
    %368 = vmatpush.bf16.msra.mxu0 0
    %369 = vmatpush.bf16.msra.mxu0 0
    %370 = vmatpush.bf16.msra.mxu0 %v250
    %371 = vmatmul.bf16.gmra.mxu0 %v225
    %v372 = vpop.f32.mrf.mxu0
    %v373 = vadd.f32 %v167, %v372
    %v374 = vpop.f32.mrf.mxu0
    %v375 = vadd.f32 %v167, %v374
    %376 = vmatmul.bf16.gmra.mxu0 %v228
    %v377 = vpop.f32.mrf.mxu0
    %v378 = vadd.f32 %v167, %v377
    %v379 = vpop.f32.mrf.mxu0
    %v380 = vadd.f32 %v167, %v379
    %381 = vmatmul.bf16.gmra.mxu0 %v231
    %v382 = vpop.f32.mrf.mxu0
    %v383 = vadd.f32 %v167, %v382
    %v384 = vpop.f32.mrf.mxu0
    %v385 = vadd.f32 %v167, %v384
    %386 = vmatmul.bf16.gmra.mxu0 %v234
    %v387 = vpop.f32.mrf.mxu0
    %v388 = vadd.f32 %v167, %v387
    %v389 = vpop.f32.mrf.mxu0
    %v390 = vadd.f32 %v167, %v389
    %391 = vmatmul.bf16.gmra.mxu0 %v237
    %v392 = vpop.f32.mrf.mxu0
    %v393 = vadd.f32 %v167, %v392
    %v394 = vpop.f32.mrf.mxu0
    %395 = vdwg.mxu0
    %396 = vmatpush.bf16.msra.mxu0 0
    %397 = vmatpush.bf16.msra.mxu0 0
    %398 = vmatpush.bf16.msra.mxu0 0
    %399 = vmatpush.bf16.msra.mxu0 0
    %400 = vmatpush.bf16.msra.mxu0 0
    %401 = vmatpush.bf16.msra.mxu0 0
    %402 = vmatpush.bf16.msra.mxu0 0
    %403 = vmatpush.bf16.msra.mxu0 %v253
    %404 = vmatmul.bf16.gmra.mxu0 %v225
    %v405 = vpop.f32.mrf.mxu0
    %v406 = vadd.f32 %v168, %v405
    %v407 = vpop.f32.mrf.mxu0
    %v408 = vadd.f32 %v168, %v407
    %409 = vmatmul.bf16.gmra.mxu0 %v228
    %v410 = vpop.f32.mrf.mxu0
    %v411 = vadd.f32 %v168, %v410
    %v412 = vpop.f32.mrf.mxu0
    %v413 = vadd.f32 %v168, %v412
    %414 = vmatmul.bf16.gmra.mxu0 %v231
    %v415 = vpop.f32.mrf.mxu0
    %v416 = vadd.f32 %v168, %v415
    %v417 = vpop.f32.mrf.mxu0
    %v418 = vadd.f32 %v168, %v417
    %419 = vmatmul.bf16.gmra.mxu0 %v234
    %v420 = vpop.f32.mrf.mxu0
    %v421 = vadd.f32 %v168, %v420
    %v422 = vpop.f32.mrf.mxu0
    %v423 = vadd.f32 %v168, %v422
    %424 = vmatmul.bf16.gmra.mxu0 %v237
    %v425 = vpop.f32.mrf.mxu0
    %v426 = vadd.f32 %v168, %v425
    %v427 = vpop.f32.mrf.mxu0
    %428 = vdwg.mxu0
    %429 = vmatpush.bf16.msra.mxu0 0
    %430 = vmatpush.bf16.msra.mxu0 0
    %431 = vmatpush.bf16.msra.mxu0 0
    %432 = vmatpush.bf16.msra.mxu0 0
    %433 = vmatpush.bf16.msra.mxu0 0
    %434 = vmatpush.bf16.msra.mxu0 0
    %435 = vmatpush.bf16.msra.mxu0 0
    %436 = vmatpush.bf16.msra.mxu0 %v256
    %437 = vmatmul.bf16.gmra.mxu0 %v225
    %v438 = vpop.f32.mrf.mxu0
    %v439 = vadd.f32 %v169, %v438
    %v440 = vpop.f32.mrf.mxu0
    %v441 = vadd.f32 %v169, %v440
    %442 = vmatmul.bf16.gmra.mxu0 %v228
    %v443 = vpop.f32.mrf.mxu0
    %v444 = vadd.f32 %v169, %v443
    %v445 = vpop.f32.mrf.mxu0
    %v446 = vadd.f32 %v169, %v445
    %447 = vmatmul.bf16.gmra.mxu0 %v231
    %v448 = vpop.f32.mrf.mxu0
    %v449 = vadd.f32 %v169, %v448
    %v450 = vpop.f32.mrf.mxu0
    %v451 = vadd.f32 %v169, %v450
    %452 = vmatmul.bf16.gmra.mxu0 %v234
    %v453 = vpop.f32.mrf.mxu0
    %v454 = vadd.f32 %v169, %v453
    %v455 = vpop.f32.mrf.mxu0
    %v456 = vadd.f32 %v169, %v455
    %457 = vmatmul.bf16.gmra.mxu0 %v237
    %v458 = vpop.f32.mrf.mxu0
    %v459 = vadd.f32 %v169, %v458
    %v460 = vpop.f32.mrf.mxu0
    %461 = vdwg.mxu0
    %462 = vmatpush.bf16.msra.mxu0 0
    %463 = vmatpush.bf16.msra.mxu0 0
    %464 = vmatpush.bf16.msra.mxu0 0
    %465 = vmatpush.bf16.msra.mxu0 0
    %466 = vmatpush.bf16.msra.mxu0 0
    %467 = vmatpush.bf16.msra.mxu0 0
    %468 = vmatpush.bf16.msra.mxu0 0
    %469 = vmatpush.bf16.msra.mxu0 %v259
    %470 = vmatmul.bf16.gmra.mxu0 %v225
    %v471 = vpop.f32.mrf.mxu0
    %v472 = vadd.f32 %v170, %v471
    %v473 = vpop.f32.mrf.mxu0
    %v474 = vadd.f32 %v170, %v473
    %475 = vmatmul.bf16.gmra.mxu0 %v228
    %v476 = vpop.f32.mrf.mxu0
    %v477 = vadd.f32 %v170, %v476
    %v478 = vpop.f32.mrf.mxu0
    %v479 = vadd.f32 %v170, %v478
    %480 = vmatmul.bf16.gmra.mxu0 %v231
    %v481 = vpop.f32.mrf.mxu0
    %v482 = vadd.f32 %v170, %v481
    %v483 = vpop.f32.mrf.mxu0
    %v484 = vadd.f32 %v170, %v483
    %485 = vmatmul.bf16.gmra.mxu0 %v234
    %v486 = vpop.f32.mrf.mxu0
    %v487 = vadd.f32 %v170, %v486
    %v488 = vpop.f32.mrf.mxu0
    %v489 = vadd.f32 %v170, %v488
    %490 = vmatmul.bf16.gmra.mxu0 %v237
    %v491 = vpop.f32.mrf.mxu0
    %v492 = vadd.f32 %v170, %v491
    %v493 = vpop.f32.mrf.mxu0
    %494 = vdwg.mxu0
    %495 = vmatpush.bf16.msra.mxu0 0
    %496 = vmatpush.bf16.msra.mxu0 0
    %497 = vmatpush.bf16.msra.mxu0 0
    %498 = vmatpush.bf16.msra.mxu0 0
    %499 = vmatpush.bf16.msra.mxu0 0
    %500 = vmatpush.bf16.msra.mxu0 0
    %501 = vmatpush.bf16.msra.mxu0 0
    %502 = vmatpush.bf16.msra.mxu0 %v262
    %503 = vmatmul.bf16.gmra.mxu0 %v225
    %v504 = vpop.f32.mrf.mxu0
    %v505 = vadd.f32 %v171, %v504
    %v506 = vpop.f32.mrf.mxu0
    %v507 = vadd.f32 %v171, %v506
    %508 = vmatmul.bf16.gmra.mxu0 %v228
    %v509 = vpop.f32.mrf.mxu0
    %v510 = vadd.f32 %v171, %v509
    %v511 = vpop.f32.mrf.mxu0
    %v512 = vadd.f32 %v171, %v511
    %513 = vmatmul.bf16.gmra.mxu0 %v231
    %v514 = vpop.f32.mrf.mxu0
    %v515 = vadd.f32 %v171, %v514
    %v516 = vpop.f32.mrf.mxu0
    %v517 = vadd.f32 %v171, %v516
    %518 = vmatmul.bf16.gmra.mxu0 %v234
    %v519 = vpop.f32.mrf.mxu0
    %v520 = vadd.f32 %v171, %v519
    %v521 = vpop.f32.mrf.mxu0
    %v522 = vadd.f32 %v171, %v521
    %523 = vmatmul.bf16.gmra.mxu0 %v237
    %v524 = vpop.f32.mrf.mxu0
    %v525 = vadd.f32 %v171, %v524
    %v526 = vpop.f32.mrf.mxu0
    %527 = vdwg.mxu0
    %v528 = vmax.f32 %v274, 0.0
    %v529 = vmax.f32 %v307, 0.0
    %v530 = vmax.f32 %v340, 0.0
    %v531 = vmax.f32 %v373, 0.0
    %v532 = vmax.f32 %v406, 0.0
    %v533 = vmax.f32 %v439, 0.0
    %v534 = vmax.f32 %v472, 0.0
    %v535 = vmax.f32 %v505, 0.0
    %v536 = vmax.f32 %v276, 0.0
    %v537 = vmax.f32 %v309, 0.0
    %v538 = vmax.f32 %v342, 0.0
    %v539 = vmax.f32 %v375, 0.0
    %v540 = vmax.f32 %v408, 0.0
    %v541 = vmax.f32 %v441, 0.0
    %v542 = vmax.f32 %v474, 0.0
    %v543 = vmax.f32 %v507, 0.0
    %v544 = vmax.f32 %v279, 0.0
    %v545 = vmax.f32 %v312, 0.0
    %v546 = vmax.f32 %v345, 0.0
    %v547 = vmax.f32 %v378, 0.0
    %v548 = vmax.f32 %v411, 0.0
    %v549 = vmax.f32 %v444, 0.0
    %v550 = vmax.f32 %v477, 0.0
    %v551 = vmax.f32 %v510, 0.0
    %v552 = vmax.f32 %v281, 0.0
    %v553 = vmax.f32 %v314, 0.0
    %v554 = vmax.f32 %v347, 0.0
    %v555 = vmax.f32 %v380, 0.0
    %v556 = vmax.f32 %v413, 0.0
    %v557 = vmax.f32 %v446, 0.0
    %v558 = vmax.f32 %v479, 0.0
    %v559 = vmax.f32 %v512, 0.0
    %v560 = vmax.f32 %v284, 0.0
    %v561 = vmax.f32 %v317, 0.0
    %v562 = vmax.f32 %v350, 0.0
    %v563 = vmax.f32 %v383, 0.0
    %v564 = vmax.f32 %v416, 0.0
    %v565 = vmax.f32 %v449, 0.0
    %v566 = vmax.f32 %v482, 0.0
    %v567 = vmax.f32 %v515, 0.0
    %v568 = vmax.f32 %v286, 0.0
    %v569 = vmax.f32 %v319, 0.0
    %v570 = vmax.f32 %v352, 0.0
    %v571 = vmax.f32 %v385, 0.0
    %v572 = vmax.f32 %v418, 0.0
    %v573 = vmax.f32 %v451, 0.0
    %v574 = vmax.f32 %v484, 0.0
    %v575 = vmax.f32 %v517, 0.0
    %v576 = vmax.f32 %v289, 0.0
    %v577 = vmax.f32 %v322, 0.0
    %v578 = vmax.f32 %v355, 0.0
    %v579 = vmax.f32 %v388, 0.0
    %v580 = vmax.f32 %v421, 0.0
    %v581 = vmax.f32 %v454, 0.0
    %v582 = vmax.f32 %v487, 0.0
    %v583 = vmax.f32 %v520, 0.0
    %v584 = vmax.f32 %v291, 0.0
    %v585 = vmax.f32 %v324, 0.0
    %v586 = vmax.f32 %v357, 0.0
    %v587 = vmax.f32 %v390, 0.0
    %v588 = vmax.f32 %v423, 0.0
    %v589 = vmax.f32 %v456, 0.0
    %v590 = vmax.f32 %v489, 0.0
    %v591 = vmax.f32 %v522, 0.0
    %v592 = vmax.f32 %v294, 0.0
    %v593 = vmax.f32 %v327, 0.0
    %v594 = vmax.f32 %v360, 0.0
    %v595 = vmax.f32 %v393, 0.0
    %v596 = vmax.f32 %v426, 0.0
    %v597 = vmax.f32 %v459, 0.0
    %v598 = vmax.f32 %v492, 0.0
    %v599 = vmax.f32 %v525, 0.0
    %v600 = vpack.c.bf16 %v536, %v528
    %v601 = vpack.c.bf16 %v537, %v529
    %v602 = vpack.c.bf16 %v538, %v530
    %v603 = vpack.c.bf16 %v539, %v531
    %v604 = vpack.c.bf16 %v540, %v532
    %v605 = vpack.c.bf16 %v541, %v533
    %v606 = vpack.c.bf16 %v542, %v534
    %v607 = vpack.c.bf16 %v543, %v535
    %v608 = vpack.c.bf16 %v552, %v544
    %v609 = vpack.c.bf16 %v553, %v545
    %v610 = vpack.c.bf16 %v554, %v546
    %v611 = vpack.c.bf16 %v555, %v547
    %v612 = vpack.c.bf16 %v556, %v548
    %v613 = vpack.c.bf16 %v557, %v549
    %v614 = vpack.c.bf16 %v558, %v550
    %v615 = vpack.c.bf16 %v559, %v551
    %v616 = vpack.c.bf16 %v568, %v560
    %v617 = vpack.c.bf16 %v569, %v561
    %v618 = vpack.c.bf16 %v570, %v562
    %v619 = vpack.c.bf16 %v571, %v563
    %v620 = vpack.c.bf16 %v572, %v564
    %v621 = vpack.c.bf16 %v573, %v565
    %v622 = vpack.c.bf16 %v574, %v566
    %v623 = vpack.c.bf16 %v575, %v567
    %v624 = vpack.c.bf16 %v584, %v576
    %v625 = vpack.c.bf16 %v585, %v577
    %v626 = vpack.c.bf16 %v586, %v578
    %v627 = vpack.c.bf16 %v587, %v579
    %v628 = vpack.c.bf16 %v588, %v580
    %v629 = vpack.c.bf16 %v589, %v581
    %v630 = vpack.c.bf16 %v590, %v582
    %v631 = vpack.c.bf16 %v591, %v583
    %v632 = vpack.c.bf16 %v592, %v592
    %v633 = vpack.c.bf16 %v593, %v593
    %v634 = vpack.c.bf16 %v594, %v594
    %v635 = vpack.c.bf16 %v595, %v595
    %v636 = vpack.c.bf16 %v596, %v596
    %v637 = vpack.c.bf16 %v597, %v597
    %v638 = vpack.c.bf16 %v598, %v598
    %v639 = vpack.c.bf16 %v599, %v599
    %v640 = vld [vmem:[#allocation7] sm:$0xff]
    %v641 = vld [vmem:[#allocation7 + $0x8] sm:$0xff]
    %v642 = vld [vmem:[#allocation7 + $0x10] sm:$0xff]
    %v643 = vld [vmem:[#allocation7 + $0x18] sm:$0xff]
    %v644 = vld [vmem:[#allocation7 + $0x20] sm:$0xff]
    %v645 = vld [vmem:[#allocation7 + $0x28] sm:$0xff]
    %v646 = vld [vmem:[#allocation7 + $0x30] sm:$0xff]
    %v647 = vld [vmem:[#allocation7 + $0x38] sm:$0xff]
    %v648 = vld [vmem:[#allocation7 + $0x40] sm:$0xff]
    %v649 = vld [vmem:[#allocation7 + $0x48] sm:$0xff]
    %v650 = vld [vmem:[#allocation7 + $0x50] sm:$0xff]
    %v651 = vld [vmem:[#allocation7 + $0x58] sm:$0xff]
    %v652 = vld [vmem:[#allocation7 + $0x60] sm:$0xff]
    %v653 = vld [vmem:[#allocation7 + $0x68] sm:$0xff]
    %v654 = vld [vmem:[#allocation7 + $0x70] sm:$0xff]
    %v655 = vld [vmem:[#allocation7 + $0x78] sm:$0xff]
    %v656 = vld [vmem:[#allocation7 + $0x80] sm:$0xff]
    %v657 = vld [vmem:[#allocation7 + $0x88] sm:$0xff]
    %v658 = vld [vmem:[#allocation7 + $0x90] sm:$0xff]
    %v659 = vld [vmem:[#allocation7 + $0x98] sm:$0xff]
    %v660 = vld [vmem:[#allocation7 + $0xa0] sm:$0xff]
    %v661 = vld [vmem:[#allocation7 + $0xa8] sm:$0xff]
    %v662 = vld [vmem:[#allocation7 + $0xb0] sm:$0xff]
    %v663 = vld [vmem:[#allocation7 + $0xb8] sm:$0xff]
    %v664 = vld [vmem:[#allocation7 + $0xc0] sm:$0xff]
    %v665 = vld [vmem:[#allocation7 + $0xc8] sm:$0xff]
    %v666 = vld [vmem:[#allocation7 + $0xd0] sm:$0xff]
    %v667 = vld [vmem:[#allocation7 + $0xd8] sm:$0xff]
    %v668 = vld [vmem:[#allocation7 + $0xe0] sm:$0xff]
    %v669 = vld [vmem:[#allocation7 + $0xe8] sm:$0xff]
    %v670 = vld [vmem:[#allocation7 + $0xf0] sm:$0xff]
    %v671 = vld [vmem:[#allocation7 + $0xf8] sm:$0xff]
    %v672 = vld [vmem:[#allocation7 + $0x100] sm:$0xff]
    %v673 = vld [vmem:[#allocation7 + $0x108] sm:$0xff]
    %v674 = vld [vmem:[#allocation7 + $0x110] sm:$0xff]
    %v675 = vld [vmem:[#allocation7 + $0x118] sm:$0xff]
    %v676 = vld [vmem:[#allocation7 + $0x120] sm:$0xff]
    %v677 = vld [vmem:[#allocation7 + $0x128] sm:$0xff]
    %v678 = vld [vmem:[#allocation7 + $0x130] sm:$0xff]
    %v679 = vld [vmem:[#allocation7 + $0x138] sm:$0xff]
    %v680 = vld [vmem:[#allocation7 + $0x140] sm:$0xff]
    %v681 = vld [vmem:[#allocation7 + $0x148] sm:$0xff]
    %v682 = vld [vmem:[#allocation7 + $0x150] sm:$0xff]
    %v683 = vld [vmem:[#allocation7 + $0x158] sm:$0xff]
    %v684 = vld [vmem:[#allocation7 + $0x160] sm:$0xff]
    %v685 = vld [vmem:[#allocation7 + $0x168] sm:$0xff]
    %v686 = vld [vmem:[#allocation7 + $0x170] sm:$0xff]
    %v687 = vld [vmem:[#allocation7 + $0x178] sm:$0xff]
    %v688 = vld [vmem:[#allocation7 + $0x180] sm:$0xff]
    %v689 = vld [vmem:[#allocation7 + $0x188] sm:$0xff]
    %v690 = vld [vmem:[#allocation7 + $0x190] sm:$0xff]
    %v691 = vld [vmem:[#allocation7 + $0x198] sm:$0xff]
    %v692 = vld [vmem:[#allocation7 + $0x1a0] sm:$0xff]
    %v693 = vld [vmem:[#allocation7 + $0x1a8] sm:$0xff]
    %v694 = vld [vmem:[#allocation7 + $0x1b0] sm:$0xff]
    %v695 = vld [vmem:[#allocation7 + $0x1b8] sm:$0xff]
    %v696 = vld [vmem:[#allocation7 + $0x1c0] sm:$0xff]
    %v697 = vld [vmem:[#allocation7 + $0x1c8] sm:$0xff]
    %v698 = vld [vmem:[#allocation7 + $0x1d0] sm:$0xff]
    %v699 = vld [vmem:[#allocation7 + $0x1d8] sm:$0xff]
    %v700 = vld [vmem:[#allocation7 + $0x1e0] sm:$0xff]
    %v701 = vld [vmem:[#allocation7 + $0x1e8] sm:$0xff]
    %v702 = vld [vmem:[#allocation7 + $0x1f0] sm:$0xff]
    %v703 = vld [vmem:[#allocation7 + $0x1f8] sm:$0xff]
    %v704 = vld [vmem:[#allocation7 + $0x200] sm:$0xff]
    %v705 = vld [vmem:[#allocation7 + $0x208] sm:$0xff]
    %v706 = vld [vmem:[#allocation7 + $0x210] sm:$0xff]
    %v707 = vld [vmem:[#allocation7 + $0x218] sm:$0xff]
    %v708 = vld [vmem:[#allocation7 + $0x220] sm:$0xff]
    %v709 = vld [vmem:[#allocation7 + $0x228] sm:$0xff]
    %v710 = vld [vmem:[#allocation7 + $0x230] sm:$0xff]
    %v711 = vld [vmem:[#allocation7 + $0x238] sm:$0xff]
    %v712 = vld [vmem:[#allocation7 + $0x240] sm:$0xff]
    %v713 = vld [vmem:[#allocation7 + $0x248] sm:$0xff]
    %v714 = vld [vmem:[#allocation7 + $0x250] sm:$0xff]
    %v715 = vld [vmem:[#allocation7 + $0x258] sm:$0xff]
    %v716 = vld [vmem:[#allocation7 + $0x260] sm:$0xff]
    %v717 = vld [vmem:[#allocation7 + $0x268] sm:$0xff]
    %v718 = vld [vmem:[#allocation7 + $0x270] sm:$0xff]
    %v719 = vld [vmem:[#allocation7 + $0x278] sm:$0xff]
    %v720 = vld [vmem:[#allocation7 + $0x280] sm:$0xff]
    %v721 = vld [vmem:[#allocation7 + $0x288] sm:$0xff]
    %v722 = vld [vmem:[#allocation7 + $0x290] sm:$0xff]
    %v723 = vld [vmem:[#allocation7 + $0x298] sm:$0xff]
    %v724 = vld [vmem:[#allocation7 + $0x2a0] sm:$0xff]
    %v725 = vld [vmem:[#allocation7 + $0x2a8] sm:$0xff]
    %v726 = vld [vmem:[#allocation7 + $0x2b0] sm:$0xff]
    %v727 = vld [vmem:[#allocation7 + $0x2b8] sm:$0xff]
    %v728 = vld [vmem:[#allocation7 + $0x2c0] sm:$0xff]
    %v729 = vld [vmem:[#allocation7 + $0x2c8] sm:$0xff]
    %v730 = vld [vmem:[#allocation7 + $0x2d0] sm:$0xff]
    %v731 = vld [vmem:[#allocation7 + $0x2d8] sm:$0xff]
    %v732 = vld [vmem:[#allocation7 + $0x2e0] sm:$0xff]
    %v733 = vld [vmem:[#allocation7 + $0x2e8] sm:$0xff]
    %v734 = vld [vmem:[#allocation7 + $0x2f0] sm:$0xff]
    %v735 = vld [vmem:[#allocation7 + $0x2f8] sm:$0xff]
    %v736 = vld [vmem:[#allocation7 + $0x300] sm:$0xff]
    %v737 = vld [vmem:[#allocation7 + $0x308] sm:$0xff]
    %v738 = vld [vmem:[#allocation7 + $0x310] sm:$0xff]
    %v739 = vld [vmem:[#allocation7 + $0x318] sm:$0xff]
    %v740 = vld [vmem:[#allocation7 + $0x320] sm:$0xff]
    %v741 = vld [vmem:[#allocation7 + $0x328] sm:$0xff]
    %v742 = vld [vmem:[#allocation7 + $0x330] sm:$0xff]
    %v743 = vld [vmem:[#allocation7 + $0x338] sm:$0xff]
    %v744 = vld [vmem:[#allocation7 + $0x340] sm:$0xff]
    %v745 = vld [vmem:[#allocation7 + $0x348] sm:$0xff]
    %v746 = vld [vmem:[#allocation7 + $0x350] sm:$0xff]
    %v747 = vld [vmem:[#allocation7 + $0x358] sm:$0xff]
    %v748 = vld [vmem:[#allocation7 + $0x360] sm:$0xff]
    %v749 = vld [vmem:[#allocation7 + $0x368] sm:$0xff]
    %v750 = vld [vmem:[#allocation7 + $0x370] sm:$0xff]
    %v751 = vld [vmem:[#allocation7 + $0x378] sm:$0xff]
    %v752 = vld [vmem:[#allocation7 + $0x380] sm:$0xff]
    %v753 = vld [vmem:[#allocation7 + $0x388] sm:$0xff]
    %v754 = vld [vmem:[#allocation7 + $0x390] sm:$0xff]
    %v755 = vld [vmem:[#allocation7 + $0x398] sm:$0xff]
    %v756 = vld [vmem:[#allocation7 + $0x3a0] sm:$0xff]
    %v757 = vld [vmem:[#allocation7 + $0x3a8] sm:$0xff]
    %v758 = vld [vmem:[#allocation7 + $0x3b0] sm:$0xff]
    %v759 = vld [vmem:[#allocation7 + $0x3b8] sm:$0xff]
    %v760 = vld [vmem:[#allocation7 + $0x3c0] sm:$0xff]
    %v761 = vld [vmem:[#allocation7 + $0x3c8] sm:$0xff]
    %v762 = vld [vmem:[#allocation7 + $0x3d0] sm:$0xff]
    %v763 = vld [vmem:[#allocation7 + $0x3d8] sm:$0xff]
    %v764 = vld [vmem:[#allocation7 + $0x3e0] sm:$0xff]
    %v765 = vld [vmem:[#allocation7 + $0x3e8] sm:$0xff]
    %v766 = vld [vmem:[#allocation7 + $0x3f0] sm:$0xff]
    %v767 = vld [vmem:[#allocation7 + $0x3f8] sm:$0xff]
    %v768 = vld [vmem:[#allocation7 + $0x400] sm:$0xff]
    %v769 = vld [vmem:[#allocation7 + $0x408] sm:$0xff]
    %v770 = vld [vmem:[#allocation7 + $0x410] sm:$0xff]
    %v771 = vld [vmem:[#allocation7 + $0x418] sm:$0xff]
    %v772 = vld [vmem:[#allocation7 + $0x420] sm:$0xff]
    %v773 = vld [vmem:[#allocation7 + $0x428] sm:$0xff]
    %v774 = vld [vmem:[#allocation7 + $0x430] sm:$0xff]
    %v775 = vld [vmem:[#allocation7 + $0x438] sm:$0xff]
    %v776 = vld [vmem:[#allocation7 + $0x440] sm:$0xff]
    %v777 = vld [vmem:[#allocation7 + $0x448] sm:$0xff]
    %v778 = vld [vmem:[#allocation7 + $0x450] sm:$0xff]
    %v779 = vld [vmem:[#allocation7 + $0x458] sm:$0xff]
    %v780 = vld [vmem:[#allocation7 + $0x460] sm:$0xff]
    %v781 = vld [vmem:[#allocation7 + $0x468] sm:$0xff]
    %v782 = vld [vmem:[#allocation7 + $0x470] sm:$0xff]
    %v783 = vld [vmem:[#allocation7 + $0x478] sm:$0xff]
    %v784 = vld [vmem:[#allocation7 + $0x480] sm:$0xff]
    %v785 = vld [vmem:[#allocation7 + $0x488] sm:$0xff]
    %v786 = vld [vmem:[#allocation7 + $0x490] sm:$0xff]
    %v787 = vld [vmem:[#allocation7 + $0x498] sm:$0xff]
    %v788 = vld [vmem:[#allocation7 + $0x4a0] sm:$0xff]
    %v789 = vld [vmem:[#allocation7 + $0x4a8] sm:$0xff]
    %v790 = vld [vmem:[#allocation7 + $0x4b0] sm:$0xff]
    %v791 = vld [vmem:[#allocation7 + $0x4b8] sm:$0xff]
    %v792 = vld [vmem:[#allocation7 + $0x4c0] sm:$0xff]
    %v793 = vld [vmem:[#allocation7 + $0x4c8] sm:$0xff]
    %v794 = vld [vmem:[#allocation7 + $0x4d0] sm:$0xff]
    %v795 = vld [vmem:[#allocation7 + $0x4d8] sm:$0xff]
    %v796 = vld [vmem:[#allocation7 + $0x4e0] sm:$0xff]
    %v797 = vld [vmem:[#allocation7 + $0x4e8] sm:$0xff]
    %v798 = vld [vmem:[#allocation7 + $0x4f0] sm:$0xff]
    %v799 = vld [vmem:[#allocation7 + $0x4f8] sm:$0xff]
    %v800 = vld [vmem:[#allocation7 + $0x500] sm:$0xff]
    %v801 = vld [vmem:[#allocation7 + $0x508] sm:$0xff]
    %v802 = vld [vmem:[#allocation7 + $0x510] sm:$0xff]
    %v803 = vld [vmem:[#allocation7 + $0x518] sm:$0xff]
    %v804 = vld [vmem:[#allocation7 + $0x520] sm:$0xff]
    %v805 = vld [vmem:[#allocation7 + $0x528] sm:$0xff]
    %v806 = vld [vmem:[#allocation7 + $0x530] sm:$0xff]
    %v807 = vld [vmem:[#allocation7 + $0x538] sm:$0xff]
    %v808 = vld [vmem:[#allocation7 + $0x540] sm:$0xff]
    %v809 = vld [vmem:[#allocation7 + $0x548] sm:$0xff]
    %v810 = vld [vmem:[#allocation7 + $0x550] sm:$0xff]
    %v811 = vld [vmem:[#allocation7 + $0x558] sm:$0xff]
    %v812 = vld [vmem:[#allocation7 + $0x560] sm:$0xff]
    %v813 = vld [vmem:[#allocation7 + $0x568] sm:$0xff]
    %v814 = vld [vmem:[#allocation7 + $0x570] sm:$0xff]
    %v815 = vld [vmem:[#allocation7 + $0x578] sm:$0xff]
    %v816 = vld [vmem:[#allocation7 + $0x580] sm:$0xff]
    %v817 = vld [vmem:[#allocation7 + $0x588] sm:$0xff]
    %v818 = vld [vmem:[#allocation7 + $0x590] sm:$0xff]
    %v819 = vld [vmem:[#allocation7 + $0x598] sm:$0xff]
    %v820 = vld [vmem:[#allocation7 + $0x5a0] sm:$0xff]
    %v821 = vld [vmem:[#allocation7 + $0x5a8] sm:$0xff]
    %v822 = vld [vmem:[#allocation7 + $0x5b0] sm:$0xff]
    %v823 = vld [vmem:[#allocation7 + $0x5b8] sm:$0xff]
    %v824 = vld [vmem:[#allocation7 + $0x5c0] sm:$0xff]
    %v825 = vld [vmem:[#allocation7 + $0x5c8] sm:$0xff]
    %v826 = vld [vmem:[#allocation7 + $0x5d0] sm:$0xff]
    %v827 = vld [vmem:[#allocation7 + $0x5d8] sm:$0xff]
    %v828 = vld [vmem:[#allocation7 + $0x5e0] sm:$0xff]
    %v829 = vld [vmem:[#allocation7 + $0x5e8] sm:$0xff]
    %v830 = vld [vmem:[#allocation7 + $0x5f0] sm:$0xff]
    %v831 = vld [vmem:[#allocation7 + $0x5f8] sm:$0xff]
    %v832 = vld [vmem:[#allocation7 + $0x600] sm:$0xff]
    %v833 = vld [vmem:[#allocation7 + $0x608] sm:$0xff]
    %v834 = vld [vmem:[#allocation7 + $0x610] sm:$0xff]
    %v835 = vld [vmem:[#allocation7 + $0x618] sm:$0xff]
    %v836 = vld [vmem:[#allocation7 + $0x620] sm:$0xff]
    %v837 = vld [vmem:[#allocation7 + $0x628] sm:$0xff]
    %v838 = vld [vmem:[#allocation7 + $0x630] sm:$0xff]
    %v839 = vld [vmem:[#allocation7 + $0x638] sm:$0xff]
    %v840 = vld [vmem:[#allocation7 + $0x640] sm:$0xff]
    %v841 = vld [vmem:[#allocation7 + $0x648] sm:$0xff]
    %v842 = vld [vmem:[#allocation7 + $0x650] sm:$0xff]
    %v843 = vld [vmem:[#allocation7 + $0x658] sm:$0xff]
    %v844 = vld [vmem:[#allocation7 + $0x660] sm:$0xff]
    %v845 = vld [vmem:[#allocation7 + $0x668] sm:$0xff]
    %v846 = vld [vmem:[#allocation7 + $0x670] sm:$0xff]
    %v847 = vld [vmem:[#allocation7 + $0x678] sm:$0xff]
    %v848 = vld [vmem:[#allocation7 + $0x680] sm:$0xff]
    %v849 = vld [vmem:[#allocation7 + $0x688] sm:$0xff]
    %v850 = vld [vmem:[#allocation7 + $0x690] sm:$0xff]
    %v851 = vld [vmem:[#allocation7 + $0x698] sm:$0xff]
    %v852 = vld [vmem:[#allocation7 + $0x6a0] sm:$0xff]
    %v853 = vld [vmem:[#allocation7 + $0x6a8] sm:$0xff]
    %v854 = vld [vmem:[#allocation7 + $0x6b0] sm:$0xff]
    %v855 = vld [vmem:[#allocation7 + $0x6b8] sm:$0xff]
    %v856 = vld [vmem:[#allocation7 + $0x6c0] sm:$0xff]
    %v857 = vld [vmem:[#allocation7 + $0x6c8] sm:$0xff]
    %v858 = vld [vmem:[#allocation7 + $0x6d0] sm:$0xff]
    %v859 = vld [vmem:[#allocation7 + $0x6d8] sm:$0xff]
    %v860 = vld [vmem:[#allocation7 + $0x6e0] sm:$0xff]
    %v861 = vld [vmem:[#allocation7 + $0x6e8] sm:$0xff]
    %v862 = vld [vmem:[#allocation7 + $0x6f0] sm:$0xff]
    %v863 = vld [vmem:[#allocation7 + $0x6f8] sm:$0xff]
    %v864 = vld [vmem:[#allocation7 + $0x700] sm:$0xff]
    %v865 = vld [vmem:[#allocation7 + $0x708] sm:$0xff]
    %v866 = vld [vmem:[#allocation7 + $0x710] sm:$0xff]
    %v867 = vld [vmem:[#allocation7 + $0x718] sm:$0xff]
    %v868 = vld [vmem:[#allocation7 + $0x720] sm:$0xff]
    %v869 = vld [vmem:[#allocation7 + $0x728] sm:$0xff]
    %v870 = vld [vmem:[#allocation7 + $0x730] sm:$0xff]
    %v871 = vld [vmem:[#allocation7 + $0x738] sm:$0xff]
    %v872 = vld [vmem:[#allocation7 + $0x740] sm:$0xff]
    %v873 = vld [vmem:[#allocation7 + $0x748] sm:$0xff]
    %v874 = vld [vmem:[#allocation7 + $0x750] sm:$0xff]
    %v875 = vld [vmem:[#allocation7 + $0x758] sm:$0xff]
    %v876 = vld [vmem:[#allocation7 + $0x760] sm:$0xff]
    %v877 = vld [vmem:[#allocation7 + $0x768] sm:$0xff]
    %v878 = vld [vmem:[#allocation7 + $0x770] sm:$0xff]
    %v879 = vld [vmem:[#allocation7 + $0x778] sm:$0xff]
    %v880 = vld [vmem:[#allocation7 + $0x780] sm:$0xff]
    %v881 = vld [vmem:[#allocation7 + $0x788] sm:$0xff]
    %v882 = vld [vmem:[#allocation7 + $0x790] sm:$0xff]
    %v883 = vld [vmem:[#allocation7 + $0x798] sm:$0xff]
    %v884 = vld [vmem:[#allocation7 + $0x7a0] sm:$0xff]
    %v885 = vld [vmem:[#allocation7 + $0x7a8] sm:$0xff]
    %v886 = vld [vmem:[#allocation7 + $0x7b0] sm:$0xff]
    %v887 = vld [vmem:[#allocation7 + $0x7b8] sm:$0xff]
    %v888 = vld [vmem:[#allocation7 + $0x7c0] sm:$0xff]
    %v889 = vld [vmem:[#allocation7 + $0x7c8] sm:$0xff]
    %v890 = vld [vmem:[#allocation7 + $0x7d0] sm:$0xff]
    %v891 = vld [vmem:[#allocation7 + $0x7d8] sm:$0xff]
    %v892 = vld [vmem:[#allocation7 + $0x7e0] sm:$0xff]
    %v893 = vld [vmem:[#allocation7 + $0x7e8] sm:$0xff]
    %v894 = vld [vmem:[#allocation7 + $0x7f0] sm:$0xff]
    %v895 = vld [vmem:[#allocation7 + $0x7f8] sm:$0xff]
    %v896 = vld [vmem:[#allocation7 + $0x800] sm:$0xff]
    %v897 = vld [vmem:[#allocation7 + $0x808] sm:$0xff]
    %v898 = vld [vmem:[#allocation7 + $0x810] sm:$0xff]
    %v899 = vld [vmem:[#allocation7 + $0x818] sm:$0xff]
    %v900 = vld [vmem:[#allocation7 + $0x820] sm:$0xff]
    %v901 = vld [vmem:[#allocation7 + $0x828] sm:$0xff]
    %v902 = vld [vmem:[#allocation7 + $0x830] sm:$0xff]
    %v903 = vld [vmem:[#allocation7 + $0x838] sm:$0xff]
    %v904 = vld [vmem:[#allocation7 + $0x840] sm:$0xff]
    %v905 = vld [vmem:[#allocation7 + $0x848] sm:$0xff]
    %v906 = vld [vmem:[#allocation7 + $0x850] sm:$0xff]
    %v907 = vld [vmem:[#allocation7 + $0x858] sm:$0xff]
    %v908 = vld [vmem:[#allocation7 + $0x860] sm:$0xff]
    %v909 = vld [vmem:[#allocation7 + $0x868] sm:$0xff]
    %v910 = vld [vmem:[#allocation7 + $0x870] sm:$0xff]
    %v911 = vld [vmem:[#allocation7 + $0x878] sm:$0xff]
    %v912 = vld [vmem:[#allocation7 + $0x880] sm:$0xff]
    %v913 = vld [vmem:[#allocation7 + $0x888] sm:$0xff]
    %v914 = vld [vmem:[#allocation7 + $0x890] sm:$0xff]
    %v915 = vld [vmem:[#allocation7 + $0x898] sm:$0xff]
    %v916 = vld [vmem:[#allocation7 + $0x8a0] sm:$0xff]
    %v917 = vld [vmem:[#allocation7 + $0x8a8] sm:$0xff]
    %v918 = vld [vmem:[#allocation7 + $0x8b0] sm:$0xff]
    %v919 = vld [vmem:[#allocation7 + $0x8b8] sm:$0xff]
    %v920 = vld [vmem:[#allocation7 + $0x8c0] sm:$0xff]
    %v921 = vld [vmem:[#allocation7 + $0x8c8] sm:$0xff]
    %v922 = vld [vmem:[#allocation7 + $0x8d0] sm:$0xff]
    %v923 = vld [vmem:[#allocation7 + $0x8d8] sm:$0xff]
    %v924 = vld [vmem:[#allocation7 + $0x8e0] sm:$0xff]
    %v925 = vld [vmem:[#allocation7 + $0x8e8] sm:$0xff]
    %v926 = vld [vmem:[#allocation7 + $0x8f0] sm:$0xff]
    %v927 = vld [vmem:[#allocation7 + $0x8f8] sm:$0xff]
    %v928 = vld [vmem:[#allocation7 + $0x900] sm:$0xff]
    %v929 = vld [vmem:[#allocation7 + $0x908] sm:$0xff]
    %v930 = vld [vmem:[#allocation7 + $0x910] sm:$0xff]
    %v931 = vld [vmem:[#allocation7 + $0x918] sm:$0xff]
    %v932 = vld [vmem:[#allocation7 + $0x920] sm:$0xff]
    %v933 = vld [vmem:[#allocation7 + $0x928] sm:$0xff]
    %v934 = vld [vmem:[#allocation7 + $0x930] sm:$0xff]
    %v935 = vld [vmem:[#allocation7 + $0x938] sm:$0xff]
    %v936 = vld [vmem:[#allocation7 + $0x940] sm:$0xff]
    %v937 = vld [vmem:[#allocation7 + $0x948] sm:$0xff]
    %v938 = vld [vmem:[#allocation7 + $0x950] sm:$0xff]
    %v939 = vld [vmem:[#allocation7 + $0x958] sm:$0xff]
    %v940 = vld [vmem:[#allocation7 + $0x960] sm:$0xff]
    %v941 = vld [vmem:[#allocation7 + $0x968] sm:$0xff]
    %v942 = vld [vmem:[#allocation7 + $0x970] sm:$0xff]
    %v943 = vld [vmem:[#allocation7 + $0x978] sm:$0xff]
    %v944 = vld [vmem:[#allocation7 + $0x980] sm:$0xff]
    %v945 = vld [vmem:[#allocation7 + $0x988] sm:$0xff]
    %v946 = vld [vmem:[#allocation7 + $0x990] sm:$0xff]
    %v947 = vld [vmem:[#allocation7 + $0x998] sm:$0xff]
    %v948 = vld [vmem:[#allocation7 + $0x9a0] sm:$0xff]
    %v949 = vld [vmem:[#allocation7 + $0x9a8] sm:$0xff]
    %v950 = vld [vmem:[#allocation7 + $0x9b0] sm:$0xff]
    %v951 = vld [vmem:[#allocation7 + $0x9b8] sm:$0xff]
    %v952 = vld [vmem:[#allocation7 + $0x9c0] sm:$0xff]
    %v953 = vld [vmem:[#allocation7 + $0x9c8] sm:$0xff]
    %v954 = vld [vmem:[#allocation7 + $0x9d0] sm:$0xff]
    %v955 = vld [vmem:[#allocation7 + $0x9d8] sm:$0xff]
    %v956 = vld [vmem:[#allocation7 + $0x9e0] sm:$0xff]
    %v957 = vld [vmem:[#allocation7 + $0x9e8] sm:$0xff]
    %v958 = vld [vmem:[#allocation7 + $0x9f0] sm:$0xff]
    %v959 = vld [vmem:[#allocation7 + $0x9f8] sm:$0xff]
    %v960 = vld [vmem:[#allocation7 + $0xa00] sm:$0xff]
    %v961 = vld [vmem:[#allocation7 + $0xa08] sm:$0xff]
    %v962 = vld [vmem:[#allocation7 + $0xa10] sm:$0xff]
    %v963 = vld [vmem:[#allocation7 + $0xa18] sm:$0xff]
    %v964 = vld [vmem:[#allocation7 + $0xa20] sm:$0xff]
    %v965 = vld [vmem:[#allocation7 + $0xa28] sm:$0xff]
    %v966 = vld [vmem:[#allocation7 + $0xa30] sm:$0xff]
    %v967 = vld [vmem:[#allocation7 + $0xa38] sm:$0xff]
    %v968 = vld [vmem:[#allocation7 + $0xa40] sm:$0xff]
    %v969 = vld [vmem:[#allocation7 + $0xa48] sm:$0xff]
    %v970 = vld [vmem:[#allocation7 + $0xa50] sm:$0xff]
    %v971 = vld [vmem:[#allocation7 + $0xa58] sm:$0xff]
    %v972 = vld [vmem:[#allocation7 + $0xa60] sm:$0xff]
    %v973 = vld [vmem:[#allocation7 + $0xa68] sm:$0xff]
    %v974 = vld [vmem:[#allocation7 + $0xa70] sm:$0xff]
    %v975 = vld [vmem:[#allocation7 + $0xa78] sm:$0xff]
    %v976 = vld [vmem:[#allocation7 + $0xa80] sm:$0xff]
    %v977 = vld [vmem:[#allocation7 + $0xa88] sm:$0xff]
    %v978 = vld [vmem:[#allocation7 + $0xa90] sm:$0xff]
    %v979 = vld [vmem:[#allocation7 + $0xa98] sm:$0xff]
    %v980 = vld [vmem:[#allocation7 + $0xaa0] sm:$0xff]
    %v981 = vld [vmem:[#allocation7 + $0xaa8] sm:$0xff]
    %v982 = vld [vmem:[#allocation7 + $0xab0] sm:$0xff]
    %v983 = vld [vmem:[#allocation7 + $0xab8] sm:$0xff]
    %v984 = vld [vmem:[#allocation7 + $0xac0] sm:$0xff]
    %v985 = vld [vmem:[#allocation7 + $0xac8] sm:$0xff]
    %v986 = vld [vmem:[#allocation7 + $0xad0] sm:$0xff]
    %v987 = vld [vmem:[#allocation7 + $0xad8] sm:$0xff]
    %v988 = vld [vmem:[#allocation7 + $0xae0] sm:$0xff]
    %v989 = vld [vmem:[#allocation7 + $0xae8] sm:$0xff]
    %v990 = vld [vmem:[#allocation7 + $0xaf0] sm:$0xff]
    %v991 = vld [vmem:[#allocation7 + $0xaf8] sm:$0xff]
    %v992 = vld [vmem:[#allocation7 + $0xb00] sm:$0xff]
    %v993 = vld [vmem:[#allocation7 + $0xb08] sm:$0xff]
    %v994 = vld [vmem:[#allocation7 + $0xb10] sm:$0xff]
    %v995 = vld [vmem:[#allocation7 + $0xb18] sm:$0xff]
    %v996 = vld [vmem:[#allocation7 + $0xb20] sm:$0xff]
    %v997 = vld [vmem:[#allocation7 + $0xb28] sm:$0xff]
    %v998 = vld [vmem:[#allocation7 + $0xb30] sm:$0xff]
    %v999 = vld [vmem:[#allocation7 + $0xb38] sm:$0xff]
    %v1000 = vld [vmem:[#allocation7 + $0xb40] sm:$0xff]
    %v1001 = vld [vmem:[#allocation7 + $0xb48] sm:$0xff]
    %v1002 = vld [vmem:[#allocation7 + $0xb50] sm:$0xff]
    %v1003 = vld [vmem:[#allocation7 + $0xb58] sm:$0xff]
    %v1004 = vld [vmem:[#allocation7 + $0xb60] sm:$0xff]
    %v1005 = vld [vmem:[#allocation7 + $0xb68] sm:$0xff]
    %v1006 = vld [vmem:[#allocation7 + $0xb70] sm:$0xff]
    %v1007 = vld [vmem:[#allocation7 + $0xb78] sm:$0xff]
    %v1008 = vld [vmem:[#allocation7 + $0xb80] sm:$0xff]
    %v1009 = vld [vmem:[#allocation7 + $0xb88] sm:$0xff]
    %v1010 = vld [vmem:[#allocation7 + $0xb90] sm:$0xff]
    %v1011 = vld [vmem:[#allocation7 + $0xb98] sm:$0xff]
    %v1012 = vld [vmem:[#allocation7 + $0xba0] sm:$0xff]
    %v1013 = vld [vmem:[#allocation7 + $0xba8] sm:$0xff]
    %v1014 = vld [vmem:[#allocation7 + $0xbb0] sm:$0xff]
    %v1015 = vld [vmem:[#allocation7 + $0xbb8] sm:$0xff]
    %v1016 = vld [vmem:[#allocation7 + $0xbc0] sm:$0xff]
    %v1017 = vld [vmem:[#allocation7 + $0xbc8] sm:$0xff]
    %v1018 = vld [vmem:[#allocation7 + $0xbd0] sm:$0xff]
    %v1019 = vld [vmem:[#allocation7 + $0xbd8] sm:$0xff]
    %v1020 = vld [vmem:[#allocation7 + $0xbe0] sm:$0xff]
    %v1021 = vld [vmem:[#allocation7 + $0xbe8] sm:$0xff]
    %v1022 = vld [vmem:[#allocation7 + $0xbf0] sm:$0xff]
    %v1023 = vld [vmem:[#allocation7 + $0xbf8] sm:$0xff]
    %v1024 = vld [vmem:[#allocation7 + $0xc00] sm:$0xff]
    %v1025 = vld [vmem:[#allocation7 + $0xc08] sm:$0xff]
    %v1026 = vld [vmem:[#allocation7 + $0xc10] sm:$0xff]
    %v1027 = vld [vmem:[#allocation7 + $0xc18] sm:$0xff]
    %v1028 = vld [vmem:[#allocation7 + $0xc20] sm:$0xff]
    %v1029 = vld [vmem:[#allocation7 + $0xc28] sm:$0xff]
    %v1030 = vld [vmem:[#allocation7 + $0xc30] sm:$0xff]
    %v1031 = vld [vmem:[#allocation7 + $0xc38] sm:$0xff]
    %v1032 = vld [vmem:[#allocation7 + $0xc40] sm:$0xff]
    %v1033 = vld [vmem:[#allocation7 + $0xc48] sm:$0xff]
    %v1034 = vld [vmem:[#allocation7 + $0xc50] sm:$0xff]
    %v1035 = vld [vmem:[#allocation7 + $0xc58] sm:$0xff]
    %v1036 = vld [vmem:[#allocation7 + $0xc60] sm:$0xff]
    %v1037 = vld [vmem:[#allocation7 + $0xc68] sm:$0xff]
    %v1038 = vld [vmem:[#allocation7 + $0xc70] sm:$0xff]
    %v1039 = vld [vmem:[#allocation7 + $0xc78] sm:$0xff]
    %v1040 = vld [vmem:[#allocation7 + $0xc80] sm:$0xff]
    %v1041 = vld [vmem:[#allocation7 + $0xc88] sm:$0xff]
    %v1042 = vld [vmem:[#allocation7 + $0xc90] sm:$0xff]
    %v1043 = vld [vmem:[#allocation7 + $0xc98] sm:$0xff]
    %v1044 = vld [vmem:[#allocation7 + $0xca0] sm:$0xff]
    %v1045 = vld [vmem:[#allocation7 + $0xca8] sm:$0xff]
    %v1046 = vld [vmem:[#allocation7 + $0xcb0] sm:$0xff]
    %v1047 = vld [vmem:[#allocation7 + $0xcb8] sm:$0xff]
    %v1048 = vld [vmem:[#allocation7 + $0xcc0] sm:$0xff]
    %v1049 = vld [vmem:[#allocation7 + $0xcc8] sm:$0xff]
    %v1050 = vld [vmem:[#allocation7 + $0xcd0] sm:$0xff]
    %v1051 = vld [vmem:[#allocation7 + $0xcd8] sm:$0xff]
    %v1052 = vld [vmem:[#allocation7 + $0xce0] sm:$0xff]
    %v1053 = vld [vmem:[#allocation7 + $0xce8] sm:$0xff]
    %v1054 = vld [vmem:[#allocation7 + $0xcf0] sm:$0xff]
    %v1055 = vld [vmem:[#allocation7 + $0xcf8] sm:$0xff]
    %v1056 = vld [vmem:[#allocation7 + $0xd00] sm:$0xff]
    %v1057 = vld [vmem:[#allocation7 + $0xd08] sm:$0xff]
    %v1058 = vld [vmem:[#allocation7 + $0xd10] sm:$0xff]
    %v1059 = vld [vmem:[#allocation7 + $0xd18] sm:$0xff]
    %v1060 = vld [vmem:[#allocation7 + $0xd20] sm:$0xff]
    %v1061 = vld [vmem:[#allocation7 + $0xd28] sm:$0xff]
    %v1062 = vld [vmem:[#allocation7 + $0xd30] sm:$0xff]
    %v1063 = vld [vmem:[#allocation7 + $0xd38] sm:$0xff]
    %v1064 = vld [vmem:[#allocation7 + $0xd40] sm:$0xff]
    %v1065 = vld [vmem:[#allocation7 + $0xd48] sm:$0xff]
    %v1066 = vld [vmem:[#allocation7 + $0xd50] sm:$0xff]
    %v1067 = vld [vmem:[#allocation7 + $0xd58] sm:$0xff]
    %v1068 = vld [vmem:[#allocation7 + $0xd60] sm:$0xff]
    %v1069 = vld [vmem:[#allocation7 + $0xd68] sm:$0xff]
    %v1070 = vld [vmem:[#allocation7 + $0xd70] sm:$0xff]
    %v1071 = vld [vmem:[#allocation7 + $0xd78] sm:$0xff]
    %v1072 = vld [vmem:[#allocation7 + $0xd80] sm:$0xff]
    %v1073 = vld [vmem:[#allocation7 + $0xd88] sm:$0xff]
    %v1074 = vld [vmem:[#allocation7 + $0xd90] sm:$0xff]
    %v1075 = vld [vmem:[#allocation7 + $0xd98] sm:$0xff]
    %v1076 = vld [vmem:[#allocation7 + $0xda0] sm:$0xff]
    %v1077 = vld [vmem:[#allocation7 + $0xda8] sm:$0xff]
    %v1078 = vld [vmem:[#allocation7 + $0xdb0] sm:$0xff]
    %v1079 = vld [vmem:[#allocation7 + $0xdb8] sm:$0xff]
    %v1080 = vld [vmem:[#allocation7 + $0xdc0] sm:$0xff]
    %v1081 = vld [vmem:[#allocation7 + $0xdc8] sm:$0xff]
    %v1082 = vld [vmem:[#allocation7 + $0xdd0] sm:$0xff]
    %v1083 = vld [vmem:[#allocation7 + $0xdd8] sm:$0xff]
    %v1084 = vld [vmem:[#allocation7 + $0xde0] sm:$0xff]
    %v1085 = vld [vmem:[#allocation7 + $0xde8] sm:$0xff]
    %v1086 = vld [vmem:[#allocation7 + $0xdf0] sm:$0xff]
    %v1087 = vld [vmem:[#allocation7 + $0xdf8] sm:$0xff]
    %v1088 = vld [vmem:[#allocation7 + $0xe00] sm:$0xff]
    %v1089 = vld [vmem:[#allocation7 + $0xe08] sm:$0xff]
    %v1090 = vld [vmem:[#allocation7 + $0xe10] sm:$0xff]
    %v1091 = vld [vmem:[#allocation7 + $0xe18] sm:$0xff]
    %v1092 = vld [vmem:[#allocation7 + $0xe20] sm:$0xff]
    %v1093 = vld [vmem:[#allocation7 + $0xe28] sm:$0xff]
    %v1094 = vld [vmem:[#allocation7 + $0xe30] sm:$0xff]
    %v1095 = vld [vmem:[#allocation7 + $0xe38] sm:$0xff]
    %v1096 = vld [vmem:[#allocation7 + $0xe40] sm:$0xff]
    %v1097 = vld [vmem:[#allocation7 + $0xe48] sm:$0xff]
    %v1098 = vld [vmem:[#allocation7 + $0xe50] sm:$0xff]
    %v1099 = vld [vmem:[#allocation7 + $0xe58] sm:$0xff]
    %v1100 = vld [vmem:[#allocation7 + $0xe60] sm:$0xff]
    %v1101 = vld [vmem:[#allocation7 + $0xe68] sm:$0xff]
    %v1102 = vld [vmem:[#allocation7 + $0xe70] sm:$0xff]
    %v1103 = vld [vmem:[#allocation7 + $0xe78] sm:$0xff]
    %v1104 = vld [vmem:[#allocation7 + $0xe80] sm:$0xff]
    %v1105 = vld [vmem:[#allocation7 + $0xe88] sm:$0xff]
    %v1106 = vld [vmem:[#allocation7 + $0xe90] sm:$0xff]
    %v1107 = vld [vmem:[#allocation7 + $0xe98] sm:$0xff]
    %v1108 = vld [vmem:[#allocation7 + $0xea0] sm:$0xff]
    %v1109 = vld [vmem:[#allocation7 + $0xea8] sm:$0xff]
    %v1110 = vld [vmem:[#allocation7 + $0xeb0] sm:$0xff]
    %v1111 = vld [vmem:[#allocation7 + $0xeb8] sm:$0xff]
    %v1112 = vld [vmem:[#allocation7 + $0xec0] sm:$0xff]
    %v1113 = vld [vmem:[#allocation7 + $0xec8] sm:$0xff]
    %v1114 = vld [vmem:[#allocation7 + $0xed0] sm:$0xff]
    %v1115 = vld [vmem:[#allocation7 + $0xed8] sm:$0xff]
    %v1116 = vld [vmem:[#allocation7 + $0xee0] sm:$0xff]
    %v1117 = vld [vmem:[#allocation7 + $0xee8] sm:$0xff]
    %v1118 = vld [vmem:[#allocation7 + $0xef0] sm:$0xff]
    %v1119 = vld [vmem:[#allocation7 + $0xef8] sm:$0xff]
    %v1120 = vld [vmem:[#allocation7 + $0xf00] sm:$0xff]
    %v1121 = vld [vmem:[#allocation7 + $0xf08] sm:$0xff]
    %v1122 = vld [vmem:[#allocation7 + $0xf10] sm:$0xff]
    %v1123 = vld [vmem:[#allocation7 + $0xf18] sm:$0xff]
    %v1124 = vld [vmem:[#allocation7 + $0xf20] sm:$0xff]
    %v1125 = vld [vmem:[#allocation7 + $0xf28] sm:$0xff]
    %v1126 = vld [vmem:[#allocation7 + $0xf30] sm:$0xff]
    %v1127 = vld [vmem:[#allocation7 + $0xf38] sm:$0xff]
    %v1128 = vld [vmem:[#allocation7 + $0xf40] sm:$0xff]
    %v1129 = vld [vmem:[#allocation7 + $0xf48] sm:$0xff]
    %v1130 = vld [vmem:[#allocation7 + $0xf50] sm:$0xff]
    %v1131 = vld [vmem:[#allocation7 + $0xf58] sm:$0xff]
    %v1132 = vld [vmem:[#allocation7 + $0xf60] sm:$0xff]
    %v1133 = vld [vmem:[#allocation7 + $0xf68] sm:$0xff]
    %v1134 = vld [vmem:[#allocation7 + $0xf70] sm:$0xff]
    %v1135 = vld [vmem:[#allocation7 + $0xf78] sm:$0xff]
    %v1136 = vld [vmem:[#allocation7 + $0xf80] sm:$0xff]
    %v1137 = vld [vmem:[#allocation7 + $0xf88] sm:$0xff]
    %v1138 = vld [vmem:[#allocation7 + $0xf90] sm:$0xff]
    %v1139 = vld [vmem:[#allocation7 + $0xf98] sm:$0xff]
    %v1140 = vld [vmem:[#allocation7 + $0xfa0] sm:$0xff]
    %v1141 = vld [vmem:[#allocation7 + $0xfa8] sm:$0xff]
    %v1142 = vld [vmem:[#allocation7 + $0xfb0] sm:$0xff]
    %v1143 = vld [vmem:[#allocation7 + $0xfb8] sm:$0xff]
    %v1144 = vld [vmem:[#allocation7 + $0xfc0] sm:$0xff]
    %v1145 = vld [vmem:[#allocation7 + $0xfc8] sm:$0xff]
    %v1146 = vld [vmem:[#allocation7 + $0xfd0] sm:$0xff]
    %v1147 = vld [vmem:[#allocation7 + $0xfd8] sm:$0xff]
    %v1148 = vld [vmem:[#allocation7 + $0xfe0] sm:$0xff]
    %v1149 = vld [vmem:[#allocation7 + $0xfe8] sm:$0xff]
    %v1150 = vld [vmem:[#allocation7 + $0xff0] sm:$0xff]
    %v1151 = vld [vmem:[#allocation7 + $0xff8] sm:$0xff]
    %v1664 = vunpack.c.l.b16 %v640
    %v1665 = vunpack.c.h.b16 %v640
    %v1666 = vunpack.c.l.b16 %v641
    %v1667 = vunpack.c.h.b16 %v641
    %v1668 = vunpack.c.l.b16 %v642
    %v1669 = vunpack.c.h.b16 %v642
    %v1670 = vunpack.c.l.b16 %v643
    %v1671 = vunpack.c.h.b16 %v643
    %v1672 = vunpack.c.l.b16 %v644
    %v1673 = vunpack.c.h.b16 %v644
    %v1674 = vunpack.c.l.b16 %v645
    %v1675 = vunpack.c.h.b16 %v645
    %v1676 = vunpack.c.l.b16 %v646
    %v1677 = vunpack.c.h.b16 %v646
    %v1678 = vunpack.c.l.b16 %v647
    %v1679 = vunpack.c.h.b16 %v647
    %v1680 = vunpack.c.l.b16 %v648
    %v1681 = vunpack.c.h.b16 %v648
    %v1682 = vunpack.c.l.b16 %v649
    %v1683 = vunpack.c.h.b16 %v649
    %v1684 = vunpack.c.l.b16 %v650
    %v1685 = vunpack.c.h.b16 %v650
    %v1686 = vunpack.c.l.b16 %v651
    %v1687 = vunpack.c.h.b16 %v651
    %v1688 = vunpack.c.l.b16 %v652
    %v1689 = vunpack.c.h.b16 %v652
    %v1690 = vunpack.c.l.b16 %v653
    %v1691 = vunpack.c.h.b16 %v653
    %v1692 = vunpack.c.l.b16 %v654
    %v1693 = vunpack.c.h.b16 %v654
    %v1694 = vunpack.c.l.b16 %v655
    %v1695 = vunpack.c.h.b16 %v655
    %v1696 = vunpack.c.l.b16 %v656
    %v1697 = vunpack.c.h.b16 %v656
    %v1698 = vunpack.c.l.b16 %v657
    %v1699 = vunpack.c.h.b16 %v657
    %v1700 = vunpack.c.l.b16 %v658
    %v1701 = vunpack.c.h.b16 %v658
    %v1702 = vunpack.c.l.b16 %v659
    %v1703 = vunpack.c.h.b16 %v659
    %v1704 = vunpack.c.l.b16 %v660
    %v1705 = vunpack.c.h.b16 %v660
    %v1706 = vunpack.c.l.b16 %v661
    %v1707 = vunpack.c.h.b16 %v661
    %v1708 = vunpack.c.l.b16 %v662
    %v1709 = vunpack.c.h.b16 %v662
    %v1710 = vunpack.c.l.b16 %v663
    %v1711 = vunpack.c.h.b16 %v663
    %v1712 = vunpack.c.l.b16 %v664
    %v1713 = vunpack.c.h.b16 %v664
    %v1714 = vunpack.c.l.b16 %v665
    %v1715 = vunpack.c.h.b16 %v665
    %v1716 = vunpack.c.l.b16 %v666
    %v1717 = vunpack.c.h.b16 %v666
    %v1718 = vunpack.c.l.b16 %v667
    %v1719 = vunpack.c.h.b16 %v667
    %v1720 = vunpack.c.l.b16 %v668
    %v1721 = vunpack.c.h.b16 %v668
    %v1722 = vunpack.c.l.b16 %v669
    %v1723 = vunpack.c.h.b16 %v669
    %v1724 = vunpack.c.l.b16 %v670
    %v1725 = vunpack.c.h.b16 %v670
    %v1726 = vunpack.c.l.b16 %v671
    %v1727 = vunpack.c.h.b16 %v671
    %v1728 = vunpack.c.l.b16 %v672
    %v1729 = vunpack.c.h.b16 %v672
    %v1730 = vunpack.c.l.b16 %v673
    %v1731 = vunpack.c.h.b16 %v673
    %v1732 = vunpack.c.l.b16 %v674
    %v1733 = vunpack.c.h.b16 %v674
    %v1734 = vunpack.c.l.b16 %v675
    %v1735 = vunpack.c.h.b16 %v675
    %v1736 = vunpack.c.l.b16 %v676
    %v1737 = vunpack.c.h.b16 %v676
    %v1738 = vunpack.c.l.b16 %v677
    %v1739 = vunpack.c.h.b16 %v677
    %v1740 = vunpack.c.l.b16 %v678
    %v1741 = vunpack.c.h.b16 %v678
    %v1742 = vunpack.c.l.b16 %v679
    %v1743 = vunpack.c.h.b16 %v679
    %v1744 = vunpack.c.l.b16 %v680
    %v1745 = vunpack.c.h.b16 %v680
    %v1746 = vunpack.c.l.b16 %v681
    %v1747 = vunpack.c.h.b16 %v681
    %v1748 = vunpack.c.l.b16 %v682
    %v1749 = vunpack.c.h.b16 %v682
    %v1750 = vunpack.c.l.b16 %v683
    %v1751 = vunpack.c.h.b16 %v683
    %v1752 = vunpack.c.l.b16 %v684
    %v1753 = vunpack.c.h.b16 %v684
    %v1754 = vunpack.c.l.b16 %v685
    %v1755 = vunpack.c.h.b16 %v685
    %v1756 = vunpack.c.l.b16 %v686
    %v1757 = vunpack.c.h.b16 %v686
    %v1758 = vunpack.c.l.b16 %v687
    %v1759 = vunpack.c.h.b16 %v687
    %v1760 = vunpack.c.l.b16 %v688
    %v1761 = vunpack.c.h.b16 %v688
    %v1762 = vunpack.c.l.b16 %v689
    %v1763 = vunpack.c.h.b16 %v689
    %v1764 = vunpack.c.l.b16 %v690
    %v1765 = vunpack.c.h.b16 %v690
    %v1766 = vunpack.c.l.b16 %v691
    %v1767 = vunpack.c.h.b16 %v691
    %v1768 = vunpack.c.l.b16 %v692
    %v1769 = vunpack.c.h.b16 %v692
    %v1770 = vunpack.c.l.b16 %v693
    %v1771 = vunpack.c.h.b16 %v693
    %v1772 = vunpack.c.l.b16 %v694
    %v1773 = vunpack.c.h.b16 %v694
    %v1774 = vunpack.c.l.b16 %v695
    %v1775 = vunpack.c.h.b16 %v695
    %v1776 = vunpack.c.l.b16 %v696
    %v1777 = vunpack.c.h.b16 %v696
    %v1778 = vunpack.c.l.b16 %v697
    %v1779 = vunpack.c.h.b16 %v697
    %v1780 = vunpack.c.l.b16 %v698
    %v1781 = vunpack.c.h.b16 %v698
    %v1782 = vunpack.c.l.b16 %v699
    %v1783 = vunpack.c.h.b16 %v699
    %v1784 = vunpack.c.l.b16 %v700
    %v1785 = vunpack.c.h.b16 %v700
    %v1786 = vunpack.c.l.b16 %v701
    %v1787 = vunpack.c.h.b16 %v701
    %v1788 = vunpack.c.l.b16 %v702
    %v1789 = vunpack.c.h.b16 %v702
    %v1790 = vunpack.c.l.b16 %v703
    %v1791 = vunpack.c.h.b16 %v703
    %v1792 = vunpack.c.l.b16 %v704
    %v1793 = vunpack.c.h.b16 %v704
    %v1794 = vunpack.c.l.b16 %v705
    %v1795 = vunpack.c.h.b16 %v705
    %v1796 = vunpack.c.l.b16 %v706
    %v1797 = vunpack.c.h.b16 %v706
    %v1798 = vunpack.c.l.b16 %v707
    %v1799 = vunpack.c.h.b16 %v707
    %v1800 = vunpack.c.l.b16 %v708
    %v1801 = vunpack.c.h.b16 %v708
    %v1802 = vunpack.c.l.b16 %v709
    %v1803 = vunpack.c.h.b16 %v709
    %v1804 = vunpack.c.l.b16 %v710
    %v1805 = vunpack.c.h.b16 %v710
    %v1806 = vunpack.c.l.b16 %v711
    %v1807 = vunpack.c.h.b16 %v711
    %v1808 = vunpack.c.l.b16 %v712
    %v1809 = vunpack.c.h.b16 %v712
    %v1810 = vunpack.c.l.b16 %v713
    %v1811 = vunpack.c.h.b16 %v713
    %v1812 = vunpack.c.l.b16 %v714
    %v1813 = vunpack.c.h.b16 %v714
    %v1814 = vunpack.c.l.b16 %v715
    %v1815 = vunpack.c.h.b16 %v715
    %v1816 = vunpack.c.l.b16 %v716
    %v1817 = vunpack.c.h.b16 %v716
    %v1818 = vunpack.c.l.b16 %v717
    %v1819 = vunpack.c.h.b16 %v717
    %v1820 = vunpack.c.l.b16 %v718
    %v1821 = vunpack.c.h.b16 %v718
    %v1822 = vunpack.c.l.b16 %v719
    %v1823 = vunpack.c.h.b16 %v719
    %v1824 = vunpack.c.l.b16 %v720
    %v1825 = vunpack.c.h.b16 %v720
    %v1826 = vunpack.c.l.b16 %v721
    %v1827 = vunpack.c.h.b16 %v721
    %v1828 = vunpack.c.l.b16 %v722
    %v1829 = vunpack.c.h.b16 %v722
    %v1830 = vunpack.c.l.b16 %v723
    %v1831 = vunpack.c.h.b16 %v723
    %v1832 = vunpack.c.l.b16 %v724
    %v1833 = vunpack.c.h.b16 %v724
    %v1834 = vunpack.c.l.b16 %v725
    %v1835 = vunpack.c.h.b16 %v725
    %v1836 = vunpack.c.l.b16 %v726
    %v1837 = vunpack.c.h.b16 %v726
    %v1838 = vunpack.c.l.b16 %v727
    %v1839 = vunpack.c.h.b16 %v727
    %v1840 = vunpack.c.l.b16 %v728
    %v1841 = vunpack.c.h.b16 %v728
    %v1842 = vunpack.c.l.b16 %v729
    %v1843 = vunpack.c.h.b16 %v729
    %v1844 = vunpack.c.l.b16 %v730
    %v1845 = vunpack.c.h.b16 %v730
    %v1846 = vunpack.c.l.b16 %v731
    %v1847 = vunpack.c.h.b16 %v731
    %v1848 = vunpack.c.l.b16 %v732
    %v1849 = vunpack.c.h.b16 %v732
    %v1850 = vunpack.c.l.b16 %v733
    %v1851 = vunpack.c.h.b16 %v733
    %v1852 = vunpack.c.l.b16 %v734
    %v1853 = vunpack.c.h.b16 %v734
    %v1854 = vunpack.c.l.b16 %v735
    %v1855 = vunpack.c.h.b16 %v735
    %v1856 = vunpack.c.l.b16 %v736
    %v1857 = vunpack.c.h.b16 %v736
    %v1858 = vunpack.c.l.b16 %v737
    %v1859 = vunpack.c.h.b16 %v737
    %v1860 = vunpack.c.l.b16 %v738
    %v1861 = vunpack.c.h.b16 %v738
    %v1862 = vunpack.c.l.b16 %v739
    %v1863 = vunpack.c.h.b16 %v739
    %v1864 = vunpack.c.l.b16 %v740
    %v1865 = vunpack.c.h.b16 %v740
    %v1866 = vunpack.c.l.b16 %v741
    %v1867 = vunpack.c.h.b16 %v741
    %v1868 = vunpack.c.l.b16 %v742
    %v1869 = vunpack.c.h.b16 %v742
    %v1870 = vunpack.c.l.b16 %v743
    %v1871 = vunpack.c.h.b16 %v743
    %v1872 = vunpack.c.l.b16 %v744
    %v1873 = vunpack.c.h.b16 %v744
    %v1874 = vunpack.c.l.b16 %v745
    %v1875 = vunpack.c.h.b16 %v745
    %v1876 = vunpack.c.l.b16 %v746
    %v1877 = vunpack.c.h.b16 %v746
    %v1878 = vunpack.c.l.b16 %v747
    %v1879 = vunpack.c.h.b16 %v747
    %v1880 = vunpack.c.l.b16 %v748
    %v1881 = vunpack.c.h.b16 %v748
    %v1882 = vunpack.c.l.b16 %v749
    %v1883 = vunpack.c.h.b16 %v749
    %v1884 = vunpack.c.l.b16 %v750
    %v1885 = vunpack.c.h.b16 %v750
    %v1886 = vunpack.c.l.b16 %v751
    %v1887 = vunpack.c.h.b16 %v751
    %v1888 = vunpack.c.l.b16 %v752
    %v1889 = vunpack.c.h.b16 %v752
    %v1890 = vunpack.c.l.b16 %v753
    %v1891 = vunpack.c.h.b16 %v753
    %v1892 = vunpack.c.l.b16 %v754
    %v1893 = vunpack.c.h.b16 %v754
    %v1894 = vunpack.c.l.b16 %v755
    %v1895 = vunpack.c.h.b16 %v755
    %v1896 = vunpack.c.l.b16 %v756
    %v1897 = vunpack.c.h.b16 %v756
    %v1898 = vunpack.c.l.b16 %v757
    %v1899 = vunpack.c.h.b16 %v757
    %v1900 = vunpack.c.l.b16 %v758
    %v1901 = vunpack.c.h.b16 %v758
    %v1902 = vunpack.c.l.b16 %v759
    %v1903 = vunpack.c.h.b16 %v759
    %v1904 = vunpack.c.l.b16 %v760
    %v1905 = vunpack.c.h.b16 %v760
    %v1906 = vunpack.c.l.b16 %v761
    %v1907 = vunpack.c.h.b16 %v761
    %v1908 = vunpack.c.l.b16 %v762
    %v1909 = vunpack.c.h.b16 %v762
    %v1910 = vunpack.c.l.b16 %v763
    %v1911 = vunpack.c.h.b16 %v763
    %v1912 = vunpack.c.l.b16 %v764
    %v1913 = vunpack.c.h.b16 %v764
    %v1914 = vunpack.c.l.b16 %v765
    %v1915 = vunpack.c.h.b16 %v765
    %v1916 = vunpack.c.l.b16 %v766
    %v1917 = vunpack.c.h.b16 %v766
    %v1918 = vunpack.c.l.b16 %v767
    %v1919 = vunpack.c.h.b16 %v767
    %v1920 = vunpack.c.l.b16 %v768
    %v1921 = vunpack.c.h.b16 %v768
    %v1922 = vunpack.c.l.b16 %v769
    %v1923 = vunpack.c.h.b16 %v769
    %v1924 = vunpack.c.l.b16 %v770
    %v1925 = vunpack.c.h.b16 %v770
    %v1926 = vunpack.c.l.b16 %v771
    %v1927 = vunpack.c.h.b16 %v771
    %v1928 = vunpack.c.l.b16 %v772
    %v1929 = vunpack.c.h.b16 %v772
    %v1930 = vunpack.c.l.b16 %v773
    %v1931 = vunpack.c.h.b16 %v773
    %v1932 = vunpack.c.l.b16 %v774
    %v1933 = vunpack.c.h.b16 %v774
    %v1934 = vunpack.c.l.b16 %v775
    %v1935 = vunpack.c.h.b16 %v775
    %v1936 = vunpack.c.l.b16 %v776
    %v1937 = vunpack.c.h.b16 %v776
    %v1938 = vunpack.c.l.b16 %v777
    %v1939 = vunpack.c.h.b16 %v777
    %v1940 = vunpack.c.l.b16 %v778
    %v1941 = vunpack.c.h.b16 %v778
    %v1942 = vunpack.c.l.b16 %v779
    %v1943 = vunpack.c.h.b16 %v779
    %v1944 = vunpack.c.l.b16 %v780
    %v1945 = vunpack.c.h.b16 %v780
    %v1946 = vunpack.c.l.b16 %v781
    %v1947 = vunpack.c.h.b16 %v781
    %v1948 = vunpack.c.l.b16 %v782
    %v1949 = vunpack.c.h.b16 %v782
    %v1950 = vunpack.c.l.b16 %v783
    %v1951 = vunpack.c.h.b16 %v783
    %v1952 = vunpack.c.l.b16 %v784
    %v1953 = vunpack.c.h.b16 %v784
    %v1954 = vunpack.c.l.b16 %v785
    %v1955 = vunpack.c.h.b16 %v785
    %v1956 = vunpack.c.l.b16 %v786
    %v1957 = vunpack.c.h.b16 %v786
    %v1958 = vunpack.c.l.b16 %v787
    %v1959 = vunpack.c.h.b16 %v787
    %v1960 = vunpack.c.l.b16 %v788
    %v1961 = vunpack.c.h.b16 %v788
    %v1962 = vunpack.c.l.b16 %v789
    %v1963 = vunpack.c.h.b16 %v789
    %v1964 = vunpack.c.l.b16 %v790
    %v1965 = vunpack.c.h.b16 %v790
    %v1966 = vunpack.c.l.b16 %v791
    %v1967 = vunpack.c.h.b16 %v791
    %v1968 = vunpack.c.l.b16 %v792
    %v1969 = vunpack.c.h.b16 %v792
    %v1970 = vunpack.c.l.b16 %v793
    %v1971 = vunpack.c.h.b16 %v793
    %v1972 = vunpack.c.l.b16 %v794
    %v1973 = vunpack.c.h.b16 %v794
    %v1974 = vunpack.c.l.b16 %v795
    %v1975 = vunpack.c.h.b16 %v795
    %v1976 = vunpack.c.l.b16 %v796
    %v1977 = vunpack.c.h.b16 %v796
    %v1978 = vunpack.c.l.b16 %v797
    %v1979 = vunpack.c.h.b16 %v797
    %v1980 = vunpack.c.l.b16 %v798
    %v1981 = vunpack.c.h.b16 %v798
    %v1982 = vunpack.c.l.b16 %v799
    %v1983 = vunpack.c.h.b16 %v799
    %v1984 = vunpack.c.l.b16 %v800
    %v1985 = vunpack.c.h.b16 %v800
    %v1986 = vunpack.c.l.b16 %v801
    %v1987 = vunpack.c.h.b16 %v801
    %v1988 = vunpack.c.l.b16 %v802
    %v1989 = vunpack.c.h.b16 %v802
    %v1990 = vunpack.c.l.b16 %v803
    %v1991 = vunpack.c.h.b16 %v803
    %v1992 = vunpack.c.l.b16 %v804
    %v1993 = vunpack.c.h.b16 %v804
    %v1994 = vunpack.c.l.b16 %v805
    %v1995 = vunpack.c.h.b16 %v805
    %v1996 = vunpack.c.l.b16 %v806
    %v1997 = vunpack.c.h.b16 %v806
    %v1998 = vunpack.c.l.b16 %v807
    %v1999 = vunpack.c.h.b16 %v807
    %v2000 = vunpack.c.l.b16 %v808
    %v2001 = vunpack.c.h.b16 %v808
    %v2002 = vunpack.c.l.b16 %v809
    %v2003 = vunpack.c.h.b16 %v809
    %v2004 = vunpack.c.l.b16 %v810
    %v2005 = vunpack.c.h.b16 %v810
    %v2006 = vunpack.c.l.b16 %v811
    %v2007 = vunpack.c.h.b16 %v811
    %v2008 = vunpack.c.l.b16 %v812
    %v2009 = vunpack.c.h.b16 %v812
    %v2010 = vunpack.c.l.b16 %v813
    %v2011 = vunpack.c.h.b16 %v813
    %v2012 = vunpack.c.l.b16 %v814
    %v2013 = vunpack.c.h.b16 %v814
    %v2014 = vunpack.c.l.b16 %v815
    %v2015 = vunpack.c.h.b16 %v815
    %v2016 = vunpack.c.l.b16 %v816
    %v2017 = vunpack.c.h.b16 %v816
    %v2018 = vunpack.c.l.b16 %v817
    %v2019 = vunpack.c.h.b16 %v817
    %v2020 = vunpack.c.l.b16 %v818
    %v2021 = vunpack.c.h.b16 %v818
    %v2022 = vunpack.c.l.b16 %v819
    %v2023 = vunpack.c.h.b16 %v819
    %v2024 = vunpack.c.l.b16 %v820
    %v2025 = vunpack.c.h.b16 %v820
    %v2026 = vunpack.c.l.b16 %v821
    %v2027 = vunpack.c.h.b16 %v821
    %v2028 = vunpack.c.l.b16 %v822
    %v2029 = vunpack.c.h.b16 %v822
    %v2030 = vunpack.c.l.b16 %v823
    %v2031 = vunpack.c.h.b16 %v823
    %v2032 = vunpack.c.l.b16 %v824
    %v2033 = vunpack.c.h.b16 %v824
    %v2034 = vunpack.c.l.b16 %v825
    %v2035 = vunpack.c.h.b16 %v825
    %v2036 = vunpack.c.l.b16 %v826
    %v2037 = vunpack.c.h.b16 %v826
    %v2038 = vunpack.c.l.b16 %v827
    %v2039 = vunpack.c.h.b16 %v827
    %v2040 = vunpack.c.l.b16 %v828
    %v2041 = vunpack.c.h.b16 %v828
    %v2042 = vunpack.c.l.b16 %v829
    %v2043 = vunpack.c.h.b16 %v829
    %v2044 = vunpack.c.l.b16 %v830
    %v2045 = vunpack.c.h.b16 %v830
    %v2046 = vunpack.c.l.b16 %v831
    %v2047 = vunpack.c.h.b16 %v831
    %v2048 = vunpack.c.l.b16 %v832
    %v2049 = vunpack.c.h.b16 %v832
    %v2050 = vunpack.c.l.b16 %v833
    %v2051 = vunpack.c.h.b16 %v833
    %v2052 = vunpack.c.l.b16 %v834
    %v2053 = vunpack.c.h.b16 %v834
    %v2054 = vunpack.c.l.b16 %v835
    %v2055 = vunpack.c.h.b16 %v835
    %v2056 = vunpack.c.l.b16 %v836
    %v2057 = vunpack.c.h.b16 %v836
    %v2058 = vunpack.c.l.b16 %v837
    %v2059 = vunpack.c.h.b16 %v837
    %v2060 = vunpack.c.l.b16 %v838
    %v2061 = vunpack.c.h.b16 %v838
    %v2062 = vunpack.c.l.b16 %v839
    %v2063 = vunpack.c.h.b16 %v839
    %v2064 = vunpack.c.l.b16 %v840
    %v2065 = vunpack.c.h.b16 %v840
    %v2066 = vunpack.c.l.b16 %v841
    %v2067 = vunpack.c.h.b16 %v841
    %v2068 = vunpack.c.l.b16 %v842
    %v2069 = vunpack.c.h.b16 %v842
    %v2070 = vunpack.c.l.b16 %v843
    %v2071 = vunpack.c.h.b16 %v843
    %v2072 = vunpack.c.l.b16 %v844
    %v2073 = vunpack.c.h.b16 %v844
    %v2074 = vunpack.c.l.b16 %v845
    %v2075 = vunpack.c.h.b16 %v845
    %v2076 = vunpack.c.l.b16 %v846
    %v2077 = vunpack.c.h.b16 %v846
    %v2078 = vunpack.c.l.b16 %v847
    %v2079 = vunpack.c.h.b16 %v847
    %v2080 = vunpack.c.l.b16 %v848
    %v2081 = vunpack.c.h.b16 %v848
    %v2082 = vunpack.c.l.b16 %v849
    %v2083 = vunpack.c.h.b16 %v849
    %v2084 = vunpack.c.l.b16 %v850
    %v2085 = vunpack.c.h.b16 %v850
    %v2086 = vunpack.c.l.b16 %v851
    %v2087 = vunpack.c.h.b16 %v851
    %v2088 = vunpack.c.l.b16 %v852
    %v2089 = vunpack.c.h.b16 %v852
    %v2090 = vunpack.c.l.b16 %v853
    %v2091 = vunpack.c.h.b16 %v853
    %v2092 = vunpack.c.l.b16 %v854
    %v2093 = vunpack.c.h.b16 %v854
    %v2094 = vunpack.c.l.b16 %v855
    %v2095 = vunpack.c.h.b16 %v855
    %v2096 = vunpack.c.l.b16 %v856
    %v2097 = vunpack.c.h.b16 %v856
    %v2098 = vunpack.c.l.b16 %v857
    %v2099 = vunpack.c.h.b16 %v857
    %v2100 = vunpack.c.l.b16 %v858
    %v2101 = vunpack.c.h.b16 %v858
    %v2102 = vunpack.c.l.b16 %v859
    %v2103 = vunpack.c.h.b16 %v859
    %v2104 = vunpack.c.l.b16 %v860
    %v2105 = vunpack.c.h.b16 %v860
    %v2106 = vunpack.c.l.b16 %v861
    %v2107 = vunpack.c.h.b16 %v861
    %v2108 = vunpack.c.l.b16 %v862
    %v2109 = vunpack.c.h.b16 %v862
    %v2110 = vunpack.c.l.b16 %v863
    %v2111 = vunpack.c.h.b16 %v863
    %v2112 = vunpack.c.l.b16 %v864
    %v2113 = vunpack.c.h.b16 %v864
    %v2114 = vunpack.c.l.b16 %v865
    %v2115 = vunpack.c.h.b16 %v865
    %v2116 = vunpack.c.l.b16 %v866
    %v2117 = vunpack.c.h.b16 %v866
    %v2118 = vunpack.c.l.b16 %v867
    %v2119 = vunpack.c.h.b16 %v867
    %v2120 = vunpack.c.l.b16 %v868
    %v2121 = vunpack.c.h.b16 %v868
    %v2122 = vunpack.c.l.b16 %v869
    %v2123 = vunpack.c.h.b16 %v869
    %v2124 = vunpack.c.l.b16 %v870
    %v2125 = vunpack.c.h.b16 %v870
    %v2126 = vunpack.c.l.b16 %v871
    %v2127 = vunpack.c.h.b16 %v871
    %v2128 = vunpack.c.l.b16 %v872
    %v2129 = vunpack.c.h.b16 %v872
    %v2130 = vunpack.c.l.b16 %v873
    %v2131 = vunpack.c.h.b16 %v873
    %v2132 = vunpack.c.l.b16 %v874
    %v2133 = vunpack.c.h.b16 %v874
    %v2134 = vunpack.c.l.b16 %v875
    %v2135 = vunpack.c.h.b16 %v875
    %v2136 = vunpack.c.l.b16 %v876
    %v2137 = vunpack.c.h.b16 %v876
    %v2138 = vunpack.c.l.b16 %v877
    %v2139 = vunpack.c.h.b16 %v877
    %v2140 = vunpack.c.l.b16 %v878
    %v2141 = vunpack.c.h.b16 %v878
    %v2142 = vunpack.c.l.b16 %v879
    %v2143 = vunpack.c.h.b16 %v879
    %v2144 = vunpack.c.l.b16 %v880
    %v2145 = vunpack.c.h.b16 %v880
    %v2146 = vunpack.c.l.b16 %v881
    %v2147 = vunpack.c.h.b16 %v881
    %v2148 = vunpack.c.l.b16 %v882
    %v2149 = vunpack.c.h.b16 %v882
    %v2150 = vunpack.c.l.b16 %v883
    %v2151 = vunpack.c.h.b16 %v883
    %v2152 = vunpack.c.l.b16 %v884
    %v2153 = vunpack.c.h.b16 %v884
    %v2154 = vunpack.c.l.b16 %v885
    %v2155 = vunpack.c.h.b16 %v885
    %v2156 = vunpack.c.l.b16 %v886
    %v2157 = vunpack.c.h.b16 %v886
    %v2158 = vunpack.c.l.b16 %v887
    %v2159 = vunpack.c.h.b16 %v887
    %v2160 = vunpack.c.l.b16 %v888
    %v2161 = vunpack.c.h.b16 %v888
    %v2162 = vunpack.c.l.b16 %v889
    %v2163 = vunpack.c.h.b16 %v889
    %v2164 = vunpack.c.l.b16 %v890
    %v2165 = vunpack.c.h.b16 %v890
    %v2166 = vunpack.c.l.b16 %v891
    %v2167 = vunpack.c.h.b16 %v891
    %v2168 = vunpack.c.l.b16 %v892
    %v2169 = vunpack.c.h.b16 %v892
    %v2170 = vunpack.c.l.b16 %v893
    %v2171 = vunpack.c.h.b16 %v893
    %v2172 = vunpack.c.l.b16 %v894
    %v2173 = vunpack.c.h.b16 %v894
    %v2174 = vunpack.c.l.b16 %v895
    %v2175 = vunpack.c.h.b16 %v895
    %v2176 = vunpack.c.l.b16 %v896
    %v2177 = vunpack.c.h.b16 %v896
    %v2178 = vunpack.c.l.b16 %v897
    %v2179 = vunpack.c.h.b16 %v897
    %v2180 = vunpack.c.l.b16 %v898
    %v2181 = vunpack.c.h.b16 %v898
    %v2182 = vunpack.c.l.b16 %v899
    %v2183 = vunpack.c.h.b16 %v899
    %v2184 = vunpack.c.l.b16 %v900
    %v2185 = vunpack.c.h.b16 %v900
    %v2186 = vunpack.c.l.b16 %v901
    %v2187 = vunpack.c.h.b16 %v901
    %v2188 = vunpack.c.l.b16 %v902
    %v2189 = vunpack.c.h.b16 %v902
    %v2190 = vunpack.c.l.b16 %v903
    %v2191 = vunpack.c.h.b16 %v903
    %v2192 = vunpack.c.l.b16 %v904
    %v2193 = vunpack.c.h.b16 %v904
    %v2194 = vunpack.c.l.b16 %v905
    %v2195 = vunpack.c.h.b16 %v905
    %v2196 = vunpack.c.l.b16 %v906
    %v2197 = vunpack.c.h.b16 %v906
    %v2198 = vunpack.c.l.b16 %v907
    %v2199 = vunpack.c.h.b16 %v907
    %v2200 = vunpack.c.l.b16 %v908
    %v2201 = vunpack.c.h.b16 %v908
    %v2202 = vunpack.c.l.b16 %v909
    %v2203 = vunpack.c.h.b16 %v909
    %v2204 = vunpack.c.l.b16 %v910
    %v2205 = vunpack.c.h.b16 %v910
    %v2206 = vunpack.c.l.b16 %v911
    %v2207 = vunpack.c.h.b16 %v911
    %v2208 = vunpack.c.l.b16 %v912
    %v2209 = vunpack.c.h.b16 %v912
    %v2210 = vunpack.c.l.b16 %v913
    %v2211 = vunpack.c.h.b16 %v913
    %v2212 = vunpack.c.l.b16 %v914
    %v2213 = vunpack.c.h.b16 %v914
    %v2214 = vunpack.c.l.b16 %v915
    %v2215 = vunpack.c.h.b16 %v915
    %v2216 = vunpack.c.l.b16 %v916
    %v2217 = vunpack.c.h.b16 %v916
    %v2218 = vunpack.c.l.b16 %v917
    %v2219 = vunpack.c.h.b16 %v917
    %v2220 = vunpack.c.l.b16 %v918
    %v2221 = vunpack.c.h.b16 %v918
    %v2222 = vunpack.c.l.b16 %v919
    %v2223 = vunpack.c.h.b16 %v919
    %v2224 = vunpack.c.l.b16 %v920
    %v2225 = vunpack.c.h.b16 %v920
    %v2226 = vunpack.c.l.b16 %v921
    %v2227 = vunpack.c.h.b16 %v921
    %v2228 = vunpack.c.l.b16 %v922
    %v2229 = vunpack.c.h.b16 %v922
    %v2230 = vunpack.c.l.b16 %v923
    %v2231 = vunpack.c.h.b16 %v923
    %v2232 = vunpack.c.l.b16 %v924
    %v2233 = vunpack.c.h.b16 %v924
    %v2234 = vunpack.c.l.b16 %v925
    %v2235 = vunpack.c.h.b16 %v925
    %v2236 = vunpack.c.l.b16 %v926
    %v2237 = vunpack.c.h.b16 %v926
    %v2238 = vunpack.c.l.b16 %v927
    %v2239 = vunpack.c.h.b16 %v927
    %v2240 = vunpack.c.l.b16 %v928
    %v2241 = vunpack.c.h.b16 %v928
    %v2242 = vunpack.c.l.b16 %v929
    %v2243 = vunpack.c.h.b16 %v929
    %v2244 = vunpack.c.l.b16 %v930
    %v2245 = vunpack.c.h.b16 %v930
    %v2246 = vunpack.c.l.b16 %v931
    %v2247 = vunpack.c.h.b16 %v931
    %v2248 = vunpack.c.l.b16 %v932
    %v2249 = vunpack.c.h.b16 %v932
    %v2250 = vunpack.c.l.b16 %v933
    %v2251 = vunpack.c.h.b16 %v933
    %v2252 = vunpack.c.l.b16 %v934
    %v2253 = vunpack.c.h.b16 %v934
    %v2254 = vunpack.c.l.b16 %v935
    %v2255 = vunpack.c.h.b16 %v935
    %v2256 = vunpack.c.l.b16 %v936
    %v2257 = vunpack.c.h.b16 %v936
    %v2258 = vunpack.c.l.b16 %v937
    %v2259 = vunpack.c.h.b16 %v937
    %v2260 = vunpack.c.l.b16 %v938
    %v2261 = vunpack.c.h.b16 %v938
    %v2262 = vunpack.c.l.b16 %v939
    %v2263 = vunpack.c.h.b16 %v939
    %v2264 = vunpack.c.l.b16 %v940
    %v2265 = vunpack.c.h.b16 %v940
    %v2266 = vunpack.c.l.b16 %v941
    %v2267 = vunpack.c.h.b16 %v941
    %v2268 = vunpack.c.l.b16 %v942
    %v2269 = vunpack.c.h.b16 %v942
    %v2270 = vunpack.c.l.b16 %v943
    %v2271 = vunpack.c.h.b16 %v943
    %v2272 = vunpack.c.l.b16 %v944
    %v2273 = vunpack.c.h.b16 %v944
    %v2274 = vunpack.c.l.b16 %v945
    %v2275 = vunpack.c.h.b16 %v945
    %v2276 = vunpack.c.l.b16 %v946
    %v2277 = vunpack.c.h.b16 %v946
    %v2278 = vunpack.c.l.b16 %v947
    %v2279 = vunpack.c.h.b16 %v947
    %v2280 = vunpack.c.l.b16 %v948
    %v2281 = vunpack.c.h.b16 %v948
    %v2282 = vunpack.c.l.b16 %v949
    %v2283 = vunpack.c.h.b16 %v949
    %v2284 = vunpack.c.l.b16 %v950
    %v2285 = vunpack.c.h.b16 %v950
    %v2286 = vunpack.c.l.b16 %v951
    %v2287 = vunpack.c.h.b16 %v951
    %v2288 = vunpack.c.l.b16 %v952
    %v2289 = vunpack.c.h.b16 %v952
    %v2290 = vunpack.c.l.b16 %v953
    %v2291 = vunpack.c.h.b16 %v953
    %v2292 = vunpack.c.l.b16 %v954
    %v2293 = vunpack.c.h.b16 %v954
    %v2294 = vunpack.c.l.b16 %v955
    %v2295 = vunpack.c.h.b16 %v955
    %v2296 = vunpack.c.l.b16 %v956
    %v2297 = vunpack.c.h.b16 %v956
    %v2298 = vunpack.c.l.b16 %v957
    %v2299 = vunpack.c.h.b16 %v957
    %v2300 = vunpack.c.l.b16 %v958
    %v2301 = vunpack.c.h.b16 %v958
    %v2302 = vunpack.c.l.b16 %v959
    %v2303 = vunpack.c.h.b16 %v959
    %v2304 = vunpack.c.l.b16 %v960
    %v2305 = vunpack.c.h.b16 %v960
    %v2306 = vunpack.c.l.b16 %v961
    %v2307 = vunpack.c.h.b16 %v961
    %v2308 = vunpack.c.l.b16 %v962
    %v2309 = vunpack.c.h.b16 %v962
    %v2310 = vunpack.c.l.b16 %v963
    %v2311 = vunpack.c.h.b16 %v963
    %v2312 = vunpack.c.l.b16 %v964
    %v2313 = vunpack.c.h.b16 %v964
    %v2314 = vunpack.c.l.b16 %v965
    %v2315 = vunpack.c.h.b16 %v965
    %v2316 = vunpack.c.l.b16 %v966
    %v2317 = vunpack.c.h.b16 %v966
    %v2318 = vunpack.c.l.b16 %v967
    %v2319 = vunpack.c.h.b16 %v967
    %v2320 = vunpack.c.l.b16 %v968
    %v2321 = vunpack.c.h.b16 %v968
    %v2322 = vunpack.c.l.b16 %v969
    %v2323 = vunpack.c.h.b16 %v969
    %v2324 = vunpack.c.l.b16 %v970
    %v2325 = vunpack.c.h.b16 %v970
    %v2326 = vunpack.c.l.b16 %v971
    %v2327 = vunpack.c.h.b16 %v971
    %v2328 = vunpack.c.l.b16 %v972
    %v2329 = vunpack.c.h.b16 %v972
    %v2330 = vunpack.c.l.b16 %v973
    %v2331 = vunpack.c.h.b16 %v973
    %v2332 = vunpack.c.l.b16 %v974
    %v2333 = vunpack.c.h.b16 %v974
    %v2334 = vunpack.c.l.b16 %v975
    %v2335 = vunpack.c.h.b16 %v975
    %v2336 = vunpack.c.l.b16 %v976
    %v2337 = vunpack.c.h.b16 %v976
    %v2338 = vunpack.c.l.b16 %v977
    %v2339 = vunpack.c.h.b16 %v977
    %v2340 = vunpack.c.l.b16 %v978
    %v2341 = vunpack.c.h.b16 %v978
    %v2342 = vunpack.c.l.b16 %v979
    %v2343 = vunpack.c.h.b16 %v979
    %v2344 = vunpack.c.l.b16 %v980
    %v2345 = vunpack.c.h.b16 %v980
    %v2346 = vunpack.c.l.b16 %v981
    %v2347 = vunpack.c.h.b16 %v981
    %v2348 = vunpack.c.l.b16 %v982
    %v2349 = vunpack.c.h.b16 %v982
    %v2350 = vunpack.c.l.b16 %v983
    %v2351 = vunpack.c.h.b16 %v983
    %v2352 = vunpack.c.l.b16 %v984
    %v2353 = vunpack.c.h.b16 %v984
    %v2354 = vunpack.c.l.b16 %v985
    %v2355 = vunpack.c.h.b16 %v985
    %v2356 = vunpack.c.l.b16 %v986
    %v2357 = vunpack.c.h.b16 %v986
    %v2358 = vunpack.c.l.b16 %v987
    %v2359 = vunpack.c.h.b16 %v987
    %v2360 = vunpack.c.l.b16 %v988
    %v2361 = vunpack.c.h.b16 %v988
    %v2362 = vunpack.c.l.b16 %v989
    %v2363 = vunpack.c.h.b16 %v989
    %v2364 = vunpack.c.l.b16 %v990
    %v2365 = vunpack.c.h.b16 %v990
    %v2366 = vunpack.c.l.b16 %v991
    %v2367 = vunpack.c.h.b16 %v991
    %v2368 = vunpack.c.l.b16 %v992
    %v2369 = vunpack.c.h.b16 %v992
    %v2370 = vunpack.c.l.b16 %v993
    %v2371 = vunpack.c.h.b16 %v993
    %v2372 = vunpack.c.l.b16 %v994
    %v2373 = vunpack.c.h.b16 %v994
    %v2374 = vunpack.c.l.b16 %v995
    %v2375 = vunpack.c.h.b16 %v995
    %v2376 = vunpack.c.l.b16 %v996
    %v2377 = vunpack.c.h.b16 %v996
    %v2378 = vunpack.c.l.b16 %v997
    %v2379 = vunpack.c.h.b16 %v997
    %v2380 = vunpack.c.l.b16 %v998
    %v2381 = vunpack.c.h.b16 %v998
    %v2382 = vunpack.c.l.b16 %v999
    %v2383 = vunpack.c.h.b16 %v999
    %v2384 = vunpack.c.l.b16 %v1000
    %v2385 = vunpack.c.h.b16 %v1000
    %v2386 = vunpack.c.l.b16 %v1001
    %v2387 = vunpack.c.h.b16 %v1001
    %v2388 = vunpack.c.l.b16 %v1002
    %v2389 = vunpack.c.h.b16 %v1002
    %v2390 = vunpack.c.l.b16 %v1003
    %v2391 = vunpack.c.h.b16 %v1003
    %v2392 = vunpack.c.l.b16 %v1004
    %v2393 = vunpack.c.h.b16 %v1004
    %v2394 = vunpack.c.l.b16 %v1005
    %v2395 = vunpack.c.h.b16 %v1005
    %v2396 = vunpack.c.l.b16 %v1006
    %v2397 = vunpack.c.h.b16 %v1006
    %v2398 = vunpack.c.l.b16 %v1007
    %v2399 = vunpack.c.h.b16 %v1007
    %v2400 = vunpack.c.l.b16 %v1008
    %v2401 = vunpack.c.h.b16 %v1008
    %v2402 = vunpack.c.l.b16 %v1009
    %v2403 = vunpack.c.h.b16 %v1009
    %v2404 = vunpack.c.l.b16 %v1010
    %v2405 = vunpack.c.h.b16 %v1010
    %v2406 = vunpack.c.l.b16 %v1011
    %v2407 = vunpack.c.h.b16 %v1011
    %v2408 = vunpack.c.l.b16 %v1012
    %v2409 = vunpack.c.h.b16 %v1012
    %v2410 = vunpack.c.l.b16 %v1013
    %v2411 = vunpack.c.h.b16 %v1013
    %v2412 = vunpack.c.l.b16 %v1014
    %v2413 = vunpack.c.h.b16 %v1014
    %v2414 = vunpack.c.l.b16 %v1015
    %v2415 = vunpack.c.h.b16 %v1015
    %v2416 = vunpack.c.l.b16 %v1016
    %v2417 = vunpack.c.h.b16 %v1016
    %v2418 = vunpack.c.l.b16 %v1017
    %v2419 = vunpack.c.h.b16 %v1017
    %v2420 = vunpack.c.l.b16 %v1018
    %v2421 = vunpack.c.h.b16 %v1018
    %v2422 = vunpack.c.l.b16 %v1019
    %v2423 = vunpack.c.h.b16 %v1019
    %v2424 = vunpack.c.l.b16 %v1020
    %v2425 = vunpack.c.h.b16 %v1020
    %v2426 = vunpack.c.l.b16 %v1021
    %v2427 = vunpack.c.h.b16 %v1021
    %v2428 = vunpack.c.l.b16 %v1022
    %v2429 = vunpack.c.h.b16 %v1022
    %v2430 = vunpack.c.l.b16 %v1023
    %v2431 = vunpack.c.h.b16 %v1023
    %v2432 = vunpack.c.l.b16 %v1024
    %v2433 = vunpack.c.h.b16 %v1024
    %v2434 = vunpack.c.l.b16 %v1025
    %v2435 = vunpack.c.h.b16 %v1025
    %v2436 = vunpack.c.l.b16 %v1026
    %v2437 = vunpack.c.h.b16 %v1026
    %v2438 = vunpack.c.l.b16 %v1027
    %v2439 = vunpack.c.h.b16 %v1027
    %v2440 = vunpack.c.l.b16 %v1028
    %v2441 = vunpack.c.h.b16 %v1028
    %v2442 = vunpack.c.l.b16 %v1029
    %v2443 = vunpack.c.h.b16 %v1029
    %v2444 = vunpack.c.l.b16 %v1030
    %v2445 = vunpack.c.h.b16 %v1030
    %v2446 = vunpack.c.l.b16 %v1031
    %v2447 = vunpack.c.h.b16 %v1031
    %v2448 = vunpack.c.l.b16 %v1032
    %v2449 = vunpack.c.h.b16 %v1032
    %v2450 = vunpack.c.l.b16 %v1033
    %v2451 = vunpack.c.h.b16 %v1033
    %v2452 = vunpack.c.l.b16 %v1034
    %v2453 = vunpack.c.h.b16 %v1034
    %v2454 = vunpack.c.l.b16 %v1035
    %v2455 = vunpack.c.h.b16 %v1035
    %v2456 = vunpack.c.l.b16 %v1036
    %v2457 = vunpack.c.h.b16 %v1036
    %v2458 = vunpack.c.l.b16 %v1037
    %v2459 = vunpack.c.h.b16 %v1037
    %v2460 = vunpack.c.l.b16 %v1038
    %v2461 = vunpack.c.h.b16 %v1038
    %v2462 = vunpack.c.l.b16 %v1039
    %v2463 = vunpack.c.h.b16 %v1039
    %v2464 = vunpack.c.l.b16 %v1040
    %v2465 = vunpack.c.h.b16 %v1040
    %v2466 = vunpack.c.l.b16 %v1041
    %v2467 = vunpack.c.h.b16 %v1041
    %v2468 = vunpack.c.l.b16 %v1042
    %v2469 = vunpack.c.h.b16 %v1042
    %v2470 = vunpack.c.l.b16 %v1043
    %v2471 = vunpack.c.h.b16 %v1043
    %v2472 = vunpack.c.l.b16 %v1044
    %v2473 = vunpack.c.h.b16 %v1044
    %v2474 = vunpack.c.l.b16 %v1045
    %v2475 = vunpack.c.h.b16 %v1045
    %v2476 = vunpack.c.l.b16 %v1046
    %v2477 = vunpack.c.h.b16 %v1046
    %v2478 = vunpack.c.l.b16 %v1047
    %v2479 = vunpack.c.h.b16 %v1047
    %v2480 = vunpack.c.l.b16 %v1048
    %v2481 = vunpack.c.h.b16 %v1048
    %v2482 = vunpack.c.l.b16 %v1049
    %v2483 = vunpack.c.h.b16 %v1049
    %v2484 = vunpack.c.l.b16 %v1050
    %v2485 = vunpack.c.h.b16 %v1050
    %v2486 = vunpack.c.l.b16 %v1051
    %v2487 = vunpack.c.h.b16 %v1051
    %v2488 = vunpack.c.l.b16 %v1052
    %v2489 = vunpack.c.h.b16 %v1052
    %v2490 = vunpack.c.l.b16 %v1053
    %v2491 = vunpack.c.h.b16 %v1053
    %v2492 = vunpack.c.l.b16 %v1054
    %v2493 = vunpack.c.h.b16 %v1054
    %v2494 = vunpack.c.l.b16 %v1055
    %v2495 = vunpack.c.h.b16 %v1055
    %v2496 = vunpack.c.l.b16 %v1056
    %v2497 = vunpack.c.h.b16 %v1056
    %v2498 = vunpack.c.l.b16 %v1057
    %v2499 = vunpack.c.h.b16 %v1057
    %v2500 = vunpack.c.l.b16 %v1058
    %v2501 = vunpack.c.h.b16 %v1058
    %v2502 = vunpack.c.l.b16 %v1059
    %v2503 = vunpack.c.h.b16 %v1059
    %v2504 = vunpack.c.l.b16 %v1060
    %v2505 = vunpack.c.h.b16 %v1060
    %v2506 = vunpack.c.l.b16 %v1061
    %v2507 = vunpack.c.h.b16 %v1061
    %v2508 = vunpack.c.l.b16 %v1062
    %v2509 = vunpack.c.h.b16 %v1062
    %v2510 = vunpack.c.l.b16 %v1063
    %v2511 = vunpack.c.h.b16 %v1063
    %v2512 = vunpack.c.l.b16 %v1064
    %v2513 = vunpack.c.h.b16 %v1064
    %v2514 = vunpack.c.l.b16 %v1065
    %v2515 = vunpack.c.h.b16 %v1065
    %v2516 = vunpack.c.l.b16 %v1066
    %v2517 = vunpack.c.h.b16 %v1066
    %v2518 = vunpack.c.l.b16 %v1067
    %v2519 = vunpack.c.h.b16 %v1067
    %v2520 = vunpack.c.l.b16 %v1068
    %v2521 = vunpack.c.h.b16 %v1068
    %v2522 = vunpack.c.l.b16 %v1069
    %v2523 = vunpack.c.h.b16 %v1069
    %v2524 = vunpack.c.l.b16 %v1070
    %v2525 = vunpack.c.h.b16 %v1070
    %v2526 = vunpack.c.l.b16 %v1071
    %v2527 = vunpack.c.h.b16 %v1071
    %v2528 = vunpack.c.l.b16 %v1072
    %v2529 = vunpack.c.h.b16 %v1072
    %v2530 = vunpack.c.l.b16 %v1073
    %v2531 = vunpack.c.h.b16 %v1073
    %v2532 = vunpack.c.l.b16 %v1074
    %v2533 = vunpack.c.h.b16 %v1074
    %v2534 = vunpack.c.l.b16 %v1075
    %v2535 = vunpack.c.h.b16 %v1075
    %v2536 = vunpack.c.l.b16 %v1076
    %v2537 = vunpack.c.h.b16 %v1076
    %v2538 = vunpack.c.l.b16 %v1077
    %v2539 = vunpack.c.h.b16 %v1077
    %v2540 = vunpack.c.l.b16 %v1078
    %v2541 = vunpack.c.h.b16 %v1078
    %v2542 = vunpack.c.l.b16 %v1079
    %v2543 = vunpack.c.h.b16 %v1079
    %v2544 = vunpack.c.l.b16 %v1080
    %v2545 = vunpack.c.h.b16 %v1080
    %v2546 = vunpack.c.l.b16 %v1081
    %v2547 = vunpack.c.h.b16 %v1081
    %v2548 = vunpack.c.l.b16 %v1082
    %v2549 = vunpack.c.h.b16 %v1082
    %v2550 = vunpack.c.l.b16 %v1083
    %v2551 = vunpack.c.h.b16 %v1083
    %v2552 = vunpack.c.l.b16 %v1084
    %v2553 = vunpack.c.h.b16 %v1084
    %v2554 = vunpack.c.l.b16 %v1085
    %v2555 = vunpack.c.h.b16 %v1085
    %v2556 = vunpack.c.l.b16 %v1086
    %v2557 = vunpack.c.h.b16 %v1086
    %v2558 = vunpack.c.l.b16 %v1087
    %v2559 = vunpack.c.h.b16 %v1087
    %v2560 = vunpack.c.l.b16 %v1088
    %v2561 = vunpack.c.h.b16 %v1088
    %v2562 = vunpack.c.l.b16 %v1089
    %v2563 = vunpack.c.h.b16 %v1089
    %v2564 = vunpack.c.l.b16 %v1090
    %v2565 = vunpack.c.h.b16 %v1090
    %v2566 = vunpack.c.l.b16 %v1091
    %v2567 = vunpack.c.h.b16 %v1091
    %v2568 = vunpack.c.l.b16 %v1092
    %v2569 = vunpack.c.h.b16 %v1092
    %v2570 = vunpack.c.l.b16 %v1093
    %v2571 = vunpack.c.h.b16 %v1093
    %v2572 = vunpack.c.l.b16 %v1094
    %v2573 = vunpack.c.h.b16 %v1094
    %v2574 = vunpack.c.l.b16 %v1095
    %v2575 = vunpack.c.h.b16 %v1095
    %v2576 = vunpack.c.l.b16 %v1096
    %v2577 = vunpack.c.h.b16 %v1096
    %v2578 = vunpack.c.l.b16 %v1097
    %v2579 = vunpack.c.h.b16 %v1097
    %v2580 = vunpack.c.l.b16 %v1098
    %v2581 = vunpack.c.h.b16 %v1098
    %v2582 = vunpack.c.l.b16 %v1099
    %v2583 = vunpack.c.h.b16 %v1099
    %v2584 = vunpack.c.l.b16 %v1100
    %v2585 = vunpack.c.h.b16 %v1100
    %v2586 = vunpack.c.l.b16 %v1101
    %v2587 = vunpack.c.h.b16 %v1101
    %v2588 = vunpack.c.l.b16 %v1102
    %v2589 = vunpack.c.h.b16 %v1102
    %v2590 = vunpack.c.l.b16 %v1103
    %v2591 = vunpack.c.h.b16 %v1103
    %v2592 = vunpack.c.l.b16 %v1104
    %v2593 = vunpack.c.h.b16 %v1104
    %v2594 = vunpack.c.l.b16 %v1105
    %v2595 = vunpack.c.h.b16 %v1105
    %v2596 = vunpack.c.l.b16 %v1106
    %v2597 = vunpack.c.h.b16 %v1106
    %v2598 = vunpack.c.l.b16 %v1107
    %v2599 = vunpack.c.h.b16 %v1107
    %v2600 = vunpack.c.l.b16 %v1108
    %v2601 = vunpack.c.h.b16 %v1108
    %v2602 = vunpack.c.l.b16 %v1109
    %v2603 = vunpack.c.h.b16 %v1109
    %v2604 = vunpack.c.l.b16 %v1110
    %v2605 = vunpack.c.h.b16 %v1110
    %v2606 = vunpack.c.l.b16 %v1111
    %v2607 = vunpack.c.h.b16 %v1111
    %v2608 = vunpack.c.l.b16 %v1112
    %v2609 = vunpack.c.h.b16 %v1112
    %v2610 = vunpack.c.l.b16 %v1113
    %v2611 = vunpack.c.h.b16 %v1113
    %v2612 = vunpack.c.l.b16 %v1114
    %v2613 = vunpack.c.h.b16 %v1114
    %v2614 = vunpack.c.l.b16 %v1115
    %v2615 = vunpack.c.h.b16 %v1115
    %v2616 = vunpack.c.l.b16 %v1116
    %v2617 = vunpack.c.h.b16 %v1116
    %v2618 = vunpack.c.l.b16 %v1117
    %v2619 = vunpack.c.h.b16 %v1117
    %v2620 = vunpack.c.l.b16 %v1118
    %v2621 = vunpack.c.h.b16 %v1118
    %v2622 = vunpack.c.l.b16 %v1119
    %v2623 = vunpack.c.h.b16 %v1119
    %v2624 = vunpack.c.l.b16 %v1120
    %v2625 = vunpack.c.h.b16 %v1120
    %v2626 = vunpack.c.l.b16 %v1121
    %v2627 = vunpack.c.h.b16 %v1121
    %v2628 = vunpack.c.l.b16 %v1122
    %v2629 = vunpack.c.h.b16 %v1122
    %v2630 = vunpack.c.l.b16 %v1123
    %v2631 = vunpack.c.h.b16 %v1123
    %v2632 = vunpack.c.l.b16 %v1124
    %v2633 = vunpack.c.h.b16 %v1124
    %v2634 = vunpack.c.l.b16 %v1125
    %v2635 = vunpack.c.h.b16 %v1125
    %v2636 = vunpack.c.l.b16 %v1126
    %v2637 = vunpack.c.h.b16 %v1126
    %v2638 = vunpack.c.l.b16 %v1127
    %v2639 = vunpack.c.h.b16 %v1127
    %v2640 = vunpack.c.l.b16 %v1128
    %v2641 = vunpack.c.h.b16 %v1128
    %v2642 = vunpack.c.l.b16 %v1129
    %v2643 = vunpack.c.h.b16 %v1129
    %v2644 = vunpack.c.l.b16 %v1130
    %v2645 = vunpack.c.h.b16 %v1130
    %v2646 = vunpack.c.l.b16 %v1131
    %v2647 = vunpack.c.h.b16 %v1131
    %v2648 = vunpack.c.l.b16 %v1132
    %v2649 = vunpack.c.h.b16 %v1132
    %v2650 = vunpack.c.l.b16 %v1133
    %v2651 = vunpack.c.h.b16 %v1133
    %v2652 = vunpack.c.l.b16 %v1134
    %v2653 = vunpack.c.h.b16 %v1134
    %v2654 = vunpack.c.l.b16 %v1135
    %v2655 = vunpack.c.h.b16 %v1135
    %v2656 = vunpack.c.l.b16 %v1136
    %v2657 = vunpack.c.h.b16 %v1136
    %v2658 = vunpack.c.l.b16 %v1137
    %v2659 = vunpack.c.h.b16 %v1137
    %v2660 = vunpack.c.l.b16 %v1138
    %v2661 = vunpack.c.h.b16 %v1138
    %v2662 = vunpack.c.l.b16 %v1139
    %v2663 = vunpack.c.h.b16 %v1139
    %v2664 = vunpack.c.l.b16 %v1140
    %v2665 = vunpack.c.h.b16 %v1140
    %v2666 = vunpack.c.l.b16 %v1141
    %v2667 = vunpack.c.h.b16 %v1141
    %v2668 = vunpack.c.l.b16 %v1142
    %v2669 = vunpack.c.h.b16 %v1142
    %v2670 = vunpack.c.l.b16 %v1143
    %v2671 = vunpack.c.h.b16 %v1143
    %v2672 = vunpack.c.l.b16 %v1144
    %v2673 = vunpack.c.h.b16 %v1144
    %v2674 = vunpack.c.l.b16 %v1145
    %v2675 = vunpack.c.h.b16 %v1145
    %v2676 = vunpack.c.l.b16 %v1146
    %v2677 = vunpack.c.h.b16 %v1146
    %v2678 = vunpack.c.l.b16 %v1147
    %v2679 = vunpack.c.h.b16 %v1147
    %v2680 = vunpack.c.l.b16 %v1148
    %v2681 = vunpack.c.h.b16 %v1148
    %v2682 = vunpack.c.l.b16 %v1149
    %v2683 = vunpack.c.h.b16 %v1149
    %v2684 = vunpack.c.l.b16 %v1150
    %v2685 = vunpack.c.h.b16 %v1150
    %v2686 = vunpack.c.l.b16 %v1151
    %v2687 = vunpack.c.h.b16 %v1151
    %v2688 = vpack.c.b16 %v1672, %v1664
    %v2689 = vpack.c.b16 %v1673, %v1665
    %v2690 = vpack.c.b16 %v1674, %v1666
    %v2691 = vpack.c.b16 %v1675, %v1667
    %v2692 = vpack.c.b16 %v1676, %v1668
    %v2693 = vpack.c.b16 %v1677, %v1669
    %v2694 = vpack.c.b16 %v1678, %v1670
    %v2695 = vpack.c.b16 %v1679, %v1671
    %v2696 = vpack.c.b16 %v1688, %v1680
    %v2697 = vpack.c.b16 %v1689, %v1681
    %v2698 = vpack.c.b16 %v1690, %v1682
    %v2699 = vpack.c.b16 %v1691, %v1683
    %v2700 = vpack.c.b16 %v1692, %v1684
    %v2701 = vpack.c.b16 %v1693, %v1685
    %v2702 = vpack.c.b16 %v1694, %v1686
    %v2703 = vpack.c.b16 %v1695, %v1687
    %v2704 = vpack.c.b16 %v1704, %v1696
    %v2705 = vpack.c.b16 %v1705, %v1697
    %v2706 = vpack.c.b16 %v1706, %v1698
    %v2707 = vpack.c.b16 %v1707, %v1699
    %v2708 = vpack.c.b16 %v1708, %v1700
    %v2709 = vpack.c.b16 %v1709, %v1701
    %v2710 = vpack.c.b16 %v1710, %v1702
    %v2711 = vpack.c.b16 %v1711, %v1703
    %v2712 = vpack.c.b16 %v1720, %v1712
    %v2713 = vpack.c.b16 %v1721, %v1713
    %v2714 = vpack.c.b16 %v1722, %v1714
    %v2715 = vpack.c.b16 %v1723, %v1715
    %v2716 = vpack.c.b16 %v1724, %v1716
    %v2717 = vpack.c.b16 %v1725, %v1717
    %v2718 = vpack.c.b16 %v1726, %v1718
    %v2719 = vpack.c.b16 %v1727, %v1719
    %v2720 = vpack.c.b16 %v1736, %v1728
    %v2721 = vpack.c.b16 %v1737, %v1729
    %v2722 = vpack.c.b16 %v1738, %v1730
    %v2723 = vpack.c.b16 %v1739, %v1731
    %v2724 = vpack.c.b16 %v1740, %v1732
    %v2725 = vpack.c.b16 %v1741, %v1733
    %v2726 = vpack.c.b16 %v1742, %v1734
    %v2727 = vpack.c.b16 %v1743, %v1735
    %v2728 = vpack.c.b16 %v1752, %v1744
    %v2729 = vpack.c.b16 %v1753, %v1745
    %v2730 = vpack.c.b16 %v1754, %v1746
    %v2731 = vpack.c.b16 %v1755, %v1747
    %v2732 = vpack.c.b16 %v1756, %v1748
    %v2733 = vpack.c.b16 %v1757, %v1749
    %v2734 = vpack.c.b16 %v1758, %v1750
    %v2735 = vpack.c.b16 %v1759, %v1751
    %v2736 = vpack.c.b16 %v1768, %v1760
    %v2737 = vpack.c.b16 %v1769, %v1761
    %v2738 = vpack.c.b16 %v1770, %v1762
    %v2739 = vpack.c.b16 %v1771, %v1763
    %v2740 = vpack.c.b16 %v1772, %v1764
    %v2741 = vpack.c.b16 %v1773, %v1765
    %v2742 = vpack.c.b16 %v1774, %v1766
    %v2743 = vpack.c.b16 %v1775, %v1767
    %v2744 = vpack.c.b16 %v1784, %v1776
    %v2745 = vpack.c.b16 %v1785, %v1777
    %v2746 = vpack.c.b16 %v1786, %v1778
    %v2747 = vpack.c.b16 %v1787, %v1779
    %v2748 = vpack.c.b16 %v1788, %v1780
    %v2749 = vpack.c.b16 %v1789, %v1781
    %v2750 = vpack.c.b16 %v1790, %v1782
    %v2751 = vpack.c.b16 %v1791, %v1783
    %v2752 = vpack.c.b16 %v1800, %v1792
    %v2753 = vpack.c.b16 %v1801, %v1793
    %v2754 = vpack.c.b16 %v1802, %v1794
    %v2755 = vpack.c.b16 %v1803, %v1795
    %v2756 = vpack.c.b16 %v1804, %v1796
    %v2757 = vpack.c.b16 %v1805, %v1797
    %v2758 = vpack.c.b16 %v1806, %v1798
    %v2759 = vpack.c.b16 %v1807, %v1799
    %v2760 = vpack.c.b16 %v1816, %v1808
    %v2761 = vpack.c.b16 %v1817, %v1809
    %v2762 = vpack.c.b16 %v1818, %v1810
    %v2763 = vpack.c.b16 %v1819, %v1811
    %v2764 = vpack.c.b16 %v1820, %v1812
    %v2765 = vpack.c.b16 %v1821, %v1813
    %v2766 = vpack.c.b16 %v1822, %v1814
    %v2767 = vpack.c.b16 %v1823, %v1815
    %v2768 = vpack.c.b16 %v1832, %v1824
    %v2769 = vpack.c.b16 %v1833, %v1825
    %v2770 = vpack.c.b16 %v1834, %v1826
    %v2771 = vpack.c.b16 %v1835, %v1827
    %v2772 = vpack.c.b16 %v1836, %v1828
    %v2773 = vpack.c.b16 %v1837, %v1829
    %v2774 = vpack.c.b16 %v1838, %v1830
    %v2775 = vpack.c.b16 %v1839, %v1831
    %v2776 = vpack.c.b16 %v1848, %v1840
    %v2777 = vpack.c.b16 %v1849, %v1841
    %v2778 = vpack.c.b16 %v1850, %v1842
    %v2779 = vpack.c.b16 %v1851, %v1843
    %v2780 = vpack.c.b16 %v1852, %v1844
    %v2781 = vpack.c.b16 %v1853, %v1845
    %v2782 = vpack.c.b16 %v1854, %v1846
    %v2783 = vpack.c.b16 %v1855, %v1847
    %v2784 = vpack.c.b16 %v1864, %v1856
    %v2785 = vpack.c.b16 %v1865, %v1857
    %v2786 = vpack.c.b16 %v1866, %v1858
    %v2787 = vpack.c.b16 %v1867, %v1859
    %v2788 = vpack.c.b16 %v1868, %v1860
    %v2789 = vpack.c.b16 %v1869, %v1861
    %v2790 = vpack.c.b16 %v1870, %v1862
    %v2791 = vpack.c.b16 %v1871, %v1863
    %v2792 = vpack.c.b16 %v1880, %v1872
    %v2793 = vpack.c.b16 %v1881, %v1873
    %v2794 = vpack.c.b16 %v1882, %v1874
    %v2795 = vpack.c.b16 %v1883, %v1875
    %v2796 = vpack.c.b16 %v1884, %v1876
    %v2797 = vpack.c.b16 %v1885, %v1877
    %v2798 = vpack.c.b16 %v1886, %v1878
    %v2799 = vpack.c.b16 %v1887, %v1879
    %v2800 = vpack.c.b16 %v1896, %v1888
    %v2801 = vpack.c.b16 %v1897, %v1889
    %v2802 = vpack.c.b16 %v1898, %v1890
    %v2803 = vpack.c.b16 %v1899, %v1891
    %v2804 = vpack.c.b16 %v1900, %v1892
    %v2805 = vpack.c.b16 %v1901, %v1893
    %v2806 = vpack.c.b16 %v1902, %v1894
    %v2807 = vpack.c.b16 %v1903, %v1895
    %v2808 = vpack.c.b16 %v1912, %v1904
    %v2809 = vpack.c.b16 %v1913, %v1905
    %v2810 = vpack.c.b16 %v1914, %v1906
    %v2811 = vpack.c.b16 %v1915, %v1907
    %v2812 = vpack.c.b16 %v1916, %v1908
    %v2813 = vpack.c.b16 %v1917, %v1909
    %v2814 = vpack.c.b16 %v1918, %v1910
    %v2815 = vpack.c.b16 %v1919, %v1911
    %v2816 = vpack.c.b16 %v1928, %v1920
    %v2817 = vpack.c.b16 %v1929, %v1921
    %v2818 = vpack.c.b16 %v1930, %v1922
    %v2819 = vpack.c.b16 %v1931, %v1923
    %v2820 = vpack.c.b16 %v1932, %v1924
    %v2821 = vpack.c.b16 %v1933, %v1925
    %v2822 = vpack.c.b16 %v1934, %v1926
    %v2823 = vpack.c.b16 %v1935, %v1927
    %v2824 = vpack.c.b16 %v1944, %v1936
    %v2825 = vpack.c.b16 %v1945, %v1937
    %v2826 = vpack.c.b16 %v1946, %v1938
    %v2827 = vpack.c.b16 %v1947, %v1939
    %v2828 = vpack.c.b16 %v1948, %v1940
    %v2829 = vpack.c.b16 %v1949, %v1941
    %v2830 = vpack.c.b16 %v1950, %v1942
    %v2831 = vpack.c.b16 %v1951, %v1943
    %v2832 = vpack.c.b16 %v1960, %v1952
    %v2833 = vpack.c.b16 %v1961, %v1953
    %v2834 = vpack.c.b16 %v1962, %v1954
    %v2835 = vpack.c.b16 %v1963, %v1955
    %v2836 = vpack.c.b16 %v1964, %v1956
    %v2837 = vpack.c.b16 %v1965, %v1957
    %v2838 = vpack.c.b16 %v1966, %v1958
    %v2839 = vpack.c.b16 %v1967, %v1959
    %v2840 = vpack.c.b16 %v1976, %v1968
    %v2841 = vpack.c.b16 %v1977, %v1969
    %v2842 = vpack.c.b16 %v1978, %v1970
    %v2843 = vpack.c.b16 %v1979, %v1971
    %v2844 = vpack.c.b16 %v1980, %v1972
    %v2845 = vpack.c.b16 %v1981, %v1973
    %v2846 = vpack.c.b16 %v1982, %v1974
    %v2847 = vpack.c.b16 %v1983, %v1975
    %v2848 = vpack.c.b16 %v1992, %v1984
    %v2849 = vpack.c.b16 %v1993, %v1985
    %v2850 = vpack.c.b16 %v1994, %v1986
    %v2851 = vpack.c.b16 %v1995, %v1987
    %v2852 = vpack.c.b16 %v1996, %v1988
    %v2853 = vpack.c.b16 %v1997, %v1989
    %v2854 = vpack.c.b16 %v1998, %v1990
    %v2855 = vpack.c.b16 %v1999, %v1991
    %v2856 = vpack.c.b16 %v2008, %v2000
    %v2857 = vpack.c.b16 %v2009, %v2001
    %v2858 = vpack.c.b16 %v2010, %v2002
    %v2859 = vpack.c.b16 %v2011, %v2003
    %v2860 = vpack.c.b16 %v2012, %v2004
    %v2861 = vpack.c.b16 %v2013, %v2005
    %v2862 = vpack.c.b16 %v2014, %v2006
    %v2863 = vpack.c.b16 %v2015, %v2007
    %v2864 = vpack.c.b16 %v2024, %v2016
    %v2865 = vpack.c.b16 %v2025, %v2017
    %v2866 = vpack.c.b16 %v2026, %v2018
    %v2867 = vpack.c.b16 %v2027, %v2019
    %v2868 = vpack.c.b16 %v2028, %v2020
    %v2869 = vpack.c.b16 %v2029, %v2021
    %v2870 = vpack.c.b16 %v2030, %v2022
    %v2871 = vpack.c.b16 %v2031, %v2023
    %v2872 = vpack.c.b16 %v2040, %v2032
    %v2873 = vpack.c.b16 %v2041, %v2033
    %v2874 = vpack.c.b16 %v2042, %v2034
    %v2875 = vpack.c.b16 %v2043, %v2035
    %v2876 = vpack.c.b16 %v2044, %v2036
    %v2877 = vpack.c.b16 %v2045, %v2037
    %v2878 = vpack.c.b16 %v2046, %v2038
    %v2879 = vpack.c.b16 %v2047, %v2039
    %v2880 = vpack.c.b16 %v2056, %v2048
    %v2881 = vpack.c.b16 %v2057, %v2049
    %v2882 = vpack.c.b16 %v2058, %v2050
    %v2883 = vpack.c.b16 %v2059, %v2051
    %v2884 = vpack.c.b16 %v2060, %v2052
    %v2885 = vpack.c.b16 %v2061, %v2053
    %v2886 = vpack.c.b16 %v2062, %v2054
    %v2887 = vpack.c.b16 %v2063, %v2055
    %v2888 = vpack.c.b16 %v2072, %v2064
    %v2889 = vpack.c.b16 %v2073, %v2065
    %v2890 = vpack.c.b16 %v2074, %v2066
    %v2891 = vpack.c.b16 %v2075, %v2067
    %v2892 = vpack.c.b16 %v2076, %v2068
    %v2893 = vpack.c.b16 %v2077, %v2069
    %v2894 = vpack.c.b16 %v2078, %v2070
    %v2895 = vpack.c.b16 %v2079, %v2071
    %v2896 = vpack.c.b16 %v2088, %v2080
    %v2897 = vpack.c.b16 %v2089, %v2081
    %v2898 = vpack.c.b16 %v2090, %v2082
    %v2899 = vpack.c.b16 %v2091, %v2083
    %v2900 = vpack.c.b16 %v2092, %v2084
    %v2901 = vpack.c.b16 %v2093, %v2085
    %v2902 = vpack.c.b16 %v2094, %v2086
    %v2903 = vpack.c.b16 %v2095, %v2087
    %v2904 = vpack.c.b16 %v2104, %v2096
    %v2905 = vpack.c.b16 %v2105, %v2097
    %v2906 = vpack.c.b16 %v2106, %v2098
    %v2907 = vpack.c.b16 %v2107, %v2099
    %v2908 = vpack.c.b16 %v2108, %v2100
    %v2909 = vpack.c.b16 %v2109, %v2101
    %v2910 = vpack.c.b16 %v2110, %v2102
    %v2911 = vpack.c.b16 %v2111, %v2103
    %v2912 = vpack.c.b16 %v2120, %v2112
    %v2913 = vpack.c.b16 %v2121, %v2113
    %v2914 = vpack.c.b16 %v2122, %v2114
    %v2915 = vpack.c.b16 %v2123, %v2115
    %v2916 = vpack.c.b16 %v2124, %v2116
    %v2917 = vpack.c.b16 %v2125, %v2117
    %v2918 = vpack.c.b16 %v2126, %v2118
    %v2919 = vpack.c.b16 %v2127, %v2119
    %v2920 = vpack.c.b16 %v2136, %v2128
    %v2921 = vpack.c.b16 %v2137, %v2129
    %v2922 = vpack.c.b16 %v2138, %v2130
    %v2923 = vpack.c.b16 %v2139, %v2131
    %v2924 = vpack.c.b16 %v2140, %v2132
    %v2925 = vpack.c.b16 %v2141, %v2133
    %v2926 = vpack.c.b16 %v2142, %v2134
    %v2927 = vpack.c.b16 %v2143, %v2135
    %v2928 = vpack.c.b16 %v2152, %v2144
    %v2929 = vpack.c.b16 %v2153, %v2145
    %v2930 = vpack.c.b16 %v2154, %v2146
    %v2931 = vpack.c.b16 %v2155, %v2147
    %v2932 = vpack.c.b16 %v2156, %v2148
    %v2933 = vpack.c.b16 %v2157, %v2149
    %v2934 = vpack.c.b16 %v2158, %v2150
    %v2935 = vpack.c.b16 %v2159, %v2151
    %v2936 = vpack.c.b16 %v2168, %v2160
    %v2937 = vpack.c.b16 %v2169, %v2161
    %v2938 = vpack.c.b16 %v2170, %v2162
    %v2939 = vpack.c.b16 %v2171, %v2163
    %v2940 = vpack.c.b16 %v2172, %v2164
    %v2941 = vpack.c.b16 %v2173, %v2165
    %v2942 = vpack.c.b16 %v2174, %v2166
    %v2943 = vpack.c.b16 %v2175, %v2167
    %v2944 = vpack.c.b16 %v2184, %v2176
    %v2945 = vpack.c.b16 %v2185, %v2177
    %v2946 = vpack.c.b16 %v2186, %v2178
    %v2947 = vpack.c.b16 %v2187, %v2179
    %v2948 = vpack.c.b16 %v2188, %v2180
    %v2949 = vpack.c.b16 %v2189, %v2181
    %v2950 = vpack.c.b16 %v2190, %v2182
    %v2951 = vpack.c.b16 %v2191, %v2183
    %v2952 = vpack.c.b16 %v2200, %v2192
    %v2953 = vpack.c.b16 %v2201, %v2193
    %v2954 = vpack.c.b16 %v2202, %v2194
    %v2955 = vpack.c.b16 %v2203, %v2195
    %v2956 = vpack.c.b16 %v2204, %v2196
    %v2957 = vpack.c.b16 %v2205, %v2197
    %v2958 = vpack.c.b16 %v2206, %v2198
    %v2959 = vpack.c.b16 %v2207, %v2199
    %v2960 = vpack.c.b16 %v2216, %v2208
    %v2961 = vpack.c.b16 %v2217, %v2209
    %v2962 = vpack.c.b16 %v2218, %v2210
    %v2963 = vpack.c.b16 %v2219, %v2211
    %v2964 = vpack.c.b16 %v2220, %v2212
    %v2965 = vpack.c.b16 %v2221, %v2213
    %v2966 = vpack.c.b16 %v2222, %v2214
    %v2967 = vpack.c.b16 %v2223, %v2215
    %v2968 = vpack.c.b16 %v2232, %v2224
    %v2969 = vpack.c.b16 %v2233, %v2225
    %v2970 = vpack.c.b16 %v2234, %v2226
    %v2971 = vpack.c.b16 %v2235, %v2227
    %v2972 = vpack.c.b16 %v2236, %v2228
    %v2973 = vpack.c.b16 %v2237, %v2229
    %v2974 = vpack.c.b16 %v2238, %v2230
    %v2975 = vpack.c.b16 %v2239, %v2231
    %v2976 = vpack.c.b16 %v2248, %v2240
    %v2977 = vpack.c.b16 %v2249, %v2241
    %v2978 = vpack.c.b16 %v2250, %v2242
    %v2979 = vpack.c.b16 %v2251, %v2243
    %v2980 = vpack.c.b16 %v2252, %v2244
    %v2981 = vpack.c.b16 %v2253, %v2245
    %v2982 = vpack.c.b16 %v2254, %v2246
    %v2983 = vpack.c.b16 %v2255, %v2247
    %v2984 = vpack.c.b16 %v2264, %v2256
    %v2985 = vpack.c.b16 %v2265, %v2257
    %v2986 = vpack.c.b16 %v2266, %v2258
    %v2987 = vpack.c.b16 %v2267, %v2259
    %v2988 = vpack.c.b16 %v2268, %v2260
    %v2989 = vpack.c.b16 %v2269, %v2261
    %v2990 = vpack.c.b16 %v2270, %v2262
    %v2991 = vpack.c.b16 %v2271, %v2263
    %v2992 = vpack.c.b16 %v2280, %v2272
    %v2993 = vpack.c.b16 %v2281, %v2273
    %v2994 = vpack.c.b16 %v2282, %v2274
    %v2995 = vpack.c.b16 %v2283, %v2275
    %v2996 = vpack.c.b16 %v2284, %v2276
    %v2997 = vpack.c.b16 %v2285, %v2277
    %v2998 = vpack.c.b16 %v2286, %v2278
    %v2999 = vpack.c.b16 %v2287, %v2279
    %v3000 = vpack.c.b16 %v2296, %v2288
    %v3001 = vpack.c.b16 %v2297, %v2289
    %v3002 = vpack.c.b16 %v2298, %v2290
    %v3003 = vpack.c.b16 %v2299, %v2291
    %v3004 = vpack.c.b16 %v2300, %v2292
    %v3005 = vpack.c.b16 %v2301, %v2293
    %v3006 = vpack.c.b16 %v2302, %v2294
    %v3007 = vpack.c.b16 %v2303, %v2295
    %v3008 = vpack.c.b16 %v2312, %v2304
    %v3009 = vpack.c.b16 %v2313, %v2305
    %v3010 = vpack.c.b16 %v2314, %v2306
    %v3011 = vpack.c.b16 %v2315, %v2307
    %v3012 = vpack.c.b16 %v2316, %v2308
    %v3013 = vpack.c.b16 %v2317, %v2309
    %v3014 = vpack.c.b16 %v2318, %v2310
    %v3015 = vpack.c.b16 %v2319, %v2311
    %v3016 = vpack.c.b16 %v2328, %v2320
    %v3017 = vpack.c.b16 %v2329, %v2321
    %v3018 = vpack.c.b16 %v2330, %v2322
    %v3019 = vpack.c.b16 %v2331, %v2323
    %v3020 = vpack.c.b16 %v2332, %v2324
    %v3021 = vpack.c.b16 %v2333, %v2325
    %v3022 = vpack.c.b16 %v2334, %v2326
    %v3023 = vpack.c.b16 %v2335, %v2327
    %v3024 = vpack.c.b16 %v2344, %v2336
    %v3025 = vpack.c.b16 %v2345, %v2337
    %v3026 = vpack.c.b16 %v2346, %v2338
    %v3027 = vpack.c.b16 %v2347, %v2339
    %v3028 = vpack.c.b16 %v2348, %v2340
    %v3029 = vpack.c.b16 %v2349, %v2341
    %v3030 = vpack.c.b16 %v2350, %v2342
    %v3031 = vpack.c.b16 %v2351, %v2343
    %v3032 = vpack.c.b16 %v2360, %v2352
    %v3033 = vpack.c.b16 %v2361, %v2353
    %v3034 = vpack.c.b16 %v2362, %v2354
    %v3035 = vpack.c.b16 %v2363, %v2355
    %v3036 = vpack.c.b16 %v2364, %v2356
    %v3037 = vpack.c.b16 %v2365, %v2357
    %v3038 = vpack.c.b16 %v2366, %v2358
    %v3039 = vpack.c.b16 %v2367, %v2359
    %v3040 = vpack.c.b16 %v2376, %v2368
    %v3041 = vpack.c.b16 %v2377, %v2369
    %v3042 = vpack.c.b16 %v2378, %v2370
    %v3043 = vpack.c.b16 %v2379, %v2371
    %v3044 = vpack.c.b16 %v2380, %v2372
    %v3045 = vpack.c.b16 %v2381, %v2373
    %v3046 = vpack.c.b16 %v2382, %v2374
    %v3047 = vpack.c.b16 %v2383, %v2375
    %v3048 = vpack.c.b16 %v2392, %v2384
    %v3049 = vpack.c.b16 %v2393, %v2385
    %v3050 = vpack.c.b16 %v2394, %v2386
    %v3051 = vpack.c.b16 %v2395, %v2387
    %v3052 = vpack.c.b16 %v2396, %v2388
    %v3053 = vpack.c.b16 %v2397, %v2389
    %v3054 = vpack.c.b16 %v2398, %v2390
    %v3055 = vpack.c.b16 %v2399, %v2391
    %v3056 = vpack.c.b16 %v2408, %v2400
    %v3057 = vpack.c.b16 %v2409, %v2401
    %v3058 = vpack.c.b16 %v2410, %v2402
    %v3059 = vpack.c.b16 %v2411, %v2403
    %v3060 = vpack.c.b16 %v2412, %v2404
    %v3061 = vpack.c.b16 %v2413, %v2405
    %v3062 = vpack.c.b16 %v2414, %v2406
    %v3063 = vpack.c.b16 %v2415, %v2407
    %v3064 = vpack.c.b16 %v2424, %v2416
    %v3065 = vpack.c.b16 %v2425, %v2417
    %v3066 = vpack.c.b16 %v2426, %v2418
    %v3067 = vpack.c.b16 %v2427, %v2419
    %v3068 = vpack.c.b16 %v2428, %v2420
    %v3069 = vpack.c.b16 %v2429, %v2421
    %v3070 = vpack.c.b16 %v2430, %v2422
    %v3071 = vpack.c.b16 %v2431, %v2423
    %v3072 = vpack.c.b16 %v2440, %v2432
    %v3073 = vpack.c.b16 %v2441, %v2433
    %v3074 = vpack.c.b16 %v2442, %v2434
    %v3075 = vpack.c.b16 %v2443, %v2435
    %v3076 = vpack.c.b16 %v2444, %v2436
    %v3077 = vpack.c.b16 %v2445, %v2437
    %v3078 = vpack.c.b16 %v2446, %v2438
    %v3079 = vpack.c.b16 %v2447, %v2439
    %v3080 = vpack.c.b16 %v2456, %v2448
    %v3081 = vpack.c.b16 %v2457, %v2449
    %v3082 = vpack.c.b16 %v2458, %v2450
    %v3083 = vpack.c.b16 %v2459, %v2451
    %v3084 = vpack.c.b16 %v2460, %v2452
    %v3085 = vpack.c.b16 %v2461, %v2453
    %v3086 = vpack.c.b16 %v2462, %v2454
    %v3087 = vpack.c.b16 %v2463, %v2455
    %v3088 = vpack.c.b16 %v2472, %v2464
    %v3089 = vpack.c.b16 %v2473, %v2465
    %v3090 = vpack.c.b16 %v2474, %v2466
    %v3091 = vpack.c.b16 %v2475, %v2467
    %v3092 = vpack.c.b16 %v2476, %v2468
    %v3093 = vpack.c.b16 %v2477, %v2469
    %v3094 = vpack.c.b16 %v2478, %v2470
    %v3095 = vpack.c.b16 %v2479, %v2471
    %v3096 = vpack.c.b16 %v2488, %v2480
    %v3097 = vpack.c.b16 %v2489, %v2481
    %v3098 = vpack.c.b16 %v2490, %v2482
    %v3099 = vpack.c.b16 %v2491, %v2483
    %v3100 = vpack.c.b16 %v2492, %v2484
    %v3101 = vpack.c.b16 %v2493, %v2485
    %v3102 = vpack.c.b16 %v2494, %v2486
    %v3103 = vpack.c.b16 %v2495, %v2487
    %v3104 = vpack.c.b16 %v2504, %v2496
    %v3105 = vpack.c.b16 %v2505, %v2497
    %v3106 = vpack.c.b16 %v2506, %v2498
    %v3107 = vpack.c.b16 %v2507, %v2499
    %v3108 = vpack.c.b16 %v2508, %v2500
    %v3109 = vpack.c.b16 %v2509, %v2501
    %v3110 = vpack.c.b16 %v2510, %v2502
    %v3111 = vpack.c.b16 %v2511, %v2503
    %v3112 = vpack.c.b16 %v2520, %v2512
    %v3113 = vpack.c.b16 %v2521, %v2513
    %v3114 = vpack.c.b16 %v2522, %v2514
    %v3115 = vpack.c.b16 %v2523, %v2515
    %v3116 = vpack.c.b16 %v2524, %v2516
    %v3117 = vpack.c.b16 %v2525, %v2517
    %v3118 = vpack.c.b16 %v2526, %v2518
    %v3119 = vpack.c.b16 %v2527, %v2519
    %v3120 = vpack.c.b16 %v2536, %v2528
    %v3121 = vpack.c.b16 %v2537, %v2529
    %v3122 = vpack.c.b16 %v2538, %v2530
    %v3123 = vpack.c.b16 %v2539, %v2531
    %v3124 = vpack.c.b16 %v2540, %v2532
    %v3125 = vpack.c.b16 %v2541, %v2533
    %v3126 = vpack.c.b16 %v2542, %v2534
    %v3127 = vpack.c.b16 %v2543, %v2535
    %v3128 = vpack.c.b16 %v2552, %v2544
    %v3129 = vpack.c.b16 %v2553, %v2545
    %v3130 = vpack.c.b16 %v2554, %v2546
    %v3131 = vpack.c.b16 %v2555, %v2547
    %v3132 = vpack.c.b16 %v2556, %v2548
    %v3133 = vpack.c.b16 %v2557, %v2549
    %v3134 = vpack.c.b16 %v2558, %v2550
    %v3135 = vpack.c.b16 %v2559, %v2551
    %v3136 = vpack.c.b16 %v2568, %v2560
    %v3137 = vpack.c.b16 %v2569, %v2561
    %v3138 = vpack.c.b16 %v2570, %v2562
    %v3139 = vpack.c.b16 %v2571, %v2563
    %v3140 = vpack.c.b16 %v2572, %v2564
    %v3141 = vpack.c.b16 %v2573, %v2565
    %v3142 = vpack.c.b16 %v2574, %v2566
    %v3143 = vpack.c.b16 %v2575, %v2567
    %v3144 = vpack.c.b16 %v2584, %v2576
    %v3145 = vpack.c.b16 %v2585, %v2577
    %v3146 = vpack.c.b16 %v2586, %v2578
    %v3147 = vpack.c.b16 %v2587, %v2579
    %v3148 = vpack.c.b16 %v2588, %v2580
    %v3149 = vpack.c.b16 %v2589, %v2581
    %v3150 = vpack.c.b16 %v2590, %v2582
    %v3151 = vpack.c.b16 %v2591, %v2583
    %v3152 = vpack.c.b16 %v2600, %v2592
    %v3153 = vpack.c.b16 %v2601, %v2593
    %v3154 = vpack.c.b16 %v2602, %v2594
    %v3155 = vpack.c.b16 %v2603, %v2595
    %v3156 = vpack.c.b16 %v2604, %v2596
    %v3157 = vpack.c.b16 %v2605, %v2597
    %v3158 = vpack.c.b16 %v2606, %v2598
    %v3159 = vpack.c.b16 %v2607, %v2599
    %v3160 = vpack.c.b16 %v2616, %v2608
    %v3161 = vpack.c.b16 %v2617, %v2609
    %v3162 = vpack.c.b16 %v2618, %v2610
    %v3163 = vpack.c.b16 %v2619, %v2611
    %v3164 = vpack.c.b16 %v2620, %v2612
    %v3165 = vpack.c.b16 %v2621, %v2613
    %v3166 = vpack.c.b16 %v2622, %v2614
    %v3167 = vpack.c.b16 %v2623, %v2615
    %v3168 = vpack.c.b16 %v2632, %v2624
    %v3169 = vpack.c.b16 %v2633, %v2625
    %v3170 = vpack.c.b16 %v2634, %v2626
    %v3171 = vpack.c.b16 %v2635, %v2627
    %v3172 = vpack.c.b16 %v2636, %v2628
    %v3173 = vpack.c.b16 %v2637, %v2629
    %v3174 = vpack.c.b16 %v2638, %v2630
    %v3175 = vpack.c.b16 %v2639, %v2631
    %v3176 = vpack.c.b16 %v2648, %v2640
    %v3177 = vpack.c.b16 %v2649, %v2641
    %v3178 = vpack.c.b16 %v2650, %v2642
    %v3179 = vpack.c.b16 %v2651, %v2643
    %v3180 = vpack.c.b16 %v2652, %v2644
    %v3181 = vpack.c.b16 %v2653, %v2645
    %v3182 = vpack.c.b16 %v2654, %v2646
    %v3183 = vpack.c.b16 %v2655, %v2647
    %v3184 = vpack.c.b16 %v2664, %v2656
    %v3185 = vpack.c.b16 %v2665, %v2657
    %v3186 = vpack.c.b16 %v2666, %v2658
    %v3187 = vpack.c.b16 %v2667, %v2659
    %v3188 = vpack.c.b16 %v2668, %v2660
    %v3189 = vpack.c.b16 %v2669, %v2661
    %v3190 = vpack.c.b16 %v2670, %v2662
    %v3191 = vpack.c.b16 %v2671, %v2663
    %v3192 = vpack.c.b16 %v2680, %v2672
    %v3193 = vpack.c.b16 %v2681, %v2673
    %v3194 = vpack.c.b16 %v2682, %v2674
    %v3195 = vpack.c.b16 %v2683, %v2675
    %v3196 = vpack.c.b16 %v2684, %v2676
    %v3197 = vpack.c.b16 %v2685, %v2677
    %v3198 = vpack.c.b16 %v2686, %v2678
    %v3199 = vpack.c.b16 %v2687, %v2679
    %3712 = vmatpush.bf16.msra.mxu0 %v2744
    %3713 = vmatpush.bf16.msra.mxu0 %v2736
    %3714 = vmatpush.bf16.msra.mxu0 %v2728
    %3715 = vmatpush.bf16.msra.mxu0 %v2720
    %3716 = vmatpush.bf16.msra.mxu0 %v2712
    %3717 = vmatpush.bf16.msra.mxu0 %v2704
    %3718 = vmatpush.bf16.msra.mxu0 %v2696
    %3719 = vmatpush.bf16.msra.mxu0 %v2688
    %3720 = vmatmul.bf16.gmra.mxu0 %v600
    %v3721 = vpop.f32.mrf.mxu0
    %v3722 = vadd.f32 0.0, %v3721
    %v3723 = vpop.f32.mrf.mxu0
    %v3724 = vadd.f32 0.0, %v3723
    %3725 = vmatmul.bf16.gmra.mxu0 %v608
    %v3726 = vpop.f32.mrf.mxu0
    %v3727 = vadd.f32 0.0, %v3726
    %v3728 = vpop.f32.mrf.mxu0
    %v3729 = vadd.f32 0.0, %v3728
    %3730 = vmatmul.bf16.gmra.mxu0 %v616
    %v3731 = vpop.f32.mrf.mxu0
    %v3732 = vadd.f32 0.0, %v3731
    %v3733 = vpop.f32.mrf.mxu0
    %v3734 = vadd.f32 0.0, %v3733
    %3735 = vmatmul.bf16.gmra.mxu0 %v624
    %v3736 = vpop.f32.mrf.mxu0
    %v3737 = vadd.f32 0.0, %v3736
    %v3738 = vpop.f32.mrf.mxu0
    %v3739 = vadd.f32 0.0, %v3738
    %3740 = vmatmul.bf16.gmra.mxu0 %v632
    %v3741 = vpop.f32.mrf.mxu0
    %v3742 = vadd.f32 0.0, %v3741
    %v3743 = vpop.f32.mrf.mxu0
    %3744 = vdwg.mxu0
    %3745 = vmatpush.bf16.msra.mxu0 %v2808
    %3746 = vmatpush.bf16.msra.mxu0 %v2800
    %3747 = vmatpush.bf16.msra.mxu0 %v2792
    %3748 = vmatpush.bf16.msra.mxu0 %v2784
    %3749 = vmatpush.bf16.msra.mxu0 %v2776
    %3750 = vmatpush.bf16.msra.mxu0 %v2768
    %3751 = vmatpush.bf16.msra.mxu0 %v2760
    %3752 = vmatpush.bf16.msra.mxu0 %v2752
    %3753 = vmatmul.bf16.gmra.mxu0 %v601
    %v3754 = vpop.f32.mrf.mxu0
    %v3755 = vadd.f32 %v3722, %v3754
    %v3756 = vpop.f32.mrf.mxu0
    %v3757 = vadd.f32 %v3724, %v3756
    %3758 = vmatmul.bf16.gmra.mxu0 %v609
    %v3759 = vpop.f32.mrf.mxu0
    %v3760 = vadd.f32 %v3727, %v3759
    %v3761 = vpop.f32.mrf.mxu0
    %v3762 = vadd.f32 %v3729, %v3761
    %3763 = vmatmul.bf16.gmra.mxu0 %v617
    %v3764 = vpop.f32.mrf.mxu0
    %v3765 = vadd.f32 %v3732, %v3764
    %v3766 = vpop.f32.mrf.mxu0
    %v3767 = vadd.f32 %v3734, %v3766
    %3768 = vmatmul.bf16.gmra.mxu0 %v625
    %v3769 = vpop.f32.mrf.mxu0
    %v3770 = vadd.f32 %v3737, %v3769
    %v3771 = vpop.f32.mrf.mxu0
    %v3772 = vadd.f32 %v3739, %v3771
    %3773 = vmatmul.bf16.gmra.mxu0 %v633
    %v3774 = vpop.f32.mrf.mxu0
    %v3775 = vadd.f32 %v3742, %v3774
    %v3776 = vpop.f32.mrf.mxu0
    %3777 = vdwg.mxu0
    %3778 = vmatpush.bf16.msra.mxu0 %v2872
    %3779 = vmatpush.bf16.msra.mxu0 %v2864
    %3780 = vmatpush.bf16.msra.mxu0 %v2856
    %3781 = vmatpush.bf16.msra.mxu0 %v2848
    %3782 = vmatpush.bf16.msra.mxu0 %v2840
    %3783 = vmatpush.bf16.msra.mxu0 %v2832
    %3784 = vmatpush.bf16.msra.mxu0 %v2824
    %3785 = vmatpush.bf16.msra.mxu0 %v2816
    %3786 = vmatmul.bf16.gmra.mxu0 %v602
    %v3787 = vpop.f32.mrf.mxu0
    %v3788 = vadd.f32 %v3755, %v3787
    %v3789 = vpop.f32.mrf.mxu0
    %v3790 = vadd.f32 %v3757, %v3789
    %3791 = vmatmul.bf16.gmra.mxu0 %v610
    %v3792 = vpop.f32.mrf.mxu0
    %v3793 = vadd.f32 %v3760, %v3792
    %v3794 = vpop.f32.mrf.mxu0
    %v3795 = vadd.f32 %v3762, %v3794
    %3796 = vmatmul.bf16.gmra.mxu0 %v618
    %v3797 = vpop.f32.mrf.mxu0
    %v3798 = vadd.f32 %v3765, %v3797
    %v3799 = vpop.f32.mrf.mxu0
    %v3800 = vadd.f32 %v3767, %v3799
    %3801 = vmatmul.bf16.gmra.mxu0 %v626
    %v3802 = vpop.f32.mrf.mxu0
    %v3803 = vadd.f32 %v3770, %v3802
    %v3804 = vpop.f32.mrf.mxu0
    %v3805 = vadd.f32 %v3772, %v3804
    %3806 = vmatmul.bf16.gmra.mxu0 %v634
    %v3807 = vpop.f32.mrf.mxu0
    %v3808 = vadd.f32 %v3775, %v3807
    %v3809 = vpop.f32.mrf.mxu0
    %3810 = vdwg.mxu0
    %3811 = vmatpush.bf16.msra.mxu0 %v2936
    %3812 = vmatpush.bf16.msra.mxu0 %v2928
    %3813 = vmatpush.bf16.msra.mxu0 %v2920
    %3814 = vmatpush.bf16.msra.mxu0 %v2912
    %3815 = vmatpush.bf16.msra.mxu0 %v2904
    %3816 = vmatpush.bf16.msra.mxu0 %v2896
    %3817 = vmatpush.bf16.msra.mxu0 %v2888
    %3818 = vmatpush.bf16.msra.mxu0 %v2880
    %3819 = vmatmul.bf16.gmra.mxu0 %v603
    %v3820 = vpop.f32.mrf.mxu0
    %v3821 = vadd.f32 %v3788, %v3820
    %v3822 = vpop.f32.mrf.mxu0
    %v3823 = vadd.f32 %v3790, %v3822
    %3824 = vmatmul.bf16.gmra.mxu0 %v611
    %v3825 = vpop.f32.mrf.mxu0
    %v3826 = vadd.f32 %v3793, %v3825
    %v3827 = vpop.f32.mrf.mxu0
    %v3828 = vadd.f32 %v3795, %v3827
    %3829 = vmatmul.bf16.gmra.mxu0 %v619
    %v3830 = vpop.f32.mrf.mxu0
    %v3831 = vadd.f32 %v3798, %v3830
    %v3832 = vpop.f32.mrf.mxu0
    %v3833 = vadd.f32 %v3800, %v3832
    %3834 = vmatmul.bf16.gmra.mxu0 %v627
    %v3835 = vpop.f32.mrf.mxu0
    %v3836 = vadd.f32 %v3803, %v3835
    %v3837 = vpop.f32.mrf.mxu0
    %v3838 = vadd.f32 %v3805, %v3837
    %3839 = vmatmul.bf16.gmra.mxu0 %v635
    %v3840 = vpop.f32.mrf.mxu0
    %v3841 = vadd.f32 %v3808, %v3840
    %v3842 = vpop.f32.mrf.mxu0
    %3843 = vdwg.mxu0
    %3844 = vmatpush.bf16.msra.mxu0 %v3000
    %3845 = vmatpush.bf16.msra.mxu0 %v2992
    %3846 = vmatpush.bf16.msra.mxu0 %v2984
    %3847 = vmatpush.bf16.msra.mxu0 %v2976
    %3848 = vmatpush.bf16.msra.mxu0 %v2968
    %3849 = vmatpush.bf16.msra.mxu0 %v2960
    %3850 = vmatpush.bf16.msra.mxu0 %v2952
    %3851 = vmatpush.bf16.msra.mxu0 %v2944
    %3852 = vmatmul.bf16.gmra.mxu0 %v604
    %v3853 = vpop.f32.mrf.mxu0
    %v3854 = vadd.f32 %v3821, %v3853
    %v3855 = vpop.f32.mrf.mxu0
    %v3856 = vadd.f32 %v3823, %v3855
    %3857 = vmatmul.bf16.gmra.mxu0 %v612
    %v3858 = vpop.f32.mrf.mxu0
    %v3859 = vadd.f32 %v3826, %v3858
    %v3860 = vpop.f32.mrf.mxu0
    %v3861 = vadd.f32 %v3828, %v3860
    %3862 = vmatmul.bf16.gmra.mxu0 %v620
    %v3863 = vpop.f32.mrf.mxu0
    %v3864 = vadd.f32 %v3831, %v3863
    %v3865 = vpop.f32.mrf.mxu0
    %v3866 = vadd.f32 %v3833, %v3865
    %3867 = vmatmul.bf16.gmra.mxu0 %v628
    %v3868 = vpop.f32.mrf.mxu0
    %v3869 = vadd.f32 %v3836, %v3868
    %v3870 = vpop.f32.mrf.mxu0
    %v3871 = vadd.f32 %v3838, %v3870
    %3872 = vmatmul.bf16.gmra.mxu0 %v636
    %v3873 = vpop.f32.mrf.mxu0
    %v3874 = vadd.f32 %v3841, %v3873
    %v3875 = vpop.f32.mrf.mxu0
    %3876 = vdwg.mxu0
    %3877 = vmatpush.bf16.msra.mxu0 %v3064
    %3878 = vmatpush.bf16.msra.mxu0 %v3056
    %3879 = vmatpush.bf16.msra.mxu0 %v3048
    %3880 = vmatpush.bf16.msra.mxu0 %v3040
    %3881 = vmatpush.bf16.msra.mxu0 %v3032
    %3882 = vmatpush.bf16.msra.mxu0 %v3024
    %3883 = vmatpush.bf16.msra.mxu0 %v3016
    %3884 = vmatpush.bf16.msra.mxu0 %v3008
    %3885 = vmatmul.bf16.gmra.mxu0 %v605
    %v3886 = vpop.f32.mrf.mxu0
    %v3887 = vadd.f32 %v3854, %v3886
    %v3888 = vpop.f32.mrf.mxu0
    %v3889 = vadd.f32 %v3856, %v3888
    %3890 = vmatmul.bf16.gmra.mxu0 %v613
    %v3891 = vpop.f32.mrf.mxu0
    %v3892 = vadd.f32 %v3859, %v3891
    %v3893 = vpop.f32.mrf.mxu0
    %v3894 = vadd.f32 %v3861, %v3893
    %3895 = vmatmul.bf16.gmra.mxu0 %v621
    %v3896 = vpop.f32.mrf.mxu0
    %v3897 = vadd.f32 %v3864, %v3896
    %v3898 = vpop.f32.mrf.mxu0
    %v3899 = vadd.f32 %v3866, %v3898
    %3900 = vmatmul.bf16.gmra.mxu0 %v629
    %v3901 = vpop.f32.mrf.mxu0
    %v3902 = vadd.f32 %v3869, %v3901
    %v3903 = vpop.f32.mrf.mxu0
    %v3904 = vadd.f32 %v3871, %v3903
    %3905 = vmatmul.bf16.gmra.mxu0 %v637
    %v3906 = vpop.f32.mrf.mxu0
    %v3907 = vadd.f32 %v3874, %v3906
    %v3908 = vpop.f32.mrf.mxu0
    %3909 = vdwg.mxu0
    %3910 = vmatpush.bf16.msra.mxu0 %v3128
    %3911 = vmatpush.bf16.msra.mxu0 %v3120
    %3912 = vmatpush.bf16.msra.mxu0 %v3112
    %3913 = vmatpush.bf16.msra.mxu0 %v3104
    %3914 = vmatpush.bf16.msra.mxu0 %v3096
    %3915 = vmatpush.bf16.msra.mxu0 %v3088
    %3916 = vmatpush.bf16.msra.mxu0 %v3080
    %3917 = vmatpush.bf16.msra.mxu0 %v3072
    %3918 = vmatmul.bf16.gmra.mxu0 %v606
    %v3919 = vpop.f32.mrf.mxu0
    %v3920 = vadd.f32 %v3887, %v3919
    %v3921 = vpop.f32.mrf.mxu0
    %v3922 = vadd.f32 %v3889, %v3921
    %3923 = vmatmul.bf16.gmra.mxu0 %v614
    %v3924 = vpop.f32.mrf.mxu0
    %v3925 = vadd.f32 %v3892, %v3924
    %v3926 = vpop.f32.mrf.mxu0
    %v3927 = vadd.f32 %v3894, %v3926
    %3928 = vmatmul.bf16.gmra.mxu0 %v622
    %v3929 = vpop.f32.mrf.mxu0
    %v3930 = vadd.f32 %v3897, %v3929
    %v3931 = vpop.f32.mrf.mxu0
    %v3932 = vadd.f32 %v3899, %v3931
    %3933 = vmatmul.bf16.gmra.mxu0 %v630
    %v3934 = vpop.f32.mrf.mxu0
    %v3935 = vadd.f32 %v3902, %v3934
    %v3936 = vpop.f32.mrf.mxu0
    %v3937 = vadd.f32 %v3904, %v3936
    %3938 = vmatmul.bf16.gmra.mxu0 %v638
    %v3939 = vpop.f32.mrf.mxu0
    %v3940 = vadd.f32 %v3907, %v3939
    %v3941 = vpop.f32.mrf.mxu0
    %3942 = vdwg.mxu0
    %3943 = vmatpush.bf16.msra.mxu0 %v3192
    %3944 = vmatpush.bf16.msra.mxu0 %v3184
    %3945 = vmatpush.bf16.msra.mxu0 %v3176
    %3946 = vmatpush.bf16.msra.mxu0 %v3168
    %3947 = vmatpush.bf16.msra.mxu0 %v3160
    %3948 = vmatpush.bf16.msra.mxu0 %v3152
    %3949 = vmatpush.bf16.msra.mxu0 %v3144
    %3950 = vmatpush.bf16.msra.mxu0 %v3136
    %3951 = vmatmul.bf16.gmra.mxu0 %v607
    %v3952 = vpop.f32.mrf.mxu0
    %v3953 = vadd.f32 %v3920, %v3952
    %v3954 = vpop.f32.mrf.mxu0
    %v3955 = vadd.f32 %v3922, %v3954
    %3956 = vmatmul.bf16.gmra.mxu0 %v615
    %v3957 = vpop.f32.mrf.mxu0
    %v3958 = vadd.f32 %v3925, %v3957
    %v3959 = vpop.f32.mrf.mxu0
    %v3960 = vadd.f32 %v3927, %v3959
    %3961 = vmatmul.bf16.gmra.mxu0 %v623
    %v3962 = vpop.f32.mrf.mxu0
    %v3963 = vadd.f32 %v3930, %v3962
    %v3964 = vpop.f32.mrf.mxu0
    %v3965 = vadd.f32 %v3932, %v3964
    %3966 = vmatmul.bf16.gmra.mxu0 %v631
    %v3967 = vpop.f32.mrf.mxu0
    %v3968 = vadd.f32 %v3935, %v3967
    %v3969 = vpop.f32.mrf.mxu0
    %v3970 = vadd.f32 %v3937, %v3969
    %3971 = vmatmul.bf16.gmra.mxu0 %v639
    %v3972 = vpop.f32.mrf.mxu0
    %v3973 = vadd.f32 %v3940, %v3972
    %v3974 = vpop.f32.mrf.mxu0
    %3975 = vdwg.mxu0
    %3976 = vmatpush.bf16.msra.mxu0 %v2745
    %3977 = vmatpush.bf16.msra.mxu0 %v2737
    %3978 = vmatpush.bf16.msra.mxu0 %v2729
    %3979 = vmatpush.bf16.msra.mxu0 %v2721
    %3980 = vmatpush.bf16.msra.mxu0 %v2713
    %3981 = vmatpush.bf16.msra.mxu0 %v2705
    %3982 = vmatpush.bf16.msra.mxu0 %v2697
    %3983 = vmatpush.bf16.msra.mxu0 %v2689
    %3984 = vmatmul.bf16.gmra.mxu0 %v600
    %v3985 = vpop.f32.mrf.mxu0
    %v3986 = vadd.f32 0.0, %v3985
    %v3987 = vpop.f32.mrf.mxu0
    %v3988 = vadd.f32 0.0, %v3987
    %3989 = vmatmul.bf16.gmra.mxu0 %v608
    %v3990 = vpop.f32.mrf.mxu0
    %v3991 = vadd.f32 0.0, %v3990
    %v3992 = vpop.f32.mrf.mxu0
    %v3993 = vadd.f32 0.0, %v3992
    %3994 = vmatmul.bf16.gmra.mxu0 %v616
    %v3995 = vpop.f32.mrf.mxu0
    %v3996 = vadd.f32 0.0, %v3995
    %v3997 = vpop.f32.mrf.mxu0
    %v3998 = vadd.f32 0.0, %v3997
    %3999 = vmatmul.bf16.gmra.mxu0 %v624
    %v4000 = vpop.f32.mrf.mxu0
    %v4001 = vadd.f32 0.0, %v4000
    %v4002 = vpop.f32.mrf.mxu0
    %v4003 = vadd.f32 0.0, %v4002
    %4004 = vmatmul.bf16.gmra.mxu0 %v632
    %v4005 = vpop.f32.mrf.mxu0
    %v4006 = vadd.f32 0.0, %v4005
    %v4007 = vpop.f32.mrf.mxu0
    %4008 = vdwg.mxu0
    %4009 = vmatpush.bf16.msra.mxu0 %v2809
    %4010 = vmatpush.bf16.msra.mxu0 %v2801
    %4011 = vmatpush.bf16.msra.mxu0 %v2793
    %4012 = vmatpush.bf16.msra.mxu0 %v2785
    %4013 = vmatpush.bf16.msra.mxu0 %v2777
    %4014 = vmatpush.bf16.msra.mxu0 %v2769
    %4015 = vmatpush.bf16.msra.mxu0 %v2761
    %4016 = vmatpush.bf16.msra.mxu0 %v2753
    %4017 = vmatmul.bf16.gmra.mxu0 %v601
    %v4018 = vpop.f32.mrf.mxu0
    %v4019 = vadd.f32 %v3986, %v4018
    %v4020 = vpop.f32.mrf.mxu0
    %v4021 = vadd.f32 %v3988, %v4020
    %4022 = vmatmul.bf16.gmra.mxu0 %v609
    %v4023 = vpop.f32.mrf.mxu0
    %v4024 = vadd.f32 %v3991, %v4023
    %v4025 = vpop.f32.mrf.mxu0
    %v4026 = vadd.f32 %v3993, %v4025
    %4027 = vmatmul.bf16.gmra.mxu0 %v617
    %v4028 = vpop.f32.mrf.mxu0
    %v4029 = vadd.f32 %v3996, %v4028
    %v4030 = vpop.f32.mrf.mxu0
    %v4031 = vadd.f32 %v3998, %v4030
    %4032 = vmatmul.bf16.gmra.mxu0 %v625
    %v4033 = vpop.f32.mrf.mxu0
    %v4034 = vadd.f32 %v4001, %v4033
    %v4035 = vpop.f32.mrf.mxu0
    %v4036 = vadd.f32 %v4003, %v4035
    %4037 = vmatmul.bf16.gmra.mxu0 %v633
    %v4038 = vpop.f32.mrf.mxu0
    %v4039 = vadd.f32 %v4006, %v4038
    %v4040 = vpop.f32.mrf.mxu0
    %4041 = vdwg.mxu0
    %4042 = vmatpush.bf16.msra.mxu0 %v2873
    %4043 = vmatpush.bf16.msra.mxu0 %v2865
    %4044 = vmatpush.bf16.msra.mxu0 %v2857
    %4045 = vmatpush.bf16.msra.mxu0 %v2849
    %4046 = vmatpush.bf16.msra.mxu0 %v2841
    %4047 = vmatpush.bf16.msra.mxu0 %v2833
    %4048 = vmatpush.bf16.msra.mxu0 %v2825
    %4049 = vmatpush.bf16.msra.mxu0 %v2817
    %4050 = vmatmul.bf16.gmra.mxu0 %v602
    %v4051 = vpop.f32.mrf.mxu0
    %v4052 = vadd.f32 %v4019, %v4051
    %v4053 = vpop.f32.mrf.mxu0
    %v4054 = vadd.f32 %v4021, %v4053
    %4055 = vmatmul.bf16.gmra.mxu0 %v610
    %v4056 = vpop.f32.mrf.mxu0
    %v4057 = vadd.f32 %v4024, %v4056
    %v4058 = vpop.f32.mrf.mxu0
    %v4059 = vadd.f32 %v4026, %v4058
    %4060 = vmatmul.bf16.gmra.mxu0 %v618
    %v4061 = vpop.f32.mrf.mxu0
    %v4062 = vadd.f32 %v4029, %v4061
    %v4063 = vpop.f32.mrf.mxu0
    %v4064 = vadd.f32 %v4031, %v4063
    %4065 = vmatmul.bf16.gmra.mxu0 %v626
    %v4066 = vpop.f32.mrf.mxu0
    %v4067 = vadd.f32 %v4034, %v4066
    %v4068 = vpop.f32.mrf.mxu0
    %v4069 = vadd.f32 %v4036, %v4068
    %4070 = vmatmul.bf16.gmra.mxu0 %v634
    %v4071 = vpop.f32.mrf.mxu0
    %v4072 = vadd.f32 %v4039, %v4071
    %v4073 = vpop.f32.mrf.mxu0
    %4074 = vdwg.mxu0
    %4075 = vmatpush.bf16.msra.mxu0 %v2937
    %4076 = vmatpush.bf16.msra.mxu0 %v2929
    %4077 = vmatpush.bf16.msra.mxu0 %v2921
    %4078 = vmatpush.bf16.msra.mxu0 %v2913
    %4079 = vmatpush.bf16.msra.mxu0 %v2905
    %4080 = vmatpush.bf16.msra.mxu0 %v2897
    %4081 = vmatpush.bf16.msra.mxu0 %v2889
    %4082 = vmatpush.bf16.msra.mxu0 %v2881
    %4083 = vmatmul.bf16.gmra.mxu0 %v603
    %v4084 = vpop.f32.mrf.mxu0
    %v4085 = vadd.f32 %v4052, %v4084
    %v4086 = vpop.f32.mrf.mxu0
    %v4087 = vadd.f32 %v4054, %v4086
    %4088 = vmatmul.bf16.gmra.mxu0 %v611
    %v4089 = vpop.f32.mrf.mxu0
    %v4090 = vadd.f32 %v4057, %v4089
    %v4091 = vpop.f32.mrf.mxu0
    %v4092 = vadd.f32 %v4059, %v4091
    %4093 = vmatmul.bf16.gmra.mxu0 %v619
    %v4094 = vpop.f32.mrf.mxu0
    %v4095 = vadd.f32 %v4062, %v4094
    %v4096 = vpop.f32.mrf.mxu0
    %v4097 = vadd.f32 %v4064, %v4096
    %4098 = vmatmul.bf16.gmra.mxu0 %v627
    %v4099 = vpop.f32.mrf.mxu0
    %v4100 = vadd.f32 %v4067, %v4099
    %v4101 = vpop.f32.mrf.mxu0
    %v4102 = vadd.f32 %v4069, %v4101
    %4103 = vmatmul.bf16.gmra.mxu0 %v635
    %v4104 = vpop.f32.mrf.mxu0
    %v4105 = vadd.f32 %v4072, %v4104
    %v4106 = vpop.f32.mrf.mxu0
    %4107 = vdwg.mxu0
    %4108 = vmatpush.bf16.msra.mxu0 %v3001
    %4109 = vmatpush.bf16.msra.mxu0 %v2993
    %4110 = vmatpush.bf16.msra.mxu0 %v2985
    %4111 = vmatpush.bf16.msra.mxu0 %v2977
    %4112 = vmatpush.bf16.msra.mxu0 %v2969
    %4113 = vmatpush.bf16.msra.mxu0 %v2961
    %4114 = vmatpush.bf16.msra.mxu0 %v2953
    %4115 = vmatpush.bf16.msra.mxu0 %v2945
    %4116 = vmatmul.bf16.gmra.mxu0 %v604
    %v4117 = vpop.f32.mrf.mxu0
    %v4118 = vadd.f32 %v4085, %v4117
    %v4119 = vpop.f32.mrf.mxu0
    %v4120 = vadd.f32 %v4087, %v4119
    %4121 = vmatmul.bf16.gmra.mxu0 %v612
    %v4122 = vpop.f32.mrf.mxu0
    %v4123 = vadd.f32 %v4090, %v4122
    %v4124 = vpop.f32.mrf.mxu0
    %v4125 = vadd.f32 %v4092, %v4124
    %4126 = vmatmul.bf16.gmra.mxu0 %v620
    %v4127 = vpop.f32.mrf.mxu0
    %v4128 = vadd.f32 %v4095, %v4127
    %v4129 = vpop.f32.mrf.mxu0
    %v4130 = vadd.f32 %v4097, %v4129
    %4131 = vmatmul.bf16.gmra.mxu0 %v628
    %v4132 = vpop.f32.mrf.mxu0
    %v4133 = vadd.f32 %v4100, %v4132
    %v4134 = vpop.f32.mrf.mxu0
    %v4135 = vadd.f32 %v4102, %v4134
    %4136 = vmatmul.bf16.gmra.mxu0 %v636
    %v4137 = vpop.f32.mrf.mxu0
    %v4138 = vadd.f32 %v4105, %v4137
    %v4139 = vpop.f32.mrf.mxu0
    %4140 = vdwg.mxu0
    %4141 = vmatpush.bf16.msra.mxu0 %v3065
    %4142 = vmatpush.bf16.msra.mxu0 %v3057
    %4143 = vmatpush.bf16.msra.mxu0 %v3049
    %4144 = vmatpush.bf16.msra.mxu0 %v3041
    %4145 = vmatpush.bf16.msra.mxu0 %v3033
    %4146 = vmatpush.bf16.msra.mxu0 %v3025
    %4147 = vmatpush.bf16.msra.mxu0 %v3017
    %4148 = vmatpush.bf16.msra.mxu0 %v3009
    %4149 = vmatmul.bf16.gmra.mxu0 %v605
    %v4150 = vpop.f32.mrf.mxu0
    %v4151 = vadd.f32 %v4118, %v4150
    %v4152 = vpop.f32.mrf.mxu0
    %v4153 = vadd.f32 %v4120, %v4152
    %4154 = vmatmul.bf16.gmra.mxu0 %v613
    %v4155 = vpop.f32.mrf.mxu0
    %v4156 = vadd.f32 %v4123, %v4155
    %v4157 = vpop.f32.mrf.mxu0
    %v4158 = vadd.f32 %v4125, %v4157
    %4159 = vmatmul.bf16.gmra.mxu0 %v621
    %v4160 = vpop.f32.mrf.mxu0
    %v4161 = vadd.f32 %v4128, %v4160
    %v4162 = vpop.f32.mrf.mxu0
    %v4163 = vadd.f32 %v4130, %v4162
    %4164 = vmatmul.bf16.gmra.mxu0 %v629
    %v4165 = vpop.f32.mrf.mxu0
    %v4166 = vadd.f32 %v4133, %v4165
    %v4167 = vpop.f32.mrf.mxu0
    %v4168 = vadd.f32 %v4135, %v4167
    %4169 = vmatmul.bf16.gmra.mxu0 %v637
    %v4170 = vpop.f32.mrf.mxu0
    %v4171 = vadd.f32 %v4138, %v4170
    %v4172 = vpop.f32.mrf.mxu0
    %4173 = vdwg.mxu0
    %4174 = vmatpush.bf16.msra.mxu0 %v3129
    %4175 = vmatpush.bf16.msra.mxu0 %v3121
    %4176 = vmatpush.bf16.msra.mxu0 %v3113
    %4177 = vmatpush.bf16.msra.mxu0 %v3105
    %4178 = vmatpush.bf16.msra.mxu0 %v3097
    %4179 = vmatpush.bf16.msra.mxu0 %v3089
    %4180 = vmatpush.bf16.msra.mxu0 %v3081
    %4181 = vmatpush.bf16.msra.mxu0 %v3073
    %4182 = vmatmul.bf16.gmra.mxu0 %v606
    %v4183 = vpop.f32.mrf.mxu0
    %v4184 = vadd.f32 %v4151, %v4183
    %v4185 = vpop.f32.mrf.mxu0
    %v4186 = vadd.f32 %v4153, %v4185
    %4187 = vmatmul.bf16.gmra.mxu0 %v614
    %v4188 = vpop.f32.mrf.mxu0
    %v4189 = vadd.f32 %v4156, %v4188
    %v4190 = vpop.f32.mrf.mxu0
    %v4191 = vadd.f32 %v4158, %v4190
    %4192 = vmatmul.bf16.gmra.mxu0 %v622
    %v4193 = vpop.f32.mrf.mxu0
    %v4194 = vadd.f32 %v4161, %v4193
    %v4195 = vpop.f32.mrf.mxu0
    %v4196 = vadd.f32 %v4163, %v4195
    %4197 = vmatmul.bf16.gmra.mxu0 %v630
    %v4198 = vpop.f32.mrf.mxu0
    %v4199 = vadd.f32 %v4166, %v4198
    %v4200 = vpop.f32.mrf.mxu0
    %v4201 = vadd.f32 %v4168, %v4200
    %4202 = vmatmul.bf16.gmra.mxu0 %v638
    %v4203 = vpop.f32.mrf.mxu0
    %v4204 = vadd.f32 %v4171, %v4203
    %v4205 = vpop.f32.mrf.mxu0
    %4206 = vdwg.mxu0
    %4207 = vmatpush.bf16.msra.mxu0 %v3193
    %4208 = vmatpush.bf16.msra.mxu0 %v3185
    %4209 = vmatpush.bf16.msra.mxu0 %v3177
    %4210 = vmatpush.bf16.msra.mxu0 %v3169
    %4211 = vmatpush.bf16.msra.mxu0 %v3161
    %4212 = vmatpush.bf16.msra.mxu0 %v3153
    %4213 = vmatpush.bf16.msra.mxu0 %v3145
    %4214 = vmatpush.bf16.msra.mxu0 %v3137
    %4215 = vmatmul.bf16.gmra.mxu0 %v607
    %v4216 = vpop.f32.mrf.mxu0
    %v4217 = vadd.f32 %v4184, %v4216
    %v4218 = vpop.f32.mrf.mxu0
    %v4219 = vadd.f32 %v4186, %v4218
    %4220 = vmatmul.bf16.gmra.mxu0 %v615
    %v4221 = vpop.f32.mrf.mxu0
    %v4222 = vadd.f32 %v4189, %v4221
    %v4223 = vpop.f32.mrf.mxu0
    %v4224 = vadd.f32 %v4191, %v4223
    %4225 = vmatmul.bf16.gmra.mxu0 %v623
    %v4226 = vpop.f32.mrf.mxu0
    %v4227 = vadd.f32 %v4194, %v4226
    %v4228 = vpop.f32.mrf.mxu0
    %v4229 = vadd.f32 %v4196, %v4228
    %4230 = vmatmul.bf16.gmra.mxu0 %v631
    %v4231 = vpop.f32.mrf.mxu0
    %v4232 = vadd.f32 %v4199, %v4231
    %v4233 = vpop.f32.mrf.mxu0
    %v4234 = vadd.f32 %v4201, %v4233
    %4235 = vmatmul.bf16.gmra.mxu0 %v639
    %v4236 = vpop.f32.mrf.mxu0
    %v4237 = vadd.f32 %v4204, %v4236
    %v4238 = vpop.f32.mrf.mxu0
    %4239 = vdwg.mxu0
    %4240 = vmatpush.bf16.msra.mxu0 %v2746
    %4241 = vmatpush.bf16.msra.mxu0 %v2738
    %4242 = vmatpush.bf16.msra.mxu0 %v2730
    %4243 = vmatpush.bf16.msra.mxu0 %v2722
    %4244 = vmatpush.bf16.msra.mxu0 %v2714
    %4245 = vmatpush.bf16.msra.mxu0 %v2706
    %4246 = vmatpush.bf16.msra.mxu0 %v2698
    %4247 = vmatpush.bf16.msra.mxu0 %v2690
    %4248 = vmatmul.bf16.gmra.mxu0 %v600
    %v4249 = vpop.f32.mrf.mxu0
    %v4250 = vadd.f32 0.0, %v4249
    %v4251 = vpop.f32.mrf.mxu0
    %v4252 = vadd.f32 0.0, %v4251
    %4253 = vmatmul.bf16.gmra.mxu0 %v608
    %v4254 = vpop.f32.mrf.mxu0
    %v4255 = vadd.f32 0.0, %v4254
    %v4256 = vpop.f32.mrf.mxu0
    %v4257 = vadd.f32 0.0, %v4256
    %4258 = vmatmul.bf16.gmra.mxu0 %v616
    %v4259 = vpop.f32.mrf.mxu0
    %v4260 = vadd.f32 0.0, %v4259
    %v4261 = vpop.f32.mrf.mxu0
    %v4262 = vadd.f32 0.0, %v4261
    %4263 = vmatmul.bf16.gmra.mxu0 %v624
    %v4264 = vpop.f32.mrf.mxu0
    %v4265 = vadd.f32 0.0, %v4264
    %v4266 = vpop.f32.mrf.mxu0
    %v4267 = vadd.f32 0.0, %v4266
    %4268 = vmatmul.bf16.gmra.mxu0 %v632
    %v4269 = vpop.f32.mrf.mxu0
    %v4270 = vadd.f32 0.0, %v4269
    %v4271 = vpop.f32.mrf.mxu0
    %4272 = vdwg.mxu0
    %4273 = vmatpush.bf16.msra.mxu0 %v2810
    %4274 = vmatpush.bf16.msra.mxu0 %v2802
    %4275 = vmatpush.bf16.msra.mxu0 %v2794
    %4276 = vmatpush.bf16.msra.mxu0 %v2786
    %4277 = vmatpush.bf16.msra.mxu0 %v2778
    %4278 = vmatpush.bf16.msra.mxu0 %v2770
    %4279 = vmatpush.bf16.msra.mxu0 %v2762
    %4280 = vmatpush.bf16.msra.mxu0 %v2754
    %4281 = vmatmul.bf16.gmra.mxu0 %v601
    %v4282 = vpop.f32.mrf.mxu0
    %v4283 = vadd.f32 %v4250, %v4282
    %v4284 = vpop.f32.mrf.mxu0
    %v4285 = vadd.f32 %v4252, %v4284
    %4286 = vmatmul.bf16.gmra.mxu0 %v609
    %v4287 = vpop.f32.mrf.mxu0
    %v4288 = vadd.f32 %v4255, %v4287
    %v4289 = vpop.f32.mrf.mxu0
    %v4290 = vadd.f32 %v4257, %v4289
    %4291 = vmatmul.bf16.gmra.mxu0 %v617
    %v4292 = vpop.f32.mrf.mxu0
    %v4293 = vadd.f32 %v4260, %v4292
    %v4294 = vpop.f32.mrf.mxu0
    %v4295 = vadd.f32 %v4262, %v4294
    %4296 = vmatmul.bf16.gmra.mxu0 %v625
    %v4297 = vpop.f32.mrf.mxu0
    %v4298 = vadd.f32 %v4265, %v4297
    %v4299 = vpop.f32.mrf.mxu0
    %v4300 = vadd.f32 %v4267, %v4299
    %4301 = vmatmul.bf16.gmra.mxu0 %v633
    %v4302 = vpop.f32.mrf.mxu0
    %v4303 = vadd.f32 %v4270, %v4302
    %v4304 = vpop.f32.mrf.mxu0
    %4305 = vdwg.mxu0
    %4306 = vmatpush.bf16.msra.mxu0 %v2874
    %4307 = vmatpush.bf16.msra.mxu0 %v2866
    %4308 = vmatpush.bf16.msra.mxu0 %v2858
    %4309 = vmatpush.bf16.msra.mxu0 %v2850
    %4310 = vmatpush.bf16.msra.mxu0 %v2842
    %4311 = vmatpush.bf16.msra.mxu0 %v2834
    %4312 = vmatpush.bf16.msra.mxu0 %v2826
    %4313 = vmatpush.bf16.msra.mxu0 %v2818
    %4314 = vmatmul.bf16.gmra.mxu0 %v602
    %v4315 = vpop.f32.mrf.mxu0
    %v4316 = vadd.f32 %v4283, %v4315
    %v4317 = vpop.f32.mrf.mxu0
    %v4318 = vadd.f32 %v4285, %v4317
    %4319 = vmatmul.bf16.gmra.mxu0 %v610
    %v4320 = vpop.f32.mrf.mxu0
    %v4321 = vadd.f32 %v4288, %v4320
    %v4322 = vpop.f32.mrf.mxu0
    %v4323 = vadd.f32 %v4290, %v4322
    %4324 = vmatmul.bf16.gmra.mxu0 %v618
    %v4325 = vpop.f32.mrf.mxu0
    %v4326 = vadd.f32 %v4293, %v4325
    %v4327 = vpop.f32.mrf.mxu0
    %v4328 = vadd.f32 %v4295, %v4327
    %4329 = vmatmul.bf16.gmra.mxu0 %v626
    %v4330 = vpop.f32.mrf.mxu0
    %v4331 = vadd.f32 %v4298, %v4330
    %v4332 = vpop.f32.mrf.mxu0
    %v4333 = vadd.f32 %v4300, %v4332
    %4334 = vmatmul.bf16.gmra.mxu0 %v634
    %v4335 = vpop.f32.mrf.mxu0
    %v4336 = vadd.f32 %v4303, %v4335
    %v4337 = vpop.f32.mrf.mxu0
    %4338 = vdwg.mxu0
    %4339 = vmatpush.bf16.msra.mxu0 %v2938
    %4340 = vmatpush.bf16.msra.mxu0 %v2930
    %4341 = vmatpush.bf16.msra.mxu0 %v2922
    %4342 = vmatpush.bf16.msra.mxu0 %v2914
    %4343 = vmatpush.bf16.msra.mxu0 %v2906
    %4344 = vmatpush.bf16.msra.mxu0 %v2898
    %4345 = vmatpush.bf16.msra.mxu0 %v2890
    %4346 = vmatpush.bf16.msra.mxu0 %v2882
    %4347 = vmatmul.bf16.gmra.mxu0 %v603
    %v4348 = vpop.f32.mrf.mxu0
    %v4349 = vadd.f32 %v4316, %v4348
    %v4350 = vpop.f32.mrf.mxu0
    %v4351 = vadd.f32 %v4318, %v4350
    %4352 = vmatmul.bf16.gmra.mxu0 %v611
    %v4353 = vpop.f32.mrf.mxu0
    %v4354 = vadd.f32 %v4321, %v4353
    %v4355 = vpop.f32.mrf.mxu0
    %v4356 = vadd.f32 %v4323, %v4355
    %4357 = vmatmul.bf16.gmra.mxu0 %v619
    %v4358 = vpop.f32.mrf.mxu0
    %v4359 = vadd.f32 %v4326, %v4358
    %v4360 = vpop.f32.mrf.mxu0
    %v4361 = vadd.f32 %v4328, %v4360
    %4362 = vmatmul.bf16.gmra.mxu0 %v627
    %v4363 = vpop.f32.mrf.mxu0
    %v4364 = vadd.f32 %v4331, %v4363
    %v4365 = vpop.f32.mrf.mxu0
    %v4366 = vadd.f32 %v4333, %v4365
    %4367 = vmatmul.bf16.gmra.mxu0 %v635
    %v4368 = vpop.f32.mrf.mxu0
    %v4369 = vadd.f32 %v4336, %v4368
    %v4370 = vpop.f32.mrf.mxu0
    %4371 = vdwg.mxu0
    %4372 = vmatpush.bf16.msra.mxu0 %v3002
    %4373 = vmatpush.bf16.msra.mxu0 %v2994
    %4374 = vmatpush.bf16.msra.mxu0 %v2986
    %4375 = vmatpush.bf16.msra.mxu0 %v2978
    %4376 = vmatpush.bf16.msra.mxu0 %v2970
    %4377 = vmatpush.bf16.msra.mxu0 %v2962
    %4378 = vmatpush.bf16.msra.mxu0 %v2954
    %4379 = vmatpush.bf16.msra.mxu0 %v2946
    %4380 = vmatmul.bf16.gmra.mxu0 %v604
    %v4381 = vpop.f32.mrf.mxu0
    %v4382 = vadd.f32 %v4349, %v4381
    %v4383 = vpop.f32.mrf.mxu0
    %v4384 = vadd.f32 %v4351, %v4383
    %4385 = vmatmul.bf16.gmra.mxu0 %v612
    %v4386 = vpop.f32.mrf.mxu0
    %v4387 = vadd.f32 %v4354, %v4386
    %v4388 = vpop.f32.mrf.mxu0
    %v4389 = vadd.f32 %v4356, %v4388
    %4390 = vmatmul.bf16.gmra.mxu0 %v620
    %v4391 = vpop.f32.mrf.mxu0
    %v4392 = vadd.f32 %v4359, %v4391
    %v4393 = vpop.f32.mrf.mxu0
    %v4394 = vadd.f32 %v4361, %v4393
    %4395 = vmatmul.bf16.gmra.mxu0 %v628
    %v4396 = vpop.f32.mrf.mxu0
    %v4397 = vadd.f32 %v4364, %v4396
    %v4398 = vpop.f32.mrf.mxu0
    %v4399 = vadd.f32 %v4366, %v4398
    %4400 = vmatmul.bf16.gmra.mxu0 %v636
    %v4401 = vpop.f32.mrf.mxu0
    %v4402 = vadd.f32 %v4369, %v4401
    %v4403 = vpop.f32.mrf.mxu0
    %4404 = vdwg.mxu0
    %4405 = vmatpush.bf16.msra.mxu0 %v3066
    %4406 = vmatpush.bf16.msra.mxu0 %v3058
    %4407 = vmatpush.bf16.msra.mxu0 %v3050
    %4408 = vmatpush.bf16.msra.mxu0 %v3042
    %4409 = vmatpush.bf16.msra.mxu0 %v3034
    %4410 = vmatpush.bf16.msra.mxu0 %v3026
    %4411 = vmatpush.bf16.msra.mxu0 %v3018
    %4412 = vmatpush.bf16.msra.mxu0 %v3010
    %4413 = vmatmul.bf16.gmra.mxu0 %v605
    %v4414 = vpop.f32.mrf.mxu0
    %v4415 = vadd.f32 %v4382, %v4414
    %v4416 = vpop.f32.mrf.mxu0
    %v4417 = vadd.f32 %v4384, %v4416
    %4418 = vmatmul.bf16.gmra.mxu0 %v613
    %v4419 = vpop.f32.mrf.mxu0
    %v4420 = vadd.f32 %v4387, %v4419
    %v4421 = vpop.f32.mrf.mxu0
    %v4422 = vadd.f32 %v4389, %v4421
    %4423 = vmatmul.bf16.gmra.mxu0 %v621
    %v4424 = vpop.f32.mrf.mxu0
    %v4425 = vadd.f32 %v4392, %v4424
    %v4426 = vpop.f32.mrf.mxu0
    %v4427 = vadd.f32 %v4394, %v4426
    %4428 = vmatmul.bf16.gmra.mxu0 %v629
    %v4429 = vpop.f32.mrf.mxu0
    %v4430 = vadd.f32 %v4397, %v4429
    %v4431 = vpop.f32.mrf.mxu0
    %v4432 = vadd.f32 %v4399, %v4431
    %4433 = vmatmul.bf16.gmra.mxu0 %v637
    %v4434 = vpop.f32.mrf.mxu0
    %v4435 = vadd.f32 %v4402, %v4434
    %v4436 = vpop.f32.mrf.mxu0
    %4437 = vdwg.mxu0
    %4438 = vmatpush.bf16.msra.mxu0 %v3130
    %4439 = vmatpush.bf16.msra.mxu0 %v3122
    %4440 = vmatpush.bf16.msra.mxu0 %v3114
    %4441 = vmatpush.bf16.msra.mxu0 %v3106
    %4442 = vmatpush.bf16.msra.mxu0 %v3098
    %4443 = vmatpush.bf16.msra.mxu0 %v3090
    %4444 = vmatpush.bf16.msra.mxu0 %v3082
    %4445 = vmatpush.bf16.msra.mxu0 %v3074
    %4446 = vmatmul.bf16.gmra.mxu0 %v606
    %v4447 = vpop.f32.mrf.mxu0
    %v4448 = vadd.f32 %v4415, %v4447
    %v4449 = vpop.f32.mrf.mxu0
    %v4450 = vadd.f32 %v4417, %v4449
    %4451 = vmatmul.bf16.gmra.mxu0 %v614
    %v4452 = vpop.f32.mrf.mxu0
    %v4453 = vadd.f32 %v4420, %v4452
    %v4454 = vpop.f32.mrf.mxu0
    %v4455 = vadd.f32 %v4422, %v4454
    %4456 = vmatmul.bf16.gmra.mxu0 %v622
    %v4457 = vpop.f32.mrf.mxu0
    %v4458 = vadd.f32 %v4425, %v4457
    %v4459 = vpop.f32.mrf.mxu0
    %v4460 = vadd.f32 %v4427, %v4459
    %4461 = vmatmul.bf16.gmra.mxu0 %v630
    %v4462 = vpop.f32.mrf.mxu0
    %v4463 = vadd.f32 %v4430, %v4462
    %v4464 = vpop.f32.mrf.mxu0
    %v4465 = vadd.f32 %v4432, %v4464
    %4466 = vmatmul.bf16.gmra.mxu0 %v638
    %v4467 = vpop.f32.mrf.mxu0
    %v4468 = vadd.f32 %v4435, %v4467
    %v4469 = vpop.f32.mrf.mxu0
    %4470 = vdwg.mxu0
    %4471 = vmatpush.bf16.msra.mxu0 %v3194
    %4472 = vmatpush.bf16.msra.mxu0 %v3186
    %4473 = vmatpush.bf16.msra.mxu0 %v3178
    %4474 = vmatpush.bf16.msra.mxu0 %v3170
    %4475 = vmatpush.bf16.msra.mxu0 %v3162
    %4476 = vmatpush.bf16.msra.mxu0 %v3154
    %4477 = vmatpush.bf16.msra.mxu0 %v3146
    %4478 = vmatpush.bf16.msra.mxu0 %v3138
    %4479 = vmatmul.bf16.gmra.mxu0 %v607
    %v4480 = vpop.f32.mrf.mxu0
    %v4481 = vadd.f32 %v4448, %v4480
    %v4482 = vpop.f32.mrf.mxu0
    %v4483 = vadd.f32 %v4450, %v4482
    %4484 = vmatmul.bf16.gmra.mxu0 %v615
    %v4485 = vpop.f32.mrf.mxu0
    %v4486 = vadd.f32 %v4453, %v4485
    %v4487 = vpop.f32.mrf.mxu0
    %v4488 = vadd.f32 %v4455, %v4487
    %4489 = vmatmul.bf16.gmra.mxu0 %v623
    %v4490 = vpop.f32.mrf.mxu0
    %v4491 = vadd.f32 %v4458, %v4490
    %v4492 = vpop.f32.mrf.mxu0
    %v4493 = vadd.f32 %v4460, %v4492
    %4494 = vmatmul.bf16.gmra.mxu0 %v631
    %v4495 = vpop.f32.mrf.mxu0
    %v4496 = vadd.f32 %v4463, %v4495
    %v4497 = vpop.f32.mrf.mxu0
    %v4498 = vadd.f32 %v4465, %v4497
    %4499 = vmatmul.bf16.gmra.mxu0 %v639
    %v4500 = vpop.f32.mrf.mxu0
    %v4501 = vadd.f32 %v4468, %v4500
    %v4502 = vpop.f32.mrf.mxu0
    %4503 = vdwg.mxu0
    %4504 = vmatpush.bf16.msra.mxu0 %v2747
    %4505 = vmatpush.bf16.msra.mxu0 %v2739
    %4506 = vmatpush.bf16.msra.mxu0 %v2731
    %4507 = vmatpush.bf16.msra.mxu0 %v2723
    %4508 = vmatpush.bf16.msra.mxu0 %v2715
    %4509 = vmatpush.bf16.msra.mxu0 %v2707
    %4510 = vmatpush.bf16.msra.mxu0 %v2699
    %4511 = vmatpush.bf16.msra.mxu0 %v2691
    %4512 = vmatmul.bf16.gmra.mxu0 %v600
    %v4513 = vpop.f32.mrf.mxu0
    %v4514 = vadd.f32 0.0, %v4513
    %v4515 = vpop.f32.mrf.mxu0
    %v4516 = vadd.f32 0.0, %v4515
    %4517 = vmatmul.bf16.gmra.mxu0 %v608
    %v4518 = vpop.f32.mrf.mxu0
    %v4519 = vadd.f32 0.0, %v4518
    %v4520 = vpop.f32.mrf.mxu0
    %v4521 = vadd.f32 0.0, %v4520
    %4522 = vmatmul.bf16.gmra.mxu0 %v616
    %v4523 = vpop.f32.mrf.mxu0
    %v4524 = vadd.f32 0.0, %v4523
    %v4525 = vpop.f32.mrf.mxu0
    %v4526 = vadd.f32 0.0, %v4525
    %4527 = vmatmul.bf16.gmra.mxu0 %v624
    %v4528 = vpop.f32.mrf.mxu0
    %v4529 = vadd.f32 0.0, %v4528
    %v4530 = vpop.f32.mrf.mxu0
    %v4531 = vadd.f32 0.0, %v4530
    %4532 = vmatmul.bf16.gmra.mxu0 %v632
    %v4533 = vpop.f32.mrf.mxu0
    %v4534 = vadd.f32 0.0, %v4533
    %v4535 = vpop.f32.mrf.mxu0
    %4536 = vdwg.mxu0
    %4537 = vmatpush.bf16.msra.mxu0 %v2811
    %4538 = vmatpush.bf16.msra.mxu0 %v2803
    %4539 = vmatpush.bf16.msra.mxu0 %v2795
    %4540 = vmatpush.bf16.msra.mxu0 %v2787
    %4541 = vmatpush.bf16.msra.mxu0 %v2779
    %4542 = vmatpush.bf16.msra.mxu0 %v2771
    %4543 = vmatpush.bf16.msra.mxu0 %v2763
    %4544 = vmatpush.bf16.msra.mxu0 %v2755
    %4545 = vmatmul.bf16.gmra.mxu0 %v601
    %v4546 = vpop.f32.mrf.mxu0
    %v4547 = vadd.f32 %v4514, %v4546
    %v4548 = vpop.f32.mrf.mxu0
    %v4549 = vadd.f32 %v4516, %v4548
    %4550 = vmatmul.bf16.gmra.mxu0 %v609
    %v4551 = vpop.f32.mrf.mxu0
    %v4552 = vadd.f32 %v4519, %v4551
    %v4553 = vpop.f32.mrf.mxu0
    %v4554 = vadd.f32 %v4521, %v4553
    %4555 = vmatmul.bf16.gmra.mxu0 %v617
    %v4556 = vpop.f32.mrf.mxu0
    %v4557 = vadd.f32 %v4524, %v4556
    %v4558 = vpop.f32.mrf.mxu0
    %v4559 = vadd.f32 %v4526, %v4558
    %4560 = vmatmul.bf16.gmra.mxu0 %v625
    %v4561 = vpop.f32.mrf.mxu0
    %v4562 = vadd.f32 %v4529, %v4561
    %v4563 = vpop.f32.mrf.mxu0
    %v4564 = vadd.f32 %v4531, %v4563
    %4565 = vmatmul.bf16.gmra.mxu0 %v633
    %v4566 = vpop.f32.mrf.mxu0
    %v4567 = vadd.f32 %v4534, %v4566
    %v4568 = vpop.f32.mrf.mxu0
    %4569 = vdwg.mxu0
    %4570 = vmatpush.bf16.msra.mxu0 %v2875
    %4571 = vmatpush.bf16.msra.mxu0 %v2867
    %4572 = vmatpush.bf16.msra.mxu0 %v2859
    %4573 = vmatpush.bf16.msra.mxu0 %v2851
    %4574 = vmatpush.bf16.msra.mxu0 %v2843
    %4575 = vmatpush.bf16.msra.mxu0 %v2835
    %4576 = vmatpush.bf16.msra.mxu0 %v2827
    %4577 = vmatpush.bf16.msra.mxu0 %v2819
    %4578 = vmatmul.bf16.gmra.mxu0 %v602
    %v4579 = vpop.f32.mrf.mxu0
    %v4580 = vadd.f32 %v4547, %v4579
    %v4581 = vpop.f32.mrf.mxu0
    %v4582 = vadd.f32 %v4549, %v4581
    %4583 = vmatmul.bf16.gmra.mxu0 %v610
    %v4584 = vpop.f32.mrf.mxu0
    %v4585 = vadd.f32 %v4552, %v4584
    %v4586 = vpop.f32.mrf.mxu0
    %v4587 = vadd.f32 %v4554, %v4586
    %4588 = vmatmul.bf16.gmra.mxu0 %v618
    %v4589 = vpop.f32.mrf.mxu0
    %v4590 = vadd.f32 %v4557, %v4589
    %v4591 = vpop.f32.mrf.mxu0
    %v4592 = vadd.f32 %v4559, %v4591
    %4593 = vmatmul.bf16.gmra.mxu0 %v626
    %v4594 = vpop.f32.mrf.mxu0
    %v4595 = vadd.f32 %v4562, %v4594
    %v4596 = vpop.f32.mrf.mxu0
    %v4597 = vadd.f32 %v4564, %v4596
    %4598 = vmatmul.bf16.gmra.mxu0 %v634
    %v4599 = vpop.f32.mrf.mxu0
    %v4600 = vadd.f32 %v4567, %v4599
    %v4601 = vpop.f32.mrf.mxu0
    %4602 = vdwg.mxu0
    %4603 = vmatpush.bf16.msra.mxu0 %v2939
    %4604 = vmatpush.bf16.msra.mxu0 %v2931
    %4605 = vmatpush.bf16.msra.mxu0 %v2923
    %4606 = vmatpush.bf16.msra.mxu0 %v2915
    %4607 = vmatpush.bf16.msra.mxu0 %v2907
    %4608 = vmatpush.bf16.msra.mxu0 %v2899
    %4609 = vmatpush.bf16.msra.mxu0 %v2891
    %4610 = vmatpush.bf16.msra.mxu0 %v2883
    %4611 = vmatmul.bf16.gmra.mxu0 %v603
    %v4612 = vpop.f32.mrf.mxu0
    %v4613 = vadd.f32 %v4580, %v4612
    %v4614 = vpop.f32.mrf.mxu0
    %v4615 = vadd.f32 %v4582, %v4614
    %4616 = vmatmul.bf16.gmra.mxu0 %v611
    %v4617 = vpop.f32.mrf.mxu0
    %v4618 = vadd.f32 %v4585, %v4617
    %v4619 = vpop.f32.mrf.mxu0
    %v4620 = vadd.f32 %v4587, %v4619
    %4621 = vmatmul.bf16.gmra.mxu0 %v619
    %v4622 = vpop.f32.mrf.mxu0
    %v4623 = vadd.f32 %v4590, %v4622
    %v4624 = vpop.f32.mrf.mxu0
    %v4625 = vadd.f32 %v4592, %v4624
    %4626 = vmatmul.bf16.gmra.mxu0 %v627
    %v4627 = vpop.f32.mrf.mxu0
    %v4628 = vadd.f32 %v4595, %v4627
    %v4629 = vpop.f32.mrf.mxu0
    %v4630 = vadd.f32 %v4597, %v4629
    %4631 = vmatmul.bf16.gmra.mxu0 %v635
    %v4632 = vpop.f32.mrf.mxu0
    %v4633 = vadd.f32 %v4600, %v4632
    %v4634 = vpop.f32.mrf.mxu0
    %4635 = vdwg.mxu0
    %4636 = vmatpush.bf16.msra.mxu0 %v3003
    %4637 = vmatpush.bf16.msra.mxu0 %v2995
    %4638 = vmatpush.bf16.msra.mxu0 %v2987
    %4639 = vmatpush.bf16.msra.mxu0 %v2979
    %4640 = vmatpush.bf16.msra.mxu0 %v2971
    %4641 = vmatpush.bf16.msra.mxu0 %v2963
    %4642 = vmatpush.bf16.msra.mxu0 %v2955
    %4643 = vmatpush.bf16.msra.mxu0 %v2947
    %4644 = vmatmul.bf16.gmra.mxu0 %v604
    %v4645 = vpop.f32.mrf.mxu0
    %v4646 = vadd.f32 %v4613, %v4645
    %v4647 = vpop.f32.mrf.mxu0
    %v4648 = vadd.f32 %v4615, %v4647
    %4649 = vmatmul.bf16.gmra.mxu0 %v612
    %v4650 = vpop.f32.mrf.mxu0
    %v4651 = vadd.f32 %v4618, %v4650
    %v4652 = vpop.f32.mrf.mxu0
    %v4653 = vadd.f32 %v4620, %v4652
    %4654 = vmatmul.bf16.gmra.mxu0 %v620
    %v4655 = vpop.f32.mrf.mxu0
    %v4656 = vadd.f32 %v4623, %v4655
    %v4657 = vpop.f32.mrf.mxu0
    %v4658 = vadd.f32 %v4625, %v4657
    %4659 = vmatmul.bf16.gmra.mxu0 %v628
    %v4660 = vpop.f32.mrf.mxu0
    %v4661 = vadd.f32 %v4628, %v4660
    %v4662 = vpop.f32.mrf.mxu0
    %v4663 = vadd.f32 %v4630, %v4662
    %4664 = vmatmul.bf16.gmra.mxu0 %v636
    %v4665 = vpop.f32.mrf.mxu0
    %v4666 = vadd.f32 %v4633, %v4665
    %v4667 = vpop.f32.mrf.mxu0
    %4668 = vdwg.mxu0
    %4669 = vmatpush.bf16.msra.mxu0 %v3067
    %4670 = vmatpush.bf16.msra.mxu0 %v3059
    %4671 = vmatpush.bf16.msra.mxu0 %v3051
    %4672 = vmatpush.bf16.msra.mxu0 %v3043
    %4673 = vmatpush.bf16.msra.mxu0 %v3035
    %4674 = vmatpush.bf16.msra.mxu0 %v3027
    %4675 = vmatpush.bf16.msra.mxu0 %v3019
    %4676 = vmatpush.bf16.msra.mxu0 %v3011
    %4677 = vmatmul.bf16.gmra.mxu0 %v605
    %v4678 = vpop.f32.mrf.mxu0
    %v4679 = vadd.f32 %v4646, %v4678
    %v4680 = vpop.f32.mrf.mxu0
    %v4681 = vadd.f32 %v4648, %v4680
    %4682 = vmatmul.bf16.gmra.mxu0 %v613
    %v4683 = vpop.f32.mrf.mxu0
    %v4684 = vadd.f32 %v4651, %v4683
    %v4685 = vpop.f32.mrf.mxu0
    %v4686 = vadd.f32 %v4653, %v4685
    %4687 = vmatmul.bf16.gmra.mxu0 %v621
    %v4688 = vpop.f32.mrf.mxu0
    %v4689 = vadd.f32 %v4656, %v4688
    %v4690 = vpop.f32.mrf.mxu0
    %v4691 = vadd.f32 %v4658, %v4690
    %4692 = vmatmul.bf16.gmra.mxu0 %v629
    %v4693 = vpop.f32.mrf.mxu0
    %v4694 = vadd.f32 %v4661, %v4693
    %v4695 = vpop.f32.mrf.mxu0
    %v4696 = vadd.f32 %v4663, %v4695
    %4697 = vmatmul.bf16.gmra.mxu0 %v637
    %v4698 = vpop.f32.mrf.mxu0
    %v4699 = vadd.f32 %v4666, %v4698
    %v4700 = vpop.f32.mrf.mxu0
    %4701 = vdwg.mxu0
    %4702 = vmatpush.bf16.msra.mxu0 %v3131
    %4703 = vmatpush.bf16.msra.mxu0 %v3123
    %4704 = vmatpush.bf16.msra.mxu0 %v3115
    %4705 = vmatpush.bf16.msra.mxu0 %v3107
    %4706 = vmatpush.bf16.msra.mxu0 %v3099
    %4707 = vmatpush.bf16.msra.mxu0 %v3091
    %4708 = vmatpush.bf16.msra.mxu0 %v3083
    %4709 = vmatpush.bf16.msra.mxu0 %v3075
    %4710 = vmatmul.bf16.gmra.mxu0 %v606
    %v4711 = vpop.f32.mrf.mxu0
    %v4712 = vadd.f32 %v4679, %v4711
    %v4713 = vpop.f32.mrf.mxu0
    %v4714 = vadd.f32 %v4681, %v4713
    %4715 = vmatmul.bf16.gmra.mxu0 %v614
    %v4716 = vpop.f32.mrf.mxu0
    %v4717 = vadd.f32 %v4684, %v4716
    %v4718 = vpop.f32.mrf.mxu0
    %v4719 = vadd.f32 %v4686, %v4718
    %4720 = vmatmul.bf16.gmra.mxu0 %v622
    %v4721 = vpop.f32.mrf.mxu0
    %v4722 = vadd.f32 %v4689, %v4721
    %v4723 = vpop.f32.mrf.mxu0
    %v4724 = vadd.f32 %v4691, %v4723
    %4725 = vmatmul.bf16.gmra.mxu0 %v630
    %v4726 = vpop.f32.mrf.mxu0
    %v4727 = vadd.f32 %v4694, %v4726
    %v4728 = vpop.f32.mrf.mxu0
    %v4729 = vadd.f32 %v4696, %v4728
    %4730 = vmatmul.bf16.gmra.mxu0 %v638
    %v4731 = vpop.f32.mrf.mxu0
    %v4732 = vadd.f32 %v4699, %v4731
    %v4733 = vpop.f32.mrf.mxu0
    %4734 = vdwg.mxu0
    %4735 = vmatpush.bf16.msra.mxu0 %v3195
    %4736 = vmatpush.bf16.msra.mxu0 %v3187
    %4737 = vmatpush.bf16.msra.mxu0 %v3179
    %4738 = vmatpush.bf16.msra.mxu0 %v3171
    %4739 = vmatpush.bf16.msra.mxu0 %v3163
    %4740 = vmatpush.bf16.msra.mxu0 %v3155
    %4741 = vmatpush.bf16.msra.mxu0 %v3147
    %4742 = vmatpush.bf16.msra.mxu0 %v3139
    %4743 = vmatmul.bf16.gmra.mxu0 %v607
    %v4744 = vpop.f32.mrf.mxu0
    %v4745 = vadd.f32 %v4712, %v4744
    %v4746 = vpop.f32.mrf.mxu0
    %v4747 = vadd.f32 %v4714, %v4746
    %4748 = vmatmul.bf16.gmra.mxu0 %v615
    %v4749 = vpop.f32.mrf.mxu0
    %v4750 = vadd.f32 %v4717, %v4749
    %v4751 = vpop.f32.mrf.mxu0
    %v4752 = vadd.f32 %v4719, %v4751
    %4753 = vmatmul.bf16.gmra.mxu0 %v623
    %v4754 = vpop.f32.mrf.mxu0
    %v4755 = vadd.f32 %v4722, %v4754
    %v4756 = vpop.f32.mrf.mxu0
    %v4757 = vadd.f32 %v4724, %v4756
    %4758 = vmatmul.bf16.gmra.mxu0 %v631
    %v4759 = vpop.f32.mrf.mxu0
    %v4760 = vadd.f32 %v4727, %v4759
    %v4761 = vpop.f32.mrf.mxu0
    %v4762 = vadd.f32 %v4729, %v4761
    %4763 = vmatmul.bf16.gmra.mxu0 %v639
    %v4764 = vpop.f32.mrf.mxu0
    %v4765 = vadd.f32 %v4732, %v4764
    %v4766 = vpop.f32.mrf.mxu0
    %4767 = vdwg.mxu0
    %4768 = vmatpush.bf16.msra.mxu0 %v2748
    %4769 = vmatpush.bf16.msra.mxu0 %v2740
    %4770 = vmatpush.bf16.msra.mxu0 %v2732
    %4771 = vmatpush.bf16.msra.mxu0 %v2724
    %4772 = vmatpush.bf16.msra.mxu0 %v2716
    %4773 = vmatpush.bf16.msra.mxu0 %v2708
    %4774 = vmatpush.bf16.msra.mxu0 %v2700
    %4775 = vmatpush.bf16.msra.mxu0 %v2692
    %4776 = vmatmul.bf16.gmra.mxu0 %v600
    %v4777 = vpop.f32.mrf.mxu0
    %v4778 = vadd.f32 0.0, %v4777
    %v4779 = vpop.f32.mrf.mxu0
    %v4780 = vadd.f32 0.0, %v4779
    %4781 = vmatmul.bf16.gmra.mxu0 %v608
    %v4782 = vpop.f32.mrf.mxu0
    %v4783 = vadd.f32 0.0, %v4782
    %v4784 = vpop.f32.mrf.mxu0
    %v4785 = vadd.f32 0.0, %v4784
    %4786 = vmatmul.bf16.gmra.mxu0 %v616
    %v4787 = vpop.f32.mrf.mxu0
    %v4788 = vadd.f32 0.0, %v4787
    %v4789 = vpop.f32.mrf.mxu0
    %v4790 = vadd.f32 0.0, %v4789
    %4791 = vmatmul.bf16.gmra.mxu0 %v624
    %v4792 = vpop.f32.mrf.mxu0
    %v4793 = vadd.f32 0.0, %v4792
    %v4794 = vpop.f32.mrf.mxu0
    %v4795 = vadd.f32 0.0, %v4794
    %4796 = vmatmul.bf16.gmra.mxu0 %v632
    %v4797 = vpop.f32.mrf.mxu0
    %v4798 = vadd.f32 0.0, %v4797
    %v4799 = vpop.f32.mrf.mxu0
    %4800 = vdwg.mxu0
    %4801 = vmatpush.bf16.msra.mxu0 %v2812
    %4802 = vmatpush.bf16.msra.mxu0 %v2804
    %4803 = vmatpush.bf16.msra.mxu0 %v2796
    %4804 = vmatpush.bf16.msra.mxu0 %v2788
    %4805 = vmatpush.bf16.msra.mxu0 %v2780
    %4806 = vmatpush.bf16.msra.mxu0 %v2772
    %4807 = vmatpush.bf16.msra.mxu0 %v2764
    %4808 = vmatpush.bf16.msra.mxu0 %v2756
    %4809 = vmatmul.bf16.gmra.mxu0 %v601
    %v4810 = vpop.f32.mrf.mxu0
    %v4811 = vadd.f32 %v4778, %v4810
    %v4812 = vpop.f32.mrf.mxu0
    %v4813 = vadd.f32 %v4780, %v4812
    %4814 = vmatmul.bf16.gmra.mxu0 %v609
    %v4815 = vpop.f32.mrf.mxu0
    %v4816 = vadd.f32 %v4783, %v4815
    %v4817 = vpop.f32.mrf.mxu0
    %v4818 = vadd.f32 %v4785, %v4817
    %4819 = vmatmul.bf16.gmra.mxu0 %v617
    %v4820 = vpop.f32.mrf.mxu0
    %v4821 = vadd.f32 %v4788, %v4820
    %v4822 = vpop.f32.mrf.mxu0
    %v4823 = vadd.f32 %v4790, %v4822
    %4824 = vmatmul.bf16.gmra.mxu0 %v625
    %v4825 = vpop.f32.mrf.mxu0
    %v4826 = vadd.f32 %v4793, %v4825
    %v4827 = vpop.f32.mrf.mxu0
    %v4828 = vadd.f32 %v4795, %v4827
    %4829 = vmatmul.bf16.gmra.mxu0 %v633
    %v4830 = vpop.f32.mrf.mxu0
    %v4831 = vadd.f32 %v4798, %v4830
    %v4832 = vpop.f32.mrf.mxu0
    %4833 = vdwg.mxu0
    %4834 = vmatpush.bf16.msra.mxu0 %v2876
    %4835 = vmatpush.bf16.msra.mxu0 %v2868
    %4836 = vmatpush.bf16.msra.mxu0 %v2860
    %4837 = vmatpush.bf16.msra.mxu0 %v2852
    %4838 = vmatpush.bf16.msra.mxu0 %v2844
    %4839 = vmatpush.bf16.msra.mxu0 %v2836
    %4840 = vmatpush.bf16.msra.mxu0 %v2828
    %4841 = vmatpush.bf16.msra.mxu0 %v2820
    %4842 = vmatmul.bf16.gmra.mxu0 %v602
    %v4843 = vpop.f32.mrf.mxu0
    %v4844 = vadd.f32 %v4811, %v4843
    %v4845 = vpop.f32.mrf.mxu0
    %v4846 = vadd.f32 %v4813, %v4845
    %4847 = vmatmul.bf16.gmra.mxu0 %v610
    %v4848 = vpop.f32.mrf.mxu0
    %v4849 = vadd.f32 %v4816, %v4848
    %v4850 = vpop.f32.mrf.mxu0
    %v4851 = vadd.f32 %v4818, %v4850
    %4852 = vmatmul.bf16.gmra.mxu0 %v618
    %v4853 = vpop.f32.mrf.mxu0
    %v4854 = vadd.f32 %v4821, %v4853
    %v4855 = vpop.f32.mrf.mxu0
    %v4856 = vadd.f32 %v4823, %v4855
    %4857 = vmatmul.bf16.gmra.mxu0 %v626
    %v4858 = vpop.f32.mrf.mxu0
    %v4859 = vadd.f32 %v4826, %v4858
    %v4860 = vpop.f32.mrf.mxu0
    %v4861 = vadd.f32 %v4828, %v4860
    %4862 = vmatmul.bf16.gmra.mxu0 %v634
    %v4863 = vpop.f32.mrf.mxu0
    %v4864 = vadd.f32 %v4831, %v4863
    %v4865 = vpop.f32.mrf.mxu0
    %4866 = vdwg.mxu0
    %4867 = vmatpush.bf16.msra.mxu0 %v2940
    %4868 = vmatpush.bf16.msra.mxu0 %v2932
    %4869 = vmatpush.bf16.msra.mxu0 %v2924
    %4870 = vmatpush.bf16.msra.mxu0 %v2916
    %4871 = vmatpush.bf16.msra.mxu0 %v2908
    %4872 = vmatpush.bf16.msra.mxu0 %v2900
    %4873 = vmatpush.bf16.msra.mxu0 %v2892
    %4874 = vmatpush.bf16.msra.mxu0 %v2884
    %4875 = vmatmul.bf16.gmra.mxu0 %v603
    %v4876 = vpop.f32.mrf.mxu0
    %v4877 = vadd.f32 %v4844, %v4876
    %v4878 = vpop.f32.mrf.mxu0
    %v4879 = vadd.f32 %v4846, %v4878
    %4880 = vmatmul.bf16.gmra.mxu0 %v611
    %v4881 = vpop.f32.mrf.mxu0
    %v4882 = vadd.f32 %v4849, %v4881
    %v4883 = vpop.f32.mrf.mxu0
    %v4884 = vadd.f32 %v4851, %v4883
    %4885 = vmatmul.bf16.gmra.mxu0 %v619
    %v4886 = vpop.f32.mrf.mxu0
    %v4887 = vadd.f32 %v4854, %v4886
    %v4888 = vpop.f32.mrf.mxu0
    %v4889 = vadd.f32 %v4856, %v4888
    %4890 = vmatmul.bf16.gmra.mxu0 %v627
    %v4891 = vpop.f32.mrf.mxu0
    %v4892 = vadd.f32 %v4859, %v4891
    %v4893 = vpop.f32.mrf.mxu0
    %v4894 = vadd.f32 %v4861, %v4893
    %4895 = vmatmul.bf16.gmra.mxu0 %v635
    %v4896 = vpop.f32.mrf.mxu0
    %v4897 = vadd.f32 %v4864, %v4896
    %v4898 = vpop.f32.mrf.mxu0
    %4899 = vdwg.mxu0
    %4900 = vmatpush.bf16.msra.mxu0 %v3004
    %4901 = vmatpush.bf16.msra.mxu0 %v2996
    %4902 = vmatpush.bf16.msra.mxu0 %v2988
    %4903 = vmatpush.bf16.msra.mxu0 %v2980
    %4904 = vmatpush.bf16.msra.mxu0 %v2972
    %4905 = vmatpush.bf16.msra.mxu0 %v2964
    %4906 = vmatpush.bf16.msra.mxu0 %v2956
    %4907 = vmatpush.bf16.msra.mxu0 %v2948
    %4908 = vmatmul.bf16.gmra.mxu0 %v604
    %v4909 = vpop.f32.mrf.mxu0
    %v4910 = vadd.f32 %v4877, %v4909
    %v4911 = vpop.f32.mrf.mxu0
    %v4912 = vadd.f32 %v4879, %v4911
    %4913 = vmatmul.bf16.gmra.mxu0 %v612
    %v4914 = vpop.f32.mrf.mxu0
    %v4915 = vadd.f32 %v4882, %v4914
    %v4916 = vpop.f32.mrf.mxu0
    %v4917 = vadd.f32 %v4884, %v4916
    %4918 = vmatmul.bf16.gmra.mxu0 %v620
    %v4919 = vpop.f32.mrf.mxu0
    %v4920 = vadd.f32 %v4887, %v4919
    %v4921 = vpop.f32.mrf.mxu0
    %v4922 = vadd.f32 %v4889, %v4921
    %4923 = vmatmul.bf16.gmra.mxu0 %v628
    %v4924 = vpop.f32.mrf.mxu0
    %v4925 = vadd.f32 %v4892, %v4924
    %v4926 = vpop.f32.mrf.mxu0
    %v4927 = vadd.f32 %v4894, %v4926
    %4928 = vmatmul.bf16.gmra.mxu0 %v636
    %v4929 = vpop.f32.mrf.mxu0
    %v4930 = vadd.f32 %v4897, %v4929
    %v4931 = vpop.f32.mrf.mxu0
    %4932 = vdwg.mxu0
    %4933 = vmatpush.bf16.msra.mxu0 %v3068
    %4934 = vmatpush.bf16.msra.mxu0 %v3060
    %4935 = vmatpush.bf16.msra.mxu0 %v3052
    %4936 = vmatpush.bf16.msra.mxu0 %v3044
    %4937 = vmatpush.bf16.msra.mxu0 %v3036
    %4938 = vmatpush.bf16.msra.mxu0 %v3028
    %4939 = vmatpush.bf16.msra.mxu0 %v3020
    %4940 = vmatpush.bf16.msra.mxu0 %v3012
    %4941 = vmatmul.bf16.gmra.mxu0 %v605
    %v4942 = vpop.f32.mrf.mxu0
    %v4943 = vadd.f32 %v4910, %v4942
    %v4944 = vpop.f32.mrf.mxu0
    %v4945 = vadd.f32 %v4912, %v4944
    %4946 = vmatmul.bf16.gmra.mxu0 %v613
    %v4947 = vpop.f32.mrf.mxu0
    %v4948 = vadd.f32 %v4915, %v4947
    %v4949 = vpop.f32.mrf.mxu0
    %v4950 = vadd.f32 %v4917, %v4949
    %4951 = vmatmul.bf16.gmra.mxu0 %v621
    %v4952 = vpop.f32.mrf.mxu0
    %v4953 = vadd.f32 %v4920, %v4952
    %v4954 = vpop.f32.mrf.mxu0
    %v4955 = vadd.f32 %v4922, %v4954
    %4956 = vmatmul.bf16.gmra.mxu0 %v629
    %v4957 = vpop.f32.mrf.mxu0
    %v4958 = vadd.f32 %v4925, %v4957
    %v4959 = vpop.f32.mrf.mxu0
    %v4960 = vadd.f32 %v4927, %v4959
    %4961 = vmatmul.bf16.gmra.mxu0 %v637
    %v4962 = vpop.f32.mrf.mxu0
    %v4963 = vadd.f32 %v4930, %v4962
    %v4964 = vpop.f32.mrf.mxu0
    %4965 = vdwg.mxu0
    %4966 = vmatpush.bf16.msra.mxu0 %v3132
    %4967 = vmatpush.bf16.msra.mxu0 %v3124
    %4968 = vmatpush.bf16.msra.mxu0 %v3116
    %4969 = vmatpush.bf16.msra.mxu0 %v3108
    %4970 = vmatpush.bf16.msra.mxu0 %v3100
    %4971 = vmatpush.bf16.msra.mxu0 %v3092
    %4972 = vmatpush.bf16.msra.mxu0 %v3084
    %4973 = vmatpush.bf16.msra.mxu0 %v3076
    %4974 = vmatmul.bf16.gmra.mxu0 %v606
    %v4975 = vpop.f32.mrf.mxu0
    %v4976 = vadd.f32 %v4943, %v4975
    %v4977 = vpop.f32.mrf.mxu0
    %v4978 = vadd.f32 %v4945, %v4977
    %4979 = vmatmul.bf16.gmra.mxu0 %v614
    %v4980 = vpop.f32.mrf.mxu0
    %v4981 = vadd.f32 %v4948, %v4980
    %v4982 = vpop.f32.mrf.mxu0
    %v4983 = vadd.f32 %v4950, %v4982
    %4984 = vmatmul.bf16.gmra.mxu0 %v622
    %v4985 = vpop.f32.mrf.mxu0
    %v4986 = vadd.f32 %v4953, %v4985
    %v4987 = vpop.f32.mrf.mxu0
    %v4988 = vadd.f32 %v4955, %v4987
    %4989 = vmatmul.bf16.gmra.mxu0 %v630
    %v4990 = vpop.f32.mrf.mxu0
    %v4991 = vadd.f32 %v4958, %v4990
    %v4992 = vpop.f32.mrf.mxu0
    %v4993 = vadd.f32 %v4960, %v4992
    %4994 = vmatmul.bf16.gmra.mxu0 %v638
    %v4995 = vpop.f32.mrf.mxu0
    %v4996 = vadd.f32 %v4963, %v4995
    %v4997 = vpop.f32.mrf.mxu0
    %4998 = vdwg.mxu0
    %4999 = vmatpush.bf16.msra.mxu0 %v3196
    %5000 = vmatpush.bf16.msra.mxu0 %v3188
    %5001 = vmatpush.bf16.msra.mxu0 %v3180
    %5002 = vmatpush.bf16.msra.mxu0 %v3172
    %5003 = vmatpush.bf16.msra.mxu0 %v3164
    %5004 = vmatpush.bf16.msra.mxu0 %v3156
    %5005 = vmatpush.bf16.msra.mxu0 %v3148
    %5006 = vmatpush.bf16.msra.mxu0 %v3140
    %5007 = vmatmul.bf16.gmra.mxu0 %v607
    %v5008 = vpop.f32.mrf.mxu0
    %v5009 = vadd.f32 %v4976, %v5008
    %v5010 = vpop.f32.mrf.mxu0
    %v5011 = vadd.f32 %v4978, %v5010
    %5012 = vmatmul.bf16.gmra.mxu0 %v615
    %v5013 = vpop.f32.mrf.mxu0
    %v5014 = vadd.f32 %v4981, %v5013
    %v5015 = vpop.f32.mrf.mxu0
    %v5016 = vadd.f32 %v4983, %v5015
    %5017 = vmatmul.bf16.gmra.mxu0 %v623
    %v5018 = vpop.f32.mrf.mxu0
    %v5019 = vadd.f32 %v4986, %v5018
    %v5020 = vpop.f32.mrf.mxu0
    %v5021 = vadd.f32 %v4988, %v5020
    %5022 = vmatmul.bf16.gmra.mxu0 %v631
    %v5023 = vpop.f32.mrf.mxu0
    %v5024 = vadd.f32 %v4991, %v5023
    %v5025 = vpop.f32.mrf.mxu0
    %v5026 = vadd.f32 %v4993, %v5025
    %5027 = vmatmul.bf16.gmra.mxu0 %v639
    %v5028 = vpop.f32.mrf.mxu0
    %v5029 = vadd.f32 %v4996, %v5028
    %v5030 = vpop.f32.mrf.mxu0
    %5031 = vdwg.mxu0
    %5032 = vmatpush.bf16.msra.mxu0 %v2749
    %5033 = vmatpush.bf16.msra.mxu0 %v2741
    %5034 = vmatpush.bf16.msra.mxu0 %v2733
    %5035 = vmatpush.bf16.msra.mxu0 %v2725
    %5036 = vmatpush.bf16.msra.mxu0 %v2717
    %5037 = vmatpush.bf16.msra.mxu0 %v2709
    %5038 = vmatpush.bf16.msra.mxu0 %v2701
    %5039 = vmatpush.bf16.msra.mxu0 %v2693
    %5040 = vmatmul.bf16.gmra.mxu0 %v600
    %v5041 = vpop.f32.mrf.mxu0
    %v5042 = vadd.f32 0.0, %v5041
    %v5043 = vpop.f32.mrf.mxu0
    %v5044 = vadd.f32 0.0, %v5043
    %5045 = vmatmul.bf16.gmra.mxu0 %v608
    %v5046 = vpop.f32.mrf.mxu0
    %v5047 = vadd.f32 0.0, %v5046
    %v5048 = vpop.f32.mrf.mxu0
    %v5049 = vadd.f32 0.0, %v5048
    %5050 = vmatmul.bf16.gmra.mxu0 %v616
    %v5051 = vpop.f32.mrf.mxu0
    %v5052 = vadd.f32 0.0, %v5051
    %v5053 = vpop.f32.mrf.mxu0
    %v5054 = vadd.f32 0.0, %v5053
    %5055 = vmatmul.bf16.gmra.mxu0 %v624
    %v5056 = vpop.f32.mrf.mxu0
    %v5057 = vadd.f32 0.0, %v5056
    %v5058 = vpop.f32.mrf.mxu0
    %v5059 = vadd.f32 0.0, %v5058
    %5060 = vmatmul.bf16.gmra.mxu0 %v632
    %v5061 = vpop.f32.mrf.mxu0
    %v5062 = vadd.f32 0.0, %v5061
    %v5063 = vpop.f32.mrf.mxu0
    %5064 = vdwg.mxu0
    %5065 = vmatpush.bf16.msra.mxu0 %v2813
    %5066 = vmatpush.bf16.msra.mxu0 %v2805
    %5067 = vmatpush.bf16.msra.mxu0 %v2797
    %5068 = vmatpush.bf16.msra.mxu0 %v2789
    %5069 = vmatpush.bf16.msra.mxu0 %v2781
    %5070 = vmatpush.bf16.msra.mxu0 %v2773
    %5071 = vmatpush.bf16.msra.mxu0 %v2765
    %5072 = vmatpush.bf16.msra.mxu0 %v2757
    %5073 = vmatmul.bf16.gmra.mxu0 %v601
    %v5074 = vpop.f32.mrf.mxu0
    %v5075 = vadd.f32 %v5042, %v5074
    %v5076 = vpop.f32.mrf.mxu0
    %v5077 = vadd.f32 %v5044, %v5076
    %5078 = vmatmul.bf16.gmra.mxu0 %v609
    %v5079 = vpop.f32.mrf.mxu0
    %v5080 = vadd.f32 %v5047, %v5079
    %v5081 = vpop.f32.mrf.mxu0
    %v5082 = vadd.f32 %v5049, %v5081
    %5083 = vmatmul.bf16.gmra.mxu0 %v617
    %v5084 = vpop.f32.mrf.mxu0
    %v5085 = vadd.f32 %v5052, %v5084
    %v5086 = vpop.f32.mrf.mxu0
    %v5087 = vadd.f32 %v5054, %v5086
    %5088 = vmatmul.bf16.gmra.mxu0 %v625
    %v5089 = vpop.f32.mrf.mxu0
    %v5090 = vadd.f32 %v5057, %v5089
    %v5091 = vpop.f32.mrf.mxu0
    %v5092 = vadd.f32 %v5059, %v5091
    %5093 = vmatmul.bf16.gmra.mxu0 %v633
    %v5094 = vpop.f32.mrf.mxu0
    %v5095 = vadd.f32 %v5062, %v5094
    %v5096 = vpop.f32.mrf.mxu0
    %5097 = vdwg.mxu0
    %5098 = vmatpush.bf16.msra.mxu0 %v2877
    %5099 = vmatpush.bf16.msra.mxu0 %v2869
    %5100 = vmatpush.bf16.msra.mxu0 %v2861
    %5101 = vmatpush.bf16.msra.mxu0 %v2853
    %5102 = vmatpush.bf16.msra.mxu0 %v2845
    %5103 = vmatpush.bf16.msra.mxu0 %v2837
    %5104 = vmatpush.bf16.msra.mxu0 %v2829
    %5105 = vmatpush.bf16.msra.mxu0 %v2821
    %5106 = vmatmul.bf16.gmra.mxu0 %v602
    %v5107 = vpop.f32.mrf.mxu0
    %v5108 = vadd.f32 %v5075, %v5107
    %v5109 = vpop.f32.mrf.mxu0
    %v5110 = vadd.f32 %v5077, %v5109
    %5111 = vmatmul.bf16.gmra.mxu0 %v610
    %v5112 = vpop.f32.mrf.mxu0
    %v5113 = vadd.f32 %v5080, %v5112
    %v5114 = vpop.f32.mrf.mxu0
    %v5115 = vadd.f32 %v5082, %v5114
    %5116 = vmatmul.bf16.gmra.mxu0 %v618
    %v5117 = vpop.f32.mrf.mxu0
    %v5118 = vadd.f32 %v5085, %v5117
    %v5119 = vpop.f32.mrf.mxu0
    %v5120 = vadd.f32 %v5087, %v5119
    %5121 = vmatmul.bf16.gmra.mxu0 %v626
    %v5122 = vpop.f32.mrf.mxu0
    %v5123 = vadd.f32 %v5090, %v5122
    %v5124 = vpop.f32.mrf.mxu0
    %v5125 = vadd.f32 %v5092, %v5124
    %5126 = vmatmul.bf16.gmra.mxu0 %v634
    %v5127 = vpop.f32.mrf.mxu0
    %v5128 = vadd.f32 %v5095, %v5127
    %v5129 = vpop.f32.mrf.mxu0
    %5130 = vdwg.mxu0
    %5131 = vmatpush.bf16.msra.mxu0 %v2941
    %5132 = vmatpush.bf16.msra.mxu0 %v2933
    %5133 = vmatpush.bf16.msra.mxu0 %v2925
    %5134 = vmatpush.bf16.msra.mxu0 %v2917
    %5135 = vmatpush.bf16.msra.mxu0 %v2909
    %5136 = vmatpush.bf16.msra.mxu0 %v2901
    %5137 = vmatpush.bf16.msra.mxu0 %v2893
    %5138 = vmatpush.bf16.msra.mxu0 %v2885
    %5139 = vmatmul.bf16.gmra.mxu0 %v603
    %v5140 = vpop.f32.mrf.mxu0
    %v5141 = vadd.f32 %v5108, %v5140
    %v5142 = vpop.f32.mrf.mxu0
    %v5143 = vadd.f32 %v5110, %v5142
    %5144 = vmatmul.bf16.gmra.mxu0 %v611
    %v5145 = vpop.f32.mrf.mxu0
    %v5146 = vadd.f32 %v5113, %v5145
    %v5147 = vpop.f32.mrf.mxu0
    %v5148 = vadd.f32 %v5115, %v5147
    %5149 = vmatmul.bf16.gmra.mxu0 %v619
    %v5150 = vpop.f32.mrf.mxu0
    %v5151 = vadd.f32 %v5118, %v5150
    %v5152 = vpop.f32.mrf.mxu0
    %v5153 = vadd.f32 %v5120, %v5152
    %5154 = vmatmul.bf16.gmra.mxu0 %v627
    %v5155 = vpop.f32.mrf.mxu0
    %v5156 = vadd.f32 %v5123, %v5155
    %v5157 = vpop.f32.mrf.mxu0
    %v5158 = vadd.f32 %v5125, %v5157
    %5159 = vmatmul.bf16.gmra.mxu0 %v635
    %v5160 = vpop.f32.mrf.mxu0
    %v5161 = vadd.f32 %v5128, %v5160
    %v5162 = vpop.f32.mrf.mxu0
    %5163 = vdwg.mxu0
    %5164 = vmatpush.bf16.msra.mxu0 %v3005
    %5165 = vmatpush.bf16.msra.mxu0 %v2997
    %5166 = vmatpush.bf16.msra.mxu0 %v2989
    %5167 = vmatpush.bf16.msra.mxu0 %v2981
    %5168 = vmatpush.bf16.msra.mxu0 %v2973
    %5169 = vmatpush.bf16.msra.mxu0 %v2965
    %5170 = vmatpush.bf16.msra.mxu0 %v2957
    %5171 = vmatpush.bf16.msra.mxu0 %v2949
    %5172 = vmatmul.bf16.gmra.mxu0 %v604
    %v5173 = vpop.f32.mrf.mxu0
    %v5174 = vadd.f32 %v5141, %v5173
    %v5175 = vpop.f32.mrf.mxu0
    %v5176 = vadd.f32 %v5143, %v5175
    %5177 = vmatmul.bf16.gmra.mxu0 %v612
    %v5178 = vpop.f32.mrf.mxu0
    %v5179 = vadd.f32 %v5146, %v5178
    %v5180 = vpop.f32.mrf.mxu0
    %v5181 = vadd.f32 %v5148, %v5180
    %5182 = vmatmul.bf16.gmra.mxu0 %v620
    %v5183 = vpop.f32.mrf.mxu0
    %v5184 = vadd.f32 %v5151, %v5183
    %v5185 = vpop.f32.mrf.mxu0
    %v5186 = vadd.f32 %v5153, %v5185
    %5187 = vmatmul.bf16.gmra.mxu0 %v628
    %v5188 = vpop.f32.mrf.mxu0
    %v5189 = vadd.f32 %v5156, %v5188
    %v5190 = vpop.f32.mrf.mxu0
    %v5191 = vadd.f32 %v5158, %v5190
    %5192 = vmatmul.bf16.gmra.mxu0 %v636
    %v5193 = vpop.f32.mrf.mxu0
    %v5194 = vadd.f32 %v5161, %v5193
    %v5195 = vpop.f32.mrf.mxu0
    %5196 = vdwg.mxu0
    %5197 = vmatpush.bf16.msra.mxu0 %v3069
    %5198 = vmatpush.bf16.msra.mxu0 %v3061
    %5199 = vmatpush.bf16.msra.mxu0 %v3053
    %5200 = vmatpush.bf16.msra.mxu0 %v3045
    %5201 = vmatpush.bf16.msra.mxu0 %v3037
    %5202 = vmatpush.bf16.msra.mxu0 %v3029
    %5203 = vmatpush.bf16.msra.mxu0 %v3021
    %5204 = vmatpush.bf16.msra.mxu0 %v3013
    %5205 = vmatmul.bf16.gmra.mxu0 %v605
    %v5206 = vpop.f32.mrf.mxu0
    %v5207 = vadd.f32 %v5174, %v5206
    %v5208 = vpop.f32.mrf.mxu0
    %v5209 = vadd.f32 %v5176, %v5208
    %5210 = vmatmul.bf16.gmra.mxu0 %v613
    %v5211 = vpop.f32.mrf.mxu0
    %v5212 = vadd.f32 %v5179, %v5211
    %v5213 = vpop.f32.mrf.mxu0
    %v5214 = vadd.f32 %v5181, %v5213
    %5215 = vmatmul.bf16.gmra.mxu0 %v621
    %v5216 = vpop.f32.mrf.mxu0
    %v5217 = vadd.f32 %v5184, %v5216
    %v5218 = vpop.f32.mrf.mxu0
    %v5219 = vadd.f32 %v5186, %v5218
    %5220 = vmatmul.bf16.gmra.mxu0 %v629
    %v5221 = vpop.f32.mrf.mxu0
    %v5222 = vadd.f32 %v5189, %v5221
    %v5223 = vpop.f32.mrf.mxu0
    %v5224 = vadd.f32 %v5191, %v5223
    %5225 = vmatmul.bf16.gmra.mxu0 %v637
    %v5226 = vpop.f32.mrf.mxu0
    %v5227 = vadd.f32 %v5194, %v5226
    %v5228 = vpop.f32.mrf.mxu0
    %5229 = vdwg.mxu0
    %5230 = vmatpush.bf16.msra.mxu0 %v3133
    %5231 = vmatpush.bf16.msra.mxu0 %v3125
    %5232 = vmatpush.bf16.msra.mxu0 %v3117
    %5233 = vmatpush.bf16.msra.mxu0 %v3109
    %5234 = vmatpush.bf16.msra.mxu0 %v3101
    %5235 = vmatpush.bf16.msra.mxu0 %v3093
    %5236 = vmatpush.bf16.msra.mxu0 %v3085
    %5237 = vmatpush.bf16.msra.mxu0 %v3077
    %5238 = vmatmul.bf16.gmra.mxu0 %v606
    %v5239 = vpop.f32.mrf.mxu0
    %v5240 = vadd.f32 %v5207, %v5239
    %v5241 = vpop.f32.mrf.mxu0
    %v5242 = vadd.f32 %v5209, %v5241
    %5243 = vmatmul.bf16.gmra.mxu0 %v614
    %v5244 = vpop.f32.mrf.mxu0
    %v5245 = vadd.f32 %v5212, %v5244
    %v5246 = vpop.f32.mrf.mxu0
    %v5247 = vadd.f32 %v5214, %v5246
    %5248 = vmatmul.bf16.gmra.mxu0 %v622
    %v5249 = vpop.f32.mrf.mxu0
    %v5250 = vadd.f32 %v5217, %v5249
    %v5251 = vpop.f32.mrf.mxu0
    %v5252 = vadd.f32 %v5219, %v5251
    %5253 = vmatmul.bf16.gmra.mxu0 %v630
    %v5254 = vpop.f32.mrf.mxu0
    %v5255 = vadd.f32 %v5222, %v5254
    %v5256 = vpop.f32.mrf.mxu0
    %v5257 = vadd.f32 %v5224, %v5256
    %5258 = vmatmul.bf16.gmra.mxu0 %v638
    %v5259 = vpop.f32.mrf.mxu0
    %v5260 = vadd.f32 %v5227, %v5259
    %v5261 = vpop.f32.mrf.mxu0
    %5262 = vdwg.mxu0
    %5263 = vmatpush.bf16.msra.mxu0 %v3197
    %5264 = vmatpush.bf16.msra.mxu0 %v3189
    %5265 = vmatpush.bf16.msra.mxu0 %v3181
    %5266 = vmatpush.bf16.msra.mxu0 %v3173
    %5267 = vmatpush.bf16.msra.mxu0 %v3165
    %5268 = vmatpush.bf16.msra.mxu0 %v3157
    %5269 = vmatpush.bf16.msra.mxu0 %v3149
    %5270 = vmatpush.bf16.msra.mxu0 %v3141
    %5271 = vmatmul.bf16.gmra.mxu0 %v607
    %v5272 = vpop.f32.mrf.mxu0
    %v5273 = vadd.f32 %v5240, %v5272
    %v5274 = vpop.f32.mrf.mxu0
    %v5275 = vadd.f32 %v5242, %v5274
    %5276 = vmatmul.bf16.gmra.mxu0 %v615
    %v5277 = vpop.f32.mrf.mxu0
    %v5278 = vadd.f32 %v5245, %v5277
    %v5279 = vpop.f32.mrf.mxu0
    %v5280 = vadd.f32 %v5247, %v5279
    %5281 = vmatmul.bf16.gmra.mxu0 %v623
    %v5282 = vpop.f32.mrf.mxu0
    %v5283 = vadd.f32 %v5250, %v5282
    %v5284 = vpop.f32.mrf.mxu0
    %v5285 = vadd.f32 %v5252, %v5284
    %5286 = vmatmul.bf16.gmra.mxu0 %v631
    %v5287 = vpop.f32.mrf.mxu0
    %v5288 = vadd.f32 %v5255, %v5287
    %v5289 = vpop.f32.mrf.mxu0
    %v5290 = vadd.f32 %v5257, %v5289
    %5291 = vmatmul.bf16.gmra.mxu0 %v639
    %v5292 = vpop.f32.mrf.mxu0
    %v5293 = vadd.f32 %v5260, %v5292
    %v5294 = vpop.f32.mrf.mxu0
    %5295 = vdwg.mxu0
    %5296 = vmatpush.bf16.msra.mxu0 %v2750
    %5297 = vmatpush.bf16.msra.mxu0 %v2742
    %5298 = vmatpush.bf16.msra.mxu0 %v2734
    %5299 = vmatpush.bf16.msra.mxu0 %v2726
    %5300 = vmatpush.bf16.msra.mxu0 %v2718
    %5301 = vmatpush.bf16.msra.mxu0 %v2710
    %5302 = vmatpush.bf16.msra.mxu0 %v2702
    %5303 = vmatpush.bf16.msra.mxu0 %v2694
    %5304 = vmatmul.bf16.gmra.mxu0 %v600
    %v5305 = vpop.f32.mrf.mxu0
    %v5306 = vadd.f32 0.0, %v5305
    %v5307 = vpop.f32.mrf.mxu0
    %v5308 = vadd.f32 0.0, %v5307
    %5309 = vmatmul.bf16.gmra.mxu0 %v608
    %v5310 = vpop.f32.mrf.mxu0
    %v5311 = vadd.f32 0.0, %v5310
    %v5312 = vpop.f32.mrf.mxu0
    %v5313 = vadd.f32 0.0, %v5312
    %5314 = vmatmul.bf16.gmra.mxu0 %v616
    %v5315 = vpop.f32.mrf.mxu0
    %v5316 = vadd.f32 0.0, %v5315
    %v5317 = vpop.f32.mrf.mxu0
    %v5318 = vadd.f32 0.0, %v5317
    %5319 = vmatmul.bf16.gmra.mxu0 %v624
    %v5320 = vpop.f32.mrf.mxu0
    %v5321 = vadd.f32 0.0, %v5320
    %v5322 = vpop.f32.mrf.mxu0
    %v5323 = vadd.f32 0.0, %v5322
    %5324 = vmatmul.bf16.gmra.mxu0 %v632
    %v5325 = vpop.f32.mrf.mxu0
    %v5326 = vadd.f32 0.0, %v5325
    %v5327 = vpop.f32.mrf.mxu0
    %5328 = vdwg.mxu0
    %5329 = vmatpush.bf16.msra.mxu0 %v2814
    %5330 = vmatpush.bf16.msra.mxu0 %v2806
    %5331 = vmatpush.bf16.msra.mxu0 %v2798
    %5332 = vmatpush.bf16.msra.mxu0 %v2790
    %5333 = vmatpush.bf16.msra.mxu0 %v2782
    %5334 = vmatpush.bf16.msra.mxu0 %v2774
    %5335 = vmatpush.bf16.msra.mxu0 %v2766
    %5336 = vmatpush.bf16.msra.mxu0 %v2758
    %5337 = vmatmul.bf16.gmra.mxu0 %v601
    %v5338 = vpop.f32.mrf.mxu0
    %v5339 = vadd.f32 %v5306, %v5338
    %v5340 = vpop.f32.mrf.mxu0
    %v5341 = vadd.f32 %v5308, %v5340
    %5342 = vmatmul.bf16.gmra.mxu0 %v609
    %v5343 = vpop.f32.mrf.mxu0
    %v5344 = vadd.f32 %v5311, %v5343
    %v5345 = vpop.f32.mrf.mxu0
    %v5346 = vadd.f32 %v5313, %v5345
    %5347 = vmatmul.bf16.gmra.mxu0 %v617
    %v5348 = vpop.f32.mrf.mxu0
    %v5349 = vadd.f32 %v5316, %v5348
    %v5350 = vpop.f32.mrf.mxu0
    %v5351 = vadd.f32 %v5318, %v5350
    %5352 = vmatmul.bf16.gmra.mxu0 %v625
    %v5353 = vpop.f32.mrf.mxu0
    %v5354 = vadd.f32 %v5321, %v5353
    %v5355 = vpop.f32.mrf.mxu0
    %v5356 = vadd.f32 %v5323, %v5355
    %5357 = vmatmul.bf16.gmra.mxu0 %v633
    %v5358 = vpop.f32.mrf.mxu0
    %v5359 = vadd.f32 %v5326, %v5358
    %v5360 = vpop.f32.mrf.mxu0
    %5361 = vdwg.mxu0
    %5362 = vmatpush.bf16.msra.mxu0 %v2878
    %5363 = vmatpush.bf16.msra.mxu0 %v2870
    %5364 = vmatpush.bf16.msra.mxu0 %v2862
    %5365 = vmatpush.bf16.msra.mxu0 %v2854
    %5366 = vmatpush.bf16.msra.mxu0 %v2846
    %5367 = vmatpush.bf16.msra.mxu0 %v2838
    %5368 = vmatpush.bf16.msra.mxu0 %v2830
    %5369 = vmatpush.bf16.msra.mxu0 %v2822
    %5370 = vmatmul.bf16.gmra.mxu0 %v602
    %v5371 = vpop.f32.mrf.mxu0
    %v5372 = vadd.f32 %v5339, %v5371
    %v5373 = vpop.f32.mrf.mxu0
    %v5374 = vadd.f32 %v5341, %v5373
    %5375 = vmatmul.bf16.gmra.mxu0 %v610
    %v5376 = vpop.f32.mrf.mxu0
    %v5377 = vadd.f32 %v5344, %v5376
    %v5378 = vpop.f32.mrf.mxu0
    %v5379 = vadd.f32 %v5346, %v5378
    %5380 = vmatmul.bf16.gmra.mxu0 %v618
    %v5381 = vpop.f32.mrf.mxu0
    %v5382 = vadd.f32 %v5349, %v5381
    %v5383 = vpop.f32.mrf.mxu0
    %v5384 = vadd.f32 %v5351, %v5383
    %5385 = vmatmul.bf16.gmra.mxu0 %v626
    %v5386 = vpop.f32.mrf.mxu0
    %v5387 = vadd.f32 %v5354, %v5386
    %v5388 = vpop.f32.mrf.mxu0
    %v5389 = vadd.f32 %v5356, %v5388
    %5390 = vmatmul.bf16.gmra.mxu0 %v634
    %v5391 = vpop.f32.mrf.mxu0
    %v5392 = vadd.f32 %v5359, %v5391
    %v5393 = vpop.f32.mrf.mxu0
    %5394 = vdwg.mxu0
    %5395 = vmatpush.bf16.msra.mxu0 %v2942
    %5396 = vmatpush.bf16.msra.mxu0 %v2934
    %5397 = vmatpush.bf16.msra.mxu0 %v2926
    %5398 = vmatpush.bf16.msra.mxu0 %v2918
    %5399 = vmatpush.bf16.msra.mxu0 %v2910
    %5400 = vmatpush.bf16.msra.mxu0 %v2902
    %5401 = vmatpush.bf16.msra.mxu0 %v2894
    %5402 = vmatpush.bf16.msra.mxu0 %v2886
    %5403 = vmatmul.bf16.gmra.mxu0 %v603
    %v5404 = vpop.f32.mrf.mxu0
    %v5405 = vadd.f32 %v5372, %v5404
    %v5406 = vpop.f32.mrf.mxu0
    %v5407 = vadd.f32 %v5374, %v5406
    %5408 = vmatmul.bf16.gmra.mxu0 %v611
    %v5409 = vpop.f32.mrf.mxu0
    %v5410 = vadd.f32 %v5377, %v5409
    %v5411 = vpop.f32.mrf.mxu0
    %v5412 = vadd.f32 %v5379, %v5411
    %5413 = vmatmul.bf16.gmra.mxu0 %v619
    %v5414 = vpop.f32.mrf.mxu0
    %v5415 = vadd.f32 %v5382, %v5414
    %v5416 = vpop.f32.mrf.mxu0
    %v5417 = vadd.f32 %v5384, %v5416
    %5418 = vmatmul.bf16.gmra.mxu0 %v627
    %v5419 = vpop.f32.mrf.mxu0
    %v5420 = vadd.f32 %v5387, %v5419
    %v5421 = vpop.f32.mrf.mxu0
    %v5422 = vadd.f32 %v5389, %v5421
    %5423 = vmatmul.bf16.gmra.mxu0 %v635
    %v5424 = vpop.f32.mrf.mxu0
    %v5425 = vadd.f32 %v5392, %v5424
    %v5426 = vpop.f32.mrf.mxu0
    %5427 = vdwg.mxu0
    %5428 = vmatpush.bf16.msra.mxu0 %v3006
    %5429 = vmatpush.bf16.msra.mxu0 %v2998
    %5430 = vmatpush.bf16.msra.mxu0 %v2990
    %5431 = vmatpush.bf16.msra.mxu0 %v2982
    %5432 = vmatpush.bf16.msra.mxu0 %v2974
    %5433 = vmatpush.bf16.msra.mxu0 %v2966
    %5434 = vmatpush.bf16.msra.mxu0 %v2958
    %5435 = vmatpush.bf16.msra.mxu0 %v2950
    %5436 = vmatmul.bf16.gmra.mxu0 %v604
    %v5437 = vpop.f32.mrf.mxu0
    %v5438 = vadd.f32 %v5405, %v5437
    %v5439 = vpop.f32.mrf.mxu0
    %v5440 = vadd.f32 %v5407, %v5439
    %5441 = vmatmul.bf16.gmra.mxu0 %v612
    %v5442 = vpop.f32.mrf.mxu0
    %v5443 = vadd.f32 %v5410, %v5442
    %v5444 = vpop.f32.mrf.mxu0
    %v5445 = vadd.f32 %v5412, %v5444
    %5446 = vmatmul.bf16.gmra.mxu0 %v620
    %v5447 = vpop.f32.mrf.mxu0
    %v5448 = vadd.f32 %v5415, %v5447
    %v5449 = vpop.f32.mrf.mxu0
    %v5450 = vadd.f32 %v5417, %v5449
    %5451 = vmatmul.bf16.gmra.mxu0 %v628
    %v5452 = vpop.f32.mrf.mxu0
    %v5453 = vadd.f32 %v5420, %v5452
    %v5454 = vpop.f32.mrf.mxu0
    %v5455 = vadd.f32 %v5422, %v5454
    %5456 = vmatmul.bf16.gmra.mxu0 %v636
    %v5457 = vpop.f32.mrf.mxu0
    %v5458 = vadd.f32 %v5425, %v5457
    %v5459 = vpop.f32.mrf.mxu0
    %5460 = vdwg.mxu0
    %5461 = vmatpush.bf16.msra.mxu0 %v3070
    %5462 = vmatpush.bf16.msra.mxu0 %v3062
    %5463 = vmatpush.bf16.msra.mxu0 %v3054
    %5464 = vmatpush.bf16.msra.mxu0 %v3046
    %5465 = vmatpush.bf16.msra.mxu0 %v3038
    %5466 = vmatpush.bf16.msra.mxu0 %v3030
    %5467 = vmatpush.bf16.msra.mxu0 %v3022
    %5468 = vmatpush.bf16.msra.mxu0 %v3014
    %5469 = vmatmul.bf16.gmra.mxu0 %v605
    %v5470 = vpop.f32.mrf.mxu0
    %v5471 = vadd.f32 %v5438, %v5470
    %v5472 = vpop.f32.mrf.mxu0
    %v5473 = vadd.f32 %v5440, %v5472
    %5474 = vmatmul.bf16.gmra.mxu0 %v613
    %v5475 = vpop.f32.mrf.mxu0
    %v5476 = vadd.f32 %v5443, %v5475
    %v5477 = vpop.f32.mrf.mxu0
    %v5478 = vadd.f32 %v5445, %v5477
    %5479 = vmatmul.bf16.gmra.mxu0 %v621
    %v5480 = vpop.f32.mrf.mxu0
    %v5481 = vadd.f32 %v5448, %v5480
    %v5482 = vpop.f32.mrf.mxu0
    %v5483 = vadd.f32 %v5450, %v5482
    %5484 = vmatmul.bf16.gmra.mxu0 %v629
    %v5485 = vpop.f32.mrf.mxu0
    %v5486 = vadd.f32 %v5453, %v5485
    %v5487 = vpop.f32.mrf.mxu0
    %v5488 = vadd.f32 %v5455, %v5487
    %5489 = vmatmul.bf16.gmra.mxu0 %v637
    %v5490 = vpop.f32.mrf.mxu0
    %v5491 = vadd.f32 %v5458, %v5490
    %v5492 = vpop.f32.mrf.mxu0
    %5493 = vdwg.mxu0
    %5494 = vmatpush.bf16.msra.mxu0 %v3134
    %5495 = vmatpush.bf16.msra.mxu0 %v3126
    %5496 = vmatpush.bf16.msra.mxu0 %v3118
    %5497 = vmatpush.bf16.msra.mxu0 %v3110
    %5498 = vmatpush.bf16.msra.mxu0 %v3102
    %5499 = vmatpush.bf16.msra.mxu0 %v3094
    %5500 = vmatpush.bf16.msra.mxu0 %v3086
    %5501 = vmatpush.bf16.msra.mxu0 %v3078
    %5502 = vmatmul.bf16.gmra.mxu0 %v606
    %v5503 = vpop.f32.mrf.mxu0
    %v5504 = vadd.f32 %v5471, %v5503
    %v5505 = vpop.f32.mrf.mxu0
    %v5506 = vadd.f32 %v5473, %v5505
    %5507 = vmatmul.bf16.gmra.mxu0 %v614
    %v5508 = vpop.f32.mrf.mxu0
    %v5509 = vadd.f32 %v5476, %v5508
    %v5510 = vpop.f32.mrf.mxu0
    %v5511 = vadd.f32 %v5478, %v5510
    %5512 = vmatmul.bf16.gmra.mxu0 %v622
    %v5513 = vpop.f32.mrf.mxu0
    %v5514 = vadd.f32 %v5481, %v5513
    %v5515 = vpop.f32.mrf.mxu0
    %v5516 = vadd.f32 %v5483, %v5515
    %5517 = vmatmul.bf16.gmra.mxu0 %v630
    %v5518 = vpop.f32.mrf.mxu0
    %v5519 = vadd.f32 %v5486, %v5518
    %v5520 = vpop.f32.mrf.mxu0
    %v5521 = vadd.f32 %v5488, %v5520
    %5522 = vmatmul.bf16.gmra.mxu0 %v638
    %v5523 = vpop.f32.mrf.mxu0
    %v5524 = vadd.f32 %v5491, %v5523
    %v5525 = vpop.f32.mrf.mxu0
    %5526 = vdwg.mxu0
    %5527 = vmatpush.bf16.msra.mxu0 %v3198
    %5528 = vmatpush.bf16.msra.mxu0 %v3190
    %5529 = vmatpush.bf16.msra.mxu0 %v3182
    %5530 = vmatpush.bf16.msra.mxu0 %v3174
    %5531 = vmatpush.bf16.msra.mxu0 %v3166
    %5532 = vmatpush.bf16.msra.mxu0 %v3158
    %5533 = vmatpush.bf16.msra.mxu0 %v3150
    %5534 = vmatpush.bf16.msra.mxu0 %v3142
    %5535 = vmatmul.bf16.gmra.mxu0 %v607
    %v5536 = vpop.f32.mrf.mxu0
    %v5537 = vadd.f32 %v5504, %v5536
    %v5538 = vpop.f32.mrf.mxu0
    %v5539 = vadd.f32 %v5506, %v5538
    %5540 = vmatmul.bf16.gmra.mxu0 %v615
    %v5541 = vpop.f32.mrf.mxu0
    %v5542 = vadd.f32 %v5509, %v5541
    %v5543 = vpop.f32.mrf.mxu0
    %v5544 = vadd.f32 %v5511, %v5543
    %5545 = vmatmul.bf16.gmra.mxu0 %v623
    %v5546 = vpop.f32.mrf.mxu0
    %v5547 = vadd.f32 %v5514, %v5546
    %v5548 = vpop.f32.mrf.mxu0
    %v5549 = vadd.f32 %v5516, %v5548
    %5550 = vmatmul.bf16.gmra.mxu0 %v631
    %v5551 = vpop.f32.mrf.mxu0
    %v5552 = vadd.f32 %v5519, %v5551
    %v5553 = vpop.f32.mrf.mxu0
    %v5554 = vadd.f32 %v5521, %v5553
    %5555 = vmatmul.bf16.gmra.mxu0 %v639
    %v5556 = vpop.f32.mrf.mxu0
    %v5557 = vadd.f32 %v5524, %v5556
    %v5558 = vpop.f32.mrf.mxu0
    %5559 = vdwg.mxu0
    %5560 = vmatpush.bf16.msra.mxu0 %v2751
    %5561 = vmatpush.bf16.msra.mxu0 %v2743
    %5562 = vmatpush.bf16.msra.mxu0 %v2735
    %5563 = vmatpush.bf16.msra.mxu0 %v2727
    %5564 = vmatpush.bf16.msra.mxu0 %v2719
    %5565 = vmatpush.bf16.msra.mxu0 %v2711
    %5566 = vmatpush.bf16.msra.mxu0 %v2703
    %5567 = vmatpush.bf16.msra.mxu0 %v2695
    %5568 = vmatmul.bf16.gmra.mxu0 %v600
    %v5569 = vpop.f32.mrf.mxu0
    %v5570 = vadd.f32 0.0, %v5569
    %v5571 = vpop.f32.mrf.mxu0
    %v5572 = vadd.f32 0.0, %v5571
    %5573 = vmatmul.bf16.gmra.mxu0 %v608
    %v5574 = vpop.f32.mrf.mxu0
    %v5575 = vadd.f32 0.0, %v5574
    %v5576 = vpop.f32.mrf.mxu0
    %v5577 = vadd.f32 0.0, %v5576
    %5578 = vmatmul.bf16.gmra.mxu0 %v616
    %v5579 = vpop.f32.mrf.mxu0
    %v5580 = vadd.f32 0.0, %v5579
    %v5581 = vpop.f32.mrf.mxu0
    %v5582 = vadd.f32 0.0, %v5581
    %5583 = vmatmul.bf16.gmra.mxu0 %v624
    %v5584 = vpop.f32.mrf.mxu0
    %v5585 = vadd.f32 0.0, %v5584
    %v5586 = vpop.f32.mrf.mxu0
    %v5587 = vadd.f32 0.0, %v5586
    %5588 = vmatmul.bf16.gmra.mxu0 %v632
    %v5589 = vpop.f32.mrf.mxu0
    %v5590 = vadd.f32 0.0, %v5589
    %v5591 = vpop.f32.mrf.mxu0
    %5592 = vdwg.mxu0
    %5593 = vmatpush.bf16.msra.mxu0 %v2815
    %5594 = vmatpush.bf16.msra.mxu0 %v2807
    %5595 = vmatpush.bf16.msra.mxu0 %v2799
    %5596 = vmatpush.bf16.msra.mxu0 %v2791
    %5597 = vmatpush.bf16.msra.mxu0 %v2783
    %5598 = vmatpush.bf16.msra.mxu0 %v2775
    %5599 = vmatpush.bf16.msra.mxu0 %v2767
    %5600 = vmatpush.bf16.msra.mxu0 %v2759
    %5601 = vmatmul.bf16.gmra.mxu0 %v601
    %v5602 = vpop.f32.mrf.mxu0
    %v5603 = vadd.f32 %v5570, %v5602
    %v5604 = vpop.f32.mrf.mxu0
    %v5605 = vadd.f32 %v5572, %v5604
    %5606 = vmatmul.bf16.gmra.mxu0 %v609
    %v5607 = vpop.f32.mrf.mxu0
    %v5608 = vadd.f32 %v5575, %v5607
    %v5609 = vpop.f32.mrf.mxu0
    %v5610 = vadd.f32 %v5577, %v5609
    %5611 = vmatmul.bf16.gmra.mxu0 %v617
    %v5612 = vpop.f32.mrf.mxu0
    %v5613 = vadd.f32 %v5580, %v5612
    %v5614 = vpop.f32.mrf.mxu0
    %v5615 = vadd.f32 %v5582, %v5614
    %5616 = vmatmul.bf16.gmra.mxu0 %v625
    %v5617 = vpop.f32.mrf.mxu0
    %v5618 = vadd.f32 %v5585, %v5617
    %v5619 = vpop.f32.mrf.mxu0
    %v5620 = vadd.f32 %v5587, %v5619
    %5621 = vmatmul.bf16.gmra.mxu0 %v633
    %v5622 = vpop.f32.mrf.mxu0
    %v5623 = vadd.f32 %v5590, %v5622
    %v5624 = vpop.f32.mrf.mxu0
    %5625 = vdwg.mxu0
    %5626 = vmatpush.bf16.msra.mxu0 %v2879
    %5627 = vmatpush.bf16.msra.mxu0 %v2871
    %5628 = vmatpush.bf16.msra.mxu0 %v2863
    %5629 = vmatpush.bf16.msra.mxu0 %v2855
    %5630 = vmatpush.bf16.msra.mxu0 %v2847
    %5631 = vmatpush.bf16.msra.mxu0 %v2839
    %5632 = vmatpush.bf16.msra.mxu0 %v2831
    %5633 = vmatpush.bf16.msra.mxu0 %v2823
    %5634 = vmatmul.bf16.gmra.mxu0 %v602
    %v5635 = vpop.f32.mrf.mxu0
    %v5636 = vadd.f32 %v5603, %v5635
    %v5637 = vpop.f32.mrf.mxu0
    %v5638 = vadd.f32 %v5605, %v5637
    %5639 = vmatmul.bf16.gmra.mxu0 %v610
    %v5640 = vpop.f32.mrf.mxu0
    %v5641 = vadd.f32 %v5608, %v5640
    %v5642 = vpop.f32.mrf.mxu0
    %v5643 = vadd.f32 %v5610, %v5642
    %5644 = vmatmul.bf16.gmra.mxu0 %v618
    %v5645 = vpop.f32.mrf.mxu0
    %v5646 = vadd.f32 %v5613, %v5645
    %v5647 = vpop.f32.mrf.mxu0
    %v5648 = vadd.f32 %v5615, %v5647
    %5649 = vmatmul.bf16.gmra.mxu0 %v626
    %v5650 = vpop.f32.mrf.mxu0
    %v5651 = vadd.f32 %v5618, %v5650
    %v5652 = vpop.f32.mrf.mxu0
    %v5653 = vadd.f32 %v5620, %v5652
    %5654 = vmatmul.bf16.gmra.mxu0 %v634
    %v5655 = vpop.f32.mrf.mxu0
    %v5656 = vadd.f32 %v5623, %v5655
    %v5657 = vpop.f32.mrf.mxu0
    %5658 = vdwg.mxu0
    %5659 = vmatpush.bf16.msra.mxu0 %v2943
    %5660 = vmatpush.bf16.msra.mxu0 %v2935
    %5661 = vmatpush.bf16.msra.mxu0 %v2927
    %5662 = vmatpush.bf16.msra.mxu0 %v2919
    %5663 = vmatpush.bf16.msra.mxu0 %v2911
    %5664 = vmatpush.bf16.msra.mxu0 %v2903
    %5665 = vmatpush.bf16.msra.mxu0 %v2895
    %5666 = vmatpush.bf16.msra.mxu0 %v2887
    %5667 = vmatmul.bf16.gmra.mxu0 %v603
    %v5668 = vpop.f32.mrf.mxu0
    %v5669 = vadd.f32 %v5636, %v5668
    %v5670 = vpop.f32.mrf.mxu0
    %v5671 = vadd.f32 %v5638, %v5670
    %5672 = vmatmul.bf16.gmra.mxu0 %v611
    %v5673 = vpop.f32.mrf.mxu0
    %v5674 = vadd.f32 %v5641, %v5673
    %v5675 = vpop.f32.mrf.mxu0
    %v5676 = vadd.f32 %v5643, %v5675
    %5677 = vmatmul.bf16.gmra.mxu0 %v619
    %v5678 = vpop.f32.mrf.mxu0
    %v5679 = vadd.f32 %v5646, %v5678
    %v5680 = vpop.f32.mrf.mxu0
    %v5681 = vadd.f32 %v5648, %v5680
    %5682 = vmatmul.bf16.gmra.mxu0 %v627
    %v5683 = vpop.f32.mrf.mxu0
    %v5684 = vadd.f32 %v5651, %v5683
    %v5685 = vpop.f32.mrf.mxu0
    %v5686 = vadd.f32 %v5653, %v5685
    %5687 = vmatmul.bf16.gmra.mxu0 %v635
    %v5688 = vpop.f32.mrf.mxu0
    %v5689 = vadd.f32 %v5656, %v5688
    %v5690 = vpop.f32.mrf.mxu0
    %5691 = vdwg.mxu0
    %5692 = vmatpush.bf16.msra.mxu0 %v3007
    %5693 = vmatpush.bf16.msra.mxu0 %v2999
    %5694 = vmatpush.bf16.msra.mxu0 %v2991
    %5695 = vmatpush.bf16.msra.mxu0 %v2983
    %5696 = vmatpush.bf16.msra.mxu0 %v2975
    %5697 = vmatpush.bf16.msra.mxu0 %v2967
    %5698 = vmatpush.bf16.msra.mxu0 %v2959
    %5699 = vmatpush.bf16.msra.mxu0 %v2951
    %5700 = vmatmul.bf16.gmra.mxu0 %v604
    %v5701 = vpop.f32.mrf.mxu0
    %v5702 = vadd.f32 %v5669, %v5701
    %v5703 = vpop.f32.mrf.mxu0
    %v5704 = vadd.f32 %v5671, %v5703
    %5705 = vmatmul.bf16.gmra.mxu0 %v612
    %v5706 = vpop.f32.mrf.mxu0
    %v5707 = vadd.f32 %v5674, %v5706
    %v5708 = vpop.f32.mrf.mxu0
    %v5709 = vadd.f32 %v5676, %v5708
    %5710 = vmatmul.bf16.gmra.mxu0 %v620
    %v5711 = vpop.f32.mrf.mxu0
    %v5712 = vadd.f32 %v5679, %v5711
    %v5713 = vpop.f32.mrf.mxu0
    %v5714 = vadd.f32 %v5681, %v5713
    %5715 = vmatmul.bf16.gmra.mxu0 %v628
    %v5716 = vpop.f32.mrf.mxu0
    %v5717 = vadd.f32 %v5684, %v5716
    %v5718 = vpop.f32.mrf.mxu0
    %v5719 = vadd.f32 %v5686, %v5718
    %5720 = vmatmul.bf16.gmra.mxu0 %v636
    %v5721 = vpop.f32.mrf.mxu0
    %v5722 = vadd.f32 %v5689, %v5721
    %v5723 = vpop.f32.mrf.mxu0
    %5724 = vdwg.mxu0
    %5725 = vmatpush.bf16.msra.mxu0 %v3071
    %5726 = vmatpush.bf16.msra.mxu0 %v3063
    %5727 = vmatpush.bf16.msra.mxu0 %v3055
    %5728 = vmatpush.bf16.msra.mxu0 %v3047
    %5729 = vmatpush.bf16.msra.mxu0 %v3039
    %5730 = vmatpush.bf16.msra.mxu0 %v3031
    %5731 = vmatpush.bf16.msra.mxu0 %v3023
    %5732 = vmatpush.bf16.msra.mxu0 %v3015
    %5733 = vmatmul.bf16.gmra.mxu0 %v605
    %v5734 = vpop.f32.mrf.mxu0
    %v5735 = vadd.f32 %v5702, %v5734
    %v5736 = vpop.f32.mrf.mxu0
    %v5737 = vadd.f32 %v5704, %v5736
    %5738 = vmatmul.bf16.gmra.mxu0 %v613
    %v5739 = vpop.f32.mrf.mxu0
    %v5740 = vadd.f32 %v5707, %v5739
    %v5741 = vpop.f32.mrf.mxu0
    %v5742 = vadd.f32 %v5709, %v5741
    %5743 = vmatmul.bf16.gmra.mxu0 %v621
    %v5744 = vpop.f32.mrf.mxu0
    %v5745 = vadd.f32 %v5712, %v5744
    %v5746 = vpop.f32.mrf.mxu0
    %v5747 = vadd.f32 %v5714, %v5746
    %5748 = vmatmul.bf16.gmra.mxu0 %v629
    %v5749 = vpop.f32.mrf.mxu0
    %v5750 = vadd.f32 %v5717, %v5749
    %v5751 = vpop.f32.mrf.mxu0
    %v5752 = vadd.f32 %v5719, %v5751
    %5753 = vmatmul.bf16.gmra.mxu0 %v637
    %v5754 = vpop.f32.mrf.mxu0
    %v5755 = vadd.f32 %v5722, %v5754
    %v5756 = vpop.f32.mrf.mxu0
    %5757 = vdwg.mxu0
    %5758 = vmatpush.bf16.msra.mxu0 %v3135
    %5759 = vmatpush.bf16.msra.mxu0 %v3127
    %5760 = vmatpush.bf16.msra.mxu0 %v3119
    %5761 = vmatpush.bf16.msra.mxu0 %v3111
    %5762 = vmatpush.bf16.msra.mxu0 %v3103
    %5763 = vmatpush.bf16.msra.mxu0 %v3095
    %5764 = vmatpush.bf16.msra.mxu0 %v3087
    %5765 = vmatpush.bf16.msra.mxu0 %v3079
    %5766 = vmatmul.bf16.gmra.mxu0 %v606
    %v5767 = vpop.f32.mrf.mxu0
    %v5768 = vadd.f32 %v5735, %v5767
    %v5769 = vpop.f32.mrf.mxu0
    %v5770 = vadd.f32 %v5737, %v5769
    %5771 = vmatmul.bf16.gmra.mxu0 %v614
    %v5772 = vpop.f32.mrf.mxu0
    %v5773 = vadd.f32 %v5740, %v5772
    %v5774 = vpop.f32.mrf.mxu0
    %v5775 = vadd.f32 %v5742, %v5774
    %5776 = vmatmul.bf16.gmra.mxu0 %v622
    %v5777 = vpop.f32.mrf.mxu0
    %v5778 = vadd.f32 %v5745, %v5777
    %v5779 = vpop.f32.mrf.mxu0
    %v5780 = vadd.f32 %v5747, %v5779
    %5781 = vmatmul.bf16.gmra.mxu0 %v630
    %v5782 = vpop.f32.mrf.mxu0
    %v5783 = vadd.f32 %v5750, %v5782
    %v5784 = vpop.f32.mrf.mxu0
    %v5785 = vadd.f32 %v5752, %v5784
    %5786 = vmatmul.bf16.gmra.mxu0 %v638
    %v5787 = vpop.f32.mrf.mxu0
    %v5788 = vadd.f32 %v5755, %v5787
    %v5789 = vpop.f32.mrf.mxu0
    %5790 = vdwg.mxu0
    %5791 = vmatpush.bf16.msra.mxu0 %v3199
    %5792 = vmatpush.bf16.msra.mxu0 %v3191
    %5793 = vmatpush.bf16.msra.mxu0 %v3183
    %5794 = vmatpush.bf16.msra.mxu0 %v3175
    %5795 = vmatpush.bf16.msra.mxu0 %v3167
    %5796 = vmatpush.bf16.msra.mxu0 %v3159
    %5797 = vmatpush.bf16.msra.mxu0 %v3151
    %5798 = vmatpush.bf16.msra.mxu0 %v3143
    %5799 = vmatmul.bf16.gmra.mxu0 %v607
    %v5800 = vpop.f32.mrf.mxu0
    %v5801 = vadd.f32 %v5768, %v5800
    %v5802 = vpop.f32.mrf.mxu0
    %v5803 = vadd.f32 %v5770, %v5802
    %5804 = vmatmul.bf16.gmra.mxu0 %v615
    %v5805 = vpop.f32.mrf.mxu0
    %v5806 = vadd.f32 %v5773, %v5805
    %v5807 = vpop.f32.mrf.mxu0
    %v5808 = vadd.f32 %v5775, %v5807
    %5809 = vmatmul.bf16.gmra.mxu0 %v623
    %v5810 = vpop.f32.mrf.mxu0
    %v5811 = vadd.f32 %v5778, %v5810
    %v5812 = vpop.f32.mrf.mxu0
    %v5813 = vadd.f32 %v5780, %v5812
    %5814 = vmatmul.bf16.gmra.mxu0 %v631
    %v5815 = vpop.f32.mrf.mxu0
    %v5816 = vadd.f32 %v5783, %v5815
    %v5817 = vpop.f32.mrf.mxu0
    %v5818 = vadd.f32 %v5785, %v5817
    %5819 = vmatmul.bf16.gmra.mxu0 %v639
    %v5820 = vpop.f32.mrf.mxu0
    %v5821 = vadd.f32 %v5788, %v5820
    %v5822 = vpop.f32.mrf.mxu0
    %5823 = vdwg.mxu0
    %v5824 = vadd.f32 %v3953, %v3973
    %v5825 = vadd.f32 %v4217, %v4237
    %v5826 = vadd.f32 %v4481, %v4501
    %v5827 = vadd.f32 %v4745, %v4765
    %v5828 = vadd.f32 %v5009, %v5029
    %v5829 = vadd.f32 %v5273, %v5293
    %v5830 = vadd.f32 %v5537, %v5557
    %v5831 = vadd.f32 %v5801, %v5821
    %v5832 = vadd.f32 %v3955, %v3953
    %v5833 = vadd.f32 %v4219, %v4217
    %v5834 = vadd.f32 %v4483, %v4481
    %v5835 = vadd.f32 %v4747, %v4745
    %v5836 = vadd.f32 %v5011, %v5009
    %v5837 = vadd.f32 %v5275, %v5273
    %v5838 = vadd.f32 %v5539, %v5537
    %v5839 = vadd.f32 %v5803, %v5801
    %v5840 = vadd.f32 %v3958, %v3955
    %v5841 = vadd.f32 %v4222, %v4219
    %v5842 = vadd.f32 %v4486, %v4483
    %v5843 = vadd.f32 %v4750, %v4747
    %v5844 = vadd.f32 %v5014, %v5011
    %v5845 = vadd.f32 %v5278, %v5275
    %v5846 = vadd.f32 %v5542, %v5539
    %v5847 = vadd.f32 %v5806, %v5803
    %v5848 = vadd.f32 %v3960, %v3958
    %v5849 = vadd.f32 %v4224, %v4222
    %v5850 = vadd.f32 %v4488, %v4486
    %v5851 = vadd.f32 %v4752, %v4750
    %v5852 = vadd.f32 %v5016, %v5014
    %v5853 = vadd.f32 %v5280, %v5278
    %v5854 = vadd.f32 %v5544, %v5542
    %v5855 = vadd.f32 %v5808, %v5806
    %v5856 = vadd.f32 %v3963, %v3960
    %v5857 = vadd.f32 %v4227, %v4224
    %v5858 = vadd.f32 %v4491, %v4488
    %v5859 = vadd.f32 %v4755, %v4752
    %v5860 = vadd.f32 %v5019, %v5016
    %v5861 = vadd.f32 %v5283, %v5280
    %v5862 = vadd.f32 %v5547, %v5544
    %v5863 = vadd.f32 %v5811, %v5808
    %v5864 = vadd.f32 %v3965, %v3963
    %v5865 = vadd.f32 %v4229, %v4227
    %v5866 = vadd.f32 %v4493, %v4491
    %v5867 = vadd.f32 %v4757, %v4755
    %v5868 = vadd.f32 %v5021, %v5019
    %v5869 = vadd.f32 %v5285, %v5283
    %v5870 = vadd.f32 %v5549, %v5547
    %v5871 = vadd.f32 %v5813, %v5811
    %v5872 = vadd.f32 %v3968, %v3965
    %v5873 = vadd.f32 %v4232, %v4229
    %v5874 = vadd.f32 %v4496, %v4493
    %v5875 = vadd.f32 %v4760, %v4757
    %v5876 = vadd.f32 %v5024, %v5021
    %v5877 = vadd.f32 %v5288, %v5285
    %v5878 = vadd.f32 %v5552, %v5549
    %v5879 = vadd.f32 %v5816, %v5813
    %v5880 = vadd.f32 %v3970, %v3968
    %v5881 = vadd.f32 %v4234, %v4232
    %v5882 = vadd.f32 %v4498, %v4496
    %v5883 = vadd.f32 %v4762, %v4760
    %v5884 = vadd.f32 %v5026, %v5024
    %v5885 = vadd.f32 %v5290, %v5288
    %v5886 = vadd.f32 %v5554, %v5552
    %v5887 = vadd.f32 %v5818, %v5816
    %v5888 = vadd.f32 %v3973, %v3970
    %v5889 = vadd.f32 %v4237, %v4234
    %v5890 = vadd.f32 %v4501, %v4498
    %v5891 = vadd.f32 %v4765, %v4762
    %v5892 = vadd.f32 %v5029, %v5026
    %v5893 = vadd.f32 %v5293, %v5290
    %v5894 = vadd.f32 %v5557, %v5554
    %v5895 = vadd.f32 %v5821, %v5818
    %v5896 = vadd.f32 %v5824, %v3955
    %v5897 = vadd.f32 %v5825, %v4219
    %v5898 = vadd.f32 %v5826, %v4483
    %v5899 = vadd.f32 %v5827, %v4747
    %v5900 = vadd.f32 %v5828, %v5011
    %v5901 = vadd.f32 %v5829, %v5275
    %v5902 = vadd.f32 %v5830, %v5539
    %v5903 = vadd.f32 %v5831, %v5803
    %v5904 = vadd.f32 %v5832, %v3958
    %v5905 = vadd.f32 %v5833, %v4222
    %v5906 = vadd.f32 %v5834, %v4486
    %v5907 = vadd.f32 %v5835, %v4750
    %v5908 = vadd.f32 %v5836, %v5014
    %v5909 = vadd.f32 %v5837, %v5278
    %v5910 = vadd.f32 %v5838, %v5542
    %v5911 = vadd.f32 %v5839, %v5806
    %v5912 = vadd.f32 %v5840, %v3960
    %v5913 = vadd.f32 %v5841, %v4224
    %v5914 = vadd.f32 %v5842, %v4488
    %v5915 = vadd.f32 %v5843, %v4752
    %v5916 = vadd.f32 %v5844, %v5016
    %v5917 = vadd.f32 %v5845, %v5280
    %v5918 = vadd.f32 %v5846, %v5544
    %v5919 = vadd.f32 %v5847, %v5808
    %v5920 = vadd.f32 %v5848, %v3963
    %v5921 = vadd.f32 %v5849, %v4227
    %v5922 = vadd.f32 %v5850, %v4491
    %v5923 = vadd.f32 %v5851, %v4755
    %v5924 = vadd.f32 %v5852, %v5019
    %v5925 = vadd.f32 %v5853, %v5283
    %v5926 = vadd.f32 %v5854, %v5547
    %v5927 = vadd.f32 %v5855, %v5811
    %v5928 = vadd.f32 %v5856, %v3965
    %v5929 = vadd.f32 %v5857, %v4229
    %v5930 = vadd.f32 %v5858, %v4493
    %v5931 = vadd.f32 %v5859, %v4757
    %v5932 = vadd.f32 %v5860, %v5021
    %v5933 = vadd.f32 %v5861, %v5285
    %v5934 = vadd.f32 %v5862, %v5549
    %v5935 = vadd.f32 %v5863, %v5813
    %v5936 = vadd.f32 %v5864, %v3968
    %v5937 = vadd.f32 %v5865, %v4232
    %v5938 = vadd.f32 %v5866, %v4496
    %v5939 = vadd.f32 %v5867, %v4760
    %v5940 = vadd.f32 %v5868, %v5024
    %v5941 = vadd.f32 %v5869, %v5288
    %v5942 = vadd.f32 %v5870, %v5552
    %v5943 = vadd.f32 %v5871, %v5816
    %v5944 = vadd.f32 %v5872, %v3970
    %v5945 = vadd.f32 %v5873, %v4234
    %v5946 = vadd.f32 %v5874, %v4498
    %v5947 = vadd.f32 %v5875, %v4762
    %v5948 = vadd.f32 %v5876, %v5026
    %v5949 = vadd.f32 %v5877, %v5290
    %v5950 = vadd.f32 %v5878, %v5554
    %v5951 = vadd.f32 %v5879, %v5818
    %v5952 = vadd.f32 %v5880, %v3973
    %v5953 = vadd.f32 %v5881, %v4237
    %v5954 = vadd.f32 %v5882, %v4501
    %v5955 = vadd.f32 %v5883, %v4765
    %v5956 = vadd.f32 %v5884, %v5029
    %v5957 = vadd.f32 %v5885, %v5293
    %v5958 = vadd.f32 %v5886, %v5557
    %v5959 = vadd.f32 %v5887, %v5821
    %v5960 = vadd.f32 %v5888, %v3953
    %v5961 = vadd.f32 %v5889, %v4217
    %v5962 = vadd.f32 %v5890, %v4481
    %v5963 = vadd.f32 %v5891, %v4745
    %v5964 = vadd.f32 %v5892, %v5009
    %v5965 = vadd.f32 %v5893, %v5273
    %v5966 = vadd.f32 %v5894, %v5537
    %v5967 = vadd.f32 %v5895, %v5801
    %v5968 = vld [vmem:[#allocation8] sm:$0xff]
    %v5970 = vperm.slane %v5968, 0
    %v5971 = vperm.slane %v5968, 1
    %v5972 = vperm.slane %v5968, 2
    %v5973 = vperm.slane %v5968, 3
    %v5974 = vperm.slane %v5968, 4
    %v5975 = vperm.slane %v5968, 5
    %v5976 = vperm.slane %v5968, 6
    %v5977 = vperm.slane %v5968, 7
    %v5986 = vadd.f32 %v5896, %v5970
    %v5987 = vadd.f32 %v5897, %v5971
    %v5988 = vadd.f32 %v5898, %v5972
    %v5989 = vadd.f32 %v5899, %v5973
    %v5990 = vadd.f32 %v5900, %v5974
    %v5991 = vadd.f32 %v5901, %v5975
    %v5992 = vadd.f32 %v5902, %v5976
    %v5993 = vadd.f32 %v5903, %v5977
    %v5994 = vadd.f32 %v5904, %v5970
    %v5995 = vadd.f32 %v5905, %v5971
    %v5996 = vadd.f32 %v5906, %v5972
    %v5997 = vadd.f32 %v5907, %v5973
    %v5998 = vadd.f32 %v5908, %v5974
    %v5999 = vadd.f32 %v5909, %v5975
    %v6000 = vadd.f32 %v5910, %v5976
    %v6001 = vadd.f32 %v5911, %v5977
    %v6002 = vadd.f32 %v5912, %v5970
    %v6003 = vadd.f32 %v5913, %v5971
    %v6004 = vadd.f32 %v5914, %v5972
    %v6005 = vadd.f32 %v5915, %v5973
    %v6006 = vadd.f32 %v5916, %v5974
    %v6007 = vadd.f32 %v5917, %v5975
    %v6008 = vadd.f32 %v5918, %v5976
    %v6009 = vadd.f32 %v5919, %v5977
    %v6010 = vadd.f32 %v5920, %v5970
    %v6011 = vadd.f32 %v5921, %v5971
    %v6012 = vadd.f32 %v5922, %v5972
    %v6013 = vadd.f32 %v5923, %v5973
    %v6014 = vadd.f32 %v5924, %v5974
    %v6015 = vadd.f32 %v5925, %v5975
    %v6016 = vadd.f32 %v5926, %v5976
    %v6017 = vadd.f32 %v5927, %v5977
    %v6018 = vadd.f32 %v5928, %v5970
    %v6019 = vadd.f32 %v5929, %v5971
    %v6020 = vadd.f32 %v5930, %v5972
    %v6021 = vadd.f32 %v5931, %v5973
    %v6022 = vadd.f32 %v5932, %v5974
    %v6023 = vadd.f32 %v5933, %v5975
    %v6024 = vadd.f32 %v5934, %v5976
    %v6025 = vadd.f32 %v5935, %v5977
    %v6026 = vadd.f32 %v5936, %v5970
    %v6027 = vadd.f32 %v5937, %v5971
    %v6028 = vadd.f32 %v5938, %v5972
    %v6029 = vadd.f32 %v5939, %v5973
    %v6030 = vadd.f32 %v5940, %v5974
    %v6031 = vadd.f32 %v5941, %v5975
    %v6032 = vadd.f32 %v5942, %v5976
    %v6033 = vadd.f32 %v5943, %v5977
    %v6034 = vadd.f32 %v5944, %v5970
    %v6035 = vadd.f32 %v5945, %v5971
    %v6036 = vadd.f32 %v5946, %v5972
    %v6037 = vadd.f32 %v5947, %v5973
    %v6038 = vadd.f32 %v5948, %v5974
    %v6039 = vadd.f32 %v5949, %v5975
    %v6040 = vadd.f32 %v5950, %v5976
    %v6041 = vadd.f32 %v5951, %v5977
    %v6042 = vadd.f32 %v5952, %v5970
    %v6043 = vadd.f32 %v5953, %v5971
    %v6044 = vadd.f32 %v5954, %v5972
    %v6045 = vadd.f32 %v5955, %v5973
    %v6046 = vadd.f32 %v5956, %v5974
    %v6047 = vadd.f32 %v5957, %v5975
    %v6048 = vadd.f32 %v5958, %v5976
    %v6049 = vadd.f32 %v5959, %v5977
    %v6050 = vadd.f32 %v5960, %v5970
    %v6051 = vadd.f32 %v5961, %v5971
    %v6052 = vadd.f32 %v5962, %v5972
    %v6053 = vadd.f32 %v5963, %v5973
    %v6054 = vadd.f32 %v5964, %v5974
    %v6055 = vadd.f32 %v5965, %v5975
    %v6056 = vadd.f32 %v5966, %v5976
    %v6057 = vadd.f32 %v5967, %v5977
    %v6058 = vmax.f32 %v5986, 0.0
    %v6059 = vmax.f32 %v5987, 0.0
    %v6060 = vmax.f32 %v5988, 0.0
    %v6061 = vmax.f32 %v5989, 0.0
    %v6062 = vmax.f32 %v5990, 0.0
    %v6063 = vmax.f32 %v5991, 0.0
    %v6064 = vmax.f32 %v5992, 0.0
    %v6065 = vmax.f32 %v5993, 0.0
    %v6066 = vmax.f32 %v5994, 0.0
    %v6067 = vmax.f32 %v5995, 0.0
    %v6068 = vmax.f32 %v5996, 0.0
    %v6069 = vmax.f32 %v5997, 0.0
    %v6070 = vmax.f32 %v5998, 0.0
    %v6071 = vmax.f32 %v5999, 0.0
    %v6072 = vmax.f32 %v6000, 0.0
    %v6073 = vmax.f32 %v6001, 0.0
    %v6074 = vmax.f32 %v6002, 0.0
    %v6075 = vmax.f32 %v6003, 0.0
    %v6076 = vmax.f32 %v6004, 0.0
    %v6077 = vmax.f32 %v6005, 0.0
    %v6078 = vmax.f32 %v6006, 0.0
    %v6079 = vmax.f32 %v6007, 0.0
    %v6080 = vmax.f32 %v6008, 0.0
    %v6081 = vmax.f32 %v6009, 0.0
    %v6082 = vmax.f32 %v6010, 0.0
    %v6083 = vmax.f32 %v6011, 0.0
    %v6084 = vmax.f32 %v6012, 0.0
    %v6085 = vmax.f32 %v6013, 0.0
    %v6086 = vmax.f32 %v6014, 0.0
    %v6087 = vmax.f32 %v6015, 0.0
    %v6088 = vmax.f32 %v6016, 0.0
    %v6089 = vmax.f32 %v6017, 0.0
    %v6090 = vmax.f32 %v6018, 0.0
    %v6091 = vmax.f32 %v6019, 0.0
    %v6092 = vmax.f32 %v6020, 0.0
    %v6093 = vmax.f32 %v6021, 0.0
    %v6094 = vmax.f32 %v6022, 0.0
    %v6095 = vmax.f32 %v6023, 0.0
    %v6096 = vmax.f32 %v6024, 0.0
    %v6097 = vmax.f32 %v6025, 0.0
    %v6098 = vmax.f32 %v6026, 0.0
    %v6099 = vmax.f32 %v6027, 0.0
    %v6100 = vmax.f32 %v6028, 0.0
    %v6101 = vmax.f32 %v6029, 0.0
    %v6102 = vmax.f32 %v6030, 0.0
    %v6103 = vmax.f32 %v6031, 0.0
    %v6104 = vmax.f32 %v6032, 0.0
    %v6105 = vmax.f32 %v6033, 0.0
    %v6106 = vmax.f32 %v6034, 0.0
    %v6107 = vmax.f32 %v6035, 0.0
    %v6108 = vmax.f32 %v6036, 0.0
    %v6109 = vmax.f32 %v6037, 0.0
    %v6110 = vmax.f32 %v6038, 0.0
    %v6111 = vmax.f32 %v6039, 0.0
    %v6112 = vmax.f32 %v6040, 0.0
    %v6113 = vmax.f32 %v6041, 0.0
    %v6114 = vmax.f32 %v6042, 0.0
    %v6115 = vmax.f32 %v6043, 0.0
    %v6116 = vmax.f32 %v6044, 0.0
    %v6117 = vmax.f32 %v6045, 0.0
    %v6118 = vmax.f32 %v6046, 0.0
    %v6119 = vmax.f32 %v6047, 0.0
    %v6120 = vmax.f32 %v6048, 0.0
    %v6121 = vmax.f32 %v6049, 0.0
    %v6122 = vmax.f32 %v6050, 0.0
    %v6123 = vmax.f32 %v6051, 0.0
    %v6124 = vmax.f32 %v6052, 0.0
    %v6125 = vmax.f32 %v6053, 0.0
    %v6126 = vmax.f32 %v6054, 0.0
    %v6127 = vmax.f32 %v6055, 0.0
    %v6128 = vmax.f32 %v6056, 0.0
    %v6129 = vmax.f32 %v6057, 0.0
    %v6130 = vpack.c.bf16 %v6066, %v6058
    %v6131 = vpack.c.bf16 %v6067, %v6059
    %v6132 = vpack.c.bf16 %v6068, %v6060
    %v6133 = vpack.c.bf16 %v6069, %v6061
    %v6134 = vpack.c.bf16 %v6070, %v6062
    %v6135 = vpack.c.bf16 %v6071, %v6063
    %v6136 = vpack.c.bf16 %v6072, %v6064
    %v6137 = vpack.c.bf16 %v6073, %v6065
    %v6138 = vpack.c.bf16 %v6082, %v6074
    %v6139 = vpack.c.bf16 %v6083, %v6075
    %v6140 = vpack.c.bf16 %v6084, %v6076
    %v6141 = vpack.c.bf16 %v6085, %v6077
    %v6142 = vpack.c.bf16 %v6086, %v6078
    %v6143 = vpack.c.bf16 %v6087, %v6079
    %v6144 = vpack.c.bf16 %v6088, %v6080
    %v6145 = vpack.c.bf16 %v6089, %v6081
    %v6146 = vpack.c.bf16 %v6098, %v6090
    %v6147 = vpack.c.bf16 %v6099, %v6091
    %v6148 = vpack.c.bf16 %v6100, %v6092
    %v6149 = vpack.c.bf16 %v6101, %v6093
    %v6150 = vpack.c.bf16 %v6102, %v6094
    %v6151 = vpack.c.bf16 %v6103, %v6095
    %v6152 = vpack.c.bf16 %v6104, %v6096
    %v6153 = vpack.c.bf16 %v6105, %v6097
    %v6154 = vpack.c.bf16 %v6114, %v6106
    %v6155 = vpack.c.bf16 %v6115, %v6107
    %v6156 = vpack.c.bf16 %v6116, %v6108
    %v6157 = vpack.c.bf16 %v6117, %v6109
    %v6158 = vpack.c.bf16 %v6118, %v6110
    %v6159 = vpack.c.bf16 %v6119, %v6111
    %v6160 = vpack.c.bf16 %v6120, %v6112
    %v6161 = vpack.c.bf16 %v6121, %v6113
    %v6162 = vpack.c.bf16 %v6122, %v6122
    %v6163 = vpack.c.bf16 %v6123, %v6123
    %v6164 = vpack.c.bf16 %v6124, %v6124
    %v6165 = vpack.c.bf16 %v6125, %v6125
    %v6166 = vpack.c.bf16 %v6126, %v6126
    %v6167 = vpack.c.bf16 %v6127, %v6127
    %v6168 = vpack.c.bf16 %v6128, %v6128
    %v6169 = vpack.c.bf16 %v6129, %v6129
    %v6170 = vld [vmem:[#allocation10] sm:$0xff]
    %v6171 = vld [vmem:[#allocation10 + $0x8] sm:$0xff]
    %v6172 = vld [vmem:[#allocation10 + $0x10] sm:$0xff]
    %v6173 = vld [vmem:[#allocation10 + $0x18] sm:$0xff]
    %v6174 = vld [vmem:[#allocation10 + $0x20] sm:$0xff]
    %v6175 = vld [vmem:[#allocation10 + $0x28] sm:$0xff]
    %v6176 = vld [vmem:[#allocation10 + $0x30] sm:$0xff]
    %v6177 = vld [vmem:[#allocation10 + $0x38] sm:$0xff]
    %v6178 = vld [vmem:[#allocation10 + $0x40] sm:$0xff]
    %v6179 = vld [vmem:[#allocation10 + $0x48] sm:$0xff]
    %v6180 = vld [vmem:[#allocation10 + $0x50] sm:$0xff]
    %v6181 = vld [vmem:[#allocation10 + $0x58] sm:$0xff]
    %v6182 = vld [vmem:[#allocation10 + $0x60] sm:$0xff]
    %v6183 = vld [vmem:[#allocation10 + $0x68] sm:$0xff]
    %v6184 = vld [vmem:[#allocation10 + $0x70] sm:$0xff]
    %v6185 = vld [vmem:[#allocation10 + $0x78] sm:$0xff]
    %v6186 = vld [vmem:[#allocation10 + $0x80] sm:$0xff]
    %v6187 = vld [vmem:[#allocation10 + $0x88] sm:$0xff]
    %v6188 = vld [vmem:[#allocation10 + $0x90] sm:$0xff]
    %v6189 = vld [vmem:[#allocation10 + $0x98] sm:$0xff]
    %v6190 = vld [vmem:[#allocation10 + $0xa0] sm:$0xff]
    %v6191 = vld [vmem:[#allocation10 + $0xa8] sm:$0xff]
    %v6192 = vld [vmem:[#allocation10 + $0xb0] sm:$0xff]
    %v6193 = vld [vmem:[#allocation10 + $0xb8] sm:$0xff]
    %v6194 = vld [vmem:[#allocation10 + $0xc0] sm:$0xff]
    %v6195 = vld [vmem:[#allocation10 + $0xc8] sm:$0xff]
    %v6196 = vld [vmem:[#allocation10 + $0xd0] sm:$0xff]
    %v6197 = vld [vmem:[#allocation10 + $0xd8] sm:$0xff]
    %v6198 = vld [vmem:[#allocation10 + $0xe0] sm:$0xff]
    %v6199 = vld [vmem:[#allocation10 + $0xe8] sm:$0xff]
    %v6200 = vld [vmem:[#allocation10 + $0xf0] sm:$0xff]
    %v6201 = vld [vmem:[#allocation10 + $0xf8] sm:$0xff]
    %v6202 = vld [vmem:[#allocation10 + $0x100] sm:$0xff]
    %v6203 = vld [vmem:[#allocation10 + $0x108] sm:$0xff]
    %v6204 = vld [vmem:[#allocation10 + $0x110] sm:$0xff]
    %v6205 = vld [vmem:[#allocation10 + $0x118] sm:$0xff]
    %v6206 = vld [vmem:[#allocation10 + $0x120] sm:$0xff]
    %v6207 = vld [vmem:[#allocation10 + $0x128] sm:$0xff]
    %v6208 = vld [vmem:[#allocation10 + $0x130] sm:$0xff]
    %v6209 = vld [vmem:[#allocation10 + $0x138] sm:$0xff]
    %v6210 = vld [vmem:[#allocation10 + $0x140] sm:$0xff]
    %v6211 = vld [vmem:[#allocation10 + $0x148] sm:$0xff]
    %v6212 = vld [vmem:[#allocation10 + $0x150] sm:$0xff]
    %v6213 = vld [vmem:[#allocation10 + $0x158] sm:$0xff]
    %v6214 = vld [vmem:[#allocation10 + $0x160] sm:$0xff]
    %v6215 = vld [vmem:[#allocation10 + $0x168] sm:$0xff]
    %v6216 = vld [vmem:[#allocation10 + $0x170] sm:$0xff]
    %v6217 = vld [vmem:[#allocation10 + $0x178] sm:$0xff]
    %v6218 = vld [vmem:[#allocation10 + $0x180] sm:$0xff]
    %v6219 = vld [vmem:[#allocation10 + $0x188] sm:$0xff]
    %v6220 = vld [vmem:[#allocation10 + $0x190] sm:$0xff]
    %v6221 = vld [vmem:[#allocation10 + $0x198] sm:$0xff]
    %v6222 = vld [vmem:[#allocation10 + $0x1a0] sm:$0xff]
    %v6223 = vld [vmem:[#allocation10 + $0x1a8] sm:$0xff]
    %v6224 = vld [vmem:[#allocation10 + $0x1b0] sm:$0xff]
    %v6225 = vld [vmem:[#allocation10 + $0x1b8] sm:$0xff]
    %v6226 = vld [vmem:[#allocation10 + $0x1c0] sm:$0xff]
    %v6227 = vld [vmem:[#allocation10 + $0x1c8] sm:$0xff]
    %v6228 = vld [vmem:[#allocation10 + $0x1d0] sm:$0xff]
    %v6229 = vld [vmem:[#allocation10 + $0x1d8] sm:$0xff]
    %v6230 = vld [vmem:[#allocation10 + $0x1e0] sm:$0xff]
    %v6231 = vld [vmem:[#allocation10 + $0x1e8] sm:$0xff]
    %v6232 = vld [vmem:[#allocation10 + $0x1f0] sm:$0xff]
    %v6233 = vld [vmem:[#allocation10 + $0x1f8] sm:$0xff]
    %v6234 = vld [vmem:[#allocation10 + $0x200] sm:$0xff]
    %v6235 = vld [vmem:[#allocation10 + $0x208] sm:$0xff]
    %v6236 = vld [vmem:[#allocation10 + $0x210] sm:$0xff]
    %v6237 = vld [vmem:[#allocation10 + $0x218] sm:$0xff]
    %v6238 = vld [vmem:[#allocation10 + $0x220] sm:$0xff]
    %v6239 = vld [vmem:[#allocation10 + $0x228] sm:$0xff]
    %v6240 = vld [vmem:[#allocation10 + $0x230] sm:$0xff]
    %v6241 = vld [vmem:[#allocation10 + $0x238] sm:$0xff]
    %v6242 = vld [vmem:[#allocation10 + $0x240] sm:$0xff]
    %v6243 = vld [vmem:[#allocation10 + $0x248] sm:$0xff]
    %v6244 = vld [vmem:[#allocation10 + $0x250] sm:$0xff]
    %v6245 = vld [vmem:[#allocation10 + $0x258] sm:$0xff]
    %v6246 = vld [vmem:[#allocation10 + $0x260] sm:$0xff]
    %v6247 = vld [vmem:[#allocation10 + $0x268] sm:$0xff]
    %v6248 = vld [vmem:[#allocation10 + $0x270] sm:$0xff]
    %v6249 = vld [vmem:[#allocation10 + $0x278] sm:$0xff]
    %v6250 = vld [vmem:[#allocation10 + $0x280] sm:$0xff]
    %v6251 = vld [vmem:[#allocation10 + $0x288] sm:$0xff]
    %v6252 = vld [vmem:[#allocation10 + $0x290] sm:$0xff]
    %v6253 = vld [vmem:[#allocation10 + $0x298] sm:$0xff]
    %v6254 = vld [vmem:[#allocation10 + $0x2a0] sm:$0xff]
    %v6255 = vld [vmem:[#allocation10 + $0x2a8] sm:$0xff]
    %v6256 = vld [vmem:[#allocation10 + $0x2b0] sm:$0xff]
    %v6257 = vld [vmem:[#allocation10 + $0x2b8] sm:$0xff]
    %v6258 = vld [vmem:[#allocation10 + $0x2c0] sm:$0xff]
    %v6259 = vld [vmem:[#allocation10 + $0x2c8] sm:$0xff]
    %v6260 = vld [vmem:[#allocation10 + $0x2d0] sm:$0xff]
    %v6261 = vld [vmem:[#allocation10 + $0x2d8] sm:$0xff]
    %v6262 = vld [vmem:[#allocation10 + $0x2e0] sm:$0xff]
    %v6263 = vld [vmem:[#allocation10 + $0x2e8] sm:$0xff]
    %v6264 = vld [vmem:[#allocation10 + $0x2f0] sm:$0xff]
    %v6265 = vld [vmem:[#allocation10 + $0x2f8] sm:$0xff]
    %v6266 = vld [vmem:[#allocation10 + $0x300] sm:$0xff]
    %v6267 = vld [vmem:[#allocation10 + $0x308] sm:$0xff]
    %v6268 = vld [vmem:[#allocation10 + $0x310] sm:$0xff]
    %v6269 = vld [vmem:[#allocation10 + $0x318] sm:$0xff]
    %v6270 = vld [vmem:[#allocation10 + $0x320] sm:$0xff]
    %v6271 = vld [vmem:[#allocation10 + $0x328] sm:$0xff]
    %v6272 = vld [vmem:[#allocation10 + $0x330] sm:$0xff]
    %v6273 = vld [vmem:[#allocation10 + $0x338] sm:$0xff]
    %v6274 = vld [vmem:[#allocation10 + $0x340] sm:$0xff]
    %v6275 = vld [vmem:[#allocation10 + $0x348] sm:$0xff]
    %v6276 = vld [vmem:[#allocation10 + $0x350] sm:$0xff]
    %v6277 = vld [vmem:[#allocation10 + $0x358] sm:$0xff]
    %v6278 = vld [vmem:[#allocation10 + $0x360] sm:$0xff]
    %v6279 = vld [vmem:[#allocation10 + $0x368] sm:$0xff]
    %v6280 = vld [vmem:[#allocation10 + $0x370] sm:$0xff]
    %v6281 = vld [vmem:[#allocation10 + $0x378] sm:$0xff]
    %v6282 = vld [vmem:[#allocation10 + $0x380] sm:$0xff]
    %v6283 = vld [vmem:[#allocation10 + $0x388] sm:$0xff]
    %v6284 = vld [vmem:[#allocation10 + $0x390] sm:$0xff]
    %v6285 = vld [vmem:[#allocation10 + $0x398] sm:$0xff]
    %v6286 = vld [vmem:[#allocation10 + $0x3a0] sm:$0xff]
    %v6287 = vld [vmem:[#allocation10 + $0x3a8] sm:$0xff]
    %v6288 = vld [vmem:[#allocation10 + $0x3b0] sm:$0xff]
    %v6289 = vld [vmem:[#allocation10 + $0x3b8] sm:$0xff]
    %v6290 = vld [vmem:[#allocation10 + $0x3c0] sm:$0xff]
    %v6291 = vld [vmem:[#allocation10 + $0x3c8] sm:$0xff]
    %v6292 = vld [vmem:[#allocation10 + $0x3d0] sm:$0xff]
    %v6293 = vld [vmem:[#allocation10 + $0x3d8] sm:$0xff]
    %v6294 = vld [vmem:[#allocation10 + $0x3e0] sm:$0xff]
    %v6295 = vld [vmem:[#allocation10 + $0x3e8] sm:$0xff]
    %v6296 = vld [vmem:[#allocation10 + $0x3f0] sm:$0xff]
    %v6297 = vld [vmem:[#allocation10 + $0x3f8] sm:$0xff]
    %v6298 = vld [vmem:[#allocation10 + $0x400] sm:$0xff]
    %v6299 = vld [vmem:[#allocation10 + $0x408] sm:$0xff]
    %v6300 = vld [vmem:[#allocation10 + $0x410] sm:$0xff]
    %v6301 = vld [vmem:[#allocation10 + $0x418] sm:$0xff]
    %v6302 = vld [vmem:[#allocation10 + $0x420] sm:$0xff]
    %v6303 = vld [vmem:[#allocation10 + $0x428] sm:$0xff]
    %v6304 = vld [vmem:[#allocation10 + $0x430] sm:$0xff]
    %v6305 = vld [vmem:[#allocation10 + $0x438] sm:$0xff]
    %v6306 = vld [vmem:[#allocation10 + $0x440] sm:$0xff]
    %v6307 = vld [vmem:[#allocation10 + $0x448] sm:$0xff]
    %v6308 = vld [vmem:[#allocation10 + $0x450] sm:$0xff]
    %v6309 = vld [vmem:[#allocation10 + $0x458] sm:$0xff]
    %v6310 = vld [vmem:[#allocation10 + $0x460] sm:$0xff]
    %v6311 = vld [vmem:[#allocation10 + $0x468] sm:$0xff]
    %v6312 = vld [vmem:[#allocation10 + $0x470] sm:$0xff]
    %v6313 = vld [vmem:[#allocation10 + $0x478] sm:$0xff]
    %v6314 = vld [vmem:[#allocation10 + $0x480] sm:$0xff]
    %v6315 = vld [vmem:[#allocation10 + $0x488] sm:$0xff]
    %v6316 = vld [vmem:[#allocation10 + $0x490] sm:$0xff]
    %v6317 = vld [vmem:[#allocation10 + $0x498] sm:$0xff]
    %v6318 = vld [vmem:[#allocation10 + $0x4a0] sm:$0xff]
    %v6319 = vld [vmem:[#allocation10 + $0x4a8] sm:$0xff]
    %v6320 = vld [vmem:[#allocation10 + $0x4b0] sm:$0xff]
    %v6321 = vld [vmem:[#allocation10 + $0x4b8] sm:$0xff]
    %v6322 = vld [vmem:[#allocation10 + $0x4c0] sm:$0xff]
    %v6323 = vld [vmem:[#allocation10 + $0x4c8] sm:$0xff]
    %v6324 = vld [vmem:[#allocation10 + $0x4d0] sm:$0xff]
    %v6325 = vld [vmem:[#allocation10 + $0x4d8] sm:$0xff]
    %v6326 = vld [vmem:[#allocation10 + $0x4e0] sm:$0xff]
    %v6327 = vld [vmem:[#allocation10 + $0x4e8] sm:$0xff]
    %v6328 = vld [vmem:[#allocation10 + $0x4f0] sm:$0xff]
    %v6329 = vld [vmem:[#allocation10 + $0x4f8] sm:$0xff]
    %v6330 = vld [vmem:[#allocation10 + $0x500] sm:$0xff]
    %v6331 = vld [vmem:[#allocation10 + $0x508] sm:$0xff]
    %v6332 = vld [vmem:[#allocation10 + $0x510] sm:$0xff]
    %v6333 = vld [vmem:[#allocation10 + $0x518] sm:$0xff]
    %v6334 = vld [vmem:[#allocation10 + $0x520] sm:$0xff]
    %v6335 = vld [vmem:[#allocation10 + $0x528] sm:$0xff]
    %v6336 = vld [vmem:[#allocation10 + $0x530] sm:$0xff]
    %v6337 = vld [vmem:[#allocation10 + $0x538] sm:$0xff]
    %v6338 = vld [vmem:[#allocation10 + $0x540] sm:$0xff]
    %v6339 = vld [vmem:[#allocation10 + $0x548] sm:$0xff]
    %v6340 = vld [vmem:[#allocation10 + $0x550] sm:$0xff]
    %v6341 = vld [vmem:[#allocation10 + $0x558] sm:$0xff]
    %v6342 = vld [vmem:[#allocation10 + $0x560] sm:$0xff]
    %v6343 = vld [vmem:[#allocation10 + $0x568] sm:$0xff]
    %v6344 = vld [vmem:[#allocation10 + $0x570] sm:$0xff]
    %v6345 = vld [vmem:[#allocation10 + $0x578] sm:$0xff]
    %v6346 = vld [vmem:[#allocation10 + $0x580] sm:$0xff]
    %v6347 = vld [vmem:[#allocation10 + $0x588] sm:$0xff]
    %v6348 = vld [vmem:[#allocation10 + $0x590] sm:$0xff]
    %v6349 = vld [vmem:[#allocation10 + $0x598] sm:$0xff]
    %v6350 = vld [vmem:[#allocation10 + $0x5a0] sm:$0xff]
    %v6351 = vld [vmem:[#allocation10 + $0x5a8] sm:$0xff]
    %v6352 = vld [vmem:[#allocation10 + $0x5b0] sm:$0xff]
    %v6353 = vld [vmem:[#allocation10 + $0x5b8] sm:$0xff]
    %v6354 = vld [vmem:[#allocation10 + $0x5c0] sm:$0xff]
    %v6355 = vld [vmem:[#allocation10 + $0x5c8] sm:$0xff]
    %v6356 = vld [vmem:[#allocation10 + $0x5d0] sm:$0xff]
    %v6357 = vld [vmem:[#allocation10 + $0x5d8] sm:$0xff]
    %v6358 = vld [vmem:[#allocation10 + $0x5e0] sm:$0xff]
    %v6359 = vld [vmem:[#allocation10 + $0x5e8] sm:$0xff]
    %v6360 = vld [vmem:[#allocation10 + $0x5f0] sm:$0xff]
    %v6361 = vld [vmem:[#allocation10 + $0x5f8] sm:$0xff]
    %v6362 = vld [vmem:[#allocation10 + $0x600] sm:$0xff]
    %v6363 = vld [vmem:[#allocation10 + $0x608] sm:$0xff]
    %v6364 = vld [vmem:[#allocation10 + $0x610] sm:$0xff]
    %v6365 = vld [vmem:[#allocation10 + $0x618] sm:$0xff]
    %v6366 = vld [vmem:[#allocation10 + $0x620] sm:$0xff]
    %v6367 = vld [vmem:[#allocation10 + $0x628] sm:$0xff]
    %v6368 = vld [vmem:[#allocation10 + $0x630] sm:$0xff]
    %v6369 = vld [vmem:[#allocation10 + $0x638] sm:$0xff]
    %v6370 = vld [vmem:[#allocation10 + $0x640] sm:$0xff]
    %v6371 = vld [vmem:[#allocation10 + $0x648] sm:$0xff]
    %v6372 = vld [vmem:[#allocation10 + $0x650] sm:$0xff]
    %v6373 = vld [vmem:[#allocation10 + $0x658] sm:$0xff]
    %v6374 = vld [vmem:[#allocation10 + $0x660] sm:$0xff]
    %v6375 = vld [vmem:[#allocation10 + $0x668] sm:$0xff]
    %v6376 = vld [vmem:[#allocation10 + $0x670] sm:$0xff]
    %v6377 = vld [vmem:[#allocation10 + $0x678] sm:$0xff]
    %v6378 = vld [vmem:[#allocation10 + $0x680] sm:$0xff]
    %v6379 = vld [vmem:[#allocation10 + $0x688] sm:$0xff]
    %v6380 = vld [vmem:[#allocation10 + $0x690] sm:$0xff]
    %v6381 = vld [vmem:[#allocation10 + $0x698] sm:$0xff]
    %v6382 = vld [vmem:[#allocation10 + $0x6a0] sm:$0xff]
    %v6383 = vld [vmem:[#allocation10 + $0x6a8] sm:$0xff]
    %v6384 = vld [vmem:[#allocation10 + $0x6b0] sm:$0xff]
    %v6385 = vld [vmem:[#allocation10 + $0x6b8] sm:$0xff]
    %v6386 = vld [vmem:[#allocation10 + $0x6c0] sm:$0xff]
    %v6387 = vld [vmem:[#allocation10 + $0x6c8] sm:$0xff]
    %v6388 = vld [vmem:[#allocation10 + $0x6d0] sm:$0xff]
    %v6389 = vld [vmem:[#allocation10 + $0x6d8] sm:$0xff]
    %v6390 = vld [vmem:[#allocation10 + $0x6e0] sm:$0xff]
    %v6391 = vld [vmem:[#allocation10 + $0x6e8] sm:$0xff]
    %v6392 = vld [vmem:[#allocation10 + $0x6f0] sm:$0xff]
    %v6393 = vld [vmem:[#allocation10 + $0x6f8] sm:$0xff]
    %v6394 = vld [vmem:[#allocation10 + $0x700] sm:$0xff]
    %v6395 = vld [vmem:[#allocation10 + $0x708] sm:$0xff]
    %v6396 = vld [vmem:[#allocation10 + $0x710] sm:$0xff]
    %v6397 = vld [vmem:[#allocation10 + $0x718] sm:$0xff]
    %v6398 = vld [vmem:[#allocation10 + $0x720] sm:$0xff]
    %v6399 = vld [vmem:[#allocation10 + $0x728] sm:$0xff]
    %v6400 = vld [vmem:[#allocation10 + $0x730] sm:$0xff]
    %v6401 = vld [vmem:[#allocation10 + $0x738] sm:$0xff]
    %v6402 = vld [vmem:[#allocation10 + $0x740] sm:$0xff]
    %v6403 = vld [vmem:[#allocation10 + $0x748] sm:$0xff]
    %v6404 = vld [vmem:[#allocation10 + $0x750] sm:$0xff]
    %v6405 = vld [vmem:[#allocation10 + $0x758] sm:$0xff]
    %v6406 = vld [vmem:[#allocation10 + $0x760] sm:$0xff]
    %v6407 = vld [vmem:[#allocation10 + $0x768] sm:$0xff]
    %v6408 = vld [vmem:[#allocation10 + $0x770] sm:$0xff]
    %v6409 = vld [vmem:[#allocation10 + $0x778] sm:$0xff]
    %v6410 = vld [vmem:[#allocation10 + $0x780] sm:$0xff]
    %v6411 = vld [vmem:[#allocation10 + $0x788] sm:$0xff]
    %v6412 = vld [vmem:[#allocation10 + $0x790] sm:$0xff]
    %v6413 = vld [vmem:[#allocation10 + $0x798] sm:$0xff]
    %v6414 = vld [vmem:[#allocation10 + $0x7a0] sm:$0xff]
    %v6415 = vld [vmem:[#allocation10 + $0x7a8] sm:$0xff]
    %v6416 = vld [vmem:[#allocation10 + $0x7b0] sm:$0xff]
    %v6417 = vld [vmem:[#allocation10 + $0x7b8] sm:$0xff]
    %v6418 = vld [vmem:[#allocation10 + $0x7c0] sm:$0xff]
    %v6419 = vld [vmem:[#allocation10 + $0x7c8] sm:$0xff]
    %v6420 = vld [vmem:[#allocation10 + $0x7d0] sm:$0xff]
    %v6421 = vld [vmem:[#allocation10 + $0x7d8] sm:$0xff]
    %v6422 = vld [vmem:[#allocation10 + $0x7e0] sm:$0xff]
    %v6423 = vld [vmem:[#allocation10 + $0x7e8] sm:$0xff]
    %v6424 = vld [vmem:[#allocation10 + $0x7f0] sm:$0xff]
    %v6425 = vld [vmem:[#allocation10 + $0x7f8] sm:$0xff]
    %v6426 = vld [vmem:[#allocation10 + $0x800] sm:$0xff]
    %v6427 = vld [vmem:[#allocation10 + $0x808] sm:$0xff]
    %v6428 = vld [vmem:[#allocation10 + $0x810] sm:$0xff]
    %v6429 = vld [vmem:[#allocation10 + $0x818] sm:$0xff]
    %v6430 = vld [vmem:[#allocation10 + $0x820] sm:$0xff]
    %v6431 = vld [vmem:[#allocation10 + $0x828] sm:$0xff]
    %v6432 = vld [vmem:[#allocation10 + $0x830] sm:$0xff]
    %v6433 = vld [vmem:[#allocation10 + $0x838] sm:$0xff]
    %v6434 = vld [vmem:[#allocation10 + $0x840] sm:$0xff]
    %v6435 = vld [vmem:[#allocation10 + $0x848] sm:$0xff]
    %v6436 = vld [vmem:[#allocation10 + $0x850] sm:$0xff]
    %v6437 = vld [vmem:[#allocation10 + $0x858] sm:$0xff]
    %v6438 = vld [vmem:[#allocation10 + $0x860] sm:$0xff]
    %v6439 = vld [vmem:[#allocation10 + $0x868] sm:$0xff]
    %v6440 = vld [vmem:[#allocation10 + $0x870] sm:$0xff]
    %v6441 = vld [vmem:[#allocation10 + $0x878] sm:$0xff]
    %v6442 = vld [vmem:[#allocation10 + $0x880] sm:$0xff]
    %v6443 = vld [vmem:[#allocation10 + $0x888] sm:$0xff]
    %v6444 = vld [vmem:[#allocation10 + $0x890] sm:$0xff]
    %v6445 = vld [vmem:[#allocation10 + $0x898] sm:$0xff]
    %v6446 = vld [vmem:[#allocation10 + $0x8a0] sm:$0xff]
    %v6447 = vld [vmem:[#allocation10 + $0x8a8] sm:$0xff]
    %v6448 = vld [vmem:[#allocation10 + $0x8b0] sm:$0xff]
    %v6449 = vld [vmem:[#allocation10 + $0x8b8] sm:$0xff]
    %v6450 = vld [vmem:[#allocation10 + $0x8c0] sm:$0xff]
    %v6451 = vld [vmem:[#allocation10 + $0x8c8] sm:$0xff]
    %v6452 = vld [vmem:[#allocation10 + $0x8d0] sm:$0xff]
    %v6453 = vld [vmem:[#allocation10 + $0x8d8] sm:$0xff]
    %v6454 = vld [vmem:[#allocation10 + $0x8e0] sm:$0xff]
    %v6455 = vld [vmem:[#allocation10 + $0x8e8] sm:$0xff]
    %v6456 = vld [vmem:[#allocation10 + $0x8f0] sm:$0xff]
    %v6457 = vld [vmem:[#allocation10 + $0x8f8] sm:$0xff]
    %v6458 = vld [vmem:[#allocation10 + $0x900] sm:$0xff]
    %v6459 = vld [vmem:[#allocation10 + $0x908] sm:$0xff]
    %v6460 = vld [vmem:[#allocation10 + $0x910] sm:$0xff]
    %v6461 = vld [vmem:[#allocation10 + $0x918] sm:$0xff]
    %v6462 = vld [vmem:[#allocation10 + $0x920] sm:$0xff]
    %v6463 = vld [vmem:[#allocation10 + $0x928] sm:$0xff]
    %v6464 = vld [vmem:[#allocation10 + $0x930] sm:$0xff]
    %v6465 = vld [vmem:[#allocation10 + $0x938] sm:$0xff]
    %v6466 = vld [vmem:[#allocation10 + $0x940] sm:$0xff]
    %v6467 = vld [vmem:[#allocation10 + $0x948] sm:$0xff]
    %v6468 = vld [vmem:[#allocation10 + $0x950] sm:$0xff]
    %v6469 = vld [vmem:[#allocation10 + $0x958] sm:$0xff]
    %v6470 = vld [vmem:[#allocation10 + $0x960] sm:$0xff]
    %v6471 = vld [vmem:[#allocation10 + $0x968] sm:$0xff]
    %v6472 = vld [vmem:[#allocation10 + $0x970] sm:$0xff]
    %v6473 = vld [vmem:[#allocation10 + $0x978] sm:$0xff]
    %v6474 = vld [vmem:[#allocation10 + $0x980] sm:$0xff]
    %v6475 = vld [vmem:[#allocation10 + $0x988] sm:$0xff]
    %v6476 = vld [vmem:[#allocation10 + $0x990] sm:$0xff]
    %v6477 = vld [vmem:[#allocation10 + $0x998] sm:$0xff]
    %v6478 = vld [vmem:[#allocation10 + $0x9a0] sm:$0xff]
    %v6479 = vld [vmem:[#allocation10 + $0x9a8] sm:$0xff]
    %v6480 = vld [vmem:[#allocation10 + $0x9b0] sm:$0xff]
    %v6481 = vld [vmem:[#allocation10 + $0x9b8] sm:$0xff]
    %v6482 = vld [vmem:[#allocation10 + $0x9c0] sm:$0xff]
    %v6483 = vld [vmem:[#allocation10 + $0x9c8] sm:$0xff]
    %v6484 = vld [vmem:[#allocation10 + $0x9d0] sm:$0xff]
    %v6485 = vld [vmem:[#allocation10 + $0x9d8] sm:$0xff]
    %v6486 = vld [vmem:[#allocation10 + $0x9e0] sm:$0xff]
    %v6487 = vld [vmem:[#allocation10 + $0x9e8] sm:$0xff]
    %v6488 = vld [vmem:[#allocation10 + $0x9f0] sm:$0xff]
    %v6489 = vld [vmem:[#allocation10 + $0x9f8] sm:$0xff]
    %v6490 = vld [vmem:[#allocation10 + $0xa00] sm:$0xff]
    %v6491 = vld [vmem:[#allocation10 + $0xa08] sm:$0xff]
    %v6492 = vld [vmem:[#allocation10 + $0xa10] sm:$0xff]
    %v6493 = vld [vmem:[#allocation10 + $0xa18] sm:$0xff]
    %v6494 = vld [vmem:[#allocation10 + $0xa20] sm:$0xff]
    %v6495 = vld [vmem:[#allocation10 + $0xa28] sm:$0xff]
    %v6496 = vld [vmem:[#allocation10 + $0xa30] sm:$0xff]
    %v6497 = vld [vmem:[#allocation10 + $0xa38] sm:$0xff]
    %v6498 = vld [vmem:[#allocation10 + $0xa40] sm:$0xff]
    %v6499 = vld [vmem:[#allocation10 + $0xa48] sm:$0xff]
    %v6500 = vld [vmem:[#allocation10 + $0xa50] sm:$0xff]
    %v6501 = vld [vmem:[#allocation10 + $0xa58] sm:$0xff]
    %v6502 = vld [vmem:[#allocation10 + $0xa60] sm:$0xff]
    %v6503 = vld [vmem:[#allocation10 + $0xa68] sm:$0xff]
    %v6504 = vld [vmem:[#allocation10 + $0xa70] sm:$0xff]
    %v6505 = vld [vmem:[#allocation10 + $0xa78] sm:$0xff]
    %v6506 = vld [vmem:[#allocation10 + $0xa80] sm:$0xff]
    %v6507 = vld [vmem:[#allocation10 + $0xa88] sm:$0xff]
    %v6508 = vld [vmem:[#allocation10 + $0xa90] sm:$0xff]
    %v6509 = vld [vmem:[#allocation10 + $0xa98] sm:$0xff]
    %v6510 = vld [vmem:[#allocation10 + $0xaa0] sm:$0xff]
    %v6511 = vld [vmem:[#allocation10 + $0xaa8] sm:$0xff]
    %v6512 = vld [vmem:[#allocation10 + $0xab0] sm:$0xff]
    %v6513 = vld [vmem:[#allocation10 + $0xab8] sm:$0xff]
    %v6514 = vld [vmem:[#allocation10 + $0xac0] sm:$0xff]
    %v6515 = vld [vmem:[#allocation10 + $0xac8] sm:$0xff]
    %v6516 = vld [vmem:[#allocation10 + $0xad0] sm:$0xff]
    %v6517 = vld [vmem:[#allocation10 + $0xad8] sm:$0xff]
    %v6518 = vld [vmem:[#allocation10 + $0xae0] sm:$0xff]
    %v6519 = vld [vmem:[#allocation10 + $0xae8] sm:$0xff]
    %v6520 = vld [vmem:[#allocation10 + $0xaf0] sm:$0xff]
    %v6521 = vld [vmem:[#allocation10 + $0xaf8] sm:$0xff]
    %v6522 = vld [vmem:[#allocation10 + $0xb00] sm:$0xff]
    %v6523 = vld [vmem:[#allocation10 + $0xb08] sm:$0xff]
    %v6524 = vld [vmem:[#allocation10 + $0xb10] sm:$0xff]
    %v6525 = vld [vmem:[#allocation10 + $0xb18] sm:$0xff]
    %v6526 = vld [vmem:[#allocation10 + $0xb20] sm:$0xff]
    %v6527 = vld [vmem:[#allocation10 + $0xb28] sm:$0xff]
    %v6528 = vld [vmem:[#allocation10 + $0xb30] sm:$0xff]
    %v6529 = vld [vmem:[#allocation10 + $0xb38] sm:$0xff]
    %v6530 = vld [vmem:[#allocation10 + $0xb40] sm:$0xff]
    %v6531 = vld [vmem:[#allocation10 + $0xb48] sm:$0xff]
    %v6532 = vld [vmem:[#allocation10 + $0xb50] sm:$0xff]
    %v6533 = vld [vmem:[#allocation10 + $0xb58] sm:$0xff]
    %v6534 = vld [vmem:[#allocation10 + $0xb60] sm:$0xff]
    %v6535 = vld [vmem:[#allocation10 + $0xb68] sm:$0xff]
    %v6536 = vld [vmem:[#allocation10 + $0xb70] sm:$0xff]
    %v6537 = vld [vmem:[#allocation10 + $0xb78] sm:$0xff]
    %v6538 = vld [vmem:[#allocation10 + $0xb80] sm:$0xff]
    %v6539 = vld [vmem:[#allocation10 + $0xb88] sm:$0xff]
    %v6540 = vld [vmem:[#allocation10 + $0xb90] sm:$0xff]
    %v6541 = vld [vmem:[#allocation10 + $0xb98] sm:$0xff]
    %v6542 = vld [vmem:[#allocation10 + $0xba0] sm:$0xff]
    %v6543 = vld [vmem:[#allocation10 + $0xba8] sm:$0xff]
    %v6544 = vld [vmem:[#allocation10 + $0xbb0] sm:$0xff]
    %v6545 = vld [vmem:[#allocation10 + $0xbb8] sm:$0xff]
    %v6546 = vld [vmem:[#allocation10 + $0xbc0] sm:$0xff]
    %v6547 = vld [vmem:[#allocation10 + $0xbc8] sm:$0xff]
    %v6548 = vld [vmem:[#allocation10 + $0xbd0] sm:$0xff]
    %v6549 = vld [vmem:[#allocation10 + $0xbd8] sm:$0xff]
    %v6550 = vld [vmem:[#allocation10 + $0xbe0] sm:$0xff]
    %v6551 = vld [vmem:[#allocation10 + $0xbe8] sm:$0xff]
    %v6552 = vld [vmem:[#allocation10 + $0xbf0] sm:$0xff]
    %v6553 = vld [vmem:[#allocation10 + $0xbf8] sm:$0xff]
    %v6554 = vld [vmem:[#allocation10 + $0xc00] sm:$0xff]
    %v6555 = vld [vmem:[#allocation10 + $0xc08] sm:$0xff]
    %v6556 = vld [vmem:[#allocation10 + $0xc10] sm:$0xff]
    %v6557 = vld [vmem:[#allocation10 + $0xc18] sm:$0xff]
    %v6558 = vld [vmem:[#allocation10 + $0xc20] sm:$0xff]
    %v6559 = vld [vmem:[#allocation10 + $0xc28] sm:$0xff]
    %v6560 = vld [vmem:[#allocation10 + $0xc30] sm:$0xff]
    %v6561 = vld [vmem:[#allocation10 + $0xc38] sm:$0xff]
    %v6562 = vld [vmem:[#allocation10 + $0xc40] sm:$0xff]
    %v6563 = vld [vmem:[#allocation10 + $0xc48] sm:$0xff]
    %v6564 = vld [vmem:[#allocation10 + $0xc50] sm:$0xff]
    %v6565 = vld [vmem:[#allocation10 + $0xc58] sm:$0xff]
    %v6566 = vld [vmem:[#allocation10 + $0xc60] sm:$0xff]
    %v6567 = vld [vmem:[#allocation10 + $0xc68] sm:$0xff]
    %v6568 = vld [vmem:[#allocation10 + $0xc70] sm:$0xff]
    %v6569 = vld [vmem:[#allocation10 + $0xc78] sm:$0xff]
    %v6570 = vld [vmem:[#allocation10 + $0xc80] sm:$0xff]
    %v6571 = vld [vmem:[#allocation10 + $0xc88] sm:$0xff]
    %v6572 = vld [vmem:[#allocation10 + $0xc90] sm:$0xff]
    %v6573 = vld [vmem:[#allocation10 + $0xc98] sm:$0xff]
    %v6574 = vld [vmem:[#allocation10 + $0xca0] sm:$0xff]
    %v6575 = vld [vmem:[#allocation10 + $0xca8] sm:$0xff]
    %v6576 = vld [vmem:[#allocation10 + $0xcb0] sm:$0xff]
    %v6577 = vld [vmem:[#allocation10 + $0xcb8] sm:$0xff]
    %v6578 = vld [vmem:[#allocation10 + $0xcc0] sm:$0xff]
    %v6579 = vld [vmem:[#allocation10 + $0xcc8] sm:$0xff]
    %v6580 = vld [vmem:[#allocation10 + $0xcd0] sm:$0xff]
    %v6581 = vld [vmem:[#allocation10 + $0xcd8] sm:$0xff]
    %v6582 = vld [vmem:[#allocation10 + $0xce0] sm:$0xff]
    %v6583 = vld [vmem:[#allocation10 + $0xce8] sm:$0xff]
    %v6584 = vld [vmem:[#allocation10 + $0xcf0] sm:$0xff]
    %v6585 = vld [vmem:[#allocation10 + $0xcf8] sm:$0xff]
    %v6586 = vld [vmem:[#allocation10 + $0xd00] sm:$0xff]
    %v6587 = vld [vmem:[#allocation10 + $0xd08] sm:$0xff]
    %v6588 = vld [vmem:[#allocation10 + $0xd10] sm:$0xff]
    %v6589 = vld [vmem:[#allocation10 + $0xd18] sm:$0xff]
    %v6590 = vld [vmem:[#allocation10 + $0xd20] sm:$0xff]
    %v6591 = vld [vmem:[#allocation10 + $0xd28] sm:$0xff]
    %v6592 = vld [vmem:[#allocation10 + $0xd30] sm:$0xff]
    %v6593 = vld [vmem:[#allocation10 + $0xd38] sm:$0xff]
    %v6594 = vld [vmem:[#allocation10 + $0xd40] sm:$0xff]
    %v6595 = vld [vmem:[#allocation10 + $0xd48] sm:$0xff]
    %v6596 = vld [vmem:[#allocation10 + $0xd50] sm:$0xff]
    %v6597 = vld [vmem:[#allocation10 + $0xd58] sm:$0xff]
    %v6598 = vld [vmem:[#allocation10 + $0xd60] sm:$0xff]
    %v6599 = vld [vmem:[#allocation10 + $0xd68] sm:$0xff]
    %v6600 = vld [vmem:[#allocation10 + $0xd70] sm:$0xff]
    %v6601 = vld [vmem:[#allocation10 + $0xd78] sm:$0xff]
    %v6602 = vld [vmem:[#allocation10 + $0xd80] sm:$0xff]
    %v6603 = vld [vmem:[#allocation10 + $0xd88] sm:$0xff]
    %v6604 = vld [vmem:[#allocation10 + $0xd90] sm:$0xff]
    %v6605 = vld [vmem:[#allocation10 + $0xd98] sm:$0xff]
    %v6606 = vld [vmem:[#allocation10 + $0xda0] sm:$0xff]
    %v6607 = vld [vmem:[#allocation10 + $0xda8] sm:$0xff]
    %v6608 = vld [vmem:[#allocation10 + $0xdb0] sm:$0xff]
    %v6609 = vld [vmem:[#allocation10 + $0xdb8] sm:$0xff]
    %v6610 = vld [vmem:[#allocation10 + $0xdc0] sm:$0xff]
    %v6611 = vld [vmem:[#allocation10 + $0xdc8] sm:$0xff]
    %v6612 = vld [vmem:[#allocation10 + $0xdd0] sm:$0xff]
    %v6613 = vld [vmem:[#allocation10 + $0xdd8] sm:$0xff]
    %v6614 = vld [vmem:[#allocation10 + $0xde0] sm:$0xff]
    %v6615 = vld [vmem:[#allocation10 + $0xde8] sm:$0xff]
    %v6616 = vld [vmem:[#allocation10 + $0xdf0] sm:$0xff]
    %v6617 = vld [vmem:[#allocation10 + $0xdf8] sm:$0xff]
    %v6618 = vld [vmem:[#allocation10 + $0xe00] sm:$0xff]
    %v6619 = vld [vmem:[#allocation10 + $0xe08] sm:$0xff]
    %v6620 = vld [vmem:[#allocation10 + $0xe10] sm:$0xff]
    %v6621 = vld [vmem:[#allocation10 + $0xe18] sm:$0xff]
    %v6622 = vld [vmem:[#allocation10 + $0xe20] sm:$0xff]
    %v6623 = vld [vmem:[#allocation10 + $0xe28] sm:$0xff]
    %v6624 = vld [vmem:[#allocation10 + $0xe30] sm:$0xff]
    %v6625 = vld [vmem:[#allocation10 + $0xe38] sm:$0xff]
    %v6626 = vld [vmem:[#allocation10 + $0xe40] sm:$0xff]
    %v6627 = vld [vmem:[#allocation10 + $0xe48] sm:$0xff]
    %v6628 = vld [vmem:[#allocation10 + $0xe50] sm:$0xff]
    %v6629 = vld [vmem:[#allocation10 + $0xe58] sm:$0xff]
    %v6630 = vld [vmem:[#allocation10 + $0xe60] sm:$0xff]
    %v6631 = vld [vmem:[#allocation10 + $0xe68] sm:$0xff]
    %v6632 = vld [vmem:[#allocation10 + $0xe70] sm:$0xff]
    %v6633 = vld [vmem:[#allocation10 + $0xe78] sm:$0xff]
    %v6634 = vld [vmem:[#allocation10 + $0xe80] sm:$0xff]
    %v6635 = vld [vmem:[#allocation10 + $0xe88] sm:$0xff]
    %v6636 = vld [vmem:[#allocation10 + $0xe90] sm:$0xff]
    %v6637 = vld [vmem:[#allocation10 + $0xe98] sm:$0xff]
    %v6638 = vld [vmem:[#allocation10 + $0xea0] sm:$0xff]
    %v6639 = vld [vmem:[#allocation10 + $0xea8] sm:$0xff]
    %v6640 = vld [vmem:[#allocation10 + $0xeb0] sm:$0xff]
    %v6641 = vld [vmem:[#allocation10 + $0xeb8] sm:$0xff]
    %v6642 = vld [vmem:[#allocation10 + $0xec0] sm:$0xff]
    %v6643 = vld [vmem:[#allocation10 + $0xec8] sm:$0xff]
    %v6644 = vld [vmem:[#allocation10 + $0xed0] sm:$0xff]
    %v6645 = vld [vmem:[#allocation10 + $0xed8] sm:$0xff]
    %v6646 = vld [vmem:[#allocation10 + $0xee0] sm:$0xff]
    %v6647 = vld [vmem:[#allocation10 + $0xee8] sm:$0xff]
    %v6648 = vld [vmem:[#allocation10 + $0xef0] sm:$0xff]
    %v6649 = vld [vmem:[#allocation10 + $0xef8] sm:$0xff]
    %v6650 = vld [vmem:[#allocation10 + $0xf00] sm:$0xff]
    %v6651 = vld [vmem:[#allocation10 + $0xf08] sm:$0xff]
    %v6652 = vld [vmem:[#allocation10 + $0xf10] sm:$0xff]
    %v6653 = vld [vmem:[#allocation10 + $0xf18] sm:$0xff]
    %v6654 = vld [vmem:[#allocation10 + $0xf20] sm:$0xff]
    %v6655 = vld [vmem:[#allocation10 + $0xf28] sm:$0xff]
    %v6656 = vld [vmem:[#allocation10 + $0xf30] sm:$0xff]
    %v6657 = vld [vmem:[#allocation10 + $0xf38] sm:$0xff]
    %v6658 = vld [vmem:[#allocation10 + $0xf40] sm:$0xff]
    %v6659 = vld [vmem:[#allocation10 + $0xf48] sm:$0xff]
    %v6660 = vld [vmem:[#allocation10 + $0xf50] sm:$0xff]
    %v6661 = vld [vmem:[#allocation10 + $0xf58] sm:$0xff]
    %v6662 = vld [vmem:[#allocation10 + $0xf60] sm:$0xff]
    %v6663 = vld [vmem:[#allocation10 + $0xf68] sm:$0xff]
    %v6664 = vld [vmem:[#allocation10 + $0xf70] sm:$0xff]
    %v6665 = vld [vmem:[#allocation10 + $0xf78] sm:$0xff]
    %v6666 = vld [vmem:[#allocation10 + $0xf80] sm:$0xff]
    %v6667 = vld [vmem:[#allocation10 + $0xf88] sm:$0xff]
    %v6668 = vld [vmem:[#allocation10 + $0xf90] sm:$0xff]
    %v6669 = vld [vmem:[#allocation10 + $0xf98] sm:$0xff]
    %v6670 = vld [vmem:[#allocation10 + $0xfa0] sm:$0xff]
    %v6671 = vld [vmem:[#allocation10 + $0xfa8] sm:$0xff]
    %v6672 = vld [vmem:[#allocation10 + $0xfb0] sm:$0xff]
    %v6673 = vld [vmem:[#allocation10 + $0xfb8] sm:$0xff]
    %v6674 = vld [vmem:[#allocation10 + $0xfc0] sm:$0xff]
    %v6675 = vld [vmem:[#allocation10 + $0xfc8] sm:$0xff]
    %v6676 = vld [vmem:[#allocation10 + $0xfd0] sm:$0xff]
    %v6677 = vld [vmem:[#allocation10 + $0xfd8] sm:$0xff]
    %v6678 = vld [vmem:[#allocation10 + $0xfe0] sm:$0xff]
    %v6679 = vld [vmem:[#allocation10 + $0xfe8] sm:$0xff]
    %v6680 = vld [vmem:[#allocation10 + $0xff0] sm:$0xff]
    %v6681 = vld [vmem:[#allocation10 + $0xff8] sm:$0xff]
    %v7194 = vunpack.c.l.b16 %v6170
    %v7195 = vunpack.c.h.b16 %v6170
    %v7196 = vunpack.c.l.b16 %v6171
    %v7197 = vunpack.c.h.b16 %v6171
    %v7198 = vunpack.c.l.b16 %v6172
    %v7199 = vunpack.c.h.b16 %v6172
    %v7200 = vunpack.c.l.b16 %v6173
    %v7201 = vunpack.c.h.b16 %v6173
    %v7202 = vunpack.c.l.b16 %v6174
    %v7203 = vunpack.c.h.b16 %v6174
    %v7204 = vunpack.c.l.b16 %v6175
    %v7205 = vunpack.c.h.b16 %v6175
    %v7206 = vunpack.c.l.b16 %v6176
    %v7207 = vunpack.c.h.b16 %v6176
    %v7208 = vunpack.c.l.b16 %v6177
    %v7209 = vunpack.c.h.b16 %v6177
    %v7210 = vunpack.c.l.b16 %v6178
    %v7211 = vunpack.c.h.b16 %v6178
    %v7212 = vunpack.c.l.b16 %v6179
    %v7213 = vunpack.c.h.b16 %v6179
    %v7214 = vunpack.c.l.b16 %v6180
    %v7215 = vunpack.c.h.b16 %v6180
    %v7216 = vunpack.c.l.b16 %v6181
    %v7217 = vunpack.c.h.b16 %v6181
    %v7218 = vunpack.c.l.b16 %v6182
    %v7219 = vunpack.c.h.b16 %v6182
    %v7220 = vunpack.c.l.b16 %v6183
    %v7221 = vunpack.c.h.b16 %v6183
    %v7222 = vunpack.c.l.b16 %v6184
    %v7223 = vunpack.c.h.b16 %v6184
    %v7224 = vunpack.c.l.b16 %v6185
    %v7225 = vunpack.c.h.b16 %v6185
    %v7226 = vunpack.c.l.b16 %v6186
    %v7227 = vunpack.c.h.b16 %v6186
    %v7228 = vunpack.c.l.b16 %v6187
    %v7229 = vunpack.c.h.b16 %v6187
    %v7230 = vunpack.c.l.b16 %v6188
    %v7231 = vunpack.c.h.b16 %v6188
    %v7232 = vunpack.c.l.b16 %v6189
    %v7233 = vunpack.c.h.b16 %v6189
    %v7234 = vunpack.c.l.b16 %v6190
    %v7235 = vunpack.c.h.b16 %v6190
    %v7236 = vunpack.c.l.b16 %v6191
    %v7237 = vunpack.c.h.b16 %v6191
    %v7238 = vunpack.c.l.b16 %v6192
    %v7239 = vunpack.c.h.b16 %v6192
    %v7240 = vunpack.c.l.b16 %v6193
    %v7241 = vunpack.c.h.b16 %v6193
    %v7242 = vunpack.c.l.b16 %v6194
    %v7243 = vunpack.c.h.b16 %v6194
    %v7244 = vunpack.c.l.b16 %v6195
    %v7245 = vunpack.c.h.b16 %v6195
    %v7246 = vunpack.c.l.b16 %v6196
    %v7247 = vunpack.c.h.b16 %v6196
    %v7248 = vunpack.c.l.b16 %v6197
    %v7249 = vunpack.c.h.b16 %v6197
    %v7250 = vunpack.c.l.b16 %v6198
    %v7251 = vunpack.c.h.b16 %v6198
    %v7252 = vunpack.c.l.b16 %v6199
    %v7253 = vunpack.c.h.b16 %v6199
    %v7254 = vunpack.c.l.b16 %v6200
    %v7255 = vunpack.c.h.b16 %v6200
    %v7256 = vunpack.c.l.b16 %v6201
    %v7257 = vunpack.c.h.b16 %v6201
    %v7258 = vunpack.c.l.b16 %v6202
    %v7259 = vunpack.c.h.b16 %v6202
    %v7260 = vunpack.c.l.b16 %v6203
    %v7261 = vunpack.c.h.b16 %v6203
    %v7262 = vunpack.c.l.b16 %v6204
    %v7263 = vunpack.c.h.b16 %v6204
    %v7264 = vunpack.c.l.b16 %v6205
    %v7265 = vunpack.c.h.b16 %v6205
    %v7266 = vunpack.c.l.b16 %v6206
    %v7267 = vunpack.c.h.b16 %v6206
    %v7268 = vunpack.c.l.b16 %v6207
    %v7269 = vunpack.c.h.b16 %v6207
    %v7270 = vunpack.c.l.b16 %v6208
    %v7271 = vunpack.c.h.b16 %v6208
    %v7272 = vunpack.c.l.b16 %v6209
    %v7273 = vunpack.c.h.b16 %v6209
    %v7274 = vunpack.c.l.b16 %v6210
    %v7275 = vunpack.c.h.b16 %v6210
    %v7276 = vunpack.c.l.b16 %v6211
    %v7277 = vunpack.c.h.b16 %v6211
    %v7278 = vunpack.c.l.b16 %v6212
    %v7279 = vunpack.c.h.b16 %v6212
    %v7280 = vunpack.c.l.b16 %v6213
    %v7281 = vunpack.c.h.b16 %v6213
    %v7282 = vunpack.c.l.b16 %v6214
    %v7283 = vunpack.c.h.b16 %v6214
    %v7284 = vunpack.c.l.b16 %v6215
    %v7285 = vunpack.c.h.b16 %v6215
    %v7286 = vunpack.c.l.b16 %v6216
    %v7287 = vunpack.c.h.b16 %v6216
    %v7288 = vunpack.c.l.b16 %v6217
    %v7289 = vunpack.c.h.b16 %v6217
    %v7290 = vunpack.c.l.b16 %v6218
    %v7291 = vunpack.c.h.b16 %v6218
    %v7292 = vunpack.c.l.b16 %v6219
    %v7293 = vunpack.c.h.b16 %v6219
    %v7294 = vunpack.c.l.b16 %v6220
    %v7295 = vunpack.c.h.b16 %v6220
    %v7296 = vunpack.c.l.b16 %v6221
    %v7297 = vunpack.c.h.b16 %v6221
    %v7298 = vunpack.c.l.b16 %v6222
    %v7299 = vunpack.c.h.b16 %v6222
    %v7300 = vunpack.c.l.b16 %v6223
    %v7301 = vunpack.c.h.b16 %v6223
    %v7302 = vunpack.c.l.b16 %v6224
    %v7303 = vunpack.c.h.b16 %v6224
    %v7304 = vunpack.c.l.b16 %v6225
    %v7305 = vunpack.c.h.b16 %v6225
    %v7306 = vunpack.c.l.b16 %v6226
    %v7307 = vunpack.c.h.b16 %v6226
    %v7308 = vunpack.c.l.b16 %v6227
    %v7309 = vunpack.c.h.b16 %v6227
    %v7310 = vunpack.c.l.b16 %v6228
    %v7311 = vunpack.c.h.b16 %v6228
    %v7312 = vunpack.c.l.b16 %v6229
    %v7313 = vunpack.c.h.b16 %v6229
    %v7314 = vunpack.c.l.b16 %v6230
    %v7315 = vunpack.c.h.b16 %v6230
    %v7316 = vunpack.c.l.b16 %v6231
    %v7317 = vunpack.c.h.b16 %v6231
    %v7318 = vunpack.c.l.b16 %v6232
    %v7319 = vunpack.c.h.b16 %v6232
    %v7320 = vunpack.c.l.b16 %v6233
    %v7321 = vunpack.c.h.b16 %v6233
    %v7322 = vunpack.c.l.b16 %v6234
    %v7323 = vunpack.c.h.b16 %v6234
    %v7324 = vunpack.c.l.b16 %v6235
    %v7325 = vunpack.c.h.b16 %v6235
    %v7326 = vunpack.c.l.b16 %v6236
    %v7327 = vunpack.c.h.b16 %v6236
    %v7328 = vunpack.c.l.b16 %v6237
    %v7329 = vunpack.c.h.b16 %v6237
    %v7330 = vunpack.c.l.b16 %v6238
    %v7331 = vunpack.c.h.b16 %v6238
    %v7332 = vunpack.c.l.b16 %v6239
    %v7333 = vunpack.c.h.b16 %v6239
    %v7334 = vunpack.c.l.b16 %v6240
    %v7335 = vunpack.c.h.b16 %v6240
    %v7336 = vunpack.c.l.b16 %v6241
    %v7337 = vunpack.c.h.b16 %v6241
    %v7338 = vunpack.c.l.b16 %v6242
    %v7339 = vunpack.c.h.b16 %v6242
    %v7340 = vunpack.c.l.b16 %v6243
    %v7341 = vunpack.c.h.b16 %v6243
    %v7342 = vunpack.c.l.b16 %v6244
    %v7343 = vunpack.c.h.b16 %v6244
    %v7344 = vunpack.c.l.b16 %v6245
    %v7345 = vunpack.c.h.b16 %v6245
    %v7346 = vunpack.c.l.b16 %v6246
    %v7347 = vunpack.c.h.b16 %v6246
    %v7348 = vunpack.c.l.b16 %v6247
    %v7349 = vunpack.c.h.b16 %v6247
    %v7350 = vunpack.c.l.b16 %v6248
    %v7351 = vunpack.c.h.b16 %v6248
    %v7352 = vunpack.c.l.b16 %v6249
    %v7353 = vunpack.c.h.b16 %v6249
    %v7354 = vunpack.c.l.b16 %v6250
    %v7355 = vunpack.c.h.b16 %v6250
    %v7356 = vunpack.c.l.b16 %v6251
    %v7357 = vunpack.c.h.b16 %v6251
    %v7358 = vunpack.c.l.b16 %v6252
    %v7359 = vunpack.c.h.b16 %v6252
    %v7360 = vunpack.c.l.b16 %v6253
    %v7361 = vunpack.c.h.b16 %v6253
    %v7362 = vunpack.c.l.b16 %v6254
    %v7363 = vunpack.c.h.b16 %v6254
    %v7364 = vunpack.c.l.b16 %v6255
    %v7365 = vunpack.c.h.b16 %v6255
    %v7366 = vunpack.c.l.b16 %v6256
    %v7367 = vunpack.c.h.b16 %v6256
    %v7368 = vunpack.c.l.b16 %v6257
    %v7369 = vunpack.c.h.b16 %v6257
    %v7370 = vunpack.c.l.b16 %v6258
    %v7371 = vunpack.c.h.b16 %v6258
    %v7372 = vunpack.c.l.b16 %v6259
    %v7373 = vunpack.c.h.b16 %v6259
    %v7374 = vunpack.c.l.b16 %v6260
    %v7375 = vunpack.c.h.b16 %v6260
    %v7376 = vunpack.c.l.b16 %v6261
    %v7377 = vunpack.c.h.b16 %v6261
    %v7378 = vunpack.c.l.b16 %v6262
    %v7379 = vunpack.c.h.b16 %v6262
    %v7380 = vunpack.c.l.b16 %v6263
    %v7381 = vunpack.c.h.b16 %v6263
    %v7382 = vunpack.c.l.b16 %v6264
    %v7383 = vunpack.c.h.b16 %v6264
    %v7384 = vunpack.c.l.b16 %v6265
    %v7385 = vunpack.c.h.b16 %v6265
    %v7386 = vunpack.c.l.b16 %v6266
    %v7387 = vunpack.c.h.b16 %v6266
    %v7388 = vunpack.c.l.b16 %v6267
    %v7389 = vunpack.c.h.b16 %v6267
    %v7390 = vunpack.c.l.b16 %v6268
    %v7391 = vunpack.c.h.b16 %v6268
    %v7392 = vunpack.c.l.b16 %v6269
    %v7393 = vunpack.c.h.b16 %v6269
    %v7394 = vunpack.c.l.b16 %v6270
    %v7395 = vunpack.c.h.b16 %v6270
    %v7396 = vunpack.c.l.b16 %v6271
    %v7397 = vunpack.c.h.b16 %v6271
    %v7398 = vunpack.c.l.b16 %v6272
    %v7399 = vunpack.c.h.b16 %v6272
    %v7400 = vunpack.c.l.b16 %v6273
    %v7401 = vunpack.c.h.b16 %v6273
    %v7402 = vunpack.c.l.b16 %v6274
    %v7403 = vunpack.c.h.b16 %v6274
    %v7404 = vunpack.c.l.b16 %v6275
    %v7405 = vunpack.c.h.b16 %v6275
    %v7406 = vunpack.c.l.b16 %v6276
    %v7407 = vunpack.c.h.b16 %v6276
    %v7408 = vunpack.c.l.b16 %v6277
    %v7409 = vunpack.c.h.b16 %v6277
    %v7410 = vunpack.c.l.b16 %v6278
    %v7411 = vunpack.c.h.b16 %v6278
    %v7412 = vunpack.c.l.b16 %v6279
    %v7413 = vunpack.c.h.b16 %v6279
    %v7414 = vunpack.c.l.b16 %v6280
    %v7415 = vunpack.c.h.b16 %v6280
    %v7416 = vunpack.c.l.b16 %v6281
    %v7417 = vunpack.c.h.b16 %v6281
    %v7418 = vunpack.c.l.b16 %v6282
    %v7419 = vunpack.c.h.b16 %v6282
    %v7420 = vunpack.c.l.b16 %v6283
    %v7421 = vunpack.c.h.b16 %v6283
    %v7422 = vunpack.c.l.b16 %v6284
    %v7423 = vunpack.c.h.b16 %v6284
    %v7424 = vunpack.c.l.b16 %v6285
    %v7425 = vunpack.c.h.b16 %v6285
    %v7426 = vunpack.c.l.b16 %v6286
    %v7427 = vunpack.c.h.b16 %v6286
    %v7428 = vunpack.c.l.b16 %v6287
    %v7429 = vunpack.c.h.b16 %v6287
    %v7430 = vunpack.c.l.b16 %v6288
    %v7431 = vunpack.c.h.b16 %v6288
    %v7432 = vunpack.c.l.b16 %v6289
    %v7433 = vunpack.c.h.b16 %v6289
    %v7434 = vunpack.c.l.b16 %v6290
    %v7435 = vunpack.c.h.b16 %v6290
    %v7436 = vunpack.c.l.b16 %v6291
    %v7437 = vunpack.c.h.b16 %v6291
    %v7438 = vunpack.c.l.b16 %v6292
    %v7439 = vunpack.c.h.b16 %v6292
    %v7440 = vunpack.c.l.b16 %v6293
    %v7441 = vunpack.c.h.b16 %v6293
    %v7442 = vunpack.c.l.b16 %v6294
    %v7443 = vunpack.c.h.b16 %v6294
    %v7444 = vunpack.c.l.b16 %v6295
    %v7445 = vunpack.c.h.b16 %v6295
    %v7446 = vunpack.c.l.b16 %v6296
    %v7447 = vunpack.c.h.b16 %v6296
    %v7448 = vunpack.c.l.b16 %v6297
    %v7449 = vunpack.c.h.b16 %v6297
    %v7450 = vunpack.c.l.b16 %v6298
    %v7451 = vunpack.c.h.b16 %v6298
    %v7452 = vunpack.c.l.b16 %v6299
    %v7453 = vunpack.c.h.b16 %v6299
    %v7454 = vunpack.c.l.b16 %v6300
    %v7455 = vunpack.c.h.b16 %v6300
    %v7456 = vunpack.c.l.b16 %v6301
    %v7457 = vunpack.c.h.b16 %v6301
    %v7458 = vunpack.c.l.b16 %v6302
    %v7459 = vunpack.c.h.b16 %v6302
    %v7460 = vunpack.c.l.b16 %v6303
    %v7461 = vunpack.c.h.b16 %v6303
    %v7462 = vunpack.c.l.b16 %v6304
    %v7463 = vunpack.c.h.b16 %v6304
    %v7464 = vunpack.c.l.b16 %v6305
    %v7465 = vunpack.c.h.b16 %v6305
    %v7466 = vunpack.c.l.b16 %v6306
    %v7467 = vunpack.c.h.b16 %v6306
    %v7468 = vunpack.c.l.b16 %v6307
    %v7469 = vunpack.c.h.b16 %v6307
    %v7470 = vunpack.c.l.b16 %v6308
    %v7471 = vunpack.c.h.b16 %v6308
    %v7472 = vunpack.c.l.b16 %v6309
    %v7473 = vunpack.c.h.b16 %v6309
    %v7474 = vunpack.c.l.b16 %v6310
    %v7475 = vunpack.c.h.b16 %v6310
    %v7476 = vunpack.c.l.b16 %v6311
    %v7477 = vunpack.c.h.b16 %v6311
    %v7478 = vunpack.c.l.b16 %v6312
    %v7479 = vunpack.c.h.b16 %v6312
    %v7480 = vunpack.c.l.b16 %v6313
    %v7481 = vunpack.c.h.b16 %v6313
    %v7482 = vunpack.c.l.b16 %v6314
    %v7483 = vunpack.c.h.b16 %v6314
    %v7484 = vunpack.c.l.b16 %v6315
    %v7485 = vunpack.c.h.b16 %v6315
    %v7486 = vunpack.c.l.b16 %v6316
    %v7487 = vunpack.c.h.b16 %v6316
    %v7488 = vunpack.c.l.b16 %v6317
    %v7489 = vunpack.c.h.b16 %v6317
    %v7490 = vunpack.c.l.b16 %v6318
    %v7491 = vunpack.c.h.b16 %v6318
    %v7492 = vunpack.c.l.b16 %v6319
    %v7493 = vunpack.c.h.b16 %v6319
    %v7494 = vunpack.c.l.b16 %v6320
    %v7495 = vunpack.c.h.b16 %v6320
    %v7496 = vunpack.c.l.b16 %v6321
    %v7497 = vunpack.c.h.b16 %v6321
    %v7498 = vunpack.c.l.b16 %v6322
    %v7499 = vunpack.c.h.b16 %v6322
    %v7500 = vunpack.c.l.b16 %v6323
    %v7501 = vunpack.c.h.b16 %v6323
    %v7502 = vunpack.c.l.b16 %v6324
    %v7503 = vunpack.c.h.b16 %v6324
    %v7504 = vunpack.c.l.b16 %v6325
    %v7505 = vunpack.c.h.b16 %v6325
    %v7506 = vunpack.c.l.b16 %v6326
    %v7507 = vunpack.c.h.b16 %v6326
    %v7508 = vunpack.c.l.b16 %v6327
    %v7509 = vunpack.c.h.b16 %v6327
    %v7510 = vunpack.c.l.b16 %v6328
    %v7511 = vunpack.c.h.b16 %v6328
    %v7512 = vunpack.c.l.b16 %v6329
    %v7513 = vunpack.c.h.b16 %v6329
    %v7514 = vunpack.c.l.b16 %v6330
    %v7515 = vunpack.c.h.b16 %v6330
    %v7516 = vunpack.c.l.b16 %v6331
    %v7517 = vunpack.c.h.b16 %v6331
    %v7518 = vunpack.c.l.b16 %v6332
    %v7519 = vunpack.c.h.b16 %v6332
    %v7520 = vunpack.c.l.b16 %v6333
    %v7521 = vunpack.c.h.b16 %v6333
    %v7522 = vunpack.c.l.b16 %v6334
    %v7523 = vunpack.c.h.b16 %v6334
    %v7524 = vunpack.c.l.b16 %v6335
    %v7525 = vunpack.c.h.b16 %v6335
    %v7526 = vunpack.c.l.b16 %v6336
    %v7527 = vunpack.c.h.b16 %v6336
    %v7528 = vunpack.c.l.b16 %v6337
    %v7529 = vunpack.c.h.b16 %v6337
    %v7530 = vunpack.c.l.b16 %v6338
    %v7531 = vunpack.c.h.b16 %v6338
    %v7532 = vunpack.c.l.b16 %v6339
    %v7533 = vunpack.c.h.b16 %v6339
    %v7534 = vunpack.c.l.b16 %v6340
    %v7535 = vunpack.c.h.b16 %v6340
    %v7536 = vunpack.c.l.b16 %v6341
    %v7537 = vunpack.c.h.b16 %v6341
    %v7538 = vunpack.c.l.b16 %v6342
    %v7539 = vunpack.c.h.b16 %v6342
    %v7540 = vunpack.c.l.b16 %v6343
    %v7541 = vunpack.c.h.b16 %v6343
    %v7542 = vunpack.c.l.b16 %v6344
    %v7543 = vunpack.c.h.b16 %v6344
    %v7544 = vunpack.c.l.b16 %v6345
    %v7545 = vunpack.c.h.b16 %v6345
    %v7546 = vunpack.c.l.b16 %v6346
    %v7547 = vunpack.c.h.b16 %v6346
    %v7548 = vunpack.c.l.b16 %v6347
    %v7549 = vunpack.c.h.b16 %v6347
    %v7550 = vunpack.c.l.b16 %v6348
    %v7551 = vunpack.c.h.b16 %v6348
    %v7552 = vunpack.c.l.b16 %v6349
    %v7553 = vunpack.c.h.b16 %v6349
    %v7554 = vunpack.c.l.b16 %v6350
    %v7555 = vunpack.c.h.b16 %v6350
    %v7556 = vunpack.c.l.b16 %v6351
    %v7557 = vunpack.c.h.b16 %v6351
    %v7558 = vunpack.c.l.b16 %v6352
    %v7559 = vunpack.c.h.b16 %v6352
    %v7560 = vunpack.c.l.b16 %v6353
    %v7561 = vunpack.c.h.b16 %v6353
    %v7562 = vunpack.c.l.b16 %v6354
    %v7563 = vunpack.c.h.b16 %v6354
    %v7564 = vunpack.c.l.b16 %v6355
    %v7565 = vunpack.c.h.b16 %v6355
    %v7566 = vunpack.c.l.b16 %v6356
    %v7567 = vunpack.c.h.b16 %v6356
    %v7568 = vunpack.c.l.b16 %v6357
    %v7569 = vunpack.c.h.b16 %v6357
    %v7570 = vunpack.c.l.b16 %v6358
    %v7571 = vunpack.c.h.b16 %v6358
    %v7572 = vunpack.c.l.b16 %v6359
    %v7573 = vunpack.c.h.b16 %v6359
    %v7574 = vunpack.c.l.b16 %v6360
    %v7575 = vunpack.c.h.b16 %v6360
    %v7576 = vunpack.c.l.b16 %v6361
    %v7577 = vunpack.c.h.b16 %v6361
    %v7578 = vunpack.c.l.b16 %v6362
    %v7579 = vunpack.c.h.b16 %v6362
    %v7580 = vunpack.c.l.b16 %v6363
    %v7581 = vunpack.c.h.b16 %v6363
    %v7582 = vunpack.c.l.b16 %v6364
    %v7583 = vunpack.c.h.b16 %v6364
    %v7584 = vunpack.c.l.b16 %v6365
    %v7585 = vunpack.c.h.b16 %v6365
    %v7586 = vunpack.c.l.b16 %v6366
    %v7587 = vunpack.c.h.b16 %v6366
    %v7588 = vunpack.c.l.b16 %v6367
    %v7589 = vunpack.c.h.b16 %v6367
    %v7590 = vunpack.c.l.b16 %v6368
    %v7591 = vunpack.c.h.b16 %v6368
    %v7592 = vunpack.c.l.b16 %v6369
    %v7593 = vunpack.c.h.b16 %v6369
    %v7594 = vunpack.c.l.b16 %v6370
    %v7595 = vunpack.c.h.b16 %v6370
    %v7596 = vunpack.c.l.b16 %v6371
    %v7597 = vunpack.c.h.b16 %v6371
    %v7598 = vunpack.c.l.b16 %v6372
    %v7599 = vunpack.c.h.b16 %v6372
    %v7600 = vunpack.c.l.b16 %v6373
    %v7601 = vunpack.c.h.b16 %v6373
    %v7602 = vunpack.c.l.b16 %v6374
    %v7603 = vunpack.c.h.b16 %v6374
    %v7604 = vunpack.c.l.b16 %v6375
    %v7605 = vunpack.c.h.b16 %v6375
    %v7606 = vunpack.c.l.b16 %v6376
    %v7607 = vunpack.c.h.b16 %v6376
    %v7608 = vunpack.c.l.b16 %v6377
    %v7609 = vunpack.c.h.b16 %v6377
    %v7610 = vunpack.c.l.b16 %v6378
    %v7611 = vunpack.c.h.b16 %v6378
    %v7612 = vunpack.c.l.b16 %v6379
    %v7613 = vunpack.c.h.b16 %v6379
    %v7614 = vunpack.c.l.b16 %v6380
    %v7615 = vunpack.c.h.b16 %v6380
    %v7616 = vunpack.c.l.b16 %v6381
    %v7617 = vunpack.c.h.b16 %v6381
    %v7618 = vunpack.c.l.b16 %v6382
    %v7619 = vunpack.c.h.b16 %v6382
    %v7620 = vunpack.c.l.b16 %v6383
    %v7621 = vunpack.c.h.b16 %v6383
    %v7622 = vunpack.c.l.b16 %v6384
    %v7623 = vunpack.c.h.b16 %v6384
    %v7624 = vunpack.c.l.b16 %v6385
    %v7625 = vunpack.c.h.b16 %v6385
    %v7626 = vunpack.c.l.b16 %v6386
    %v7627 = vunpack.c.h.b16 %v6386
    %v7628 = vunpack.c.l.b16 %v6387
    %v7629 = vunpack.c.h.b16 %v6387
    %v7630 = vunpack.c.l.b16 %v6388
    %v7631 = vunpack.c.h.b16 %v6388
    %v7632 = vunpack.c.l.b16 %v6389
    %v7633 = vunpack.c.h.b16 %v6389
    %v7634 = vunpack.c.l.b16 %v6390
    %v7635 = vunpack.c.h.b16 %v6390
    %v7636 = vunpack.c.l.b16 %v6391
    %v7637 = vunpack.c.h.b16 %v6391
    %v7638 = vunpack.c.l.b16 %v6392
    %v7639 = vunpack.c.h.b16 %v6392
    %v7640 = vunpack.c.l.b16 %v6393
    %v7641 = vunpack.c.h.b16 %v6393
    %v7642 = vunpack.c.l.b16 %v6394
    %v7643 = vunpack.c.h.b16 %v6394
    %v7644 = vunpack.c.l.b16 %v6395
    %v7645 = vunpack.c.h.b16 %v6395
    %v7646 = vunpack.c.l.b16 %v6396
    %v7647 = vunpack.c.h.b16 %v6396
    %v7648 = vunpack.c.l.b16 %v6397
    %v7649 = vunpack.c.h.b16 %v6397
    %v7650 = vunpack.c.l.b16 %v6398
    %v7651 = vunpack.c.h.b16 %v6398
    %v7652 = vunpack.c.l.b16 %v6399
    %v7653 = vunpack.c.h.b16 %v6399
    %v7654 = vunpack.c.l.b16 %v6400
    %v7655 = vunpack.c.h.b16 %v6400
    %v7656 = vunpack.c.l.b16 %v6401
    %v7657 = vunpack.c.h.b16 %v6401
    %v7658 = vunpack.c.l.b16 %v6402
    %v7659 = vunpack.c.h.b16 %v6402
    %v7660 = vunpack.c.l.b16 %v6403
    %v7661 = vunpack.c.h.b16 %v6403
    %v7662 = vunpack.c.l.b16 %v6404
    %v7663 = vunpack.c.h.b16 %v6404
    %v7664 = vunpack.c.l.b16 %v6405
    %v7665 = vunpack.c.h.b16 %v6405
    %v7666 = vunpack.c.l.b16 %v6406
    %v7667 = vunpack.c.h.b16 %v6406
    %v7668 = vunpack.c.l.b16 %v6407
    %v7669 = vunpack.c.h.b16 %v6407
    %v7670 = vunpack.c.l.b16 %v6408
    %v7671 = vunpack.c.h.b16 %v6408
    %v7672 = vunpack.c.l.b16 %v6409
    %v7673 = vunpack.c.h.b16 %v6409
    %v7674 = vunpack.c.l.b16 %v6410
    %v7675 = vunpack.c.h.b16 %v6410
    %v7676 = vunpack.c.l.b16 %v6411
    %v7677 = vunpack.c.h.b16 %v6411
    %v7678 = vunpack.c.l.b16 %v6412
    %v7679 = vunpack.c.h.b16 %v6412
    %v7680 = vunpack.c.l.b16 %v6413
    %v7681 = vunpack.c.h.b16 %v6413
    %v7682 = vunpack.c.l.b16 %v6414
    %v7683 = vunpack.c.h.b16 %v6414
    %v7684 = vunpack.c.l.b16 %v6415
    %v7685 = vunpack.c.h.b16 %v6415
    %v7686 = vunpack.c.l.b16 %v6416
    %v7687 = vunpack.c.h.b16 %v6416
    %v7688 = vunpack.c.l.b16 %v6417
    %v7689 = vunpack.c.h.b16 %v6417
    %v7690 = vunpack.c.l.b16 %v6418
    %v7691 = vunpack.c.h.b16 %v6418
    %v7692 = vunpack.c.l.b16 %v6419
    %v7693 = vunpack.c.h.b16 %v6419
    %v7694 = vunpack.c.l.b16 %v6420
    %v7695 = vunpack.c.h.b16 %v6420
    %v7696 = vunpack.c.l.b16 %v6421
    %v7697 = vunpack.c.h.b16 %v6421
    %v7698 = vunpack.c.l.b16 %v6422
    %v7699 = vunpack.c.h.b16 %v6422
    %v7700 = vunpack.c.l.b16 %v6423
    %v7701 = vunpack.c.h.b16 %v6423
    %v7702 = vunpack.c.l.b16 %v6424
    %v7703 = vunpack.c.h.b16 %v6424
    %v7704 = vunpack.c.l.b16 %v6425
    %v7705 = vunpack.c.h.b16 %v6425
    %v7706 = vunpack.c.l.b16 %v6426
    %v7707 = vunpack.c.h.b16 %v6426
    %v7708 = vunpack.c.l.b16 %v6427
    %v7709 = vunpack.c.h.b16 %v6427
    %v7710 = vunpack.c.l.b16 %v6428
    %v7711 = vunpack.c.h.b16 %v6428
    %v7712 = vunpack.c.l.b16 %v6429
    %v7713 = vunpack.c.h.b16 %v6429
    %v7714 = vunpack.c.l.b16 %v6430
    %v7715 = vunpack.c.h.b16 %v6430
    %v7716 = vunpack.c.l.b16 %v6431
    %v7717 = vunpack.c.h.b16 %v6431
    %v7718 = vunpack.c.l.b16 %v6432
    %v7719 = vunpack.c.h.b16 %v6432
    %v7720 = vunpack.c.l.b16 %v6433
    %v7721 = vunpack.c.h.b16 %v6433
    %v7722 = vunpack.c.l.b16 %v6434
    %v7723 = vunpack.c.h.b16 %v6434
    %v7724 = vunpack.c.l.b16 %v6435
    %v7725 = vunpack.c.h.b16 %v6435
    %v7726 = vunpack.c.l.b16 %v6436
    %v7727 = vunpack.c.h.b16 %v6436
    %v7728 = vunpack.c.l.b16 %v6437
    %v7729 = vunpack.c.h.b16 %v6437
    %v7730 = vunpack.c.l.b16 %v6438
    %v7731 = vunpack.c.h.b16 %v6438
    %v7732 = vunpack.c.l.b16 %v6439
    %v7733 = vunpack.c.h.b16 %v6439
    %v7734 = vunpack.c.l.b16 %v6440
    %v7735 = vunpack.c.h.b16 %v6440
    %v7736 = vunpack.c.l.b16 %v6441
    %v7737 = vunpack.c.h.b16 %v6441
    %v7738 = vunpack.c.l.b16 %v6442
    %v7739 = vunpack.c.h.b16 %v6442
    %v7740 = vunpack.c.l.b16 %v6443
    %v7741 = vunpack.c.h.b16 %v6443
    %v7742 = vunpack.c.l.b16 %v6444
    %v7743 = vunpack.c.h.b16 %v6444
    %v7744 = vunpack.c.l.b16 %v6445
    %v7745 = vunpack.c.h.b16 %v6445
    %v7746 = vunpack.c.l.b16 %v6446
    %v7747 = vunpack.c.h.b16 %v6446
    %v7748 = vunpack.c.l.b16 %v6447
    %v7749 = vunpack.c.h.b16 %v6447
    %v7750 = vunpack.c.l.b16 %v6448
    %v7751 = vunpack.c.h.b16 %v6448
    %v7752 = vunpack.c.l.b16 %v6449
    %v7753 = vunpack.c.h.b16 %v6449
    %v7754 = vunpack.c.l.b16 %v6450
    %v7755 = vunpack.c.h.b16 %v6450
    %v7756 = vunpack.c.l.b16 %v6451
    %v7757 = vunpack.c.h.b16 %v6451
    %v7758 = vunpack.c.l.b16 %v6452
    %v7759 = vunpack.c.h.b16 %v6452
    %v7760 = vunpack.c.l.b16 %v6453
    %v7761 = vunpack.c.h.b16 %v6453
    %v7762 = vunpack.c.l.b16 %v6454
    %v7763 = vunpack.c.h.b16 %v6454
    %v7764 = vunpack.c.l.b16 %v6455
    %v7765 = vunpack.c.h.b16 %v6455
    %v7766 = vunpack.c.l.b16 %v6456
    %v7767 = vunpack.c.h.b16 %v6456
    %v7768 = vunpack.c.l.b16 %v6457
    %v7769 = vunpack.c.h.b16 %v6457
    %v7770 = vunpack.c.l.b16 %v6458
    %v7771 = vunpack.c.h.b16 %v6458
    %v7772 = vunpack.c.l.b16 %v6459
    %v7773 = vunpack.c.h.b16 %v6459
    %v7774 = vunpack.c.l.b16 %v6460
    %v7775 = vunpack.c.h.b16 %v6460
    %v7776 = vunpack.c.l.b16 %v6461
    %v7777 = vunpack.c.h.b16 %v6461
    %v7778 = vunpack.c.l.b16 %v6462
    %v7779 = vunpack.c.h.b16 %v6462
    %v7780 = vunpack.c.l.b16 %v6463
    %v7781 = vunpack.c.h.b16 %v6463
    %v7782 = vunpack.c.l.b16 %v6464
    %v7783 = vunpack.c.h.b16 %v6464
    %v7784 = vunpack.c.l.b16 %v6465
    %v7785 = vunpack.c.h.b16 %v6465
    %v7786 = vunpack.c.l.b16 %v6466
    %v7787 = vunpack.c.h.b16 %v6466
    %v7788 = vunpack.c.l.b16 %v6467
    %v7789 = vunpack.c.h.b16 %v6467
    %v7790 = vunpack.c.l.b16 %v6468
    %v7791 = vunpack.c.h.b16 %v6468
    %v7792 = vunpack.c.l.b16 %v6469
    %v7793 = vunpack.c.h.b16 %v6469
    %v7794 = vunpack.c.l.b16 %v6470
    %v7795 = vunpack.c.h.b16 %v6470
    %v7796 = vunpack.c.l.b16 %v6471
    %v7797 = vunpack.c.h.b16 %v6471
    %v7798 = vunpack.c.l.b16 %v6472
    %v7799 = vunpack.c.h.b16 %v6472
    %v7800 = vunpack.c.l.b16 %v6473
    %v7801 = vunpack.c.h.b16 %v6473
    %v7802 = vunpack.c.l.b16 %v6474
    %v7803 = vunpack.c.h.b16 %v6474
    %v7804 = vunpack.c.l.b16 %v6475
    %v7805 = vunpack.c.h.b16 %v6475
    %v7806 = vunpack.c.l.b16 %v6476
    %v7807 = vunpack.c.h.b16 %v6476
    %v7808 = vunpack.c.l.b16 %v6477
    %v7809 = vunpack.c.h.b16 %v6477
    %v7810 = vunpack.c.l.b16 %v6478
    %v7811 = vunpack.c.h.b16 %v6478
    %v7812 = vunpack.c.l.b16 %v6479
    %v7813 = vunpack.c.h.b16 %v6479
    %v7814 = vunpack.c.l.b16 %v6480
    %v7815 = vunpack.c.h.b16 %v6480
    %v7816 = vunpack.c.l.b16 %v6481
    %v7817 = vunpack.c.h.b16 %v6481
    %v7818 = vunpack.c.l.b16 %v6482
    %v7819 = vunpack.c.h.b16 %v6482
    %v7820 = vunpack.c.l.b16 %v6483
    %v7821 = vunpack.c.h.b16 %v6483
    %v7822 = vunpack.c.l.b16 %v6484
    %v7823 = vunpack.c.h.b16 %v6484
    %v7824 = vunpack.c.l.b16 %v6485
    %v7825 = vunpack.c.h.b16 %v6485
    %v7826 = vunpack.c.l.b16 %v6486
    %v7827 = vunpack.c.h.b16 %v6486
    %v7828 = vunpack.c.l.b16 %v6487
    %v7829 = vunpack.c.h.b16 %v6487
    %v7830 = vunpack.c.l.b16 %v6488
    %v7831 = vunpack.c.h.b16 %v6488
    %v7832 = vunpack.c.l.b16 %v6489
    %v7833 = vunpack.c.h.b16 %v6489
    %v7834 = vunpack.c.l.b16 %v6490
    %v7835 = vunpack.c.h.b16 %v6490
    %v7836 = vunpack.c.l.b16 %v6491
    %v7837 = vunpack.c.h.b16 %v6491
    %v7838 = vunpack.c.l.b16 %v6492
    %v7839 = vunpack.c.h.b16 %v6492
    %v7840 = vunpack.c.l.b16 %v6493
    %v7841 = vunpack.c.h.b16 %v6493
    %v7842 = vunpack.c.l.b16 %v6494
    %v7843 = vunpack.c.h.b16 %v6494
    %v7844 = vunpack.c.l.b16 %v6495
    %v7845 = vunpack.c.h.b16 %v6495
    %v7846 = vunpack.c.l.b16 %v6496
    %v7847 = vunpack.c.h.b16 %v6496
    %v7848 = vunpack.c.l.b16 %v6497
    %v7849 = vunpack.c.h.b16 %v6497
    %v7850 = vunpack.c.l.b16 %v6498
    %v7851 = vunpack.c.h.b16 %v6498
    %v7852 = vunpack.c.l.b16 %v6499
    %v7853 = vunpack.c.h.b16 %v6499
    %v7854 = vunpack.c.l.b16 %v6500
    %v7855 = vunpack.c.h.b16 %v6500
    %v7856 = vunpack.c.l.b16 %v6501
    %v7857 = vunpack.c.h.b16 %v6501
    %v7858 = vunpack.c.l.b16 %v6502
    %v7859 = vunpack.c.h.b16 %v6502
    %v7860 = vunpack.c.l.b16 %v6503
    %v7861 = vunpack.c.h.b16 %v6503
    %v7862 = vunpack.c.l.b16 %v6504
    %v7863 = vunpack.c.h.b16 %v6504
    %v7864 = vunpack.c.l.b16 %v6505
    %v7865 = vunpack.c.h.b16 %v6505
    %v7866 = vunpack.c.l.b16 %v6506
    %v7867 = vunpack.c.h.b16 %v6506
    %v7868 = vunpack.c.l.b16 %v6507
    %v7869 = vunpack.c.h.b16 %v6507
    %v7870 = vunpack.c.l.b16 %v6508
    %v7871 = vunpack.c.h.b16 %v6508
    %v7872 = vunpack.c.l.b16 %v6509
    %v7873 = vunpack.c.h.b16 %v6509
    %v7874 = vunpack.c.l.b16 %v6510
    %v7875 = vunpack.c.h.b16 %v6510
    %v7876 = vunpack.c.l.b16 %v6511
    %v7877 = vunpack.c.h.b16 %v6511
    %v7878 = vunpack.c.l.b16 %v6512
    %v7879 = vunpack.c.h.b16 %v6512
    %v7880 = vunpack.c.l.b16 %v6513
    %v7881 = vunpack.c.h.b16 %v6513
    %v7882 = vunpack.c.l.b16 %v6514
    %v7883 = vunpack.c.h.b16 %v6514
    %v7884 = vunpack.c.l.b16 %v6515
    %v7885 = vunpack.c.h.b16 %v6515
    %v7886 = vunpack.c.l.b16 %v6516
    %v7887 = vunpack.c.h.b16 %v6516
    %v7888 = vunpack.c.l.b16 %v6517
    %v7889 = vunpack.c.h.b16 %v6517
    %v7890 = vunpack.c.l.b16 %v6518
    %v7891 = vunpack.c.h.b16 %v6518
    %v7892 = vunpack.c.l.b16 %v6519
    %v7893 = vunpack.c.h.b16 %v6519
    %v7894 = vunpack.c.l.b16 %v6520
    %v7895 = vunpack.c.h.b16 %v6520
    %v7896 = vunpack.c.l.b16 %v6521
    %v7897 = vunpack.c.h.b16 %v6521
    %v7898 = vunpack.c.l.b16 %v6522
    %v7899 = vunpack.c.h.b16 %v6522
    %v7900 = vunpack.c.l.b16 %v6523
    %v7901 = vunpack.c.h.b16 %v6523
    %v7902 = vunpack.c.l.b16 %v6524
    %v7903 = vunpack.c.h.b16 %v6524
    %v7904 = vunpack.c.l.b16 %v6525
    %v7905 = vunpack.c.h.b16 %v6525
    %v7906 = vunpack.c.l.b16 %v6526
    %v7907 = vunpack.c.h.b16 %v6526
    %v7908 = vunpack.c.l.b16 %v6527
    %v7909 = vunpack.c.h.b16 %v6527
    %v7910 = vunpack.c.l.b16 %v6528
    %v7911 = vunpack.c.h.b16 %v6528
    %v7912 = vunpack.c.l.b16 %v6529
    %v7913 = vunpack.c.h.b16 %v6529
    %v7914 = vunpack.c.l.b16 %v6530
    %v7915 = vunpack.c.h.b16 %v6530
    %v7916 = vunpack.c.l.b16 %v6531
    %v7917 = vunpack.c.h.b16 %v6531
    %v7918 = vunpack.c.l.b16 %v6532
    %v7919 = vunpack.c.h.b16 %v6532
    %v7920 = vunpack.c.l.b16 %v6533
    %v7921 = vunpack.c.h.b16 %v6533
    %v7922 = vunpack.c.l.b16 %v6534
    %v7923 = vunpack.c.h.b16 %v6534
    %v7924 = vunpack.c.l.b16 %v6535
    %v7925 = vunpack.c.h.b16 %v6535
    %v7926 = vunpack.c.l.b16 %v6536
    %v7927 = vunpack.c.h.b16 %v6536
    %v7928 = vunpack.c.l.b16 %v6537
    %v7929 = vunpack.c.h.b16 %v6537
    %v7930 = vunpack.c.l.b16 %v6538
    %v7931 = vunpack.c.h.b16 %v6538
    %v7932 = vunpack.c.l.b16 %v6539
    %v7933 = vunpack.c.h.b16 %v6539
    %v7934 = vunpack.c.l.b16 %v6540
    %v7935 = vunpack.c.h.b16 %v6540
    %v7936 = vunpack.c.l.b16 %v6541
    %v7937 = vunpack.c.h.b16 %v6541
    %v7938 = vunpack.c.l.b16 %v6542
    %v7939 = vunpack.c.h.b16 %v6542
    %v7940 = vunpack.c.l.b16 %v6543
    %v7941 = vunpack.c.h.b16 %v6543
    %v7942 = vunpack.c.l.b16 %v6544
    %v7943 = vunpack.c.h.b16 %v6544
    %v7944 = vunpack.c.l.b16 %v6545
    %v7945 = vunpack.c.h.b16 %v6545
    %v7946 = vunpack.c.l.b16 %v6546
    %v7947 = vunpack.c.h.b16 %v6546
    %v7948 = vunpack.c.l.b16 %v6547
    %v7949 = vunpack.c.h.b16 %v6547
    %v7950 = vunpack.c.l.b16 %v6548
    %v7951 = vunpack.c.h.b16 %v6548
    %v7952 = vunpack.c.l.b16 %v6549
    %v7953 = vunpack.c.h.b16 %v6549
    %v7954 = vunpack.c.l.b16 %v6550
    %v7955 = vunpack.c.h.b16 %v6550
    %v7956 = vunpack.c.l.b16 %v6551
    %v7957 = vunpack.c.h.b16 %v6551
    %v7958 = vunpack.c.l.b16 %v6552
    %v7959 = vunpack.c.h.b16 %v6552
    %v7960 = vunpack.c.l.b16 %v6553
    %v7961 = vunpack.c.h.b16 %v6553
    %v7962 = vunpack.c.l.b16 %v6554
    %v7963 = vunpack.c.h.b16 %v6554
    %v7964 = vunpack.c.l.b16 %v6555
    %v7965 = vunpack.c.h.b16 %v6555
    %v7966 = vunpack.c.l.b16 %v6556
    %v7967 = vunpack.c.h.b16 %v6556
    %v7968 = vunpack.c.l.b16 %v6557
    %v7969 = vunpack.c.h.b16 %v6557
    %v7970 = vunpack.c.l.b16 %v6558
    %v7971 = vunpack.c.h.b16 %v6558
    %v7972 = vunpack.c.l.b16 %v6559
    %v7973 = vunpack.c.h.b16 %v6559
    %v7974 = vunpack.c.l.b16 %v6560
    %v7975 = vunpack.c.h.b16 %v6560
    %v7976 = vunpack.c.l.b16 %v6561
    %v7977 = vunpack.c.h.b16 %v6561
    %v7978 = vunpack.c.l.b16 %v6562
    %v7979 = vunpack.c.h.b16 %v6562
    %v7980 = vunpack.c.l.b16 %v6563
    %v7981 = vunpack.c.h.b16 %v6563
    %v7982 = vunpack.c.l.b16 %v6564
    %v7983 = vunpack.c.h.b16 %v6564
    %v7984 = vunpack.c.l.b16 %v6565
    %v7985 = vunpack.c.h.b16 %v6565
    %v7986 = vunpack.c.l.b16 %v6566
    %v7987 = vunpack.c.h.b16 %v6566
    %v7988 = vunpack.c.l.b16 %v6567
    %v7989 = vunpack.c.h.b16 %v6567
    %v7990 = vunpack.c.l.b16 %v6568
    %v7991 = vunpack.c.h.b16 %v6568
    %v7992 = vunpack.c.l.b16 %v6569
    %v7993 = vunpack.c.h.b16 %v6569
    %v7994 = vunpack.c.l.b16 %v6570
    %v7995 = vunpack.c.h.b16 %v6570
    %v7996 = vunpack.c.l.b16 %v6571
    %v7997 = vunpack.c.h.b16 %v6571
    %v7998 = vunpack.c.l.b16 %v6572
    %v7999 = vunpack.c.h.b16 %v6572
    %v8000 = vunpack.c.l.b16 %v6573
    %v8001 = vunpack.c.h.b16 %v6573
    %v8002 = vunpack.c.l.b16 %v6574
    %v8003 = vunpack.c.h.b16 %v6574
    %v8004 = vunpack.c.l.b16 %v6575
    %v8005 = vunpack.c.h.b16 %v6575
    %v8006 = vunpack.c.l.b16 %v6576
    %v8007 = vunpack.c.h.b16 %v6576
    %v8008 = vunpack.c.l.b16 %v6577
    %v8009 = vunpack.c.h.b16 %v6577
    %v8010 = vunpack.c.l.b16 %v6578
    %v8011 = vunpack.c.h.b16 %v6578
    %v8012 = vunpack.c.l.b16 %v6579
    %v8013 = vunpack.c.h.b16 %v6579
    %v8014 = vunpack.c.l.b16 %v6580
    %v8015 = vunpack.c.h.b16 %v6580
    %v8016 = vunpack.c.l.b16 %v6581
    %v8017 = vunpack.c.h.b16 %v6581
    %v8018 = vunpack.c.l.b16 %v6582
    %v8019 = vunpack.c.h.b16 %v6582
    %v8020 = vunpack.c.l.b16 %v6583
    %v8021 = vunpack.c.h.b16 %v6583
    %v8022 = vunpack.c.l.b16 %v6584
    %v8023 = vunpack.c.h.b16 %v6584
    %v8024 = vunpack.c.l.b16 %v6585
    %v8025 = vunpack.c.h.b16 %v6585
    %v8026 = vunpack.c.l.b16 %v6586
    %v8027 = vunpack.c.h.b16 %v6586
    %v8028 = vunpack.c.l.b16 %v6587
    %v8029 = vunpack.c.h.b16 %v6587
    %v8030 = vunpack.c.l.b16 %v6588
    %v8031 = vunpack.c.h.b16 %v6588
    %v8032 = vunpack.c.l.b16 %v6589
    %v8033 = vunpack.c.h.b16 %v6589
    %v8034 = vunpack.c.l.b16 %v6590
    %v8035 = vunpack.c.h.b16 %v6590
    %v8036 = vunpack.c.l.b16 %v6591
    %v8037 = vunpack.c.h.b16 %v6591
    %v8038 = vunpack.c.l.b16 %v6592
    %v8039 = vunpack.c.h.b16 %v6592
    %v8040 = vunpack.c.l.b16 %v6593
    %v8041 = vunpack.c.h.b16 %v6593
    %v8042 = vunpack.c.l.b16 %v6594
    %v8043 = vunpack.c.h.b16 %v6594
    %v8044 = vunpack.c.l.b16 %v6595
    %v8045 = vunpack.c.h.b16 %v6595
    %v8046 = vunpack.c.l.b16 %v6596
    %v8047 = vunpack.c.h.b16 %v6596
    %v8048 = vunpack.c.l.b16 %v6597
    %v8049 = vunpack.c.h.b16 %v6597
    %v8050 = vunpack.c.l.b16 %v6598
    %v8051 = vunpack.c.h.b16 %v6598
    %v8052 = vunpack.c.l.b16 %v6599
    %v8053 = vunpack.c.h.b16 %v6599
    %v8054 = vunpack.c.l.b16 %v6600
    %v8055 = vunpack.c.h.b16 %v6600
    %v8056 = vunpack.c.l.b16 %v6601
    %v8057 = vunpack.c.h.b16 %v6601
    %v8058 = vunpack.c.l.b16 %v6602
    %v8059 = vunpack.c.h.b16 %v6602
    %v8060 = vunpack.c.l.b16 %v6603
    %v8061 = vunpack.c.h.b16 %v6603
    %v8062 = vunpack.c.l.b16 %v6604
    %v8063 = vunpack.c.h.b16 %v6604
    %v8064 = vunpack.c.l.b16 %v6605
    %v8065 = vunpack.c.h.b16 %v6605
    %v8066 = vunpack.c.l.b16 %v6606
    %v8067 = vunpack.c.h.b16 %v6606
    %v8068 = vunpack.c.l.b16 %v6607
    %v8069 = vunpack.c.h.b16 %v6607
    %v8070 = vunpack.c.l.b16 %v6608
    %v8071 = vunpack.c.h.b16 %v6608
    %v8072 = vunpack.c.l.b16 %v6609
    %v8073 = vunpack.c.h.b16 %v6609
    %v8074 = vunpack.c.l.b16 %v6610
    %v8075 = vunpack.c.h.b16 %v6610
    %v8076 = vunpack.c.l.b16 %v6611
    %v8077 = vunpack.c.h.b16 %v6611
    %v8078 = vunpack.c.l.b16 %v6612
    %v8079 = vunpack.c.h.b16 %v6612
    %v8080 = vunpack.c.l.b16 %v6613
    %v8081 = vunpack.c.h.b16 %v6613
    %v8082 = vunpack.c.l.b16 %v6614
    %v8083 = vunpack.c.h.b16 %v6614
    %v8084 = vunpack.c.l.b16 %v6615
    %v8085 = vunpack.c.h.b16 %v6615
    %v8086 = vunpack.c.l.b16 %v6616
    %v8087 = vunpack.c.h.b16 %v6616
    %v8088 = vunpack.c.l.b16 %v6617
    %v8089 = vunpack.c.h.b16 %v6617
    %v8090 = vunpack.c.l.b16 %v6618
    %v8091 = vunpack.c.h.b16 %v6618
    %v8092 = vunpack.c.l.b16 %v6619
    %v8093 = vunpack.c.h.b16 %v6619
    %v8094 = vunpack.c.l.b16 %v6620
    %v8095 = vunpack.c.h.b16 %v6620
    %v8096 = vunpack.c.l.b16 %v6621
    %v8097 = vunpack.c.h.b16 %v6621
    %v8098 = vunpack.c.l.b16 %v6622
    %v8099 = vunpack.c.h.b16 %v6622
    %v8100 = vunpack.c.l.b16 %v6623
    %v8101 = vunpack.c.h.b16 %v6623
    %v8102 = vunpack.c.l.b16 %v6624
    %v8103 = vunpack.c.h.b16 %v6624
    %v8104 = vunpack.c.l.b16 %v6625
    %v8105 = vunpack.c.h.b16 %v6625
    %v8106 = vunpack.c.l.b16 %v6626
    %v8107 = vunpack.c.h.b16 %v6626
    %v8108 = vunpack.c.l.b16 %v6627
    %v8109 = vunpack.c.h.b16 %v6627
    %v8110 = vunpack.c.l.b16 %v6628
    %v8111 = vunpack.c.h.b16 %v6628
    %v8112 = vunpack.c.l.b16 %v6629
    %v8113 = vunpack.c.h.b16 %v6629
    %v8114 = vunpack.c.l.b16 %v6630
    %v8115 = vunpack.c.h.b16 %v6630
    %v8116 = vunpack.c.l.b16 %v6631
    %v8117 = vunpack.c.h.b16 %v6631
    %v8118 = vunpack.c.l.b16 %v6632
    %v8119 = vunpack.c.h.b16 %v6632
    %v8120 = vunpack.c.l.b16 %v6633
    %v8121 = vunpack.c.h.b16 %v6633
    %v8122 = vunpack.c.l.b16 %v6634
    %v8123 = vunpack.c.h.b16 %v6634
    %v8124 = vunpack.c.l.b16 %v6635
    %v8125 = vunpack.c.h.b16 %v6635
    %v8126 = vunpack.c.l.b16 %v6636
    %v8127 = vunpack.c.h.b16 %v6636
    %v8128 = vunpack.c.l.b16 %v6637
    %v8129 = vunpack.c.h.b16 %v6637
    %v8130 = vunpack.c.l.b16 %v6638
    %v8131 = vunpack.c.h.b16 %v6638
    %v8132 = vunpack.c.l.b16 %v6639
    %v8133 = vunpack.c.h.b16 %v6639
    %v8134 = vunpack.c.l.b16 %v6640
    %v8135 = vunpack.c.h.b16 %v6640
    %v8136 = vunpack.c.l.b16 %v6641
    %v8137 = vunpack.c.h.b16 %v6641
    %v8138 = vunpack.c.l.b16 %v6642
    %v8139 = vunpack.c.h.b16 %v6642
    %v8140 = vunpack.c.l.b16 %v6643
    %v8141 = vunpack.c.h.b16 %v6643
    %v8142 = vunpack.c.l.b16 %v6644
    %v8143 = vunpack.c.h.b16 %v6644
    %v8144 = vunpack.c.l.b16 %v6645
    %v8145 = vunpack.c.h.b16 %v6645
    %v8146 = vunpack.c.l.b16 %v6646
    %v8147 = vunpack.c.h.b16 %v6646
    %v8148 = vunpack.c.l.b16 %v6647
    %v8149 = vunpack.c.h.b16 %v6647
    %v8150 = vunpack.c.l.b16 %v6648
    %v8151 = vunpack.c.h.b16 %v6648
    %v8152 = vunpack.c.l.b16 %v6649
    %v8153 = vunpack.c.h.b16 %v6649
    %v8154 = vunpack.c.l.b16 %v6650
    %v8155 = vunpack.c.h.b16 %v6650
    %v8156 = vunpack.c.l.b16 %v6651
    %v8157 = vunpack.c.h.b16 %v6651
    %v8158 = vunpack.c.l.b16 %v6652
    %v8159 = vunpack.c.h.b16 %v6652
    %v8160 = vunpack.c.l.b16 %v6653
    %v8161 = vunpack.c.h.b16 %v6653
    %v8162 = vunpack.c.l.b16 %v6654
    %v8163 = vunpack.c.h.b16 %v6654
    %v8164 = vunpack.c.l.b16 %v6655
    %v8165 = vunpack.c.h.b16 %v6655
    %v8166 = vunpack.c.l.b16 %v6656
    %v8167 = vunpack.c.h.b16 %v6656
    %v8168 = vunpack.c.l.b16 %v6657
    %v8169 = vunpack.c.h.b16 %v6657
    %v8170 = vunpack.c.l.b16 %v6658
    %v8171 = vunpack.c.h.b16 %v6658
    %v8172 = vunpack.c.l.b16 %v6659
    %v8173 = vunpack.c.h.b16 %v6659
    %v8174 = vunpack.c.l.b16 %v6660
    %v8175 = vunpack.c.h.b16 %v6660
    %v8176 = vunpack.c.l.b16 %v6661
    %v8177 = vunpack.c.h.b16 %v6661
    %v8178 = vunpack.c.l.b16 %v6662
    %v8179 = vunpack.c.h.b16 %v6662
    %v8180 = vunpack.c.l.b16 %v6663
    %v8181 = vunpack.c.h.b16 %v6663
    %v8182 = vunpack.c.l.b16 %v6664
    %v8183 = vunpack.c.h.b16 %v6664
    %v8184 = vunpack.c.l.b16 %v6665
    %v8185 = vunpack.c.h.b16 %v6665
    %v8186 = vunpack.c.l.b16 %v6666
    %v8187 = vunpack.c.h.b16 %v6666
    %v8188 = vunpack.c.l.b16 %v6667
    %v8189 = vunpack.c.h.b16 %v6667
    %v8190 = vunpack.c.l.b16 %v6668
    %v8191 = vunpack.c.h.b16 %v6668
    %v8192 = vunpack.c.l.b16 %v6669
    %v8193 = vunpack.c.h.b16 %v6669
    %v8194 = vunpack.c.l.b16 %v6670
    %v8195 = vunpack.c.h.b16 %v6670
    %v8196 = vunpack.c.l.b16 %v6671
    %v8197 = vunpack.c.h.b16 %v6671
    %v8198 = vunpack.c.l.b16 %v6672
    %v8199 = vunpack.c.h.b16 %v6672
    %v8200 = vunpack.c.l.b16 %v6673
    %v8201 = vunpack.c.h.b16 %v6673
    %v8202 = vunpack.c.l.b16 %v6674
    %v8203 = vunpack.c.h.b16 %v6674
    %v8204 = vunpack.c.l.b16 %v6675
    %v8205 = vunpack.c.h.b16 %v6675
    %v8206 = vunpack.c.l.b16 %v6676
    %v8207 = vunpack.c.h.b16 %v6676
    %v8208 = vunpack.c.l.b16 %v6677
    %v8209 = vunpack.c.h.b16 %v6677
    %v8210 = vunpack.c.l.b16 %v6678
    %v8211 = vunpack.c.h.b16 %v6678
    %v8212 = vunpack.c.l.b16 %v6679
    %v8213 = vunpack.c.h.b16 %v6679
    %v8214 = vunpack.c.l.b16 %v6680
    %v8215 = vunpack.c.h.b16 %v6680
    %v8216 = vunpack.c.l.b16 %v6681
    %v8217 = vunpack.c.h.b16 %v6681
    %v8218 = vpack.c.b16 %v7202, %v7194
    %v8219 = vpack.c.b16 %v7203, %v7195
    %v8220 = vpack.c.b16 %v7204, %v7196
    %v8221 = vpack.c.b16 %v7205, %v7197
    %v8222 = vpack.c.b16 %v7206, %v7198
    %v8223 = vpack.c.b16 %v7207, %v7199
    %v8224 = vpack.c.b16 %v7208, %v7200
    %v8225 = vpack.c.b16 %v7209, %v7201
    %v8226 = vpack.c.b16 %v7218, %v7210
    %v8227 = vpack.c.b16 %v7219, %v7211
    %v8228 = vpack.c.b16 %v7220, %v7212
    %v8229 = vpack.c.b16 %v7221, %v7213
    %v8230 = vpack.c.b16 %v7222, %v7214
    %v8231 = vpack.c.b16 %v7223, %v7215
    %v8232 = vpack.c.b16 %v7224, %v7216
    %v8233 = vpack.c.b16 %v7225, %v7217
    %v8234 = vpack.c.b16 %v7234, %v7226
    %v8235 = vpack.c.b16 %v7235, %v7227
    %v8236 = vpack.c.b16 %v7236, %v7228
    %v8237 = vpack.c.b16 %v7237, %v7229
    %v8238 = vpack.c.b16 %v7238, %v7230
    %v8239 = vpack.c.b16 %v7239, %v7231
    %v8240 = vpack.c.b16 %v7240, %v7232
    %v8241 = vpack.c.b16 %v7241, %v7233
    %v8242 = vpack.c.b16 %v7250, %v7242
    %v8243 = vpack.c.b16 %v7251, %v7243
    %v8244 = vpack.c.b16 %v7252, %v7244
    %v8245 = vpack.c.b16 %v7253, %v7245
    %v8246 = vpack.c.b16 %v7254, %v7246
    %v8247 = vpack.c.b16 %v7255, %v7247
    %v8248 = vpack.c.b16 %v7256, %v7248
    %v8249 = vpack.c.b16 %v7257, %v7249
    %v8250 = vpack.c.b16 %v7266, %v7258
    %v8251 = vpack.c.b16 %v7267, %v7259
    %v8252 = vpack.c.b16 %v7268, %v7260
    %v8253 = vpack.c.b16 %v7269, %v7261
    %v8254 = vpack.c.b16 %v7270, %v7262
    %v8255 = vpack.c.b16 %v7271, %v7263
    %v8256 = vpack.c.b16 %v7272, %v7264
    %v8257 = vpack.c.b16 %v7273, %v7265
    %v8258 = vpack.c.b16 %v7282, %v7274
    %v8259 = vpack.c.b16 %v7283, %v7275
    %v8260 = vpack.c.b16 %v7284, %v7276
    %v8261 = vpack.c.b16 %v7285, %v7277
    %v8262 = vpack.c.b16 %v7286, %v7278
    %v8263 = vpack.c.b16 %v7287, %v7279
    %v8264 = vpack.c.b16 %v7288, %v7280
    %v8265 = vpack.c.b16 %v7289, %v7281
    %v8266 = vpack.c.b16 %v7298, %v7290
    %v8267 = vpack.c.b16 %v7299, %v7291
    %v8268 = vpack.c.b16 %v7300, %v7292
    %v8269 = vpack.c.b16 %v7301, %v7293
    %v8270 = vpack.c.b16 %v7302, %v7294
    %v8271 = vpack.c.b16 %v7303, %v7295
    %v8272 = vpack.c.b16 %v7304, %v7296
    %v8273 = vpack.c.b16 %v7305, %v7297
    %v8274 = vpack.c.b16 %v7314, %v7306
    %v8275 = vpack.c.b16 %v7315, %v7307
    %v8276 = vpack.c.b16 %v7316, %v7308
    %v8277 = vpack.c.b16 %v7317, %v7309
    %v8278 = vpack.c.b16 %v7318, %v7310
    %v8279 = vpack.c.b16 %v7319, %v7311
    %v8280 = vpack.c.b16 %v7320, %v7312
    %v8281 = vpack.c.b16 %v7321, %v7313
    %v8282 = vpack.c.b16 %v7330, %v7322
    %v8283 = vpack.c.b16 %v7331, %v7323
    %v8284 = vpack.c.b16 %v7332, %v7324
    %v8285 = vpack.c.b16 %v7333, %v7325
    %v8286 = vpack.c.b16 %v7334, %v7326
    %v8287 = vpack.c.b16 %v7335, %v7327
    %v8288 = vpack.c.b16 %v7336, %v7328
    %v8289 = vpack.c.b16 %v7337, %v7329
    %v8290 = vpack.c.b16 %v7346, %v7338
    %v8291 = vpack.c.b16 %v7347, %v7339
    %v8292 = vpack.c.b16 %v7348, %v7340
    %v8293 = vpack.c.b16 %v7349, %v7341
    %v8294 = vpack.c.b16 %v7350, %v7342
    %v8295 = vpack.c.b16 %v7351, %v7343
    %v8296 = vpack.c.b16 %v7352, %v7344
    %v8297 = vpack.c.b16 %v7353, %v7345
    %v8298 = vpack.c.b16 %v7362, %v7354
    %v8299 = vpack.c.b16 %v7363, %v7355
    %v8300 = vpack.c.b16 %v7364, %v7356
    %v8301 = vpack.c.b16 %v7365, %v7357
    %v8302 = vpack.c.b16 %v7366, %v7358
    %v8303 = vpack.c.b16 %v7367, %v7359
    %v8304 = vpack.c.b16 %v7368, %v7360
    %v8305 = vpack.c.b16 %v7369, %v7361
    %v8306 = vpack.c.b16 %v7378, %v7370
    %v8307 = vpack.c.b16 %v7379, %v7371
    %v8308 = vpack.c.b16 %v7380, %v7372
    %v8309 = vpack.c.b16 %v7381, %v7373
    %v8310 = vpack.c.b16 %v7382, %v7374
    %v8311 = vpack.c.b16 %v7383, %v7375
    %v8312 = vpack.c.b16 %v7384, %v7376
    %v8313 = vpack.c.b16 %v7385, %v7377
    %v8314 = vpack.c.b16 %v7394, %v7386
    %v8315 = vpack.c.b16 %v7395, %v7387
    %v8316 = vpack.c.b16 %v7396, %v7388
    %v8317 = vpack.c.b16 %v7397, %v7389
    %v8318 = vpack.c.b16 %v7398, %v7390
    %v8319 = vpack.c.b16 %v7399, %v7391
    %v8320 = vpack.c.b16 %v7400, %v7392
    %v8321 = vpack.c.b16 %v7401, %v7393
    %v8322 = vpack.c.b16 %v7410, %v7402
    %v8323 = vpack.c.b16 %v7411, %v7403
    %v8324 = vpack.c.b16 %v7412, %v7404
    %v8325 = vpack.c.b16 %v7413, %v7405
    %v8326 = vpack.c.b16 %v7414, %v7406
    %v8327 = vpack.c.b16 %v7415, %v7407
    %v8328 = vpack.c.b16 %v7416, %v7408
    %v8329 = vpack.c.b16 %v7417, %v7409
    %v8330 = vpack.c.b16 %v7426, %v7418
    %v8331 = vpack.c.b16 %v7427, %v7419
    %v8332 = vpack.c.b16 %v7428, %v7420
    %v8333 = vpack.c.b16 %v7429, %v7421
    %v8334 = vpack.c.b16 %v7430, %v7422
    %v8335 = vpack.c.b16 %v7431, %v7423
    %v8336 = vpack.c.b16 %v7432, %v7424
    %v8337 = vpack.c.b16 %v7433, %v7425
    %v8338 = vpack.c.b16 %v7442, %v7434
    %v8339 = vpack.c.b16 %v7443, %v7435
    %v8340 = vpack.c.b16 %v7444, %v7436
    %v8341 = vpack.c.b16 %v7445, %v7437
    %v8342 = vpack.c.b16 %v7446, %v7438
    %v8343 = vpack.c.b16 %v7447, %v7439
    %v8344 = vpack.c.b16 %v7448, %v7440
    %v8345 = vpack.c.b16 %v7449, %v7441
    %v8346 = vpack.c.b16 %v7458, %v7450
    %v8347 = vpack.c.b16 %v7459, %v7451
    %v8348 = vpack.c.b16 %v7460, %v7452
    %v8349 = vpack.c.b16 %v7461, %v7453
    %v8350 = vpack.c.b16 %v7462, %v7454
    %v8351 = vpack.c.b16 %v7463, %v7455
    %v8352 = vpack.c.b16 %v7464, %v7456
    %v8353 = vpack.c.b16 %v7465, %v7457
    %v8354 = vpack.c.b16 %v7474, %v7466
    %v8355 = vpack.c.b16 %v7475, %v7467
    %v8356 = vpack.c.b16 %v7476, %v7468
    %v8357 = vpack.c.b16 %v7477, %v7469
    %v8358 = vpack.c.b16 %v7478, %v7470
    %v8359 = vpack.c.b16 %v7479, %v7471
    %v8360 = vpack.c.b16 %v7480, %v7472
    %v8361 = vpack.c.b16 %v7481, %v7473
    %v8362 = vpack.c.b16 %v7490, %v7482
    %v8363 = vpack.c.b16 %v7491, %v7483
    %v8364 = vpack.c.b16 %v7492, %v7484
    %v8365 = vpack.c.b16 %v7493, %v7485
    %v8366 = vpack.c.b16 %v7494, %v7486
    %v8367 = vpack.c.b16 %v7495, %v7487
    %v8368 = vpack.c.b16 %v7496, %v7488
    %v8369 = vpack.c.b16 %v7497, %v7489
    %v8370 = vpack.c.b16 %v7506, %v7498
    %v8371 = vpack.c.b16 %v7507, %v7499
    %v8372 = vpack.c.b16 %v7508, %v7500
    %v8373 = vpack.c.b16 %v7509, %v7501
    %v8374 = vpack.c.b16 %v7510, %v7502
    %v8375 = vpack.c.b16 %v7511, %v7503
    %v8376 = vpack.c.b16 %v7512, %v7504
    %v8377 = vpack.c.b16 %v7513, %v7505
    %v8378 = vpack.c.b16 %v7522, %v7514
    %v8379 = vpack.c.b16 %v7523, %v7515
    %v8380 = vpack.c.b16 %v7524, %v7516
    %v8381 = vpack.c.b16 %v7525, %v7517
    %v8382 = vpack.c.b16 %v7526, %v7518
    %v8383 = vpack.c.b16 %v7527, %v7519
    %v8384 = vpack.c.b16 %v7528, %v7520
    %v8385 = vpack.c.b16 %v7529, %v7521
    %v8386 = vpack.c.b16 %v7538, %v7530
    %v8387 = vpack.c.b16 %v7539, %v7531
    %v8388 = vpack.c.b16 %v7540, %v7532
    %v8389 = vpack.c.b16 %v7541, %v7533
    %v8390 = vpack.c.b16 %v7542, %v7534
    %v8391 = vpack.c.b16 %v7543, %v7535
    %v8392 = vpack.c.b16 %v7544, %v7536
    %v8393 = vpack.c.b16 %v7545, %v7537
    %v8394 = vpack.c.b16 %v7554, %v7546
    %v8395 = vpack.c.b16 %v7555, %v7547
    %v8396 = vpack.c.b16 %v7556, %v7548
    %v8397 = vpack.c.b16 %v7557, %v7549
    %v8398 = vpack.c.b16 %v7558, %v7550
    %v8399 = vpack.c.b16 %v7559, %v7551
    %v8400 = vpack.c.b16 %v7560, %v7552
    %v8401 = vpack.c.b16 %v7561, %v7553
    %v8402 = vpack.c.b16 %v7570, %v7562
    %v8403 = vpack.c.b16 %v7571, %v7563
    %v8404 = vpack.c.b16 %v7572, %v7564
    %v8405 = vpack.c.b16 %v7573, %v7565
    %v8406 = vpack.c.b16 %v7574, %v7566
    %v8407 = vpack.c.b16 %v7575, %v7567
    %v8408 = vpack.c.b16 %v7576, %v7568
    %v8409 = vpack.c.b16 %v7577, %v7569
    %v8410 = vpack.c.b16 %v7586, %v7578
    %v8411 = vpack.c.b16 %v7587, %v7579
    %v8412 = vpack.c.b16 %v7588, %v7580
    %v8413 = vpack.c.b16 %v7589, %v7581
    %v8414 = vpack.c.b16 %v7590, %v7582
    %v8415 = vpack.c.b16 %v7591, %v7583
    %v8416 = vpack.c.b16 %v7592, %v7584
    %v8417 = vpack.c.b16 %v7593, %v7585
    %v8418 = vpack.c.b16 %v7602, %v7594
    %v8419 = vpack.c.b16 %v7603, %v7595
    %v8420 = vpack.c.b16 %v7604, %v7596
    %v8421 = vpack.c.b16 %v7605, %v7597
    %v8422 = vpack.c.b16 %v7606, %v7598
    %v8423 = vpack.c.b16 %v7607, %v7599
    %v8424 = vpack.c.b16 %v7608, %v7600
    %v8425 = vpack.c.b16 %v7609, %v7601
    %v8426 = vpack.c.b16 %v7618, %v7610
    %v8427 = vpack.c.b16 %v7619, %v7611
    %v8428 = vpack.c.b16 %v7620, %v7612
    %v8429 = vpack.c.b16 %v7621, %v7613
    %v8430 = vpack.c.b16 %v7622, %v7614
    %v8431 = vpack.c.b16 %v7623, %v7615
    %v8432 = vpack.c.b16 %v7624, %v7616
    %v8433 = vpack.c.b16 %v7625, %v7617
    %v8434 = vpack.c.b16 %v7634, %v7626
    %v8435 = vpack.c.b16 %v7635, %v7627
    %v8436 = vpack.c.b16 %v7636, %v7628
    %v8437 = vpack.c.b16 %v7637, %v7629
    %v8438 = vpack.c.b16 %v7638, %v7630
    %v8439 = vpack.c.b16 %v7639, %v7631
    %v8440 = vpack.c.b16 %v7640, %v7632
    %v8441 = vpack.c.b16 %v7641, %v7633
    %v8442 = vpack.c.b16 %v7650, %v7642
    %v8443 = vpack.c.b16 %v7651, %v7643
    %v8444 = vpack.c.b16 %v7652, %v7644
    %v8445 = vpack.c.b16 %v7653, %v7645
    %v8446 = vpack.c.b16 %v7654, %v7646
    %v8447 = vpack.c.b16 %v7655, %v7647
    %v8448 = vpack.c.b16 %v7656, %v7648
    %v8449 = vpack.c.b16 %v7657, %v7649
    %v8450 = vpack.c.b16 %v7666, %v7658
    %v8451 = vpack.c.b16 %v7667, %v7659
    %v8452 = vpack.c.b16 %v7668, %v7660
    %v8453 = vpack.c.b16 %v7669, %v7661
    %v8454 = vpack.c.b16 %v7670, %v7662
    %v8455 = vpack.c.b16 %v7671, %v7663
    %v8456 = vpack.c.b16 %v7672, %v7664
    %v8457 = vpack.c.b16 %v7673, %v7665
    %v8458 = vpack.c.b16 %v7682, %v7674
    %v8459 = vpack.c.b16 %v7683, %v7675
    %v8460 = vpack.c.b16 %v7684, %v7676
    %v8461 = vpack.c.b16 %v7685, %v7677
    %v8462 = vpack.c.b16 %v7686, %v7678
    %v8463 = vpack.c.b16 %v7687, %v7679
    %v8464 = vpack.c.b16 %v7688, %v7680
    %v8465 = vpack.c.b16 %v7689, %v7681
    %v8466 = vpack.c.b16 %v7698, %v7690
    %v8467 = vpack.c.b16 %v7699, %v7691
    %v8468 = vpack.c.b16 %v7700, %v7692
    %v8469 = vpack.c.b16 %v7701, %v7693
    %v8470 = vpack.c.b16 %v7702, %v7694
    %v8471 = vpack.c.b16 %v7703, %v7695
    %v8472 = vpack.c.b16 %v7704, %v7696
    %v8473 = vpack.c.b16 %v7705, %v7697
    %v8474 = vpack.c.b16 %v7714, %v7706
    %v8475 = vpack.c.b16 %v7715, %v7707
    %v8476 = vpack.c.b16 %v7716, %v7708
    %v8477 = vpack.c.b16 %v7717, %v7709
    %v8478 = vpack.c.b16 %v7718, %v7710
    %v8479 = vpack.c.b16 %v7719, %v7711
    %v8480 = vpack.c.b16 %v7720, %v7712
    %v8481 = vpack.c.b16 %v7721, %v7713
    %v8482 = vpack.c.b16 %v7730, %v7722
    %v8483 = vpack.c.b16 %v7731, %v7723
    %v8484 = vpack.c.b16 %v7732, %v7724
    %v8485 = vpack.c.b16 %v7733, %v7725
    %v8486 = vpack.c.b16 %v7734, %v7726
    %v8487 = vpack.c.b16 %v7735, %v7727
    %v8488 = vpack.c.b16 %v7736, %v7728
    %v8489 = vpack.c.b16 %v7737, %v7729
    %v8490 = vpack.c.b16 %v7746, %v7738
    %v8491 = vpack.c.b16 %v7747, %v7739
    %v8492 = vpack.c.b16 %v7748, %v7740
    %v8493 = vpack.c.b16 %v7749, %v7741
    %v8494 = vpack.c.b16 %v7750, %v7742
    %v8495 = vpack.c.b16 %v7751, %v7743
    %v8496 = vpack.c.b16 %v7752, %v7744
    %v8497 = vpack.c.b16 %v7753, %v7745
    %v8498 = vpack.c.b16 %v7762, %v7754
    %v8499 = vpack.c.b16 %v7763, %v7755
    %v8500 = vpack.c.b16 %v7764, %v7756
    %v8501 = vpack.c.b16 %v7765, %v7757
    %v8502 = vpack.c.b16 %v7766, %v7758
    %v8503 = vpack.c.b16 %v7767, %v7759
    %v8504 = vpack.c.b16 %v7768, %v7760
    %v8505 = vpack.c.b16 %v7769, %v7761
    %v8506 = vpack.c.b16 %v7778, %v7770
    %v8507 = vpack.c.b16 %v7779, %v7771
    %v8508 = vpack.c.b16 %v7780, %v7772
    %v8509 = vpack.c.b16 %v7781, %v7773
    %v8510 = vpack.c.b16 %v7782, %v7774
    %v8511 = vpack.c.b16 %v7783, %v7775
    %v8512 = vpack.c.b16 %v7784, %v7776
    %v8513 = vpack.c.b16 %v7785, %v7777
    %v8514 = vpack.c.b16 %v7794, %v7786
    %v8515 = vpack.c.b16 %v7795, %v7787
    %v8516 = vpack.c.b16 %v7796, %v7788
    %v8517 = vpack.c.b16 %v7797, %v7789
    %v8518 = vpack.c.b16 %v7798, %v7790
    %v8519 = vpack.c.b16 %v7799, %v7791
    %v8520 = vpack.c.b16 %v7800, %v7792
    %v8521 = vpack.c.b16 %v7801, %v7793
    %v8522 = vpack.c.b16 %v7810, %v7802
    %v8523 = vpack.c.b16 %v7811, %v7803
    %v8524 = vpack.c.b16 %v7812, %v7804
    %v8525 = vpack.c.b16 %v7813, %v7805
    %v8526 = vpack.c.b16 %v7814, %v7806
    %v8527 = vpack.c.b16 %v7815, %v7807
    %v8528 = vpack.c.b16 %v7816, %v7808
    %v8529 = vpack.c.b16 %v7817, %v7809
    %v8530 = vpack.c.b16 %v7826, %v7818
    %v8531 = vpack.c.b16 %v7827, %v7819
    %v8532 = vpack.c.b16 %v7828, %v7820
    %v8533 = vpack.c.b16 %v7829, %v7821
    %v8534 = vpack.c.b16 %v7830, %v7822
    %v8535 = vpack.c.b16 %v7831, %v7823
    %v8536 = vpack.c.b16 %v7832, %v7824
    %v8537 = vpack.c.b16 %v7833, %v7825
    %v8538 = vpack.c.b16 %v7842, %v7834
    %v8539 = vpack.c.b16 %v7843, %v7835
    %v8540 = vpack.c.b16 %v7844, %v7836
    %v8541 = vpack.c.b16 %v7845, %v7837
    %v8542 = vpack.c.b16 %v7846, %v7838
    %v8543 = vpack.c.b16 %v7847, %v7839
    %v8544 = vpack.c.b16 %v7848, %v7840
    %v8545 = vpack.c.b16 %v7849, %v7841
    %v8546 = vpack.c.b16 %v7858, %v7850
    %v8547 = vpack.c.b16 %v7859, %v7851
    %v8548 = vpack.c.b16 %v7860, %v7852
    %v8549 = vpack.c.b16 %v7861, %v7853
    %v8550 = vpack.c.b16 %v7862, %v7854
    %v8551 = vpack.c.b16 %v7863, %v7855
    %v8552 = vpack.c.b16 %v7864, %v7856
    %v8553 = vpack.c.b16 %v7865, %v7857
    %v8554 = vpack.c.b16 %v7874, %v7866
    %v8555 = vpack.c.b16 %v7875, %v7867
    %v8556 = vpack.c.b16 %v7876, %v7868
    %v8557 = vpack.c.b16 %v7877, %v7869
    %v8558 = vpack.c.b16 %v7878, %v7870
    %v8559 = vpack.c.b16 %v7879, %v7871
    %v8560 = vpack.c.b16 %v7880, %v7872
    %v8561 = vpack.c.b16 %v7881, %v7873
    %v8562 = vpack.c.b16 %v7890, %v7882
    %v8563 = vpack.c.b16 %v7891, %v7883
    %v8564 = vpack.c.b16 %v7892, %v7884
    %v8565 = vpack.c.b16 %v7893, %v7885
    %v8566 = vpack.c.b16 %v7894, %v7886
    %v8567 = vpack.c.b16 %v7895, %v7887
    %v8568 = vpack.c.b16 %v7896, %v7888
    %v8569 = vpack.c.b16 %v7897, %v7889
    %v8570 = vpack.c.b16 %v7906, %v7898
    %v8571 = vpack.c.b16 %v7907, %v7899
    %v8572 = vpack.c.b16 %v7908, %v7900
    %v8573 = vpack.c.b16 %v7909, %v7901
    %v8574 = vpack.c.b16 %v7910, %v7902
    %v8575 = vpack.c.b16 %v7911, %v7903
    %v8576 = vpack.c.b16 %v7912, %v7904
    %v8577 = vpack.c.b16 %v7913, %v7905
    %v8578 = vpack.c.b16 %v7922, %v7914
    %v8579 = vpack.c.b16 %v7923, %v7915
    %v8580 = vpack.c.b16 %v7924, %v7916
    %v8581 = vpack.c.b16 %v7925, %v7917
    %v8582 = vpack.c.b16 %v7926, %v7918
    %v8583 = vpack.c.b16 %v7927, %v7919
    %v8584 = vpack.c.b16 %v7928, %v7920
    %v8585 = vpack.c.b16 %v7929, %v7921
    %v8586 = vpack.c.b16 %v7938, %v7930
    %v8587 = vpack.c.b16 %v7939, %v7931
    %v8588 = vpack.c.b16 %v7940, %v7932
    %v8589 = vpack.c.b16 %v7941, %v7933
    %v8590 = vpack.c.b16 %v7942, %v7934
    %v8591 = vpack.c.b16 %v7943, %v7935
    %v8592 = vpack.c.b16 %v7944, %v7936
    %v8593 = vpack.c.b16 %v7945, %v7937
    %v8594 = vpack.c.b16 %v7954, %v7946
    %v8595 = vpack.c.b16 %v7955, %v7947
    %v8596 = vpack.c.b16 %v7956, %v7948
    %v8597 = vpack.c.b16 %v7957, %v7949
    %v8598 = vpack.c.b16 %v7958, %v7950
    %v8599 = vpack.c.b16 %v7959, %v7951
    %v8600 = vpack.c.b16 %v7960, %v7952
    %v8601 = vpack.c.b16 %v7961, %v7953
    %v8602 = vpack.c.b16 %v7970, %v7962
    %v8603 = vpack.c.b16 %v7971, %v7963
    %v8604 = vpack.c.b16 %v7972, %v7964
    %v8605 = vpack.c.b16 %v7973, %v7965
    %v8606 = vpack.c.b16 %v7974, %v7966
    %v8607 = vpack.c.b16 %v7975, %v7967
    %v8608 = vpack.c.b16 %v7976, %v7968
    %v8609 = vpack.c.b16 %v7977, %v7969
    %v8610 = vpack.c.b16 %v7986, %v7978
    %v8611 = vpack.c.b16 %v7987, %v7979
    %v8612 = vpack.c.b16 %v7988, %v7980
    %v8613 = vpack.c.b16 %v7989, %v7981
    %v8614 = vpack.c.b16 %v7990, %v7982
    %v8615 = vpack.c.b16 %v7991, %v7983
    %v8616 = vpack.c.b16 %v7992, %v7984
    %v8617 = vpack.c.b16 %v7993, %v7985
    %v8618 = vpack.c.b16 %v8002, %v7994
    %v8619 = vpack.c.b16 %v8003, %v7995
    %v8620 = vpack.c.b16 %v8004, %v7996
    %v8621 = vpack.c.b16 %v8005, %v7997
    %v8622 = vpack.c.b16 %v8006, %v7998
    %v8623 = vpack.c.b16 %v8007, %v7999
    %v8624 = vpack.c.b16 %v8008, %v8000
    %v8625 = vpack.c.b16 %v8009, %v8001
    %v8626 = vpack.c.b16 %v8018, %v8010
    %v8627 = vpack.c.b16 %v8019, %v8011
    %v8628 = vpack.c.b16 %v8020, %v8012
    %v8629 = vpack.c.b16 %v8021, %v8013
    %v8630 = vpack.c.b16 %v8022, %v8014
    %v8631 = vpack.c.b16 %v8023, %v8015
    %v8632 = vpack.c.b16 %v8024, %v8016
    %v8633 = vpack.c.b16 %v8025, %v8017
    %v8634 = vpack.c.b16 %v8034, %v8026
    %v8635 = vpack.c.b16 %v8035, %v8027
    %v8636 = vpack.c.b16 %v8036, %v8028
    %v8637 = vpack.c.b16 %v8037, %v8029
    %v8638 = vpack.c.b16 %v8038, %v8030
    %v8639 = vpack.c.b16 %v8039, %v8031
    %v8640 = vpack.c.b16 %v8040, %v8032
    %v8641 = vpack.c.b16 %v8041, %v8033
    %v8642 = vpack.c.b16 %v8050, %v8042
    %v8643 = vpack.c.b16 %v8051, %v8043
    %v8644 = vpack.c.b16 %v8052, %v8044
    %v8645 = vpack.c.b16 %v8053, %v8045
    %v8646 = vpack.c.b16 %v8054, %v8046
    %v8647 = vpack.c.b16 %v8055, %v8047
    %v8648 = vpack.c.b16 %v8056, %v8048
    %v8649 = vpack.c.b16 %v8057, %v8049
    %v8650 = vpack.c.b16 %v8066, %v8058
    %v8651 = vpack.c.b16 %v8067, %v8059
    %v8652 = vpack.c.b16 %v8068, %v8060
    %v8653 = vpack.c.b16 %v8069, %v8061
    %v8654 = vpack.c.b16 %v8070, %v8062
    %v8655 = vpack.c.b16 %v8071, %v8063
    %v8656 = vpack.c.b16 %v8072, %v8064
    %v8657 = vpack.c.b16 %v8073, %v8065
    %v8658 = vpack.c.b16 %v8082, %v8074
    %v8659 = vpack.c.b16 %v8083, %v8075
    %v8660 = vpack.c.b16 %v8084, %v8076
    %v8661 = vpack.c.b16 %v8085, %v8077
    %v8662 = vpack.c.b16 %v8086, %v8078
    %v8663 = vpack.c.b16 %v8087, %v8079
    %v8664 = vpack.c.b16 %v8088, %v8080
    %v8665 = vpack.c.b16 %v8089, %v8081
    %v8666 = vpack.c.b16 %v8098, %v8090
    %v8667 = vpack.c.b16 %v8099, %v8091
    %v8668 = vpack.c.b16 %v8100, %v8092
    %v8669 = vpack.c.b16 %v8101, %v8093
    %v8670 = vpack.c.b16 %v8102, %v8094
    %v8671 = vpack.c.b16 %v8103, %v8095
    %v8672 = vpack.c.b16 %v8104, %v8096
    %v8673 = vpack.c.b16 %v8105, %v8097
    %v8674 = vpack.c.b16 %v8114, %v8106
    %v8675 = vpack.c.b16 %v8115, %v8107
    %v8676 = vpack.c.b16 %v8116, %v8108
    %v8677 = vpack.c.b16 %v8117, %v8109
    %v8678 = vpack.c.b16 %v8118, %v8110
    %v8679 = vpack.c.b16 %v8119, %v8111
    %v8680 = vpack.c.b16 %v8120, %v8112
    %v8681 = vpack.c.b16 %v8121, %v8113
    %v8682 = vpack.c.b16 %v8130, %v8122
    %v8683 = vpack.c.b16 %v8131, %v8123
    %v8684 = vpack.c.b16 %v8132, %v8124
    %v8685 = vpack.c.b16 %v8133, %v8125
    %v8686 = vpack.c.b16 %v8134, %v8126
    %v8687 = vpack.c.b16 %v8135, %v8127
    %v8688 = vpack.c.b16 %v8136, %v8128
    %v8689 = vpack.c.b16 %v8137, %v8129
    %v8690 = vpack.c.b16 %v8146, %v8138
    %v8691 = vpack.c.b16 %v8147, %v8139
    %v8692 = vpack.c.b16 %v8148, %v8140
    %v8693 = vpack.c.b16 %v8149, %v8141
    %v8694 = vpack.c.b16 %v8150, %v8142
    %v8695 = vpack.c.b16 %v8151, %v8143
    %v8696 = vpack.c.b16 %v8152, %v8144
    %v8697 = vpack.c.b16 %v8153, %v8145
    %v8698 = vpack.c.b16 %v8162, %v8154
    %v8699 = vpack.c.b16 %v8163, %v8155
    %v8700 = vpack.c.b16 %v8164, %v8156
    %v8701 = vpack.c.b16 %v8165, %v8157
    %v8702 = vpack.c.b16 %v8166, %v8158
    %v8703 = vpack.c.b16 %v8167, %v8159
    %v8704 = vpack.c.b16 %v8168, %v8160
    %v8705 = vpack.c.b16 %v8169, %v8161
    %v8706 = vpack.c.b16 %v8178, %v8170
    %v8707 = vpack.c.b16 %v8179, %v8171
    %v8708 = vpack.c.b16 %v8180, %v8172
    %v8709 = vpack.c.b16 %v8181, %v8173
    %v8710 = vpack.c.b16 %v8182, %v8174
    %v8711 = vpack.c.b16 %v8183, %v8175
    %v8712 = vpack.c.b16 %v8184, %v8176
    %v8713 = vpack.c.b16 %v8185, %v8177
    %v8714 = vpack.c.b16 %v8194, %v8186
    %v8715 = vpack.c.b16 %v8195, %v8187
    %v8716 = vpack.c.b16 %v8196, %v8188
    %v8717 = vpack.c.b16 %v8197, %v8189
    %v8718 = vpack.c.b16 %v8198, %v8190
    %v8719 = vpack.c.b16 %v8199, %v8191
    %v8720 = vpack.c.b16 %v8200, %v8192
    %v8721 = vpack.c.b16 %v8201, %v8193
    %v8722 = vpack.c.b16 %v8210, %v8202
    %v8723 = vpack.c.b16 %v8211, %v8203
    %v8724 = vpack.c.b16 %v8212, %v8204
    %v8725 = vpack.c.b16 %v8213, %v8205
    %v8726 = vpack.c.b16 %v8214, %v8206
    %v8727 = vpack.c.b16 %v8215, %v8207
    %v8728 = vpack.c.b16 %v8216, %v8208
    %v8729 = vpack.c.b16 %v8217, %v8209
    %9242 = vmatpush.bf16.msra.mxu0 %v8274
    %9243 = vmatpush.bf16.msra.mxu0 %v8266
    %9244 = vmatpush.bf16.msra.mxu0 %v8258
    %9245 = vmatpush.bf16.msra.mxu0 %v8250
    %9246 = vmatpush.bf16.msra.mxu0 %v8242
    %9247 = vmatpush.bf16.msra.mxu0 %v8234
    %9248 = vmatpush.bf16.msra.mxu0 %v8226
    %9249 = vmatpush.bf16.msra.mxu0 %v8218
    %9250 = vmatmul.bf16.gmra.mxu0 %v6130
    %v9251 = vpop.f32.mrf.mxu0
    %v9252 = vadd.f32 0.0, %v9251
    %v9253 = vpop.f32.mrf.mxu0
    %v9254 = vadd.f32 0.0, %v9253
    %9255 = vmatmul.bf16.gmra.mxu0 %v6138
    %v9256 = vpop.f32.mrf.mxu0
    %v9257 = vadd.f32 0.0, %v9256
    %v9258 = vpop.f32.mrf.mxu0
    %v9259 = vadd.f32 0.0, %v9258
    %9260 = vmatmul.bf16.gmra.mxu0 %v6146
    %v9261 = vpop.f32.mrf.mxu0
    %v9262 = vadd.f32 0.0, %v9261
    %v9263 = vpop.f32.mrf.mxu0
    %v9264 = vadd.f32 0.0, %v9263
    %9265 = vmatmul.bf16.gmra.mxu0 %v6154
    %v9266 = vpop.f32.mrf.mxu0
    %v9267 = vadd.f32 0.0, %v9266
    %v9268 = vpop.f32.mrf.mxu0
    %v9269 = vadd.f32 0.0, %v9268
    %9270 = vmatmul.bf16.gmra.mxu0 %v6162
    %v9271 = vpop.f32.mrf.mxu0
    %v9272 = vadd.f32 0.0, %v9271
    %v9273 = vpop.f32.mrf.mxu0
    %9274 = vdwg.mxu0
    %9275 = vmatpush.bf16.msra.mxu0 %v8338
    %9276 = vmatpush.bf16.msra.mxu0 %v8330
    %9277 = vmatpush.bf16.msra.mxu0 %v8322
    %9278 = vmatpush.bf16.msra.mxu0 %v8314
    %9279 = vmatpush.bf16.msra.mxu0 %v8306
    %9280 = vmatpush.bf16.msra.mxu0 %v8298
    %9281 = vmatpush.bf16.msra.mxu0 %v8290
    %9282 = vmatpush.bf16.msra.mxu0 %v8282
    %9283 = vmatmul.bf16.gmra.mxu0 %v6131
    %v9284 = vpop.f32.mrf.mxu0
    %v9285 = vadd.f32 %v9252, %v9284
    %v9286 = vpop.f32.mrf.mxu0
    %v9287 = vadd.f32 %v9254, %v9286
    %9288 = vmatmul.bf16.gmra.mxu0 %v6139
    %v9289 = vpop.f32.mrf.mxu0
    %v9290 = vadd.f32 %v9257, %v9289
    %v9291 = vpop.f32.mrf.mxu0
    %v9292 = vadd.f32 %v9259, %v9291
    %9293 = vmatmul.bf16.gmra.mxu0 %v6147
    %v9294 = vpop.f32.mrf.mxu0
    %v9295 = vadd.f32 %v9262, %v9294
    %v9296 = vpop.f32.mrf.mxu0
    %v9297 = vadd.f32 %v9264, %v9296
    %9298 = vmatmul.bf16.gmra.mxu0 %v6155
    %v9299 = vpop.f32.mrf.mxu0
    %v9300 = vadd.f32 %v9267, %v9299
    %v9301 = vpop.f32.mrf.mxu0
    %v9302 = vadd.f32 %v9269, %v9301
    %9303 = vmatmul.bf16.gmra.mxu0 %v6163
    %v9304 = vpop.f32.mrf.mxu0
    %v9305 = vadd.f32 %v9272, %v9304
    %v9306 = vpop.f32.mrf.mxu0
    %9307 = vdwg.mxu0
    %9308 = vmatpush.bf16.msra.mxu0 %v8402
    %9309 = vmatpush.bf16.msra.mxu0 %v8394
    %9310 = vmatpush.bf16.msra.mxu0 %v8386
    %9311 = vmatpush.bf16.msra.mxu0 %v8378
    %9312 = vmatpush.bf16.msra.mxu0 %v8370
    %9313 = vmatpush.bf16.msra.mxu0 %v8362
    %9314 = vmatpush.bf16.msra.mxu0 %v8354
    %9315 = vmatpush.bf16.msra.mxu0 %v8346
    %9316 = vmatmul.bf16.gmra.mxu0 %v6132
    %v9317 = vpop.f32.mrf.mxu0
    %v9318 = vadd.f32 %v9285, %v9317
    %v9319 = vpop.f32.mrf.mxu0
    %v9320 = vadd.f32 %v9287, %v9319
    %9321 = vmatmul.bf16.gmra.mxu0 %v6140
    %v9322 = vpop.f32.mrf.mxu0
    %v9323 = vadd.f32 %v9290, %v9322
    %v9324 = vpop.f32.mrf.mxu0
    %v9325 = vadd.f32 %v9292, %v9324
    %9326 = vmatmul.bf16.gmra.mxu0 %v6148
    %v9327 = vpop.f32.mrf.mxu0
    %v9328 = vadd.f32 %v9295, %v9327
    %v9329 = vpop.f32.mrf.mxu0
    %v9330 = vadd.f32 %v9297, %v9329
    %9331 = vmatmul.bf16.gmra.mxu0 %v6156
    %v9332 = vpop.f32.mrf.mxu0
    %v9333 = vadd.f32 %v9300, %v9332
    %v9334 = vpop.f32.mrf.mxu0
    %v9335 = vadd.f32 %v9302, %v9334
    %9336 = vmatmul.bf16.gmra.mxu0 %v6164
    %v9337 = vpop.f32.mrf.mxu0
    %v9338 = vadd.f32 %v9305, %v9337
    %v9339 = vpop.f32.mrf.mxu0
    %9340 = vdwg.mxu0
    %9341 = vmatpush.bf16.msra.mxu0 %v8466
    %9342 = vmatpush.bf16.msra.mxu0 %v8458
    %9343 = vmatpush.bf16.msra.mxu0 %v8450
    %9344 = vmatpush.bf16.msra.mxu0 %v8442
    %9345 = vmatpush.bf16.msra.mxu0 %v8434
    %9346 = vmatpush.bf16.msra.mxu0 %v8426
    %9347 = vmatpush.bf16.msra.mxu0 %v8418
    %9348 = vmatpush.bf16.msra.mxu0 %v8410
    %9349 = vmatmul.bf16.gmra.mxu0 %v6133
    %v9350 = vpop.f32.mrf.mxu0
    %v9351 = vadd.f32 %v9318, %v9350
    %v9352 = vpop.f32.mrf.mxu0
    %v9353 = vadd.f32 %v9320, %v9352
    %9354 = vmatmul.bf16.gmra.mxu0 %v6141
    %v9355 = vpop.f32.mrf.mxu0
    %v9356 = vadd.f32 %v9323, %v9355
    %v9357 = vpop.f32.mrf.mxu0
    %v9358 = vadd.f32 %v9325, %v9357
    %9359 = vmatmul.bf16.gmra.mxu0 %v6149
    %v9360 = vpop.f32.mrf.mxu0
    %v9361 = vadd.f32 %v9328, %v9360
    %v9362 = vpop.f32.mrf.mxu0
    %v9363 = vadd.f32 %v9330, %v9362
    %9364 = vmatmul.bf16.gmra.mxu0 %v6157
    %v9365 = vpop.f32.mrf.mxu0
    %v9366 = vadd.f32 %v9333, %v9365
    %v9367 = vpop.f32.mrf.mxu0
    %v9368 = vadd.f32 %v9335, %v9367
    %9369 = vmatmul.bf16.gmra.mxu0 %v6165
    %v9370 = vpop.f32.mrf.mxu0
    %v9371 = vadd.f32 %v9338, %v9370
    %v9372 = vpop.f32.mrf.mxu0
    %9373 = vdwg.mxu0
    %9374 = vmatpush.bf16.msra.mxu0 %v8530
    %9375 = vmatpush.bf16.msra.mxu0 %v8522
    %9376 = vmatpush.bf16.msra.mxu0 %v8514
    %9377 = vmatpush.bf16.msra.mxu0 %v8506
    %9378 = vmatpush.bf16.msra.mxu0 %v8498
    %9379 = vmatpush.bf16.msra.mxu0 %v8490
    %9380 = vmatpush.bf16.msra.mxu0 %v8482
    %9381 = vmatpush.bf16.msra.mxu0 %v8474
    %9382 = vmatmul.bf16.gmra.mxu0 %v6134
    %v9383 = vpop.f32.mrf.mxu0
    %v9384 = vadd.f32 %v9351, %v9383
    %v9385 = vpop.f32.mrf.mxu0
    %v9386 = vadd.f32 %v9353, %v9385
    %9387 = vmatmul.bf16.gmra.mxu0 %v6142
    %v9388 = vpop.f32.mrf.mxu0
    %v9389 = vadd.f32 %v9356, %v9388
    %v9390 = vpop.f32.mrf.mxu0
    %v9391 = vadd.f32 %v9358, %v9390
    %9392 = vmatmul.bf16.gmra.mxu0 %v6150
    %v9393 = vpop.f32.mrf.mxu0
    %v9394 = vadd.f32 %v9361, %v9393
    %v9395 = vpop.f32.mrf.mxu0
    %v9396 = vadd.f32 %v9363, %v9395
    %9397 = vmatmul.bf16.gmra.mxu0 %v6158
    %v9398 = vpop.f32.mrf.mxu0
    %v9399 = vadd.f32 %v9366, %v9398
    %v9400 = vpop.f32.mrf.mxu0
    %v9401 = vadd.f32 %v9368, %v9400
    %9402 = vmatmul.bf16.gmra.mxu0 %v6166
    %v9403 = vpop.f32.mrf.mxu0
    %v9404 = vadd.f32 %v9371, %v9403
    %v9405 = vpop.f32.mrf.mxu0
    %9406 = vdwg.mxu0
    %9407 = vmatpush.bf16.msra.mxu0 %v8594
    %9408 = vmatpush.bf16.msra.mxu0 %v8586
    %9409 = vmatpush.bf16.msra.mxu0 %v8578
    %9410 = vmatpush.bf16.msra.mxu0 %v8570
    %9411 = vmatpush.bf16.msra.mxu0 %v8562
    %9412 = vmatpush.bf16.msra.mxu0 %v8554
    %9413 = vmatpush.bf16.msra.mxu0 %v8546
    %9414 = vmatpush.bf16.msra.mxu0 %v8538
    %9415 = vmatmul.bf16.gmra.mxu0 %v6135
    %v9416 = vpop.f32.mrf.mxu0
    %v9417 = vadd.f32 %v9384, %v9416
    %v9418 = vpop.f32.mrf.mxu0
    %v9419 = vadd.f32 %v9386, %v9418
    %9420 = vmatmul.bf16.gmra.mxu0 %v6143
    %v9421 = vpop.f32.mrf.mxu0
    %v9422 = vadd.f32 %v9389, %v9421
    %v9423 = vpop.f32.mrf.mxu0
    %v9424 = vadd.f32 %v9391, %v9423
    %9425 = vmatmul.bf16.gmra.mxu0 %v6151
    %v9426 = vpop.f32.mrf.mxu0
    %v9427 = vadd.f32 %v9394, %v9426
    %v9428 = vpop.f32.mrf.mxu0
    %v9429 = vadd.f32 %v9396, %v9428
    %9430 = vmatmul.bf16.gmra.mxu0 %v6159
    %v9431 = vpop.f32.mrf.mxu0
    %v9432 = vadd.f32 %v9399, %v9431
    %v9433 = vpop.f32.mrf.mxu0
    %v9434 = vadd.f32 %v9401, %v9433
    %9435 = vmatmul.bf16.gmra.mxu0 %v6167
    %v9436 = vpop.f32.mrf.mxu0
    %v9437 = vadd.f32 %v9404, %v9436
    %v9438 = vpop.f32.mrf.mxu0
    %9439 = vdwg.mxu0
    %9440 = vmatpush.bf16.msra.mxu0 %v8658
    %9441 = vmatpush.bf16.msra.mxu0 %v8650
    %9442 = vmatpush.bf16.msra.mxu0 %v8642
    %9443 = vmatpush.bf16.msra.mxu0 %v8634
    %9444 = vmatpush.bf16.msra.mxu0 %v8626
    %9445 = vmatpush.bf16.msra.mxu0 %v8618
    %9446 = vmatpush.bf16.msra.mxu0 %v8610
    %9447 = vmatpush.bf16.msra.mxu0 %v8602
    %9448 = vmatmul.bf16.gmra.mxu0 %v6136
    %v9449 = vpop.f32.mrf.mxu0
    %v9450 = vadd.f32 %v9417, %v9449
    %v9451 = vpop.f32.mrf.mxu0
    %v9452 = vadd.f32 %v9419, %v9451
    %9453 = vmatmul.bf16.gmra.mxu0 %v6144
    %v9454 = vpop.f32.mrf.mxu0
    %v9455 = vadd.f32 %v9422, %v9454
    %v9456 = vpop.f32.mrf.mxu0
    %v9457 = vadd.f32 %v9424, %v9456
    %9458 = vmatmul.bf16.gmra.mxu0 %v6152
    %v9459 = vpop.f32.mrf.mxu0
    %v9460 = vadd.f32 %v9427, %v9459
    %v9461 = vpop.f32.mrf.mxu0
    %v9462 = vadd.f32 %v9429, %v9461
    %9463 = vmatmul.bf16.gmra.mxu0 %v6160
    %v9464 = vpop.f32.mrf.mxu0
    %v9465 = vadd.f32 %v9432, %v9464
    %v9466 = vpop.f32.mrf.mxu0
    %v9467 = vadd.f32 %v9434, %v9466
    %9468 = vmatmul.bf16.gmra.mxu0 %v6168
    %v9469 = vpop.f32.mrf.mxu0
    %v9470 = vadd.f32 %v9437, %v9469
    %v9471 = vpop.f32.mrf.mxu0
    %9472 = vdwg.mxu0
    %9473 = vmatpush.bf16.msra.mxu0 %v8722
    %9474 = vmatpush.bf16.msra.mxu0 %v8714
    %9475 = vmatpush.bf16.msra.mxu0 %v8706
    %9476 = vmatpush.bf16.msra.mxu0 %v8698
    %9477 = vmatpush.bf16.msra.mxu0 %v8690
    %9478 = vmatpush.bf16.msra.mxu0 %v8682
    %9479 = vmatpush.bf16.msra.mxu0 %v8674
    %9480 = vmatpush.bf16.msra.mxu0 %v8666
    %9481 = vmatmul.bf16.gmra.mxu0 %v6137
    %v9482 = vpop.f32.mrf.mxu0
    %v9483 = vadd.f32 %v9450, %v9482
    %v9484 = vpop.f32.mrf.mxu0
    %v9485 = vadd.f32 %v9452, %v9484
    %9486 = vmatmul.bf16.gmra.mxu0 %v6145
    %v9487 = vpop.f32.mrf.mxu0
    %v9488 = vadd.f32 %v9455, %v9487
    %v9489 = vpop.f32.mrf.mxu0
    %v9490 = vadd.f32 %v9457, %v9489
    %9491 = vmatmul.bf16.gmra.mxu0 %v6153
    %v9492 = vpop.f32.mrf.mxu0
    %v9493 = vadd.f32 %v9460, %v9492
    %v9494 = vpop.f32.mrf.mxu0
    %v9495 = vadd.f32 %v9462, %v9494
    %9496 = vmatmul.bf16.gmra.mxu0 %v6161
    %v9497 = vpop.f32.mrf.mxu0
    %v9498 = vadd.f32 %v9465, %v9497
    %v9499 = vpop.f32.mrf.mxu0
    %v9500 = vadd.f32 %v9467, %v9499
    %9501 = vmatmul.bf16.gmra.mxu0 %v6169
    %v9502 = vpop.f32.mrf.mxu0
    %v9503 = vadd.f32 %v9470, %v9502
    %v9504 = vpop.f32.mrf.mxu0
    %9505 = vdwg.mxu0
    %9506 = vmatpush.bf16.msra.mxu0 %v8275
    %9507 = vmatpush.bf16.msra.mxu0 %v8267
    %9508 = vmatpush.bf16.msra.mxu0 %v8259
    %9509 = vmatpush.bf16.msra.mxu0 %v8251
    %9510 = vmatpush.bf16.msra.mxu0 %v8243
    %9511 = vmatpush.bf16.msra.mxu0 %v8235
    %9512 = vmatpush.bf16.msra.mxu0 %v8227
    %9513 = vmatpush.bf16.msra.mxu0 %v8219
    %9514 = vmatmul.bf16.gmra.mxu0 %v6130
    %v9515 = vpop.f32.mrf.mxu0
    %v9516 = vadd.f32 0.0, %v9515
    %v9517 = vpop.f32.mrf.mxu0
    %v9518 = vadd.f32 0.0, %v9517
    %9519 = vmatmul.bf16.gmra.mxu0 %v6138
    %v9520 = vpop.f32.mrf.mxu0
    %v9521 = vadd.f32 0.0, %v9520
    %v9522 = vpop.f32.mrf.mxu0
    %v9523 = vadd.f32 0.0, %v9522
    %9524 = vmatmul.bf16.gmra.mxu0 %v6146
    %v9525 = vpop.f32.mrf.mxu0
    %v9526 = vadd.f32 0.0, %v9525
    %v9527 = vpop.f32.mrf.mxu0
    %v9528 = vadd.f32 0.0, %v9527
    %9529 = vmatmul.bf16.gmra.mxu0 %v6154
    %v9530 = vpop.f32.mrf.mxu0
    %v9531 = vadd.f32 0.0, %v9530
    %v9532 = vpop.f32.mrf.mxu0
    %v9533 = vadd.f32 0.0, %v9532
    %9534 = vmatmul.bf16.gmra.mxu0 %v6162
    %v9535 = vpop.f32.mrf.mxu0
    %v9536 = vadd.f32 0.0, %v9535
    %v9537 = vpop.f32.mrf.mxu0
    %9538 = vdwg.mxu0
    %9539 = vmatpush.bf16.msra.mxu0 %v8339
    %9540 = vmatpush.bf16.msra.mxu0 %v8331
    %9541 = vmatpush.bf16.msra.mxu0 %v8323
    %9542 = vmatpush.bf16.msra.mxu0 %v8315
    %9543 = vmatpush.bf16.msra.mxu0 %v8307
    %9544 = vmatpush.bf16.msra.mxu0 %v8299
    %9545 = vmatpush.bf16.msra.mxu0 %v8291
    %9546 = vmatpush.bf16.msra.mxu0 %v8283
    %9547 = vmatmul.bf16.gmra.mxu0 %v6131
    %v9548 = vpop.f32.mrf.mxu0
    %v9549 = vadd.f32 %v9516, %v9548
    %v9550 = vpop.f32.mrf.mxu0
    %v9551 = vadd.f32 %v9518, %v9550
    %9552 = vmatmul.bf16.gmra.mxu0 %v6139
    %v9553 = vpop.f32.mrf.mxu0
    %v9554 = vadd.f32 %v9521, %v9553
    %v9555 = vpop.f32.mrf.mxu0
    %v9556 = vadd.f32 %v9523, %v9555
    %9557 = vmatmul.bf16.gmra.mxu0 %v6147
    %v9558 = vpop.f32.mrf.mxu0
    %v9559 = vadd.f32 %v9526, %v9558
    %v9560 = vpop.f32.mrf.mxu0
    %v9561 = vadd.f32 %v9528, %v9560
    %9562 = vmatmul.bf16.gmra.mxu0 %v6155
    %v9563 = vpop.f32.mrf.mxu0
    %v9564 = vadd.f32 %v9531, %v9563
    %v9565 = vpop.f32.mrf.mxu0
    %v9566 = vadd.f32 %v9533, %v9565
    %9567 = vmatmul.bf16.gmra.mxu0 %v6163
    %v9568 = vpop.f32.mrf.mxu0
    %v9569 = vadd.f32 %v9536, %v9568
    %v9570 = vpop.f32.mrf.mxu0
    %9571 = vdwg.mxu0
    %9572 = vmatpush.bf16.msra.mxu0 %v8403
    %9573 = vmatpush.bf16.msra.mxu0 %v8395
    %9574 = vmatpush.bf16.msra.mxu0 %v8387
    %9575 = vmatpush.bf16.msra.mxu0 %v8379
    %9576 = vmatpush.bf16.msra.mxu0 %v8371
    %9577 = vmatpush.bf16.msra.mxu0 %v8363
    %9578 = vmatpush.bf16.msra.mxu0 %v8355
    %9579 = vmatpush.bf16.msra.mxu0 %v8347
    %9580 = vmatmul.bf16.gmra.mxu0 %v6132
    %v9581 = vpop.f32.mrf.mxu0
    %v9582 = vadd.f32 %v9549, %v9581
    %v9583 = vpop.f32.mrf.mxu0
    %v9584 = vadd.f32 %v9551, %v9583
    %9585 = vmatmul.bf16.gmra.mxu0 %v6140
    %v9586 = vpop.f32.mrf.mxu0
    %v9587 = vadd.f32 %v9554, %v9586
    %v9588 = vpop.f32.mrf.mxu0
    %v9589 = vadd.f32 %v9556, %v9588
    %9590 = vmatmul.bf16.gmra.mxu0 %v6148
    %v9591 = vpop.f32.mrf.mxu0
    %v9592 = vadd.f32 %v9559, %v9591
    %v9593 = vpop.f32.mrf.mxu0
    %v9594 = vadd.f32 %v9561, %v9593
    %9595 = vmatmul.bf16.gmra.mxu0 %v6156
    %v9596 = vpop.f32.mrf.mxu0
    %v9597 = vadd.f32 %v9564, %v9596
    %v9598 = vpop.f32.mrf.mxu0
    %v9599 = vadd.f32 %v9566, %v9598
    %9600 = vmatmul.bf16.gmra.mxu0 %v6164
    %v9601 = vpop.f32.mrf.mxu0
    %v9602 = vadd.f32 %v9569, %v9601
    %v9603 = vpop.f32.mrf.mxu0
    %9604 = vdwg.mxu0
    %9605 = vmatpush.bf16.msra.mxu0 %v8467
    %9606 = vmatpush.bf16.msra.mxu0 %v8459
    %9607 = vmatpush.bf16.msra.mxu0 %v8451
    %9608 = vmatpush.bf16.msra.mxu0 %v8443
    %9609 = vmatpush.bf16.msra.mxu0 %v8435
    %9610 = vmatpush.bf16.msra.mxu0 %v8427
    %9611 = vmatpush.bf16.msra.mxu0 %v8419
    %9612 = vmatpush.bf16.msra.mxu0 %v8411
    %9613 = vmatmul.bf16.gmra.mxu0 %v6133
    %v9614 = vpop.f32.mrf.mxu0
    %v9615 = vadd.f32 %v9582, %v9614
    %v9616 = vpop.f32.mrf.mxu0
    %v9617 = vadd.f32 %v9584, %v9616
    %9618 = vmatmul.bf16.gmra.mxu0 %v6141
    %v9619 = vpop.f32.mrf.mxu0
    %v9620 = vadd.f32 %v9587, %v9619
    %v9621 = vpop.f32.mrf.mxu0
    %v9622 = vadd.f32 %v9589, %v9621
    %9623 = vmatmul.bf16.gmra.mxu0 %v6149
    %v9624 = vpop.f32.mrf.mxu0
    %v9625 = vadd.f32 %v9592, %v9624
    %v9626 = vpop.f32.mrf.mxu0
    %v9627 = vadd.f32 %v9594, %v9626
    %9628 = vmatmul.bf16.gmra.mxu0 %v6157
    %v9629 = vpop.f32.mrf.mxu0
    %v9630 = vadd.f32 %v9597, %v9629
    %v9631 = vpop.f32.mrf.mxu0
    %v9632 = vadd.f32 %v9599, %v9631
    %9633 = vmatmul.bf16.gmra.mxu0 %v6165
    %v9634 = vpop.f32.mrf.mxu0
    %v9635 = vadd.f32 %v9602, %v9634
    %v9636 = vpop.f32.mrf.mxu0
    %9637 = vdwg.mxu0
    %9638 = vmatpush.bf16.msra.mxu0 %v8531
    %9639 = vmatpush.bf16.msra.mxu0 %v8523
    %9640 = vmatpush.bf16.msra.mxu0 %v8515
    %9641 = vmatpush.bf16.msra.mxu0 %v8507
    %9642 = vmatpush.bf16.msra.mxu0 %v8499
    %9643 = vmatpush.bf16.msra.mxu0 %v8491
    %9644 = vmatpush.bf16.msra.mxu0 %v8483
    %9645 = vmatpush.bf16.msra.mxu0 %v8475
    %9646 = vmatmul.bf16.gmra.mxu0 %v6134
    %v9647 = vpop.f32.mrf.mxu0
    %v9648 = vadd.f32 %v9615, %v9647
    %v9649 = vpop.f32.mrf.mxu0
    %v9650 = vadd.f32 %v9617, %v9649
    %9651 = vmatmul.bf16.gmra.mxu0 %v6142
    %v9652 = vpop.f32.mrf.mxu0
    %v9653 = vadd.f32 %v9620, %v9652
    %v9654 = vpop.f32.mrf.mxu0
    %v9655 = vadd.f32 %v9622, %v9654
    %9656 = vmatmul.bf16.gmra.mxu0 %v6150
    %v9657 = vpop.f32.mrf.mxu0
    %v9658 = vadd.f32 %v9625, %v9657
    %v9659 = vpop.f32.mrf.mxu0
    %v9660 = vadd.f32 %v9627, %v9659
    %9661 = vmatmul.bf16.gmra.mxu0 %v6158
    %v9662 = vpop.f32.mrf.mxu0
    %v9663 = vadd.f32 %v9630, %v9662
    %v9664 = vpop.f32.mrf.mxu0
    %v9665 = vadd.f32 %v9632, %v9664
    %9666 = vmatmul.bf16.gmra.mxu0 %v6166
    %v9667 = vpop.f32.mrf.mxu0
    %v9668 = vadd.f32 %v9635, %v9667
    %v9669 = vpop.f32.mrf.mxu0
    %9670 = vdwg.mxu0
    %9671 = vmatpush.bf16.msra.mxu0 %v8595
    %9672 = vmatpush.bf16.msra.mxu0 %v8587
    %9673 = vmatpush.bf16.msra.mxu0 %v8579
    %9674 = vmatpush.bf16.msra.mxu0 %v8571
    %9675 = vmatpush.bf16.msra.mxu0 %v8563
    %9676 = vmatpush.bf16.msra.mxu0 %v8555
    %9677 = vmatpush.bf16.msra.mxu0 %v8547
    %9678 = vmatpush.bf16.msra.mxu0 %v8539
    %9679 = vmatmul.bf16.gmra.mxu0 %v6135
    %v9680 = vpop.f32.mrf.mxu0
    %v9681 = vadd.f32 %v9648, %v9680
    %v9682 = vpop.f32.mrf.mxu0
    %v9683 = vadd.f32 %v9650, %v9682
    %9684 = vmatmul.bf16.gmra.mxu0 %v6143
    %v9685 = vpop.f32.mrf.mxu0
    %v9686 = vadd.f32 %v9653, %v9685
    %v9687 = vpop.f32.mrf.mxu0
    %v9688 = vadd.f32 %v9655, %v9687
    %9689 = vmatmul.bf16.gmra.mxu0 %v6151
    %v9690 = vpop.f32.mrf.mxu0
    %v9691 = vadd.f32 %v9658, %v9690
    %v9692 = vpop.f32.mrf.mxu0
    %v9693 = vadd.f32 %v9660, %v9692
    %9694 = vmatmul.bf16.gmra.mxu0 %v6159
    %v9695 = vpop.f32.mrf.mxu0
    %v9696 = vadd.f32 %v9663, %v9695
    %v9697 = vpop.f32.mrf.mxu0
    %v9698 = vadd.f32 %v9665, %v9697
    %9699 = vmatmul.bf16.gmra.mxu0 %v6167
    %v9700 = vpop.f32.mrf.mxu0
    %v9701 = vadd.f32 %v9668, %v9700
    %v9702 = vpop.f32.mrf.mxu0
    %9703 = vdwg.mxu0
    %9704 = vmatpush.bf16.msra.mxu0 %v8659
    %9705 = vmatpush.bf16.msra.mxu0 %v8651
    %9706 = vmatpush.bf16.msra.mxu0 %v8643
    %9707 = vmatpush.bf16.msra.mxu0 %v8635
    %9708 = vmatpush.bf16.msra.mxu0 %v8627
    %9709 = vmatpush.bf16.msra.mxu0 %v8619
    %9710 = vmatpush.bf16.msra.mxu0 %v8611
    %9711 = vmatpush.bf16.msra.mxu0 %v8603
    %9712 = vmatmul.bf16.gmra.mxu0 %v6136
    %v9713 = vpop.f32.mrf.mxu0
    %v9714 = vadd.f32 %v9681, %v9713
    %v9715 = vpop.f32.mrf.mxu0
    %v9716 = vadd.f32 %v9683, %v9715
    %9717 = vmatmul.bf16.gmra.mxu0 %v6144
    %v9718 = vpop.f32.mrf.mxu0
    %v9719 = vadd.f32 %v9686, %v9718
    %v9720 = vpop.f32.mrf.mxu0
    %v9721 = vadd.f32 %v9688, %v9720
    %9722 = vmatmul.bf16.gmra.mxu0 %v6152
    %v9723 = vpop.f32.mrf.mxu0
    %v9724 = vadd.f32 %v9691, %v9723
    %v9725 = vpop.f32.mrf.mxu0
    %v9726 = vadd.f32 %v9693, %v9725
    %9727 = vmatmul.bf16.gmra.mxu0 %v6160
    %v9728 = vpop.f32.mrf.mxu0
    %v9729 = vadd.f32 %v9696, %v9728
    %v9730 = vpop.f32.mrf.mxu0
    %v9731 = vadd.f32 %v9698, %v9730
    %9732 = vmatmul.bf16.gmra.mxu0 %v6168
    %v9733 = vpop.f32.mrf.mxu0
    %v9734 = vadd.f32 %v9701, %v9733
    %v9735 = vpop.f32.mrf.mxu0
    %9736 = vdwg.mxu0
    %9737 = vmatpush.bf16.msra.mxu0 %v8723
    %9738 = vmatpush.bf16.msra.mxu0 %v8715
    %9739 = vmatpush.bf16.msra.mxu0 %v8707
    %9740 = vmatpush.bf16.msra.mxu0 %v8699
    %9741 = vmatpush.bf16.msra.mxu0 %v8691
    %9742 = vmatpush.bf16.msra.mxu0 %v8683
    %9743 = vmatpush.bf16.msra.mxu0 %v8675
    %9744 = vmatpush.bf16.msra.mxu0 %v8667
    %9745 = vmatmul.bf16.gmra.mxu0 %v6137
    %v9746 = vpop.f32.mrf.mxu0
    %v9747 = vadd.f32 %v9714, %v9746
    %v9748 = vpop.f32.mrf.mxu0
    %v9749 = vadd.f32 %v9716, %v9748
    %9750 = vmatmul.bf16.gmra.mxu0 %v6145
    %v9751 = vpop.f32.mrf.mxu0
    %v9752 = vadd.f32 %v9719, %v9751
    %v9753 = vpop.f32.mrf.mxu0
    %v9754 = vadd.f32 %v9721, %v9753
    %9755 = vmatmul.bf16.gmra.mxu0 %v6153
    %v9756 = vpop.f32.mrf.mxu0
    %v9757 = vadd.f32 %v9724, %v9756
    %v9758 = vpop.f32.mrf.mxu0
    %v9759 = vadd.f32 %v9726, %v9758
    %9760 = vmatmul.bf16.gmra.mxu0 %v6161
    %v9761 = vpop.f32.mrf.mxu0
    %v9762 = vadd.f32 %v9729, %v9761
    %v9763 = vpop.f32.mrf.mxu0
    %v9764 = vadd.f32 %v9731, %v9763
    %9765 = vmatmul.bf16.gmra.mxu0 %v6169
    %v9766 = vpop.f32.mrf.mxu0
    %v9767 = vadd.f32 %v9734, %v9766
    %v9768 = vpop.f32.mrf.mxu0
    %9769 = vdwg.mxu0
    %9770 = vmatpush.bf16.msra.mxu0 %v8276
    %9771 = vmatpush.bf16.msra.mxu0 %v8268
    %9772 = vmatpush.bf16.msra.mxu0 %v8260
    %9773 = vmatpush.bf16.msra.mxu0 %v8252
    %9774 = vmatpush.bf16.msra.mxu0 %v8244
    %9775 = vmatpush.bf16.msra.mxu0 %v8236
    %9776 = vmatpush.bf16.msra.mxu0 %v8228
    %9777 = vmatpush.bf16.msra.mxu0 %v8220
    %9778 = vmatmul.bf16.gmra.mxu0 %v6130
    %v9779 = vpop.f32.mrf.mxu0
    %v9780 = vadd.f32 0.0, %v9779
    %v9781 = vpop.f32.mrf.mxu0
    %v9782 = vadd.f32 0.0, %v9781
    %9783 = vmatmul.bf16.gmra.mxu0 %v6138
    %v9784 = vpop.f32.mrf.mxu0
    %v9785 = vadd.f32 0.0, %v9784
    %v9786 = vpop.f32.mrf.mxu0
    %v9787 = vadd.f32 0.0, %v9786
    %9788 = vmatmul.bf16.gmra.mxu0 %v6146
    %v9789 = vpop.f32.mrf.mxu0
    %v9790 = vadd.f32 0.0, %v9789
    %v9791 = vpop.f32.mrf.mxu0
    %v9792 = vadd.f32 0.0, %v9791
    %9793 = vmatmul.bf16.gmra.mxu0 %v6154
    %v9794 = vpop.f32.mrf.mxu0
    %v9795 = vadd.f32 0.0, %v9794
    %v9796 = vpop.f32.mrf.mxu0
    %v9797 = vadd.f32 0.0, %v9796
    %9798 = vmatmul.bf16.gmra.mxu0 %v6162
    %v9799 = vpop.f32.mrf.mxu0
    %v9800 = vadd.f32 0.0, %v9799
    %v9801 = vpop.f32.mrf.mxu0
    %9802 = vdwg.mxu0
    %9803 = vmatpush.bf16.msra.mxu0 %v8340
    %9804 = vmatpush.bf16.msra.mxu0 %v8332
    %9805 = vmatpush.bf16.msra.mxu0 %v8324
    %9806 = vmatpush.bf16.msra.mxu0 %v8316
    %9807 = vmatpush.bf16.msra.mxu0 %v8308
    %9808 = vmatpush.bf16.msra.mxu0 %v8300
    %9809 = vmatpush.bf16.msra.mxu0 %v8292
    %9810 = vmatpush.bf16.msra.mxu0 %v8284
    %9811 = vmatmul.bf16.gmra.mxu0 %v6131
    %v9812 = vpop.f32.mrf.mxu0
    %v9813 = vadd.f32 %v9780, %v9812
    %v9814 = vpop.f32.mrf.mxu0
    %v9815 = vadd.f32 %v9782, %v9814
    %9816 = vmatmul.bf16.gmra.mxu0 %v6139
    %v9817 = vpop.f32.mrf.mxu0
    %v9818 = vadd.f32 %v9785, %v9817
    %v9819 = vpop.f32.mrf.mxu0
    %v9820 = vadd.f32 %v9787, %v9819
    %9821 = vmatmul.bf16.gmra.mxu0 %v6147
    %v9822 = vpop.f32.mrf.mxu0
    %v9823 = vadd.f32 %v9790, %v9822
    %v9824 = vpop.f32.mrf.mxu0
    %v9825 = vadd.f32 %v9792, %v9824
    %9826 = vmatmul.bf16.gmra.mxu0 %v6155
    %v9827 = vpop.f32.mrf.mxu0
    %v9828 = vadd.f32 %v9795, %v9827
    %v9829 = vpop.f32.mrf.mxu0
    %v9830 = vadd.f32 %v9797, %v9829
    %9831 = vmatmul.bf16.gmra.mxu0 %v6163
    %v9832 = vpop.f32.mrf.mxu0
    %v9833 = vadd.f32 %v9800, %v9832
    %v9834 = vpop.f32.mrf.mxu0
    %9835 = vdwg.mxu0
    %9836 = vmatpush.bf16.msra.mxu0 %v8404
    %9837 = vmatpush.bf16.msra.mxu0 %v8396
    %9838 = vmatpush.bf16.msra.mxu0 %v8388
    %9839 = vmatpush.bf16.msra.mxu0 %v8380
    %9840 = vmatpush.bf16.msra.mxu0 %v8372
    %9841 = vmatpush.bf16.msra.mxu0 %v8364
    %9842 = vmatpush.bf16.msra.mxu0 %v8356
    %9843 = vmatpush.bf16.msra.mxu0 %v8348
    %9844 = vmatmul.bf16.gmra.mxu0 %v6132
    %v9845 = vpop.f32.mrf.mxu0
    %v9846 = vadd.f32 %v9813, %v9845
    %v9847 = vpop.f32.mrf.mxu0
    %v9848 = vadd.f32 %v9815, %v9847
    %9849 = vmatmul.bf16.gmra.mxu0 %v6140
    %v9850 = vpop.f32.mrf.mxu0
    %v9851 = vadd.f32 %v9818, %v9850
    %v9852 = vpop.f32.mrf.mxu0
    %v9853 = vadd.f32 %v9820, %v9852
    %9854 = vmatmul.bf16.gmra.mxu0 %v6148
    %v9855 = vpop.f32.mrf.mxu0
    %v9856 = vadd.f32 %v9823, %v9855
    %v9857 = vpop.f32.mrf.mxu0
    %v9858 = vadd.f32 %v9825, %v9857
    %9859 = vmatmul.bf16.gmra.mxu0 %v6156
    %v9860 = vpop.f32.mrf.mxu0
    %v9861 = vadd.f32 %v9828, %v9860
    %v9862 = vpop.f32.mrf.mxu0
    %v9863 = vadd.f32 %v9830, %v9862
    %9864 = vmatmul.bf16.gmra.mxu0 %v6164
    %v9865 = vpop.f32.mrf.mxu0
    %v9866 = vadd.f32 %v9833, %v9865
    %v9867 = vpop.f32.mrf.mxu0
    %9868 = vdwg.mxu0
    %9869 = vmatpush.bf16.msra.mxu0 %v8468
    %9870 = vmatpush.bf16.msra.mxu0 %v8460
    %9871 = vmatpush.bf16.msra.mxu0 %v8452
    %9872 = vmatpush.bf16.msra.mxu0 %v8444
    %9873 = vmatpush.bf16.msra.mxu0 %v8436
    %9874 = vmatpush.bf16.msra.mxu0 %v8428
    %9875 = vmatpush.bf16.msra.mxu0 %v8420
    %9876 = vmatpush.bf16.msra.mxu0 %v8412
    %9877 = vmatmul.bf16.gmra.mxu0 %v6133
    %v9878 = vpop.f32.mrf.mxu0
    %v9879 = vadd.f32 %v9846, %v9878
    %v9880 = vpop.f32.mrf.mxu0
    %v9881 = vadd.f32 %v9848, %v9880
    %9882 = vmatmul.bf16.gmra.mxu0 %v6141
    %v9883 = vpop.f32.mrf.mxu0
    %v9884 = vadd.f32 %v9851, %v9883
    %v9885 = vpop.f32.mrf.mxu0
    %v9886 = vadd.f32 %v9853, %v9885
    %9887 = vmatmul.bf16.gmra.mxu0 %v6149
    %v9888 = vpop.f32.mrf.mxu0
    %v9889 = vadd.f32 %v9856, %v9888
    %v9890 = vpop.f32.mrf.mxu0
    %v9891 = vadd.f32 %v9858, %v9890
    %9892 = vmatmul.bf16.gmra.mxu0 %v6157
    %v9893 = vpop.f32.mrf.mxu0
    %v9894 = vadd.f32 %v9861, %v9893
    %v9895 = vpop.f32.mrf.mxu0
    %v9896 = vadd.f32 %v9863, %v9895
    %9897 = vmatmul.bf16.gmra.mxu0 %v6165
    %v9898 = vpop.f32.mrf.mxu0
    %v9899 = vadd.f32 %v9866, %v9898
    %v9900 = vpop.f32.mrf.mxu0
    %9901 = vdwg.mxu0
    %9902 = vmatpush.bf16.msra.mxu0 %v8532
    %9903 = vmatpush.bf16.msra.mxu0 %v8524
    %9904 = vmatpush.bf16.msra.mxu0 %v8516
    %9905 = vmatpush.bf16.msra.mxu0 %v8508
    %9906 = vmatpush.bf16.msra.mxu0 %v8500
    %9907 = vmatpush.bf16.msra.mxu0 %v8492
    %9908 = vmatpush.bf16.msra.mxu0 %v8484
    %9909 = vmatpush.bf16.msra.mxu0 %v8476
    %9910 = vmatmul.bf16.gmra.mxu0 %v6134
    %v9911 = vpop.f32.mrf.mxu0
    %v9912 = vadd.f32 %v9879, %v9911
    %v9913 = vpop.f32.mrf.mxu0
    %v9914 = vadd.f32 %v9881, %v9913
    %9915 = vmatmul.bf16.gmra.mxu0 %v6142
    %v9916 = vpop.f32.mrf.mxu0
    %v9917 = vadd.f32 %v9884, %v9916
    %v9918 = vpop.f32.mrf.mxu0
    %v9919 = vadd.f32 %v9886, %v9918
    %9920 = vmatmul.bf16.gmra.mxu0 %v6150
    %v9921 = vpop.f32.mrf.mxu0
    %v9922 = vadd.f32 %v9889, %v9921
    %v9923 = vpop.f32.mrf.mxu0
    %v9924 = vadd.f32 %v9891, %v9923
    %9925 = vmatmul.bf16.gmra.mxu0 %v6158
    %v9926 = vpop.f32.mrf.mxu0
    %v9927 = vadd.f32 %v9894, %v9926
    %v9928 = vpop.f32.mrf.mxu0
    %v9929 = vadd.f32 %v9896, %v9928
    %9930 = vmatmul.bf16.gmra.mxu0 %v6166
    %v9931 = vpop.f32.mrf.mxu0
    %v9932 = vadd.f32 %v9899, %v9931
    %v9933 = vpop.f32.mrf.mxu0
    %9934 = vdwg.mxu0
    %9935 = vmatpush.bf16.msra.mxu0 %v8596
    %9936 = vmatpush.bf16.msra.mxu0 %v8588
    %9937 = vmatpush.bf16.msra.mxu0 %v8580
    %9938 = vmatpush.bf16.msra.mxu0 %v8572
    %9939 = vmatpush.bf16.msra.mxu0 %v8564
    %9940 = vmatpush.bf16.msra.mxu0 %v8556
    %9941 = vmatpush.bf16.msra.mxu0 %v8548
    %9942 = vmatpush.bf16.msra.mxu0 %v8540
    %9943 = vmatmul.bf16.gmra.mxu0 %v6135
    %v9944 = vpop.f32.mrf.mxu0
    %v9945 = vadd.f32 %v9912, %v9944
    %v9946 = vpop.f32.mrf.mxu0
    %v9947 = vadd.f32 %v9914, %v9946
    %9948 = vmatmul.bf16.gmra.mxu0 %v6143
    %v9949 = vpop.f32.mrf.mxu0
    %v9950 = vadd.f32 %v9917, %v9949
    %v9951 = vpop.f32.mrf.mxu0
    %v9952 = vadd.f32 %v9919, %v9951
    %9953 = vmatmul.bf16.gmra.mxu0 %v6151
    %v9954 = vpop.f32.mrf.mxu0
    %v9955 = vadd.f32 %v9922, %v9954
    %v9956 = vpop.f32.mrf.mxu0
    %v9957 = vadd.f32 %v9924, %v9956
    %9958 = vmatmul.bf16.gmra.mxu0 %v6159
    %v9959 = vpop.f32.mrf.mxu0
    %v9960 = vadd.f32 %v9927, %v9959
    %v9961 = vpop.f32.mrf.mxu0
    %v9962 = vadd.f32 %v9929, %v9961
    %9963 = vmatmul.bf16.gmra.mxu0 %v6167
    %v9964 = vpop.f32.mrf.mxu0
    %v9965 = vadd.f32 %v9932, %v9964
    %v9966 = vpop.f32.mrf.mxu0
    %9967 = vdwg.mxu0
    %9968 = vmatpush.bf16.msra.mxu0 %v8660
    %9969 = vmatpush.bf16.msra.mxu0 %v8652
    %9970 = vmatpush.bf16.msra.mxu0 %v8644
    %9971 = vmatpush.bf16.msra.mxu0 %v8636
    %9972 = vmatpush.bf16.msra.mxu0 %v8628
    %9973 = vmatpush.bf16.msra.mxu0 %v8620
    %9974 = vmatpush.bf16.msra.mxu0 %v8612
    %9975 = vmatpush.bf16.msra.mxu0 %v8604
    %9976 = vmatmul.bf16.gmra.mxu0 %v6136
    %v9977 = vpop.f32.mrf.mxu0
    %v9978 = vadd.f32 %v9945, %v9977
    %v9979 = vpop.f32.mrf.mxu0
    %v9980 = vadd.f32 %v9947, %v9979
    %9981 = vmatmul.bf16.gmra.mxu0 %v6144
    %v9982 = vpop.f32.mrf.mxu0
    %v9983 = vadd.f32 %v9950, %v9982
    %v9984 = vpop.f32.mrf.mxu0
    %v9985 = vadd.f32 %v9952, %v9984
    %9986 = vmatmul.bf16.gmra.mxu0 %v6152
    %v9987 = vpop.f32.mrf.mxu0
    %v9988 = vadd.f32 %v9955, %v9987
    %v9989 = vpop.f32.mrf.mxu0
    %v9990 = vadd.f32 %v9957, %v9989
    %9991 = vmatmul.bf16.gmra.mxu0 %v6160
    %v9992 = vpop.f32.mrf.mxu0
    %v9993 = vadd.f32 %v9960, %v9992
    %v9994 = vpop.f32.mrf.mxu0
    %v9995 = vadd.f32 %v9962, %v9994
    %9996 = vmatmul.bf16.gmra.mxu0 %v6168
    %v9997 = vpop.f32.mrf.mxu0
    %v9998 = vadd.f32 %v9965, %v9997
    %v9999 = vpop.f32.mrf.mxu0
    %10000 = vdwg.mxu0
    %10001 = vmatpush.bf16.msra.mxu0 %v8724
    %10002 = vmatpush.bf16.msra.mxu0 %v8716
    %10003 = vmatpush.bf16.msra.mxu0 %v8708
    %10004 = vmatpush.bf16.msra.mxu0 %v8700
    %10005 = vmatpush.bf16.msra.mxu0 %v8692
    %10006 = vmatpush.bf16.msra.mxu0 %v8684
    %10007 = vmatpush.bf16.msra.mxu0 %v8676
    %10008 = vmatpush.bf16.msra.mxu0 %v8668
    %10009 = vmatmul.bf16.gmra.mxu0 %v6137
    %v10010 = vpop.f32.mrf.mxu0
    %v10011 = vadd.f32 %v9978, %v10010
    %v10012 = vpop.f32.mrf.mxu0
    %v10013 = vadd.f32 %v9980, %v10012
    %10014 = vmatmul.bf16.gmra.mxu0 %v6145
    %v10015 = vpop.f32.mrf.mxu0
    %v10016 = vadd.f32 %v9983, %v10015
    %v10017 = vpop.f32.mrf.mxu0
    %v10018 = vadd.f32 %v9985, %v10017
    %10019 = vmatmul.bf16.gmra.mxu0 %v6153
    %v10020 = vpop.f32.mrf.mxu0
    %v10021 = vadd.f32 %v9988, %v10020
    %v10022 = vpop.f32.mrf.mxu0
    %v10023 = vadd.f32 %v9990, %v10022
    %10024 = vmatmul.bf16.gmra.mxu0 %v6161
    %v10025 = vpop.f32.mrf.mxu0
    %v10026 = vadd.f32 %v9993, %v10025
    %v10027 = vpop.f32.mrf.mxu0
    %v10028 = vadd.f32 %v9995, %v10027
    %10029 = vmatmul.bf16.gmra.mxu0 %v6169
    %v10030 = vpop.f32.mrf.mxu0
    %v10031 = vadd.f32 %v9998, %v10030
    %v10032 = vpop.f32.mrf.mxu0
    %10033 = vdwg.mxu0
    %10034 = vmatpush.bf16.msra.mxu0 %v8277
    %10035 = vmatpush.bf16.msra.mxu0 %v8269
    %10036 = vmatpush.bf16.msra.mxu0 %v8261
    %10037 = vmatpush.bf16.msra.mxu0 %v8253
    %10038 = vmatpush.bf16.msra.mxu0 %v8245
    %10039 = vmatpush.bf16.msra.mxu0 %v8237
    %10040 = vmatpush.bf16.msra.mxu0 %v8229
    %10041 = vmatpush.bf16.msra.mxu0 %v8221
    %10042 = vmatmul.bf16.gmra.mxu0 %v6130
    %v10043 = vpop.f32.mrf.mxu0
    %v10044 = vadd.f32 0.0, %v10043
    %v10045 = vpop.f32.mrf.mxu0
    %v10046 = vadd.f32 0.0, %v10045
    %10047 = vmatmul.bf16.gmra.mxu0 %v6138
    %v10048 = vpop.f32.mrf.mxu0
    %v10049 = vadd.f32 0.0, %v10048
    %v10050 = vpop.f32.mrf.mxu0
    %v10051 = vadd.f32 0.0, %v10050
    %10052 = vmatmul.bf16.gmra.mxu0 %v6146
    %v10053 = vpop.f32.mrf.mxu0
    %v10054 = vadd.f32 0.0, %v10053
    %v10055 = vpop.f32.mrf.mxu0
    %v10056 = vadd.f32 0.0, %v10055
    %10057 = vmatmul.bf16.gmra.mxu0 %v6154
    %v10058 = vpop.f32.mrf.mxu0
    %v10059 = vadd.f32 0.0, %v10058
    %v10060 = vpop.f32.mrf.mxu0
    %v10061 = vadd.f32 0.0, %v10060
    %10062 = vmatmul.bf16.gmra.mxu0 %v6162
    %v10063 = vpop.f32.mrf.mxu0
    %v10064 = vadd.f32 0.0, %v10063
    %v10065 = vpop.f32.mrf.mxu0
    %10066 = vdwg.mxu0
    %10067 = vmatpush.bf16.msra.mxu0 %v8341
    %10068 = vmatpush.bf16.msra.mxu0 %v8333
    %10069 = vmatpush.bf16.msra.mxu0 %v8325
    %10070 = vmatpush.bf16.msra.mxu0 %v8317
    %10071 = vmatpush.bf16.msra.mxu0 %v8309
    %10072 = vmatpush.bf16.msra.mxu0 %v8301
    %10073 = vmatpush.bf16.msra.mxu0 %v8293
    %10074 = vmatpush.bf16.msra.mxu0 %v8285
    %10075 = vmatmul.bf16.gmra.mxu0 %v6131
    %v10076 = vpop.f32.mrf.mxu0
    %v10077 = vadd.f32 %v10044, %v10076
    %v10078 = vpop.f32.mrf.mxu0
    %v10079 = vadd.f32 %v10046, %v10078
    %10080 = vmatmul.bf16.gmra.mxu0 %v6139
    %v10081 = vpop.f32.mrf.mxu0
    %v10082 = vadd.f32 %v10049, %v10081
    %v10083 = vpop.f32.mrf.mxu0
    %v10084 = vadd.f32 %v10051, %v10083
    %10085 = vmatmul.bf16.gmra.mxu0 %v6147
    %v10086 = vpop.f32.mrf.mxu0
    %v10087 = vadd.f32 %v10054, %v10086
    %v10088 = vpop.f32.mrf.mxu0
    %v10089 = vadd.f32 %v10056, %v10088
    %10090 = vmatmul.bf16.gmra.mxu0 %v6155
    %v10091 = vpop.f32.mrf.mxu0
    %v10092 = vadd.f32 %v10059, %v10091
    %v10093 = vpop.f32.mrf.mxu0
    %v10094 = vadd.f32 %v10061, %v10093
    %10095 = vmatmul.bf16.gmra.mxu0 %v6163
    %v10096 = vpop.f32.mrf.mxu0
    %v10097 = vadd.f32 %v10064, %v10096
    %v10098 = vpop.f32.mrf.mxu0
    %10099 = vdwg.mxu0
    %10100 = vmatpush.bf16.msra.mxu0 %v8405
    %10101 = vmatpush.bf16.msra.mxu0 %v8397
    %10102 = vmatpush.bf16.msra.mxu0 %v8389
    %10103 = vmatpush.bf16.msra.mxu0 %v8381
    %10104 = vmatpush.bf16.msra.mxu0 %v8373
    %10105 = vmatpush.bf16.msra.mxu0 %v8365
    %10106 = vmatpush.bf16.msra.mxu0 %v8357
    %10107 = vmatpush.bf16.msra.mxu0 %v8349
    %10108 = vmatmul.bf16.gmra.mxu0 %v6132
    %v10109 = vpop.f32.mrf.mxu0
    %v10110 = vadd.f32 %v10077, %v10109
    %v10111 = vpop.f32.mrf.mxu0
    %v10112 = vadd.f32 %v10079, %v10111
    %10113 = vmatmul.bf16.gmra.mxu0 %v6140
    %v10114 = vpop.f32.mrf.mxu0
    %v10115 = vadd.f32 %v10082, %v10114
    %v10116 = vpop.f32.mrf.mxu0
    %v10117 = vadd.f32 %v10084, %v10116
    %10118 = vmatmul.bf16.gmra.mxu0 %v6148
    %v10119 = vpop.f32.mrf.mxu0
    %v10120 = vadd.f32 %v10087, %v10119
    %v10121 = vpop.f32.mrf.mxu0
    %v10122 = vadd.f32 %v10089, %v10121
    %10123 = vmatmul.bf16.gmra.mxu0 %v6156
    %v10124 = vpop.f32.mrf.mxu0
    %v10125 = vadd.f32 %v10092, %v10124
    %v10126 = vpop.f32.mrf.mxu0
    %v10127 = vadd.f32 %v10094, %v10126
    %10128 = vmatmul.bf16.gmra.mxu0 %v6164
    %v10129 = vpop.f32.mrf.mxu0
    %v10130 = vadd.f32 %v10097, %v10129
    %v10131 = vpop.f32.mrf.mxu0
    %10132 = vdwg.mxu0
    %10133 = vmatpush.bf16.msra.mxu0 %v8469
    %10134 = vmatpush.bf16.msra.mxu0 %v8461
    %10135 = vmatpush.bf16.msra.mxu0 %v8453
    %10136 = vmatpush.bf16.msra.mxu0 %v8445
    %10137 = vmatpush.bf16.msra.mxu0 %v8437
    %10138 = vmatpush.bf16.msra.mxu0 %v8429
    %10139 = vmatpush.bf16.msra.mxu0 %v8421
    %10140 = vmatpush.bf16.msra.mxu0 %v8413
    %10141 = vmatmul.bf16.gmra.mxu0 %v6133
    %v10142 = vpop.f32.mrf.mxu0
    %v10143 = vadd.f32 %v10110, %v10142
    %v10144 = vpop.f32.mrf.mxu0
    %v10145 = vadd.f32 %v10112, %v10144
    %10146 = vmatmul.bf16.gmra.mxu0 %v6141
    %v10147 = vpop.f32.mrf.mxu0
    %v10148 = vadd.f32 %v10115, %v10147
    %v10149 = vpop.f32.mrf.mxu0
    %v10150 = vadd.f32 %v10117, %v10149
    %10151 = vmatmul.bf16.gmra.mxu0 %v6149
    %v10152 = vpop.f32.mrf.mxu0
    %v10153 = vadd.f32 %v10120, %v10152
    %v10154 = vpop.f32.mrf.mxu0
    %v10155 = vadd.f32 %v10122, %v10154
    %10156 = vmatmul.bf16.gmra.mxu0 %v6157
    %v10157 = vpop.f32.mrf.mxu0
    %v10158 = vadd.f32 %v10125, %v10157
    %v10159 = vpop.f32.mrf.mxu0
    %v10160 = vadd.f32 %v10127, %v10159
    %10161 = vmatmul.bf16.gmra.mxu0 %v6165
    %v10162 = vpop.f32.mrf.mxu0
    %v10163 = vadd.f32 %v10130, %v10162
    %v10164 = vpop.f32.mrf.mxu0
    %10165 = vdwg.mxu0
    %10166 = vmatpush.bf16.msra.mxu0 %v8533
    %10167 = vmatpush.bf16.msra.mxu0 %v8525
    %10168 = vmatpush.bf16.msra.mxu0 %v8517
    %10169 = vmatpush.bf16.msra.mxu0 %v8509
    %10170 = vmatpush.bf16.msra.mxu0 %v8501
    %10171 = vmatpush.bf16.msra.mxu0 %v8493
    %10172 = vmatpush.bf16.msra.mxu0 %v8485
    %10173 = vmatpush.bf16.msra.mxu0 %v8477
    %10174 = vmatmul.bf16.gmra.mxu0 %v6134
    %v10175 = vpop.f32.mrf.mxu0
    %v10176 = vadd.f32 %v10143, %v10175
    %v10177 = vpop.f32.mrf.mxu0
    %v10178 = vadd.f32 %v10145, %v10177
    %10179 = vmatmul.bf16.gmra.mxu0 %v6142
    %v10180 = vpop.f32.mrf.mxu0
    %v10181 = vadd.f32 %v10148, %v10180
    %v10182 = vpop.f32.mrf.mxu0
    %v10183 = vadd.f32 %v10150, %v10182
    %10184 = vmatmul.bf16.gmra.mxu0 %v6150
    %v10185 = vpop.f32.mrf.mxu0
    %v10186 = vadd.f32 %v10153, %v10185
    %v10187 = vpop.f32.mrf.mxu0
    %v10188 = vadd.f32 %v10155, %v10187
    %10189 = vmatmul.bf16.gmra.mxu0 %v6158
    %v10190 = vpop.f32.mrf.mxu0
    %v10191 = vadd.f32 %v10158, %v10190
    %v10192 = vpop.f32.mrf.mxu0
    %v10193 = vadd.f32 %v10160, %v10192
    %10194 = vmatmul.bf16.gmra.mxu0 %v6166
    %v10195 = vpop.f32.mrf.mxu0
    %v10196 = vadd.f32 %v10163, %v10195
    %v10197 = vpop.f32.mrf.mxu0
    %10198 = vdwg.mxu0
    %10199 = vmatpush.bf16.msra.mxu0 %v8597
    %10200 = vmatpush.bf16.msra.mxu0 %v8589
    %10201 = vmatpush.bf16.msra.mxu0 %v8581
    %10202 = vmatpush.bf16.msra.mxu0 %v8573
    %10203 = vmatpush.bf16.msra.mxu0 %v8565
    %10204 = vmatpush.bf16.msra.mxu0 %v8557
    %10205 = vmatpush.bf16.msra.mxu0 %v8549
    %10206 = vmatpush.bf16.msra.mxu0 %v8541
    %10207 = vmatmul.bf16.gmra.mxu0 %v6135
    %v10208 = vpop.f32.mrf.mxu0
    %v10209 = vadd.f32 %v10176, %v10208
    %v10210 = vpop.f32.mrf.mxu0
    %v10211 = vadd.f32 %v10178, %v10210
    %10212 = vmatmul.bf16.gmra.mxu0 %v6143
    %v10213 = vpop.f32.mrf.mxu0
    %v10214 = vadd.f32 %v10181, %v10213
    %v10215 = vpop.f32.mrf.mxu0
    %v10216 = vadd.f32 %v10183, %v10215
    %10217 = vmatmul.bf16.gmra.mxu0 %v6151
    %v10218 = vpop.f32.mrf.mxu0
    %v10219 = vadd.f32 %v10186, %v10218
    %v10220 = vpop.f32.mrf.mxu0
    %v10221 = vadd.f32 %v10188, %v10220
    %10222 = vmatmul.bf16.gmra.mxu0 %v6159
    %v10223 = vpop.f32.mrf.mxu0
    %v10224 = vadd.f32 %v10191, %v10223
    %v10225 = vpop.f32.mrf.mxu0
    %v10226 = vadd.f32 %v10193, %v10225
    %10227 = vmatmul.bf16.gmra.mxu0 %v6167
    %v10228 = vpop.f32.mrf.mxu0
    %v10229 = vadd.f32 %v10196, %v10228
    %v10230 = vpop.f32.mrf.mxu0
    %10231 = vdwg.mxu0
    %10232 = vmatpush.bf16.msra.mxu0 %v8661
    %10233 = vmatpush.bf16.msra.mxu0 %v8653
    %10234 = vmatpush.bf16.msra.mxu0 %v8645
    %10235 = vmatpush.bf16.msra.mxu0 %v8637
    %10236 = vmatpush.bf16.msra.mxu0 %v8629
    %10237 = vmatpush.bf16.msra.mxu0 %v8621
    %10238 = vmatpush.bf16.msra.mxu0 %v8613
    %10239 = vmatpush.bf16.msra.mxu0 %v8605
    %10240 = vmatmul.bf16.gmra.mxu0 %v6136
    %v10241 = vpop.f32.mrf.mxu0
    %v10242 = vadd.f32 %v10209, %v10241
    %v10243 = vpop.f32.mrf.mxu0
    %v10244 = vadd.f32 %v10211, %v10243
    %10245 = vmatmul.bf16.gmra.mxu0 %v6144
    %v10246 = vpop.f32.mrf.mxu0
    %v10247 = vadd.f32 %v10214, %v10246
    %v10248 = vpop.f32.mrf.mxu0
    %v10249 = vadd.f32 %v10216, %v10248
    %10250 = vmatmul.bf16.gmra.mxu0 %v6152
    %v10251 = vpop.f32.mrf.mxu0
    %v10252 = vadd.f32 %v10219, %v10251
    %v10253 = vpop.f32.mrf.mxu0
    %v10254 = vadd.f32 %v10221, %v10253
    %10255 = vmatmul.bf16.gmra.mxu0 %v6160
    %v10256 = vpop.f32.mrf.mxu0
    %v10257 = vadd.f32 %v10224, %v10256
    %v10258 = vpop.f32.mrf.mxu0
    %v10259 = vadd.f32 %v10226, %v10258
    %10260 = vmatmul.bf16.gmra.mxu0 %v6168
    %v10261 = vpop.f32.mrf.mxu0
    %v10262 = vadd.f32 %v10229, %v10261
    %v10263 = vpop.f32.mrf.mxu0
    %10264 = vdwg.mxu0
    %10265 = vmatpush.bf16.msra.mxu0 %v8725
    %10266 = vmatpush.bf16.msra.mxu0 %v8717
    %10267 = vmatpush.bf16.msra.mxu0 %v8709
    %10268 = vmatpush.bf16.msra.mxu0 %v8701
    %10269 = vmatpush.bf16.msra.mxu0 %v8693
    %10270 = vmatpush.bf16.msra.mxu0 %v8685
    %10271 = vmatpush.bf16.msra.mxu0 %v8677
    %10272 = vmatpush.bf16.msra.mxu0 %v8669
    %10273 = vmatmul.bf16.gmra.mxu0 %v6137
    %v10274 = vpop.f32.mrf.mxu0
    %v10275 = vadd.f32 %v10242, %v10274
    %v10276 = vpop.f32.mrf.mxu0
    %v10277 = vadd.f32 %v10244, %v10276
    %10278 = vmatmul.bf16.gmra.mxu0 %v6145
    %v10279 = vpop.f32.mrf.mxu0
    %v10280 = vadd.f32 %v10247, %v10279
    %v10281 = vpop.f32.mrf.mxu0
    %v10282 = vadd.f32 %v10249, %v10281
    %10283 = vmatmul.bf16.gmra.mxu0 %v6153
    %v10284 = vpop.f32.mrf.mxu0
    %v10285 = vadd.f32 %v10252, %v10284
    %v10286 = vpop.f32.mrf.mxu0
    %v10287 = vadd.f32 %v10254, %v10286
    %10288 = vmatmul.bf16.gmra.mxu0 %v6161
    %v10289 = vpop.f32.mrf.mxu0
    %v10290 = vadd.f32 %v10257, %v10289
    %v10291 = vpop.f32.mrf.mxu0
    %v10292 = vadd.f32 %v10259, %v10291
    %10293 = vmatmul.bf16.gmra.mxu0 %v6169
    %v10294 = vpop.f32.mrf.mxu0
    %v10295 = vadd.f32 %v10262, %v10294
    %v10296 = vpop.f32.mrf.mxu0
    %10297 = vdwg.mxu0
    %10298 = vmatpush.bf16.msra.mxu0 %v8278
    %10299 = vmatpush.bf16.msra.mxu0 %v8270
    %10300 = vmatpush.bf16.msra.mxu0 %v8262
    %10301 = vmatpush.bf16.msra.mxu0 %v8254
    %10302 = vmatpush.bf16.msra.mxu0 %v8246
    %10303 = vmatpush.bf16.msra.mxu0 %v8238
    %10304 = vmatpush.bf16.msra.mxu0 %v8230
    %10305 = vmatpush.bf16.msra.mxu0 %v8222
    %10306 = vmatmul.bf16.gmra.mxu0 %v6130
    %v10307 = vpop.f32.mrf.mxu0
    %v10308 = vadd.f32 0.0, %v10307
    %v10309 = vpop.f32.mrf.mxu0
    %v10310 = vadd.f32 0.0, %v10309
    %10311 = vmatmul.bf16.gmra.mxu0 %v6138
    %v10312 = vpop.f32.mrf.mxu0
    %v10313 = vadd.f32 0.0, %v10312
    %v10314 = vpop.f32.mrf.mxu0
    %v10315 = vadd.f32 0.0, %v10314
    %10316 = vmatmul.bf16.gmra.mxu0 %v6146
    %v10317 = vpop.f32.mrf.mxu0
    %v10318 = vadd.f32 0.0, %v10317
    %v10319 = vpop.f32.mrf.mxu0
    %v10320 = vadd.f32 0.0, %v10319
    %10321 = vmatmul.bf16.gmra.mxu0 %v6154
    %v10322 = vpop.f32.mrf.mxu0
    %v10323 = vadd.f32 0.0, %v10322
    %v10324 = vpop.f32.mrf.mxu0
    %v10325 = vadd.f32 0.0, %v10324
    %10326 = vmatmul.bf16.gmra.mxu0 %v6162
    %v10327 = vpop.f32.mrf.mxu0
    %v10328 = vadd.f32 0.0, %v10327
    %v10329 = vpop.f32.mrf.mxu0
    %10330 = vdwg.mxu0
    %10331 = vmatpush.bf16.msra.mxu0 %v8342
    %10332 = vmatpush.bf16.msra.mxu0 %v8334
    %10333 = vmatpush.bf16.msra.mxu0 %v8326
    %10334 = vmatpush.bf16.msra.mxu0 %v8318
    %10335 = vmatpush.bf16.msra.mxu0 %v8310
    %10336 = vmatpush.bf16.msra.mxu0 %v8302
    %10337 = vmatpush.bf16.msra.mxu0 %v8294
    %10338 = vmatpush.bf16.msra.mxu0 %v8286
    %10339 = vmatmul.bf16.gmra.mxu0 %v6131
    %v10340 = vpop.f32.mrf.mxu0
    %v10341 = vadd.f32 %v10308, %v10340
    %v10342 = vpop.f32.mrf.mxu0
    %v10343 = vadd.f32 %v10310, %v10342
    %10344 = vmatmul.bf16.gmra.mxu0 %v6139
    %v10345 = vpop.f32.mrf.mxu0
    %v10346 = vadd.f32 %v10313, %v10345
    %v10347 = vpop.f32.mrf.mxu0
    %v10348 = vadd.f32 %v10315, %v10347
    %10349 = vmatmul.bf16.gmra.mxu0 %v6147
    %v10350 = vpop.f32.mrf.mxu0
    %v10351 = vadd.f32 %v10318, %v10350
    %v10352 = vpop.f32.mrf.mxu0
    %v10353 = vadd.f32 %v10320, %v10352
    %10354 = vmatmul.bf16.gmra.mxu0 %v6155
    %v10355 = vpop.f32.mrf.mxu0
    %v10356 = vadd.f32 %v10323, %v10355
    %v10357 = vpop.f32.mrf.mxu0
    %v10358 = vadd.f32 %v10325, %v10357
    %10359 = vmatmul.bf16.gmra.mxu0 %v6163
    %v10360 = vpop.f32.mrf.mxu0
    %v10361 = vadd.f32 %v10328, %v10360
    %v10362 = vpop.f32.mrf.mxu0
    %10363 = vdwg.mxu0
    %10364 = vmatpush.bf16.msra.mxu0 %v8406
    %10365 = vmatpush.bf16.msra.mxu0 %v8398
    %10366 = vmatpush.bf16.msra.mxu0 %v8390
    %10367 = vmatpush.bf16.msra.mxu0 %v8382
    %10368 = vmatpush.bf16.msra.mxu0 %v8374
    %10369 = vmatpush.bf16.msra.mxu0 %v8366
    %10370 = vmatpush.bf16.msra.mxu0 %v8358
    %10371 = vmatpush.bf16.msra.mxu0 %v8350
    %10372 = vmatmul.bf16.gmra.mxu0 %v6132
    %v10373 = vpop.f32.mrf.mxu0
    %v10374 = vadd.f32 %v10341, %v10373
    %v10375 = vpop.f32.mrf.mxu0
    %v10376 = vadd.f32 %v10343, %v10375
    %10377 = vmatmul.bf16.gmra.mxu0 %v6140
    %v10378 = vpop.f32.mrf.mxu0
    %v10379 = vadd.f32 %v10346, %v10378
    %v10380 = vpop.f32.mrf.mxu0
    %v10381 = vadd.f32 %v10348, %v10380
    %10382 = vmatmul.bf16.gmra.mxu0 %v6148
    %v10383 = vpop.f32.mrf.mxu0
    %v10384 = vadd.f32 %v10351, %v10383
    %v10385 = vpop.f32.mrf.mxu0
    %v10386 = vadd.f32 %v10353, %v10385
    %10387 = vmatmul.bf16.gmra.mxu0 %v6156
    %v10388 = vpop.f32.mrf.mxu0
    %v10389 = vadd.f32 %v10356, %v10388
    %v10390 = vpop.f32.mrf.mxu0
    %v10391 = vadd.f32 %v10358, %v10390
    %10392 = vmatmul.bf16.gmra.mxu0 %v6164
    %v10393 = vpop.f32.mrf.mxu0
    %v10394 = vadd.f32 %v10361, %v10393
    %v10395 = vpop.f32.mrf.mxu0
    %10396 = vdwg.mxu0
    %10397 = vmatpush.bf16.msra.mxu0 %v8470
    %10398 = vmatpush.bf16.msra.mxu0 %v8462
    %10399 = vmatpush.bf16.msra.mxu0 %v8454
    %10400 = vmatpush.bf16.msra.mxu0 %v8446
    %10401 = vmatpush.bf16.msra.mxu0 %v8438
    %10402 = vmatpush.bf16.msra.mxu0 %v8430
    %10403 = vmatpush.bf16.msra.mxu0 %v8422
    %10404 = vmatpush.bf16.msra.mxu0 %v8414
    %10405 = vmatmul.bf16.gmra.mxu0 %v6133
    %v10406 = vpop.f32.mrf.mxu0
    %v10407 = vadd.f32 %v10374, %v10406
    %v10408 = vpop.f32.mrf.mxu0
    %v10409 = vadd.f32 %v10376, %v10408
    %10410 = vmatmul.bf16.gmra.mxu0 %v6141
    %v10411 = vpop.f32.mrf.mxu0
    %v10412 = vadd.f32 %v10379, %v10411
    %v10413 = vpop.f32.mrf.mxu0
    %v10414 = vadd.f32 %v10381, %v10413
    %10415 = vmatmul.bf16.gmra.mxu0 %v6149
    %v10416 = vpop.f32.mrf.mxu0
    %v10417 = vadd.f32 %v10384, %v10416
    %v10418 = vpop.f32.mrf.mxu0
    %v10419 = vadd.f32 %v10386, %v10418
    %10420 = vmatmul.bf16.gmra.mxu0 %v6157
    %v10421 = vpop.f32.mrf.mxu0
    %v10422 = vadd.f32 %v10389, %v10421
    %v10423 = vpop.f32.mrf.mxu0
    %v10424 = vadd.f32 %v10391, %v10423
    %10425 = vmatmul.bf16.gmra.mxu0 %v6165
    %v10426 = vpop.f32.mrf.mxu0
    %v10427 = vadd.f32 %v10394, %v10426
    %v10428 = vpop.f32.mrf.mxu0
    %10429 = vdwg.mxu0
    %10430 = vmatpush.bf16.msra.mxu0 %v8534
    %10431 = vmatpush.bf16.msra.mxu0 %v8526
    %10432 = vmatpush.bf16.msra.mxu0 %v8518
    %10433 = vmatpush.bf16.msra.mxu0 %v8510
    %10434 = vmatpush.bf16.msra.mxu0 %v8502
    %10435 = vmatpush.bf16.msra.mxu0 %v8494
    %10436 = vmatpush.bf16.msra.mxu0 %v8486
    %10437 = vmatpush.bf16.msra.mxu0 %v8478
    %10438 = vmatmul.bf16.gmra.mxu0 %v6134
    %v10439 = vpop.f32.mrf.mxu0
    %v10440 = vadd.f32 %v10407, %v10439
    %v10441 = vpop.f32.mrf.mxu0
    %v10442 = vadd.f32 %v10409, %v10441
    %10443 = vmatmul.bf16.gmra.mxu0 %v6142
    %v10444 = vpop.f32.mrf.mxu0
    %v10445 = vadd.f32 %v10412, %v10444
    %v10446 = vpop.f32.mrf.mxu0
    %v10447 = vadd.f32 %v10414, %v10446
    %10448 = vmatmul.bf16.gmra.mxu0 %v6150
    %v10449 = vpop.f32.mrf.mxu0
    %v10450 = vadd.f32 %v10417, %v10449
    %v10451 = vpop.f32.mrf.mxu0
    %v10452 = vadd.f32 %v10419, %v10451
    %10453 = vmatmul.bf16.gmra.mxu0 %v6158
    %v10454 = vpop.f32.mrf.mxu0
    %v10455 = vadd.f32 %v10422, %v10454
    %v10456 = vpop.f32.mrf.mxu0
    %v10457 = vadd.f32 %v10424, %v10456
    %10458 = vmatmul.bf16.gmra.mxu0 %v6166
    %v10459 = vpop.f32.mrf.mxu0
    %v10460 = vadd.f32 %v10427, %v10459
    %v10461 = vpop.f32.mrf.mxu0
    %10462 = vdwg.mxu0
    %10463 = vmatpush.bf16.msra.mxu0 %v8598
    %10464 = vmatpush.bf16.msra.mxu0 %v8590
    %10465 = vmatpush.bf16.msra.mxu0 %v8582
    %10466 = vmatpush.bf16.msra.mxu0 %v8574
    %10467 = vmatpush.bf16.msra.mxu0 %v8566
    %10468 = vmatpush.bf16.msra.mxu0 %v8558
    %10469 = vmatpush.bf16.msra.mxu0 %v8550
    %10470 = vmatpush.bf16.msra.mxu0 %v8542
    %10471 = vmatmul.bf16.gmra.mxu0 %v6135
    %v10472 = vpop.f32.mrf.mxu0
    %v10473 = vadd.f32 %v10440, %v10472
    %v10474 = vpop.f32.mrf.mxu0
    %v10475 = vadd.f32 %v10442, %v10474
    %10476 = vmatmul.bf16.gmra.mxu0 %v6143
    %v10477 = vpop.f32.mrf.mxu0
    %v10478 = vadd.f32 %v10445, %v10477
    %v10479 = vpop.f32.mrf.mxu0
    %v10480 = vadd.f32 %v10447, %v10479
    %10481 = vmatmul.bf16.gmra.mxu0 %v6151
    %v10482 = vpop.f32.mrf.mxu0
    %v10483 = vadd.f32 %v10450, %v10482
    %v10484 = vpop.f32.mrf.mxu0
    %v10485 = vadd.f32 %v10452, %v10484
    %10486 = vmatmul.bf16.gmra.mxu0 %v6159
    %v10487 = vpop.f32.mrf.mxu0
    %v10488 = vadd.f32 %v10455, %v10487
    %v10489 = vpop.f32.mrf.mxu0
    %v10490 = vadd.f32 %v10457, %v10489
    %10491 = vmatmul.bf16.gmra.mxu0 %v6167
    %v10492 = vpop.f32.mrf.mxu0
    %v10493 = vadd.f32 %v10460, %v10492
    %v10494 = vpop.f32.mrf.mxu0
    %10495 = vdwg.mxu0
    %10496 = vmatpush.bf16.msra.mxu0 %v8662
    %10497 = vmatpush.bf16.msra.mxu0 %v8654
    %10498 = vmatpush.bf16.msra.mxu0 %v8646
    %10499 = vmatpush.bf16.msra.mxu0 %v8638
    %10500 = vmatpush.bf16.msra.mxu0 %v8630
    %10501 = vmatpush.bf16.msra.mxu0 %v8622
    %10502 = vmatpush.bf16.msra.mxu0 %v8614
    %10503 = vmatpush.bf16.msra.mxu0 %v8606
    %10504 = vmatmul.bf16.gmra.mxu0 %v6136
    %v10505 = vpop.f32.mrf.mxu0
    %v10506 = vadd.f32 %v10473, %v10505
    %v10507 = vpop.f32.mrf.mxu0
    %v10508 = vadd.f32 %v10475, %v10507
    %10509 = vmatmul.bf16.gmra.mxu0 %v6144
    %v10510 = vpop.f32.mrf.mxu0
    %v10511 = vadd.f32 %v10478, %v10510
    %v10512 = vpop.f32.mrf.mxu0
    %v10513 = vadd.f32 %v10480, %v10512
    %10514 = vmatmul.bf16.gmra.mxu0 %v6152
    %v10515 = vpop.f32.mrf.mxu0
    %v10516 = vadd.f32 %v10483, %v10515
    %v10517 = vpop.f32.mrf.mxu0
    %v10518 = vadd.f32 %v10485, %v10517
    %10519 = vmatmul.bf16.gmra.mxu0 %v6160
    %v10520 = vpop.f32.mrf.mxu0
    %v10521 = vadd.f32 %v10488, %v10520
    %v10522 = vpop.f32.mrf.mxu0
    %v10523 = vadd.f32 %v10490, %v10522
    %10524 = vmatmul.bf16.gmra.mxu0 %v6168
    %v10525 = vpop.f32.mrf.mxu0
    %v10526 = vadd.f32 %v10493, %v10525
    %v10527 = vpop.f32.mrf.mxu0
    %10528 = vdwg.mxu0
    %10529 = vmatpush.bf16.msra.mxu0 %v8726
    %10530 = vmatpush.bf16.msra.mxu0 %v8718
    %10531 = vmatpush.bf16.msra.mxu0 %v8710
    %10532 = vmatpush.bf16.msra.mxu0 %v8702
    %10533 = vmatpush.bf16.msra.mxu0 %v8694
    %10534 = vmatpush.bf16.msra.mxu0 %v8686
    %10535 = vmatpush.bf16.msra.mxu0 %v8678
    %10536 = vmatpush.bf16.msra.mxu0 %v8670
    %10537 = vmatmul.bf16.gmra.mxu0 %v6137
    %v10538 = vpop.f32.mrf.mxu0
    %v10539 = vadd.f32 %v10506, %v10538
    %v10540 = vpop.f32.mrf.mxu0
    %v10541 = vadd.f32 %v10508, %v10540
    %10542 = vmatmul.bf16.gmra.mxu0 %v6145
    %v10543 = vpop.f32.mrf.mxu0
    %v10544 = vadd.f32 %v10511, %v10543
    %v10545 = vpop.f32.mrf.mxu0
    %v10546 = vadd.f32 %v10513, %v10545
    %10547 = vmatmul.bf16.gmra.mxu0 %v6153
    %v10548 = vpop.f32.mrf.mxu0
    %v10549 = vadd.f32 %v10516, %v10548
    %v10550 = vpop.f32.mrf.mxu0
    %v10551 = vadd.f32 %v10518, %v10550
    %10552 = vmatmul.bf16.gmra.mxu0 %v6161
    %v10553 = vpop.f32.mrf.mxu0
    %v10554 = vadd.f32 %v10521, %v10553
    %v10555 = vpop.f32.mrf.mxu0
    %v10556 = vadd.f32 %v10523, %v10555
    %10557 = vmatmul.bf16.gmra.mxu0 %v6169
    %v10558 = vpop.f32.mrf.mxu0
    %v10559 = vadd.f32 %v10526, %v10558
    %v10560 = vpop.f32.mrf.mxu0
    %10561 = vdwg.mxu0
    %10562 = vmatpush.bf16.msra.mxu0 %v8279
    %10563 = vmatpush.bf16.msra.mxu0 %v8271
    %10564 = vmatpush.bf16.msra.mxu0 %v8263
    %10565 = vmatpush.bf16.msra.mxu0 %v8255
    %10566 = vmatpush.bf16.msra.mxu0 %v8247
    %10567 = vmatpush.bf16.msra.mxu0 %v8239
    %10568 = vmatpush.bf16.msra.mxu0 %v8231
    %10569 = vmatpush.bf16.msra.mxu0 %v8223
    %10570 = vmatmul.bf16.gmra.mxu0 %v6130
    %v10571 = vpop.f32.mrf.mxu0
    %v10572 = vadd.f32 0.0, %v10571
    %v10573 = vpop.f32.mrf.mxu0
    %v10574 = vadd.f32 0.0, %v10573
    %10575 = vmatmul.bf16.gmra.mxu0 %v6138
    %v10576 = vpop.f32.mrf.mxu0
    %v10577 = vadd.f32 0.0, %v10576
    %v10578 = vpop.f32.mrf.mxu0
    %v10579 = vadd.f32 0.0, %v10578
    %10580 = vmatmul.bf16.gmra.mxu0 %v6146
    %v10581 = vpop.f32.mrf.mxu0
    %v10582 = vadd.f32 0.0, %v10581
    %v10583 = vpop.f32.mrf.mxu0
    %v10584 = vadd.f32 0.0, %v10583
    %10585 = vmatmul.bf16.gmra.mxu0 %v6154
    %v10586 = vpop.f32.mrf.mxu0
    %v10587 = vadd.f32 0.0, %v10586
    %v10588 = vpop.f32.mrf.mxu0
    %v10589 = vadd.f32 0.0, %v10588
    %10590 = vmatmul.bf16.gmra.mxu0 %v6162
    %v10591 = vpop.f32.mrf.mxu0
    %v10592 = vadd.f32 0.0, %v10591
    %v10593 = vpop.f32.mrf.mxu0
    %10594 = vdwg.mxu0
    %10595 = vmatpush.bf16.msra.mxu0 %v8343
    %10596 = vmatpush.bf16.msra.mxu0 %v8335
    %10597 = vmatpush.bf16.msra.mxu0 %v8327
    %10598 = vmatpush.bf16.msra.mxu0 %v8319
    %10599 = vmatpush.bf16.msra.mxu0 %v8311
    %10600 = vmatpush.bf16.msra.mxu0 %v8303
    %10601 = vmatpush.bf16.msra.mxu0 %v8295
    %10602 = vmatpush.bf16.msra.mxu0 %v8287
    %10603 = vmatmul.bf16.gmra.mxu0 %v6131
    %v10604 = vpop.f32.mrf.mxu0
    %v10605 = vadd.f32 %v10572, %v10604
    %v10606 = vpop.f32.mrf.mxu0
    %v10607 = vadd.f32 %v10574, %v10606
    %10608 = vmatmul.bf16.gmra.mxu0 %v6139
    %v10609 = vpop.f32.mrf.mxu0
    %v10610 = vadd.f32 %v10577, %v10609
    %v10611 = vpop.f32.mrf.mxu0
    %v10612 = vadd.f32 %v10579, %v10611
    %10613 = vmatmul.bf16.gmra.mxu0 %v6147
    %v10614 = vpop.f32.mrf.mxu0
    %v10615 = vadd.f32 %v10582, %v10614
    %v10616 = vpop.f32.mrf.mxu0
    %v10617 = vadd.f32 %v10584, %v10616
    %10618 = vmatmul.bf16.gmra.mxu0 %v6155
    %v10619 = vpop.f32.mrf.mxu0
    %v10620 = vadd.f32 %v10587, %v10619
    %v10621 = vpop.f32.mrf.mxu0
    %v10622 = vadd.f32 %v10589, %v10621
    %10623 = vmatmul.bf16.gmra.mxu0 %v6163
    %v10624 = vpop.f32.mrf.mxu0
    %v10625 = vadd.f32 %v10592, %v10624
    %v10626 = vpop.f32.mrf.mxu0
    %10627 = vdwg.mxu0
    %10628 = vmatpush.bf16.msra.mxu0 %v8407
    %10629 = vmatpush.bf16.msra.mxu0 %v8399
    %10630 = vmatpush.bf16.msra.mxu0 %v8391
    %10631 = vmatpush.bf16.msra.mxu0 %v8383
    %10632 = vmatpush.bf16.msra.mxu0 %v8375
    %10633 = vmatpush.bf16.msra.mxu0 %v8367
    %10634 = vmatpush.bf16.msra.mxu0 %v8359
    %10635 = vmatpush.bf16.msra.mxu0 %v8351
    %10636 = vmatmul.bf16.gmra.mxu0 %v6132
    %v10637 = vpop.f32.mrf.mxu0
    %v10638 = vadd.f32 %v10605, %v10637
    %v10639 = vpop.f32.mrf.mxu0
    %v10640 = vadd.f32 %v10607, %v10639
    %10641 = vmatmul.bf16.gmra.mxu0 %v6140
    %v10642 = vpop.f32.mrf.mxu0
    %v10643 = vadd.f32 %v10610, %v10642
    %v10644 = vpop.f32.mrf.mxu0
    %v10645 = vadd.f32 %v10612, %v10644
    %10646 = vmatmul.bf16.gmra.mxu0 %v6148
    %v10647 = vpop.f32.mrf.mxu0
    %v10648 = vadd.f32 %v10615, %v10647
    %v10649 = vpop.f32.mrf.mxu0
    %v10650 = vadd.f32 %v10617, %v10649
    %10651 = vmatmul.bf16.gmra.mxu0 %v6156
    %v10652 = vpop.f32.mrf.mxu0
    %v10653 = vadd.f32 %v10620, %v10652
    %v10654 = vpop.f32.mrf.mxu0
    %v10655 = vadd.f32 %v10622, %v10654
    %10656 = vmatmul.bf16.gmra.mxu0 %v6164
    %v10657 = vpop.f32.mrf.mxu0
    %v10658 = vadd.f32 %v10625, %v10657
    %v10659 = vpop.f32.mrf.mxu0
    %10660 = vdwg.mxu0
    %10661 = vmatpush.bf16.msra.mxu0 %v8471
    %10662 = vmatpush.bf16.msra.mxu0 %v8463
    %10663 = vmatpush.bf16.msra.mxu0 %v8455
    %10664 = vmatpush.bf16.msra.mxu0 %v8447
    %10665 = vmatpush.bf16.msra.mxu0 %v8439
    %10666 = vmatpush.bf16.msra.mxu0 %v8431
    %10667 = vmatpush.bf16.msra.mxu0 %v8423
    %10668 = vmatpush.bf16.msra.mxu0 %v8415
    %10669 = vmatmul.bf16.gmra.mxu0 %v6133
    %v10670 = vpop.f32.mrf.mxu0
    %v10671 = vadd.f32 %v10638, %v10670
    %v10672 = vpop.f32.mrf.mxu0
    %v10673 = vadd.f32 %v10640, %v10672
    %10674 = vmatmul.bf16.gmra.mxu0 %v6141
    %v10675 = vpop.f32.mrf.mxu0
    %v10676 = vadd.f32 %v10643, %v10675
    %v10677 = vpop.f32.mrf.mxu0
    %v10678 = vadd.f32 %v10645, %v10677
    %10679 = vmatmul.bf16.gmra.mxu0 %v6149
    %v10680 = vpop.f32.mrf.mxu0
    %v10681 = vadd.f32 %v10648, %v10680
    %v10682 = vpop.f32.mrf.mxu0
    %v10683 = vadd.f32 %v10650, %v10682
    %10684 = vmatmul.bf16.gmra.mxu0 %v6157
    %v10685 = vpop.f32.mrf.mxu0
    %v10686 = vadd.f32 %v10653, %v10685
    %v10687 = vpop.f32.mrf.mxu0
    %v10688 = vadd.f32 %v10655, %v10687
    %10689 = vmatmul.bf16.gmra.mxu0 %v6165
    %v10690 = vpop.f32.mrf.mxu0
    %v10691 = vadd.f32 %v10658, %v10690
    %v10692 = vpop.f32.mrf.mxu0
    %10693 = vdwg.mxu0
    %10694 = vmatpush.bf16.msra.mxu0 %v8535
    %10695 = vmatpush.bf16.msra.mxu0 %v8527
    %10696 = vmatpush.bf16.msra.mxu0 %v8519
    %10697 = vmatpush.bf16.msra.mxu0 %v8511
    %10698 = vmatpush.bf16.msra.mxu0 %v8503
    %10699 = vmatpush.bf16.msra.mxu0 %v8495
    %10700 = vmatpush.bf16.msra.mxu0 %v8487
    %10701 = vmatpush.bf16.msra.mxu0 %v8479
    %10702 = vmatmul.bf16.gmra.mxu0 %v6134
    %v10703 = vpop.f32.mrf.mxu0
    %v10704 = vadd.f32 %v10671, %v10703
    %v10705 = vpop.f32.mrf.mxu0
    %v10706 = vadd.f32 %v10673, %v10705
    %10707 = vmatmul.bf16.gmra.mxu0 %v6142
    %v10708 = vpop.f32.mrf.mxu0
    %v10709 = vadd.f32 %v10676, %v10708
    %v10710 = vpop.f32.mrf.mxu0
    %v10711 = vadd.f32 %v10678, %v10710
    %10712 = vmatmul.bf16.gmra.mxu0 %v6150
    %v10713 = vpop.f32.mrf.mxu0
    %v10714 = vadd.f32 %v10681, %v10713
    %v10715 = vpop.f32.mrf.mxu0
    %v10716 = vadd.f32 %v10683, %v10715
    %10717 = vmatmul.bf16.gmra.mxu0 %v6158
    %v10718 = vpop.f32.mrf.mxu0
    %v10719 = vadd.f32 %v10686, %v10718
    %v10720 = vpop.f32.mrf.mxu0
    %v10721 = vadd.f32 %v10688, %v10720
    %10722 = vmatmul.bf16.gmra.mxu0 %v6166
    %v10723 = vpop.f32.mrf.mxu0
    %v10724 = vadd.f32 %v10691, %v10723
    %v10725 = vpop.f32.mrf.mxu0
    %10726 = vdwg.mxu0
    %10727 = vmatpush.bf16.msra.mxu0 %v8599
    %10728 = vmatpush.bf16.msra.mxu0 %v8591
    %10729 = vmatpush.bf16.msra.mxu0 %v8583
    %10730 = vmatpush.bf16.msra.mxu0 %v8575
    %10731 = vmatpush.bf16.msra.mxu0 %v8567
    %10732 = vmatpush.bf16.msra.mxu0 %v8559
    %10733 = vmatpush.bf16.msra.mxu0 %v8551
    %10734 = vmatpush.bf16.msra.mxu0 %v8543
    %10735 = vmatmul.bf16.gmra.mxu0 %v6135
    %v10736 = vpop.f32.mrf.mxu0
    %v10737 = vadd.f32 %v10704, %v10736
    %v10738 = vpop.f32.mrf.mxu0
    %v10739 = vadd.f32 %v10706, %v10738
    %10740 = vmatmul.bf16.gmra.mxu0 %v6143
    %v10741 = vpop.f32.mrf.mxu0
    %v10742 = vadd.f32 %v10709, %v10741
    %v10743 = vpop.f32.mrf.mxu0
    %v10744 = vadd.f32 %v10711, %v10743
    %10745 = vmatmul.bf16.gmra.mxu0 %v6151
    %v10746 = vpop.f32.mrf.mxu0
    %v10747 = vadd.f32 %v10714, %v10746
    %v10748 = vpop.f32.mrf.mxu0
    %v10749 = vadd.f32 %v10716, %v10748
    %10750 = vmatmul.bf16.gmra.mxu0 %v6159
    %v10751 = vpop.f32.mrf.mxu0
    %v10752 = vadd.f32 %v10719, %v10751
    %v10753 = vpop.f32.mrf.mxu0
    %v10754 = vadd.f32 %v10721, %v10753
    %10755 = vmatmul.bf16.gmra.mxu0 %v6167
    %v10756 = vpop.f32.mrf.mxu0
    %v10757 = vadd.f32 %v10724, %v10756
    %v10758 = vpop.f32.mrf.mxu0
    %10759 = vdwg.mxu0
    %10760 = vmatpush.bf16.msra.mxu0 %v8663
    %10761 = vmatpush.bf16.msra.mxu0 %v8655
    %10762 = vmatpush.bf16.msra.mxu0 %v8647
    %10763 = vmatpush.bf16.msra.mxu0 %v8639
    %10764 = vmatpush.bf16.msra.mxu0 %v8631
    %10765 = vmatpush.bf16.msra.mxu0 %v8623
    %10766 = vmatpush.bf16.msra.mxu0 %v8615
    %10767 = vmatpush.bf16.msra.mxu0 %v8607
    %10768 = vmatmul.bf16.gmra.mxu0 %v6136
    %v10769 = vpop.f32.mrf.mxu0
    %v10770 = vadd.f32 %v10737, %v10769
    %v10771 = vpop.f32.mrf.mxu0
    %v10772 = vadd.f32 %v10739, %v10771
    %10773 = vmatmul.bf16.gmra.mxu0 %v6144
    %v10774 = vpop.f32.mrf.mxu0
    %v10775 = vadd.f32 %v10742, %v10774
    %v10776 = vpop.f32.mrf.mxu0
    %v10777 = vadd.f32 %v10744, %v10776
    %10778 = vmatmul.bf16.gmra.mxu0 %v6152
    %v10779 = vpop.f32.mrf.mxu0
    %v10780 = vadd.f32 %v10747, %v10779
    %v10781 = vpop.f32.mrf.mxu0
    %v10782 = vadd.f32 %v10749, %v10781
    %10783 = vmatmul.bf16.gmra.mxu0 %v6160
    %v10784 = vpop.f32.mrf.mxu0
    %v10785 = vadd.f32 %v10752, %v10784
    %v10786 = vpop.f32.mrf.mxu0
    %v10787 = vadd.f32 %v10754, %v10786
    %10788 = vmatmul.bf16.gmra.mxu0 %v6168
    %v10789 = vpop.f32.mrf.mxu0
    %v10790 = vadd.f32 %v10757, %v10789
    %v10791 = vpop.f32.mrf.mxu0
    %10792 = vdwg.mxu0
    %10793 = vmatpush.bf16.msra.mxu0 %v8727
    %10794 = vmatpush.bf16.msra.mxu0 %v8719
    %10795 = vmatpush.bf16.msra.mxu0 %v8711
    %10796 = vmatpush.bf16.msra.mxu0 %v8703
    %10797 = vmatpush.bf16.msra.mxu0 %v8695
    %10798 = vmatpush.bf16.msra.mxu0 %v8687
    %10799 = vmatpush.bf16.msra.mxu0 %v8679
    %10800 = vmatpush.bf16.msra.mxu0 %v8671
    %10801 = vmatmul.bf16.gmra.mxu0 %v6137
    %v10802 = vpop.f32.mrf.mxu0
    %v10803 = vadd.f32 %v10770, %v10802
    %v10804 = vpop.f32.mrf.mxu0
    %v10805 = vadd.f32 %v10772, %v10804
    %10806 = vmatmul.bf16.gmra.mxu0 %v6145
    %v10807 = vpop.f32.mrf.mxu0
    %v10808 = vadd.f32 %v10775, %v10807
    %v10809 = vpop.f32.mrf.mxu0
    %v10810 = vadd.f32 %v10777, %v10809
    %10811 = vmatmul.bf16.gmra.mxu0 %v6153
    %v10812 = vpop.f32.mrf.mxu0
    %v10813 = vadd.f32 %v10780, %v10812
    %v10814 = vpop.f32.mrf.mxu0
    %v10815 = vadd.f32 %v10782, %v10814
    %10816 = vmatmul.bf16.gmra.mxu0 %v6161
    %v10817 = vpop.f32.mrf.mxu0
    %v10818 = vadd.f32 %v10785, %v10817
    %v10819 = vpop.f32.mrf.mxu0
    %v10820 = vadd.f32 %v10787, %v10819
    %10821 = vmatmul.bf16.gmra.mxu0 %v6169
    %v10822 = vpop.f32.mrf.mxu0
    %v10823 = vadd.f32 %v10790, %v10822
    %v10824 = vpop.f32.mrf.mxu0
    %10825 = vdwg.mxu0
    %10826 = vmatpush.bf16.msra.mxu0 %v8280
    %10827 = vmatpush.bf16.msra.mxu0 %v8272
    %10828 = vmatpush.bf16.msra.mxu0 %v8264
    %10829 = vmatpush.bf16.msra.mxu0 %v8256
    %10830 = vmatpush.bf16.msra.mxu0 %v8248
    %10831 = vmatpush.bf16.msra.mxu0 %v8240
    %10832 = vmatpush.bf16.msra.mxu0 %v8232
    %10833 = vmatpush.bf16.msra.mxu0 %v8224
    %10834 = vmatmul.bf16.gmra.mxu0 %v6130
    %v10835 = vpop.f32.mrf.mxu0
    %v10836 = vadd.f32 0.0, %v10835
    %v10837 = vpop.f32.mrf.mxu0
    %v10838 = vadd.f32 0.0, %v10837
    %10839 = vmatmul.bf16.gmra.mxu0 %v6138
    %v10840 = vpop.f32.mrf.mxu0
    %v10841 = vadd.f32 0.0, %v10840
    %v10842 = vpop.f32.mrf.mxu0
    %v10843 = vadd.f32 0.0, %v10842
    %10844 = vmatmul.bf16.gmra.mxu0 %v6146
    %v10845 = vpop.f32.mrf.mxu0
    %v10846 = vadd.f32 0.0, %v10845
    %v10847 = vpop.f32.mrf.mxu0
    %v10848 = vadd.f32 0.0, %v10847
    %10849 = vmatmul.bf16.gmra.mxu0 %v6154
    %v10850 = vpop.f32.mrf.mxu0
    %v10851 = vadd.f32 0.0, %v10850
    %v10852 = vpop.f32.mrf.mxu0
    %v10853 = vadd.f32 0.0, %v10852
    %10854 = vmatmul.bf16.gmra.mxu0 %v6162
    %v10855 = vpop.f32.mrf.mxu0
    %v10856 = vadd.f32 0.0, %v10855
    %v10857 = vpop.f32.mrf.mxu0
    %10858 = vdwg.mxu0
    %10859 = vmatpush.bf16.msra.mxu0 %v8344
    %10860 = vmatpush.bf16.msra.mxu0 %v8336
    %10861 = vmatpush.bf16.msra.mxu0 %v8328
    %10862 = vmatpush.bf16.msra.mxu0 %v8320
    %10863 = vmatpush.bf16.msra.mxu0 %v8312
    %10864 = vmatpush.bf16.msra.mxu0 %v8304
    %10865 = vmatpush.bf16.msra.mxu0 %v8296
    %10866 = vmatpush.bf16.msra.mxu0 %v8288
    %10867 = vmatmul.bf16.gmra.mxu0 %v6131
    %v10868 = vpop.f32.mrf.mxu0
    %v10869 = vadd.f32 %v10836, %v10868
    %v10870 = vpop.f32.mrf.mxu0
    %v10871 = vadd.f32 %v10838, %v10870
    %10872 = vmatmul.bf16.gmra.mxu0 %v6139
    %v10873 = vpop.f32.mrf.mxu0
    %v10874 = vadd.f32 %v10841, %v10873
    %v10875 = vpop.f32.mrf.mxu0
    %v10876 = vadd.f32 %v10843, %v10875
    %10877 = vmatmul.bf16.gmra.mxu0 %v6147
    %v10878 = vpop.f32.mrf.mxu0
    %v10879 = vadd.f32 %v10846, %v10878
    %v10880 = vpop.f32.mrf.mxu0
    %v10881 = vadd.f32 %v10848, %v10880
    %10882 = vmatmul.bf16.gmra.mxu0 %v6155
    %v10883 = vpop.f32.mrf.mxu0
    %v10884 = vadd.f32 %v10851, %v10883
    %v10885 = vpop.f32.mrf.mxu0
    %v10886 = vadd.f32 %v10853, %v10885
    %10887 = vmatmul.bf16.gmra.mxu0 %v6163
    %v10888 = vpop.f32.mrf.mxu0
    %v10889 = vadd.f32 %v10856, %v10888
    %v10890 = vpop.f32.mrf.mxu0
    %10891 = vdwg.mxu0
    %10892 = vmatpush.bf16.msra.mxu0 %v8408
    %10893 = vmatpush.bf16.msra.mxu0 %v8400
    %10894 = vmatpush.bf16.msra.mxu0 %v8392
    %10895 = vmatpush.bf16.msra.mxu0 %v8384
    %10896 = vmatpush.bf16.msra.mxu0 %v8376
    %10897 = vmatpush.bf16.msra.mxu0 %v8368
    %10898 = vmatpush.bf16.msra.mxu0 %v8360
    %10899 = vmatpush.bf16.msra.mxu0 %v8352
    %10900 = vmatmul.bf16.gmra.mxu0 %v6132
    %v10901 = vpop.f32.mrf.mxu0
    %v10902 = vadd.f32 %v10869, %v10901
    %v10903 = vpop.f32.mrf.mxu0
    %v10904 = vadd.f32 %v10871, %v10903
    %10905 = vmatmul.bf16.gmra.mxu0 %v6140
    %v10906 = vpop.f32.mrf.mxu0
    %v10907 = vadd.f32 %v10874, %v10906
    %v10908 = vpop.f32.mrf.mxu0
    %v10909 = vadd.f32 %v10876, %v10908
    %10910 = vmatmul.bf16.gmra.mxu0 %v6148
    %v10911 = vpop.f32.mrf.mxu0
    %v10912 = vadd.f32 %v10879, %v10911
    %v10913 = vpop.f32.mrf.mxu0
    %v10914 = vadd.f32 %v10881, %v10913
    %10915 = vmatmul.bf16.gmra.mxu0 %v6156
    %v10916 = vpop.f32.mrf.mxu0
    %v10917 = vadd.f32 %v10884, %v10916
    %v10918 = vpop.f32.mrf.mxu0
    %v10919 = vadd.f32 %v10886, %v10918
    %10920 = vmatmul.bf16.gmra.mxu0 %v6164
    %v10921 = vpop.f32.mrf.mxu0
    %v10922 = vadd.f32 %v10889, %v10921
    %v10923 = vpop.f32.mrf.mxu0
    %10924 = vdwg.mxu0
    %10925 = vmatpush.bf16.msra.mxu0 %v8472
    %10926 = vmatpush.bf16.msra.mxu0 %v8464
    %10927 = vmatpush.bf16.msra.mxu0 %v8456
    %10928 = vmatpush.bf16.msra.mxu0 %v8448
    %10929 = vmatpush.bf16.msra.mxu0 %v8440
    %10930 = vmatpush.bf16.msra.mxu0 %v8432
    %10931 = vmatpush.bf16.msra.mxu0 %v8424
    %10932 = vmatpush.bf16.msra.mxu0 %v8416
    %10933 = vmatmul.bf16.gmra.mxu0 %v6133
    %v10934 = vpop.f32.mrf.mxu0
    %v10935 = vadd.f32 %v10902, %v10934
    %v10936 = vpop.f32.mrf.mxu0
    %v10937 = vadd.f32 %v10904, %v10936
    %10938 = vmatmul.bf16.gmra.mxu0 %v6141
    %v10939 = vpop.f32.mrf.mxu0
    %v10940 = vadd.f32 %v10907, %v10939
    %v10941 = vpop.f32.mrf.mxu0
    %v10942 = vadd.f32 %v10909, %v10941
    %10943 = vmatmul.bf16.gmra.mxu0 %v6149
    %v10944 = vpop.f32.mrf.mxu0
    %v10945 = vadd.f32 %v10912, %v10944
    %v10946 = vpop.f32.mrf.mxu0
    %v10947 = vadd.f32 %v10914, %v10946
    %10948 = vmatmul.bf16.gmra.mxu0 %v6157
    %v10949 = vpop.f32.mrf.mxu0
    %v10950 = vadd.f32 %v10917, %v10949
    %v10951 = vpop.f32.mrf.mxu0
    %v10952 = vadd.f32 %v10919, %v10951
    %10953 = vmatmul.bf16.gmra.mxu0 %v6165
    %v10954 = vpop.f32.mrf.mxu0
    %v10955 = vadd.f32 %v10922, %v10954
    %v10956 = vpop.f32.mrf.mxu0
    %10957 = vdwg.mxu0
    %10958 = vmatpush.bf16.msra.mxu0 %v8536
    %10959 = vmatpush.bf16.msra.mxu0 %v8528
    %10960 = vmatpush.bf16.msra.mxu0 %v8520
    %10961 = vmatpush.bf16.msra.mxu0 %v8512
    %10962 = vmatpush.bf16.msra.mxu0 %v8504
    %10963 = vmatpush.bf16.msra.mxu0 %v8496
    %10964 = vmatpush.bf16.msra.mxu0 %v8488
    %10965 = vmatpush.bf16.msra.mxu0 %v8480
    %10966 = vmatmul.bf16.gmra.mxu0 %v6134
    %v10967 = vpop.f32.mrf.mxu0
    %v10968 = vadd.f32 %v10935, %v10967
    %v10969 = vpop.f32.mrf.mxu0
    %v10970 = vadd.f32 %v10937, %v10969
    %10971 = vmatmul.bf16.gmra.mxu0 %v6142
    %v10972 = vpop.f32.mrf.mxu0
    %v10973 = vadd.f32 %v10940, %v10972
    %v10974 = vpop.f32.mrf.mxu0
    %v10975 = vadd.f32 %v10942, %v10974
    %10976 = vmatmul.bf16.gmra.mxu0 %v6150
    %v10977 = vpop.f32.mrf.mxu0
    %v10978 = vadd.f32 %v10945, %v10977
    %v10979 = vpop.f32.mrf.mxu0
    %v10980 = vadd.f32 %v10947, %v10979
    %10981 = vmatmul.bf16.gmra.mxu0 %v6158
    %v10982 = vpop.f32.mrf.mxu0
    %v10983 = vadd.f32 %v10950, %v10982
    %v10984 = vpop.f32.mrf.mxu0
    %v10985 = vadd.f32 %v10952, %v10984
    %10986 = vmatmul.bf16.gmra.mxu0 %v6166
    %v10987 = vpop.f32.mrf.mxu0
    %v10988 = vadd.f32 %v10955, %v10987
    %v10989 = vpop.f32.mrf.mxu0
    %10990 = vdwg.mxu0
    %10991 = vmatpush.bf16.msra.mxu0 %v8600
    %10992 = vmatpush.bf16.msra.mxu0 %v8592
    %10993 = vmatpush.bf16.msra.mxu0 %v8584
    %10994 = vmatpush.bf16.msra.mxu0 %v8576
    %10995 = vmatpush.bf16.msra.mxu0 %v8568
    %10996 = vmatpush.bf16.msra.mxu0 %v8560
    %10997 = vmatpush.bf16.msra.mxu0 %v8552
    %10998 = vmatpush.bf16.msra.mxu0 %v8544
    %10999 = vmatmul.bf16.gmra.mxu0 %v6135
    %v11000 = vpop.f32.mrf.mxu0
    %v11001 = vadd.f32 %v10968, %v11000
    %v11002 = vpop.f32.mrf.mxu0
    %v11003 = vadd.f32 %v10970, %v11002
    %11004 = vmatmul.bf16.gmra.mxu0 %v6143
    %v11005 = vpop.f32.mrf.mxu0
    %v11006 = vadd.f32 %v10973, %v11005
    %v11007 = vpop.f32.mrf.mxu0
    %v11008 = vadd.f32 %v10975, %v11007
    %11009 = vmatmul.bf16.gmra.mxu0 %v6151
    %v11010 = vpop.f32.mrf.mxu0
    %v11011 = vadd.f32 %v10978, %v11010
    %v11012 = vpop.f32.mrf.mxu0
    %v11013 = vadd.f32 %v10980, %v11012
    %11014 = vmatmul.bf16.gmra.mxu0 %v6159
    %v11015 = vpop.f32.mrf.mxu0
    %v11016 = vadd.f32 %v10983, %v11015
    %v11017 = vpop.f32.mrf.mxu0
    %v11018 = vadd.f32 %v10985, %v11017
    %11019 = vmatmul.bf16.gmra.mxu0 %v6167
    %v11020 = vpop.f32.mrf.mxu0
    %v11021 = vadd.f32 %v10988, %v11020
    %v11022 = vpop.f32.mrf.mxu0
    %11023 = vdwg.mxu0
    %11024 = vmatpush.bf16.msra.mxu0 %v8664
    %11025 = vmatpush.bf16.msra.mxu0 %v8656
    %11026 = vmatpush.bf16.msra.mxu0 %v8648
    %11027 = vmatpush.bf16.msra.mxu0 %v8640
    %11028 = vmatpush.bf16.msra.mxu0 %v8632
    %11029 = vmatpush.bf16.msra.mxu0 %v8624
    %11030 = vmatpush.bf16.msra.mxu0 %v8616
    %11031 = vmatpush.bf16.msra.mxu0 %v8608
    %11032 = vmatmul.bf16.gmra.mxu0 %v6136
    %v11033 = vpop.f32.mrf.mxu0
    %v11034 = vadd.f32 %v11001, %v11033
    %v11035 = vpop.f32.mrf.mxu0
    %v11036 = vadd.f32 %v11003, %v11035
    %11037 = vmatmul.bf16.gmra.mxu0 %v6144
    %v11038 = vpop.f32.mrf.mxu0
    %v11039 = vadd.f32 %v11006, %v11038
    %v11040 = vpop.f32.mrf.mxu0
    %v11041 = vadd.f32 %v11008, %v11040
    %11042 = vmatmul.bf16.gmra.mxu0 %v6152
    %v11043 = vpop.f32.mrf.mxu0
    %v11044 = vadd.f32 %v11011, %v11043
    %v11045 = vpop.f32.mrf.mxu0
    %v11046 = vadd.f32 %v11013, %v11045
    %11047 = vmatmul.bf16.gmra.mxu0 %v6160
    %v11048 = vpop.f32.mrf.mxu0
    %v11049 = vadd.f32 %v11016, %v11048
    %v11050 = vpop.f32.mrf.mxu0
    %v11051 = vadd.f32 %v11018, %v11050
    %11052 = vmatmul.bf16.gmra.mxu0 %v6168
    %v11053 = vpop.f32.mrf.mxu0
    %v11054 = vadd.f32 %v11021, %v11053
    %v11055 = vpop.f32.mrf.mxu0
    %11056 = vdwg.mxu0
    %11057 = vmatpush.bf16.msra.mxu0 %v8728
    %11058 = vmatpush.bf16.msra.mxu0 %v8720
    %11059 = vmatpush.bf16.msra.mxu0 %v8712
    %11060 = vmatpush.bf16.msra.mxu0 %v8704
    %11061 = vmatpush.bf16.msra.mxu0 %v8696
    %11062 = vmatpush.bf16.msra.mxu0 %v8688
    %11063 = vmatpush.bf16.msra.mxu0 %v8680
    %11064 = vmatpush.bf16.msra.mxu0 %v8672
    %11065 = vmatmul.bf16.gmra.mxu0 %v6137
    %v11066 = vpop.f32.mrf.mxu0
    %v11067 = vadd.f32 %v11034, %v11066
    %v11068 = vpop.f32.mrf.mxu0
    %v11069 = vadd.f32 %v11036, %v11068
    %11070 = vmatmul.bf16.gmra.mxu0 %v6145
    %v11071 = vpop.f32.mrf.mxu0
    %v11072 = vadd.f32 %v11039, %v11071
    %v11073 = vpop.f32.mrf.mxu0
    %v11074 = vadd.f32 %v11041, %v11073
    %11075 = vmatmul.bf16.gmra.mxu0 %v6153
    %v11076 = vpop.f32.mrf.mxu0
    %v11077 = vadd.f32 %v11044, %v11076
    %v11078 = vpop.f32.mrf.mxu0
    %v11079 = vadd.f32 %v11046, %v11078
    %11080 = vmatmul.bf16.gmra.mxu0 %v6161
    %v11081 = vpop.f32.mrf.mxu0
    %v11082 = vadd.f32 %v11049, %v11081
    %v11083 = vpop.f32.mrf.mxu0
    %v11084 = vadd.f32 %v11051, %v11083
    %11085 = vmatmul.bf16.gmra.mxu0 %v6169
    %v11086 = vpop.f32.mrf.mxu0
    %v11087 = vadd.f32 %v11054, %v11086
    %v11088 = vpop.f32.mrf.mxu0
    %11089 = vdwg.mxu0
    %11090 = vmatpush.bf16.msra.mxu0 %v8281
    %11091 = vmatpush.bf16.msra.mxu0 %v8273
    %11092 = vmatpush.bf16.msra.mxu0 %v8265
    %11093 = vmatpush.bf16.msra.mxu0 %v8257
    %11094 = vmatpush.bf16.msra.mxu0 %v8249
    %11095 = vmatpush.bf16.msra.mxu0 %v8241
    %11096 = vmatpush.bf16.msra.mxu0 %v8233
    %11097 = vmatpush.bf16.msra.mxu0 %v8225
    %11098 = vmatmul.bf16.gmra.mxu0 %v6130
    %v11099 = vpop.f32.mrf.mxu0
    %v11100 = vadd.f32 0.0, %v11099
    %v11101 = vpop.f32.mrf.mxu0
    %v11102 = vadd.f32 0.0, %v11101
    %11103 = vmatmul.bf16.gmra.mxu0 %v6138
    %v11104 = vpop.f32.mrf.mxu0
    %v11105 = vadd.f32 0.0, %v11104
    %v11106 = vpop.f32.mrf.mxu0
    %v11107 = vadd.f32 0.0, %v11106
    %11108 = vmatmul.bf16.gmra.mxu0 %v6146
    %v11109 = vpop.f32.mrf.mxu0
    %v11110 = vadd.f32 0.0, %v11109
    %v11111 = vpop.f32.mrf.mxu0
    %v11112 = vadd.f32 0.0, %v11111
    %11113 = vmatmul.bf16.gmra.mxu0 %v6154
    %v11114 = vpop.f32.mrf.mxu0
    %v11115 = vadd.f32 0.0, %v11114
    %v11116 = vpop.f32.mrf.mxu0
    %v11117 = vadd.f32 0.0, %v11116
    %11118 = vmatmul.bf16.gmra.mxu0 %v6162
    %v11119 = vpop.f32.mrf.mxu0
    %v11120 = vadd.f32 0.0, %v11119
    %v11121 = vpop.f32.mrf.mxu0
    %11122 = vdwg.mxu0
    %11123 = vmatpush.bf16.msra.mxu0 %v8345
    %11124 = vmatpush.bf16.msra.mxu0 %v8337
    %11125 = vmatpush.bf16.msra.mxu0 %v8329
    %11126 = vmatpush.bf16.msra.mxu0 %v8321
    %11127 = vmatpush.bf16.msra.mxu0 %v8313
    %11128 = vmatpush.bf16.msra.mxu0 %v8305
    %11129 = vmatpush.bf16.msra.mxu0 %v8297
    %11130 = vmatpush.bf16.msra.mxu0 %v8289
    %11131 = vmatmul.bf16.gmra.mxu0 %v6131
    %v11132 = vpop.f32.mrf.mxu0
    %v11133 = vadd.f32 %v11100, %v11132
    %v11134 = vpop.f32.mrf.mxu0
    %v11135 = vadd.f32 %v11102, %v11134
    %11136 = vmatmul.bf16.gmra.mxu0 %v6139
    %v11137 = vpop.f32.mrf.mxu0
    %v11138 = vadd.f32 %v11105, %v11137
    %v11139 = vpop.f32.mrf.mxu0
    %v11140 = vadd.f32 %v11107, %v11139
    %11141 = vmatmul.bf16.gmra.mxu0 %v6147
    %v11142 = vpop.f32.mrf.mxu0
    %v11143 = vadd.f32 %v11110, %v11142
    %v11144 = vpop.f32.mrf.mxu0
    %v11145 = vadd.f32 %v11112, %v11144
    %11146 = vmatmul.bf16.gmra.mxu0 %v6155
    %v11147 = vpop.f32.mrf.mxu0
    %v11148 = vadd.f32 %v11115, %v11147
    %v11149 = vpop.f32.mrf.mxu0
    %v11150 = vadd.f32 %v11117, %v11149
    %11151 = vmatmul.bf16.gmra.mxu0 %v6163
    %v11152 = vpop.f32.mrf.mxu0
    %v11153 = vadd.f32 %v11120, %v11152
    %v11154 = vpop.f32.mrf.mxu0
    %11155 = vdwg.mxu0
    %11156 = vmatpush.bf16.msra.mxu0 %v8409
    %11157 = vmatpush.bf16.msra.mxu0 %v8401
    %11158 = vmatpush.bf16.msra.mxu0 %v8393
    %11159 = vmatpush.bf16.msra.mxu0 %v8385
    %11160 = vmatpush.bf16.msra.mxu0 %v8377
    %11161 = vmatpush.bf16.msra.mxu0 %v8369
    %11162 = vmatpush.bf16.msra.mxu0 %v8361
    %11163 = vmatpush.bf16.msra.mxu0 %v8353
    %11164 = vmatmul.bf16.gmra.mxu0 %v6132
    %v11165 = vpop.f32.mrf.mxu0
    %v11166 = vadd.f32 %v11133, %v11165
    %v11167 = vpop.f32.mrf.mxu0
    %v11168 = vadd.f32 %v11135, %v11167
    %11169 = vmatmul.bf16.gmra.mxu0 %v6140
    %v11170 = vpop.f32.mrf.mxu0
    %v11171 = vadd.f32 %v11138, %v11170
    %v11172 = vpop.f32.mrf.mxu0
    %v11173 = vadd.f32 %v11140, %v11172
    %11174 = vmatmul.bf16.gmra.mxu0 %v6148
    %v11175 = vpop.f32.mrf.mxu0
    %v11176 = vadd.f32 %v11143, %v11175
    %v11177 = vpop.f32.mrf.mxu0
    %v11178 = vadd.f32 %v11145, %v11177
    %11179 = vmatmul.bf16.gmra.mxu0 %v6156
    %v11180 = vpop.f32.mrf.mxu0
    %v11181 = vadd.f32 %v11148, %v11180
    %v11182 = vpop.f32.mrf.mxu0
    %v11183 = vadd.f32 %v11150, %v11182
    %11184 = vmatmul.bf16.gmra.mxu0 %v6164
    %v11185 = vpop.f32.mrf.mxu0
    %v11186 = vadd.f32 %v11153, %v11185
    %v11187 = vpop.f32.mrf.mxu0
    %11188 = vdwg.mxu0
    %11189 = vmatpush.bf16.msra.mxu0 %v8473
    %11190 = vmatpush.bf16.msra.mxu0 %v8465
    %11191 = vmatpush.bf16.msra.mxu0 %v8457
    %11192 = vmatpush.bf16.msra.mxu0 %v8449
    %11193 = vmatpush.bf16.msra.mxu0 %v8441
    %11194 = vmatpush.bf16.msra.mxu0 %v8433
    %11195 = vmatpush.bf16.msra.mxu0 %v8425
    %11196 = vmatpush.bf16.msra.mxu0 %v8417
    %11197 = vmatmul.bf16.gmra.mxu0 %v6133
    %v11198 = vpop.f32.mrf.mxu0
    %v11199 = vadd.f32 %v11166, %v11198
    %v11200 = vpop.f32.mrf.mxu0
    %v11201 = vadd.f32 %v11168, %v11200
    %11202 = vmatmul.bf16.gmra.mxu0 %v6141
    %v11203 = vpop.f32.mrf.mxu0
    %v11204 = vadd.f32 %v11171, %v11203
    %v11205 = vpop.f32.mrf.mxu0
    %v11206 = vadd.f32 %v11173, %v11205
    %11207 = vmatmul.bf16.gmra.mxu0 %v6149
    %v11208 = vpop.f32.mrf.mxu0
    %v11209 = vadd.f32 %v11176, %v11208
    %v11210 = vpop.f32.mrf.mxu0
    %v11211 = vadd.f32 %v11178, %v11210
    %11212 = vmatmul.bf16.gmra.mxu0 %v6157
    %v11213 = vpop.f32.mrf.mxu0
    %v11214 = vadd.f32 %v11181, %v11213
    %v11215 = vpop.f32.mrf.mxu0
    %v11216 = vadd.f32 %v11183, %v11215
    %11217 = vmatmul.bf16.gmra.mxu0 %v6165
    %v11218 = vpop.f32.mrf.mxu0
    %v11219 = vadd.f32 %v11186, %v11218
    %v11220 = vpop.f32.mrf.mxu0
    %11221 = vdwg.mxu0
    %11222 = vmatpush.bf16.msra.mxu0 %v8537
    %11223 = vmatpush.bf16.msra.mxu0 %v8529
    %11224 = vmatpush.bf16.msra.mxu0 %v8521
    %11225 = vmatpush.bf16.msra.mxu0 %v8513
    %11226 = vmatpush.bf16.msra.mxu0 %v8505
    %11227 = vmatpush.bf16.msra.mxu0 %v8497
    %11228 = vmatpush.bf16.msra.mxu0 %v8489
    %11229 = vmatpush.bf16.msra.mxu0 %v8481
    %11230 = vmatmul.bf16.gmra.mxu0 %v6134
    %v11231 = vpop.f32.mrf.mxu0
    %v11232 = vadd.f32 %v11199, %v11231
    %v11233 = vpop.f32.mrf.mxu0
    %v11234 = vadd.f32 %v11201, %v11233
    %11235 = vmatmul.bf16.gmra.mxu0 %v6142
    %v11236 = vpop.f32.mrf.mxu0
    %v11237 = vadd.f32 %v11204, %v11236
    %v11238 = vpop.f32.mrf.mxu0
    %v11239 = vadd.f32 %v11206, %v11238
    %11240 = vmatmul.bf16.gmra.mxu0 %v6150
    %v11241 = vpop.f32.mrf.mxu0
    %v11242 = vadd.f32 %v11209, %v11241
    %v11243 = vpop.f32.mrf.mxu0
    %v11244 = vadd.f32 %v11211, %v11243
    %11245 = vmatmul.bf16.gmra.mxu0 %v6158
    %v11246 = vpop.f32.mrf.mxu0
    %v11247 = vadd.f32 %v11214, %v11246
    %v11248 = vpop.f32.mrf.mxu0
    %v11249 = vadd.f32 %v11216, %v11248
    %11250 = vmatmul.bf16.gmra.mxu0 %v6166
    %v11251 = vpop.f32.mrf.mxu0
    %v11252 = vadd.f32 %v11219, %v11251
    %v11253 = vpop.f32.mrf.mxu0
    %11254 = vdwg.mxu0
    %11255 = vmatpush.bf16.msra.mxu0 %v8601
    %11256 = vmatpush.bf16.msra.mxu0 %v8593
    %11257 = vmatpush.bf16.msra.mxu0 %v8585
    %11258 = vmatpush.bf16.msra.mxu0 %v8577
    %11259 = vmatpush.bf16.msra.mxu0 %v8569
    %11260 = vmatpush.bf16.msra.mxu0 %v8561
    %11261 = vmatpush.bf16.msra.mxu0 %v8553
    %11262 = vmatpush.bf16.msra.mxu0 %v8545
    %11263 = vmatmul.bf16.gmra.mxu0 %v6135
    %v11264 = vpop.f32.mrf.mxu0
    %v11265 = vadd.f32 %v11232, %v11264
    %v11266 = vpop.f32.mrf.mxu0
    %v11267 = vadd.f32 %v11234, %v11266
    %11268 = vmatmul.bf16.gmra.mxu0 %v6143
    %v11269 = vpop.f32.mrf.mxu0
    %v11270 = vadd.f32 %v11237, %v11269
    %v11271 = vpop.f32.mrf.mxu0
    %v11272 = vadd.f32 %v11239, %v11271
    %11273 = vmatmul.bf16.gmra.mxu0 %v6151
    %v11274 = vpop.f32.mrf.mxu0
    %v11275 = vadd.f32 %v11242, %v11274
    %v11276 = vpop.f32.mrf.mxu0
    %v11277 = vadd.f32 %v11244, %v11276
    %11278 = vmatmul.bf16.gmra.mxu0 %v6159
    %v11279 = vpop.f32.mrf.mxu0
    %v11280 = vadd.f32 %v11247, %v11279
    %v11281 = vpop.f32.mrf.mxu0
    %v11282 = vadd.f32 %v11249, %v11281
    %11283 = vmatmul.bf16.gmra.mxu0 %v6167
    %v11284 = vpop.f32.mrf.mxu0
    %v11285 = vadd.f32 %v11252, %v11284
    %v11286 = vpop.f32.mrf.mxu0
    %11287 = vdwg.mxu0
    %11288 = vmatpush.bf16.msra.mxu0 %v8665
    %11289 = vmatpush.bf16.msra.mxu0 %v8657
    %11290 = vmatpush.bf16.msra.mxu0 %v8649
    %11291 = vmatpush.bf16.msra.mxu0 %v8641
    %11292 = vmatpush.bf16.msra.mxu0 %v8633
    %11293 = vmatpush.bf16.msra.mxu0 %v8625
    %11294 = vmatpush.bf16.msra.mxu0 %v8617
    %11295 = vmatpush.bf16.msra.mxu0 %v8609
    %11296 = vmatmul.bf16.gmra.mxu0 %v6136
    %v11297 = vpop.f32.mrf.mxu0
    %v11298 = vadd.f32 %v11265, %v11297
    %v11299 = vpop.f32.mrf.mxu0
    %v11300 = vadd.f32 %v11267, %v11299
    %11301 = vmatmul.bf16.gmra.mxu0 %v6144
    %v11302 = vpop.f32.mrf.mxu0
    %v11303 = vadd.f32 %v11270, %v11302
    %v11304 = vpop.f32.mrf.mxu0
    %v11305 = vadd.f32 %v11272, %v11304
    %11306 = vmatmul.bf16.gmra.mxu0 %v6152
    %v11307 = vpop.f32.mrf.mxu0
    %v11308 = vadd.f32 %v11275, %v11307
    %v11309 = vpop.f32.mrf.mxu0
    %v11310 = vadd.f32 %v11277, %v11309
    %11311 = vmatmul.bf16.gmra.mxu0 %v6160
    %v11312 = vpop.f32.mrf.mxu0
    %v11313 = vadd.f32 %v11280, %v11312
    %v11314 = vpop.f32.mrf.mxu0
    %v11315 = vadd.f32 %v11282, %v11314
    %11316 = vmatmul.bf16.gmra.mxu0 %v6168
    %v11317 = vpop.f32.mrf.mxu0
    %v11318 = vadd.f32 %v11285, %v11317
    %v11319 = vpop.f32.mrf.mxu0
    %11320 = vdwg.mxu0
    %11321 = vmatpush.bf16.msra.mxu0 %v8729
    %11322 = vmatpush.bf16.msra.mxu0 %v8721
    %11323 = vmatpush.bf16.msra.mxu0 %v8713
    %11324 = vmatpush.bf16.msra.mxu0 %v8705
    %11325 = vmatpush.bf16.msra.mxu0 %v8697
    %11326 = vmatpush.bf16.msra.mxu0 %v8689
    %11327 = vmatpush.bf16.msra.mxu0 %v8681
    %11328 = vmatpush.bf16.msra.mxu0 %v8673
    %11329 = vmatmul.bf16.gmra.mxu0 %v6137
    %v11330 = vpop.f32.mrf.mxu0
    %v11331 = vadd.f32 %v11298, %v11330
    %v11332 = vpop.f32.mrf.mxu0
    %v11333 = vadd.f32 %v11300, %v11332
    %11334 = vmatmul.bf16.gmra.mxu0 %v6145
    %v11335 = vpop.f32.mrf.mxu0
    %v11336 = vadd.f32 %v11303, %v11335
    %v11337 = vpop.f32.mrf.mxu0
    %v11338 = vadd.f32 %v11305, %v11337
    %11339 = vmatmul.bf16.gmra.mxu0 %v6153
    %v11340 = vpop.f32.mrf.mxu0
    %v11341 = vadd.f32 %v11308, %v11340
    %v11342 = vpop.f32.mrf.mxu0
    %v11343 = vadd.f32 %v11310, %v11342
    %11344 = vmatmul.bf16.gmra.mxu0 %v6161
    %v11345 = vpop.f32.mrf.mxu0
    %v11346 = vadd.f32 %v11313, %v11345
    %v11347 = vpop.f32.mrf.mxu0
    %v11348 = vadd.f32 %v11315, %v11347
    %11349 = vmatmul.bf16.gmra.mxu0 %v6169
    %v11350 = vpop.f32.mrf.mxu0
    %v11351 = vadd.f32 %v11318, %v11350
    %v11352 = vpop.f32.mrf.mxu0
    %11353 = vdwg.mxu0
    %v11354 = vadd.f32 %v9483, %v9503
    %v11355 = vadd.f32 %v9747, %v9767
    %v11356 = vadd.f32 %v10011, %v10031
    %v11357 = vadd.f32 %v10275, %v10295
    %v11358 = vadd.f32 %v10539, %v10559
    %v11359 = vadd.f32 %v10803, %v10823
    %v11360 = vadd.f32 %v11067, %v11087
    %v11361 = vadd.f32 %v11331, %v11351
    %v11362 = vadd.f32 %v9485, %v9483
    %v11363 = vadd.f32 %v9749, %v9747
    %v11364 = vadd.f32 %v10013, %v10011
    %v11365 = vadd.f32 %v10277, %v10275
    %v11366 = vadd.f32 %v10541, %v10539
    %v11367 = vadd.f32 %v10805, %v10803
    %v11368 = vadd.f32 %v11069, %v11067
    %v11369 = vadd.f32 %v11333, %v11331
    %v11370 = vadd.f32 %v9488, %v9485
    %v11371 = vadd.f32 %v9752, %v9749
    %v11372 = vadd.f32 %v10016, %v10013
    %v11373 = vadd.f32 %v10280, %v10277
    %v11374 = vadd.f32 %v10544, %v10541
    %v11375 = vadd.f32 %v10808, %v10805
    %v11376 = vadd.f32 %v11072, %v11069
    %v11377 = vadd.f32 %v11336, %v11333
    %v11378 = vadd.f32 %v9490, %v9488
    %v11379 = vadd.f32 %v9754, %v9752
    %v11380 = vadd.f32 %v10018, %v10016
    %v11381 = vadd.f32 %v10282, %v10280
    %v11382 = vadd.f32 %v10546, %v10544
    %v11383 = vadd.f32 %v10810, %v10808
    %v11384 = vadd.f32 %v11074, %v11072
    %v11385 = vadd.f32 %v11338, %v11336
    %v11386 = vadd.f32 %v9493, %v9490
    %v11387 = vadd.f32 %v9757, %v9754
    %v11388 = vadd.f32 %v10021, %v10018
    %v11389 = vadd.f32 %v10285, %v10282
    %v11390 = vadd.f32 %v10549, %v10546
    %v11391 = vadd.f32 %v10813, %v10810
    %v11392 = vadd.f32 %v11077, %v11074
    %v11393 = vadd.f32 %v11341, %v11338
    %v11394 = vadd.f32 %v9495, %v9493
    %v11395 = vadd.f32 %v9759, %v9757
    %v11396 = vadd.f32 %v10023, %v10021
    %v11397 = vadd.f32 %v10287, %v10285
    %v11398 = vadd.f32 %v10551, %v10549
    %v11399 = vadd.f32 %v10815, %v10813
    %v11400 = vadd.f32 %v11079, %v11077
    %v11401 = vadd.f32 %v11343, %v11341
    %v11402 = vadd.f32 %v9498, %v9495
    %v11403 = vadd.f32 %v9762, %v9759
    %v11404 = vadd.f32 %v10026, %v10023
    %v11405 = vadd.f32 %v10290, %v10287
    %v11406 = vadd.f32 %v10554, %v10551
    %v11407 = vadd.f32 %v10818, %v10815
    %v11408 = vadd.f32 %v11082, %v11079
    %v11409 = vadd.f32 %v11346, %v11343
    %v11410 = vadd.f32 %v9500, %v9498
    %v11411 = vadd.f32 %v9764, %v9762
    %v11412 = vadd.f32 %v10028, %v10026
    %v11413 = vadd.f32 %v10292, %v10290
    %v11414 = vadd.f32 %v10556, %v10554
    %v11415 = vadd.f32 %v10820, %v10818
    %v11416 = vadd.f32 %v11084, %v11082
    %v11417 = vadd.f32 %v11348, %v11346
    %v11418 = vadd.f32 %v9503, %v9500
    %v11419 = vadd.f32 %v9767, %v9764
    %v11420 = vadd.f32 %v10031, %v10028
    %v11421 = vadd.f32 %v10295, %v10292
    %v11422 = vadd.f32 %v10559, %v10556
    %v11423 = vadd.f32 %v10823, %v10820
    %v11424 = vadd.f32 %v11087, %v11084
    %v11425 = vadd.f32 %v11351, %v11348
    %v11426 = vadd.f32 %v11354, %v9485
    %v11427 = vadd.f32 %v11355, %v9749
    %v11428 = vadd.f32 %v11356, %v10013
    %v11429 = vadd.f32 %v11357, %v10277
    %v11430 = vadd.f32 %v11358, %v10541
    %v11431 = vadd.f32 %v11359, %v10805
    %v11432 = vadd.f32 %v11360, %v11069
    %v11433 = vadd.f32 %v11361, %v11333
    %v11434 = vadd.f32 %v11362, %v9488
    %v11435 = vadd.f32 %v11363, %v9752
    %v11436 = vadd.f32 %v11364, %v10016
    %v11437 = vadd.f32 %v11365, %v10280
    %v11438 = vadd.f32 %v11366, %v10544
    %v11439 = vadd.f32 %v11367, %v10808
    %v11440 = vadd.f32 %v11368, %v11072
    %v11441 = vadd.f32 %v11369, %v11336
    %v11442 = vadd.f32 %v11370, %v9490
    %v11443 = vadd.f32 %v11371, %v9754
    %v11444 = vadd.f32 %v11372, %v10018
    %v11445 = vadd.f32 %v11373, %v10282
    %v11446 = vadd.f32 %v11374, %v10546
    %v11447 = vadd.f32 %v11375, %v10810
    %v11448 = vadd.f32 %v11376, %v11074
    %v11449 = vadd.f32 %v11377, %v11338
    %v11450 = vadd.f32 %v11378, %v9493
    %v11451 = vadd.f32 %v11379, %v9757
    %v11452 = vadd.f32 %v11380, %v10021
    %v11453 = vadd.f32 %v11381, %v10285
    %v11454 = vadd.f32 %v11382, %v10549
    %v11455 = vadd.f32 %v11383, %v10813
    %v11456 = vadd.f32 %v11384, %v11077
    %v11457 = vadd.f32 %v11385, %v11341
    %v11458 = vadd.f32 %v11386, %v9495
    %v11459 = vadd.f32 %v11387, %v9759
    %v11460 = vadd.f32 %v11388, %v10023
    %v11461 = vadd.f32 %v11389, %v10287
    %v11462 = vadd.f32 %v11390, %v10551
    %v11463 = vadd.f32 %v11391, %v10815
    %v11464 = vadd.f32 %v11392, %v11079
    %v11465 = vadd.f32 %v11393, %v11343
    %v11466 = vadd.f32 %v11394, %v9498
    %v11467 = vadd.f32 %v11395, %v9762
    %v11468 = vadd.f32 %v11396, %v10026
    %v11469 = vadd.f32 %v11397, %v10290
    %v11470 = vadd.f32 %v11398, %v10554
    %v11471 = vadd.f32 %v11399, %v10818
    %v11472 = vadd.f32 %v11400, %v11082
    %v11473 = vadd.f32 %v11401, %v11346
    %v11474 = vadd.f32 %v11402, %v9500
    %v11475 = vadd.f32 %v11403, %v9764
    %v11476 = vadd.f32 %v11404, %v10028
    %v11477 = vadd.f32 %v11405, %v10292
    %v11478 = vadd.f32 %v11406, %v10556
    %v11479 = vadd.f32 %v11407, %v10820
    %v11480 = vadd.f32 %v11408, %v11084
    %v11481 = vadd.f32 %v11409, %v11348
    %v11482 = vadd.f32 %v11410, %v9503
    %v11483 = vadd.f32 %v11411, %v9767
    %v11484 = vadd.f32 %v11412, %v10031
    %v11485 = vadd.f32 %v11413, %v10295
    %v11486 = vadd.f32 %v11414, %v10559
    %v11487 = vadd.f32 %v11415, %v10823
    %v11488 = vadd.f32 %v11416, %v11087
    %v11489 = vadd.f32 %v11417, %v11351
    %v11490 = vadd.f32 %v11418, %v9483
    %v11491 = vadd.f32 %v11419, %v9747
    %v11492 = vadd.f32 %v11420, %v10011
    %v11493 = vadd.f32 %v11421, %v10275
    %v11494 = vadd.f32 %v11422, %v10539
    %v11495 = vadd.f32 %v11423, %v10803
    %v11496 = vadd.f32 %v11424, %v11067
    %v11497 = vadd.f32 %v11425, %v11331
    %v11498 = vld [vmem:[#allocation11] sm:$0xff]
    %v11500 = vperm.slane %v11498, 0
    %v11501 = vperm.slane %v11498, 1
    %v11502 = vperm.slane %v11498, 2
    %v11503 = vperm.slane %v11498, 3
    %v11504 = vperm.slane %v11498, 4
    %v11505 = vperm.slane %v11498, 5
    %v11506 = vperm.slane %v11498, 6
    %v11507 = vperm.slane %v11498, 7
    %v11516 = vadd.f32 %v11426, %v11500
    %v11517 = vadd.f32 %v11427, %v11501
    %v11518 = vadd.f32 %v11428, %v11502
    %v11519 = vadd.f32 %v11429, %v11503
    %v11520 = vadd.f32 %v11430, %v11504
    %v11521 = vadd.f32 %v11431, %v11505
    %v11522 = vadd.f32 %v11432, %v11506
    %v11523 = vadd.f32 %v11433, %v11507
    %v11524 = vadd.f32 %v11434, %v11500
    %v11525 = vadd.f32 %v11435, %v11501
    %v11526 = vadd.f32 %v11436, %v11502
    %v11527 = vadd.f32 %v11437, %v11503
    %v11528 = vadd.f32 %v11438, %v11504
    %v11529 = vadd.f32 %v11439, %v11505
    %v11530 = vadd.f32 %v11440, %v11506
    %v11531 = vadd.f32 %v11441, %v11507
    %v11532 = vadd.f32 %v11442, %v11500
    %v11533 = vadd.f32 %v11443, %v11501
    %v11534 = vadd.f32 %v11444, %v11502
    %v11535 = vadd.f32 %v11445, %v11503
    %v11536 = vadd.f32 %v11446, %v11504
    %v11537 = vadd.f32 %v11447, %v11505
    %v11538 = vadd.f32 %v11448, %v11506
    %v11539 = vadd.f32 %v11449, %v11507
    %v11540 = vadd.f32 %v11450, %v11500
    %v11541 = vadd.f32 %v11451, %v11501
    %v11542 = vadd.f32 %v11452, %v11502
    %v11543 = vadd.f32 %v11453, %v11503
    %v11544 = vadd.f32 %v11454, %v11504
    %v11545 = vadd.f32 %v11455, %v11505
    %v11546 = vadd.f32 %v11456, %v11506
    %v11547 = vadd.f32 %v11457, %v11507
    %v11548 = vadd.f32 %v11458, %v11500
    %v11549 = vadd.f32 %v11459, %v11501
    %v11550 = vadd.f32 %v11460, %v11502
    %v11551 = vadd.f32 %v11461, %v11503
    %v11552 = vadd.f32 %v11462, %v11504
    %v11553 = vadd.f32 %v11463, %v11505
    %v11554 = vadd.f32 %v11464, %v11506
    %v11555 = vadd.f32 %v11465, %v11507
    %v11556 = vadd.f32 %v11466, %v11500
    %v11557 = vadd.f32 %v11467, %v11501
    %v11558 = vadd.f32 %v11468, %v11502
    %v11559 = vadd.f32 %v11469, %v11503
    %v11560 = vadd.f32 %v11470, %v11504
    %v11561 = vadd.f32 %v11471, %v11505
    %v11562 = vadd.f32 %v11472, %v11506
    %v11563 = vadd.f32 %v11473, %v11507
    %v11564 = vadd.f32 %v11474, %v11500
    %v11565 = vadd.f32 %v11475, %v11501
    %v11566 = vadd.f32 %v11476, %v11502
    %v11567 = vadd.f32 %v11477, %v11503
    %v11568 = vadd.f32 %v11478, %v11504
    %v11569 = vadd.f32 %v11479, %v11505
    %v11570 = vadd.f32 %v11480, %v11506
    %v11571 = vadd.f32 %v11481, %v11507
    %v11572 = vadd.f32 %v11482, %v11500
    %v11573 = vadd.f32 %v11483, %v11501
    %v11574 = vadd.f32 %v11484, %v11502
    %v11575 = vadd.f32 %v11485, %v11503
    %v11576 = vadd.f32 %v11486, %v11504
    %v11577 = vadd.f32 %v11487, %v11505
    %v11578 = vadd.f32 %v11488, %v11506
    %v11579 = vadd.f32 %v11489, %v11507
    %v11580 = vadd.f32 %v11490, %v11500
    %v11581 = vadd.f32 %v11491, %v11501
    %v11582 = vadd.f32 %v11492, %v11502
    %v11583 = vadd.f32 %v11493, %v11503
    %v11584 = vadd.f32 %v11494, %v11504
    %v11585 = vadd.f32 %v11495, %v11505
    %v11586 = vadd.f32 %v11496, %v11506
    %v11587 = vadd.f32 %v11497, %v11507
    %v11588 = vmax.f32 %v11516, 0.0
    %v11589 = vmax.f32 %v11517, 0.0
    %v11590 = vmax.f32 %v11518, 0.0
    %v11591 = vmax.f32 %v11519, 0.0
    %v11592 = vmax.f32 %v11520, 0.0
    %v11593 = vmax.f32 %v11521, 0.0
    %v11594 = vmax.f32 %v11522, 0.0
    %v11595 = vmax.f32 %v11523, 0.0
    %v11596 = vmax.f32 %v11524, 0.0
    %v11597 = vmax.f32 %v11525, 0.0
    %v11598 = vmax.f32 %v11526, 0.0
    %v11599 = vmax.f32 %v11527, 0.0
    %v11600 = vmax.f32 %v11528, 0.0
    %v11601 = vmax.f32 %v11529, 0.0
    %v11602 = vmax.f32 %v11530, 0.0
    %v11603 = vmax.f32 %v11531, 0.0
    %v11604 = vmax.f32 %v11532, 0.0
    %v11605 = vmax.f32 %v11533, 0.0
    %v11606 = vmax.f32 %v11534, 0.0
    %v11607 = vmax.f32 %v11535, 0.0
    %v11608 = vmax.f32 %v11536, 0.0
    %v11609 = vmax.f32 %v11537, 0.0
    %v11610 = vmax.f32 %v11538, 0.0
    %v11611 = vmax.f32 %v11539, 0.0
    %v11612 = vmax.f32 %v11540, 0.0
    %v11613 = vmax.f32 %v11541, 0.0
    %v11614 = vmax.f32 %v11542, 0.0
    %v11615 = vmax.f32 %v11543, 0.0
    %v11616 = vmax.f32 %v11544, 0.0
    %v11617 = vmax.f32 %v11545, 0.0
    %v11618 = vmax.f32 %v11546, 0.0
    %v11619 = vmax.f32 %v11547, 0.0
    %v11620 = vmax.f32 %v11548, 0.0
    %v11621 = vmax.f32 %v11549, 0.0
    %v11622 = vmax.f32 %v11550, 0.0
    %v11623 = vmax.f32 %v11551, 0.0
    %v11624 = vmax.f32 %v11552, 0.0
    %v11625 = vmax.f32 %v11553, 0.0
    %v11626 = vmax.f32 %v11554, 0.0
    %v11627 = vmax.f32 %v11555, 0.0
    %v11628 = vmax.f32 %v11556, 0.0
    %v11629 = vmax.f32 %v11557, 0.0
    %v11630 = vmax.f32 %v11558, 0.0
    %v11631 = vmax.f32 %v11559, 0.0
    %v11632 = vmax.f32 %v11560, 0.0
    %v11633 = vmax.f32 %v11561, 0.0
    %v11634 = vmax.f32 %v11562, 0.0
    %v11635 = vmax.f32 %v11563, 0.0
    %v11636 = vmax.f32 %v11564, 0.0
    %v11637 = vmax.f32 %v11565, 0.0
    %v11638 = vmax.f32 %v11566, 0.0
    %v11639 = vmax.f32 %v11567, 0.0
    %v11640 = vmax.f32 %v11568, 0.0
    %v11641 = vmax.f32 %v11569, 0.0
    %v11642 = vmax.f32 %v11570, 0.0
    %v11643 = vmax.f32 %v11571, 0.0
    %v11644 = vmax.f32 %v11572, 0.0
    %v11645 = vmax.f32 %v11573, 0.0
    %v11646 = vmax.f32 %v11574, 0.0
    %v11647 = vmax.f32 %v11575, 0.0
    %v11648 = vmax.f32 %v11576, 0.0
    %v11649 = vmax.f32 %v11577, 0.0
    %v11650 = vmax.f32 %v11578, 0.0
    %v11651 = vmax.f32 %v11579, 0.0
    %v11652 = vmax.f32 %v11580, 0.0
    %v11653 = vmax.f32 %v11581, 0.0
    %v11654 = vmax.f32 %v11582, 0.0
    %v11655 = vmax.f32 %v11583, 0.0
    %v11656 = vmax.f32 %v11584, 0.0
    %v11657 = vmax.f32 %v11585, 0.0
    %v11658 = vmax.f32 %v11586, 0.0
    %v11659 = vmax.f32 %v11587, 0.0
    %v11660 = vpack.c.bf16 %v11596, %v11588
    %v11661 = vpack.c.bf16 %v11597, %v11589
    %v11662 = vpack.c.bf16 %v11598, %v11590
    %v11663 = vpack.c.bf16 %v11599, %v11591
    %v11664 = vpack.c.bf16 %v11600, %v11592
    %v11665 = vpack.c.bf16 %v11601, %v11593
    %v11666 = vpack.c.bf16 %v11602, %v11594
    %v11667 = vpack.c.bf16 %v11603, %v11595
    %v11668 = vpack.c.bf16 %v11612, %v11604
    %v11669 = vpack.c.bf16 %v11613, %v11605
    %v11670 = vpack.c.bf16 %v11614, %v11606
    %v11671 = vpack.c.bf16 %v11615, %v11607
    %v11672 = vpack.c.bf16 %v11616, %v11608
    %v11673 = vpack.c.bf16 %v11617, %v11609
    %v11674 = vpack.c.bf16 %v11618, %v11610
    %v11675 = vpack.c.bf16 %v11619, %v11611
    %v11676 = vpack.c.bf16 %v11628, %v11620
    %v11677 = vpack.c.bf16 %v11629, %v11621
    %v11678 = vpack.c.bf16 %v11630, %v11622
    %v11679 = vpack.c.bf16 %v11631, %v11623
    %v11680 = vpack.c.bf16 %v11632, %v11624
    %v11681 = vpack.c.bf16 %v11633, %v11625
    %v11682 = vpack.c.bf16 %v11634, %v11626
    %v11683 = vpack.c.bf16 %v11635, %v11627
    %v11684 = vpack.c.bf16 %v11644, %v11636
    %v11685 = vpack.c.bf16 %v11645, %v11637
    %v11686 = vpack.c.bf16 %v11646, %v11638
    %v11687 = vpack.c.bf16 %v11647, %v11639
    %v11688 = vpack.c.bf16 %v11648, %v11640
    %v11689 = vpack.c.bf16 %v11649, %v11641
    %v11690 = vpack.c.bf16 %v11650, %v11642
    %v11691 = vpack.c.bf16 %v11651, %v11643
    %v11692 = vpack.c.bf16 %v11652, %v11652
    %v11693 = vpack.c.bf16 %v11653, %v11653
    %v11694 = vpack.c.bf16 %v11654, %v11654
    %v11695 = vpack.c.bf16 %v11655, %v11655
    %v11696 = vpack.c.bf16 %v11656, %v11656
    %v11697 = vpack.c.bf16 %v11657, %v11657
    %v11698 = vpack.c.bf16 %v11658, %v11658
    %v11699 = vpack.c.bf16 %v11659, %v11659
    %v11700 = vld [vmem:[#allocation13] sm:$0xf]
    %v11701 = vld [vmem:[#allocation13 + $0x4] sm:$0xf]
    %v11702 = vld [vmem:[#allocation13 + $0x8] sm:$0xf]
    %v11703 = vld [vmem:[#allocation13 + $0xc] sm:$0xf]
    %v11704 = vld [vmem:[#allocation13 + $0x10] sm:$0xf]
    %v11705 = vld [vmem:[#allocation13 + $0x14] sm:$0xf]
    %v11706 = vld [vmem:[#allocation13 + $0x18] sm:$0xf]
    %v11707 = vld [vmem:[#allocation13 + $0x1c] sm:$0xf]
    %v11708 = vld [vmem:[#allocation13 + $0x20] sm:$0xf]
    %v11709 = vld [vmem:[#allocation13 + $0x24] sm:$0xf]
    %v11710 = vld [vmem:[#allocation13 + $0x28] sm:$0xf]
    %v11711 = vld [vmem:[#allocation13 + $0x2c] sm:$0xf]
    %v11712 = vld [vmem:[#allocation13 + $0x30] sm:$0xf]
    %v11713 = vld [vmem:[#allocation13 + $0x34] sm:$0xf]
    %v11714 = vld [vmem:[#allocation13 + $0x38] sm:$0xf]
    %v11715 = vld [vmem:[#allocation13 + $0x3c] sm:$0xf]
    %v11716 = vld [vmem:[#allocation13 + $0x40] sm:$0xf]
    %v11717 = vld [vmem:[#allocation13 + $0x44] sm:$0xf]
    %v11718 = vld [vmem:[#allocation13 + $0x48] sm:$0xf]
    %v11719 = vld [vmem:[#allocation13 + $0x4c] sm:$0xf]
    %v11720 = vld [vmem:[#allocation13 + $0x50] sm:$0xf]
    %v11721 = vld [vmem:[#allocation13 + $0x54] sm:$0xf]
    %v11722 = vld [vmem:[#allocation13 + $0x58] sm:$0xf]
    %v11723 = vld [vmem:[#allocation13 + $0x5c] sm:$0xf]
    %v11724 = vld [vmem:[#allocation13 + $0x60] sm:$0xf]
    %v11725 = vld [vmem:[#allocation13 + $0x64] sm:$0xf]
    %v11726 = vld [vmem:[#allocation13 + $0x68] sm:$0xf]
    %v11727 = vld [vmem:[#allocation13 + $0x6c] sm:$0xf]
    %v11728 = vld [vmem:[#allocation13 + $0x70] sm:$0xf]
    %v11729 = vld [vmem:[#allocation13 + $0x74] sm:$0xf]
    %v11730 = vld [vmem:[#allocation13 + $0x78] sm:$0xf]
    %v11731 = vld [vmem:[#allocation13 + $0x7c] sm:$0xf]
    %v11732 = vld [vmem:[#allocation13 + $0x80] sm:$0xf]
    %v11733 = vld [vmem:[#allocation13 + $0x84] sm:$0xf]
    %v11734 = vld [vmem:[#allocation13 + $0x88] sm:$0xf]
    %v11735 = vld [vmem:[#allocation13 + $0x8c] sm:$0xf]
    %v11736 = vld [vmem:[#allocation13 + $0x90] sm:$0xf]
    %v11737 = vld [vmem:[#allocation13 + $0x94] sm:$0xf]
    %v11738 = vld [vmem:[#allocation13 + $0x98] sm:$0xf]
    %v11739 = vld [vmem:[#allocation13 + $0x9c] sm:$0xf]
    %v11740 = vld [vmem:[#allocation13 + $0xa0] sm:$0xf]
    %v11741 = vld [vmem:[#allocation13 + $0xa4] sm:$0xf]
    %v11742 = vld [vmem:[#allocation13 + $0xa8] sm:$0xf]
    %v11743 = vld [vmem:[#allocation13 + $0xac] sm:$0xf]
    %v11744 = vld [vmem:[#allocation13 + $0xb0] sm:$0xf]
    %v11745 = vld [vmem:[#allocation13 + $0xb4] sm:$0xf]
    %v11746 = vld [vmem:[#allocation13 + $0xb8] sm:$0xf]
    %v11747 = vld [vmem:[#allocation13 + $0xbc] sm:$0xf]
    %v11748 = vld [vmem:[#allocation13 + $0xc0] sm:$0xf]
    %v11749 = vld [vmem:[#allocation13 + $0xc4] sm:$0xf]
    %v11750 = vld [vmem:[#allocation13 + $0xc8] sm:$0xf]
    %v11751 = vld [vmem:[#allocation13 + $0xcc] sm:$0xf]
    %v11752 = vld [vmem:[#allocation13 + $0xd0] sm:$0xf]
    %v11753 = vld [vmem:[#allocation13 + $0xd4] sm:$0xf]
    %v11754 = vld [vmem:[#allocation13 + $0xd8] sm:$0xf]
    %v11755 = vld [vmem:[#allocation13 + $0xdc] sm:$0xf]
    %v11756 = vld [vmem:[#allocation13 + $0xe0] sm:$0xf]
    %v11757 = vld [vmem:[#allocation13 + $0xe4] sm:$0xf]
    %v11758 = vld [vmem:[#allocation13 + $0xe8] sm:$0xf]
    %v11759 = vld [vmem:[#allocation13 + $0xec] sm:$0xf]
    %v11760 = vld [vmem:[#allocation13 + $0xf0] sm:$0xf]
    %v11761 = vld [vmem:[#allocation13 + $0xf4] sm:$0xf]
    %v11762 = vld [vmem:[#allocation13 + $0xf8] sm:$0xf]
    %v11763 = vld [vmem:[#allocation13 + $0xfc] sm:$0xf]
    %v11764 = vld [vmem:[#allocation13 + $0x100] sm:$0xf]
    %v11765 = vld [vmem:[#allocation13 + $0x104] sm:$0xf]
    %v11766 = vld [vmem:[#allocation13 + $0x108] sm:$0xf]
    %v11767 = vld [vmem:[#allocation13 + $0x10c] sm:$0xf]
    %v11768 = vld [vmem:[#allocation13 + $0x110] sm:$0xf]
    %v11769 = vld [vmem:[#allocation13 + $0x114] sm:$0xf]
    %v11770 = vld [vmem:[#allocation13 + $0x118] sm:$0xf]
    %v11771 = vld [vmem:[#allocation13 + $0x11c] sm:$0xf]
    %v11772 = vld [vmem:[#allocation13 + $0x120] sm:$0xf]
    %v11773 = vld [vmem:[#allocation13 + $0x124] sm:$0xf]
    %v11774 = vld [vmem:[#allocation13 + $0x128] sm:$0xf]
    %v11775 = vld [vmem:[#allocation13 + $0x12c] sm:$0xf]
    %v11776 = vld [vmem:[#allocation13 + $0x130] sm:$0xf]
    %v11777 = vld [vmem:[#allocation13 + $0x134] sm:$0xf]
    %v11778 = vld [vmem:[#allocation13 + $0x138] sm:$0xf]
    %v11779 = vld [vmem:[#allocation13 + $0x13c] sm:$0xf]
    %v11780 = vld [vmem:[#allocation13 + $0x140] sm:$0xf]
    %v11781 = vld [vmem:[#allocation13 + $0x144] sm:$0xf]
    %v11782 = vld [vmem:[#allocation13 + $0x148] sm:$0xf]
    %v11783 = vld [vmem:[#allocation13 + $0x14c] sm:$0xf]
    %v11784 = vld [vmem:[#allocation13 + $0x150] sm:$0xf]
    %v11785 = vld [vmem:[#allocation13 + $0x154] sm:$0xf]
    %v11786 = vld [vmem:[#allocation13 + $0x158] sm:$0xf]
    %v11787 = vld [vmem:[#allocation13 + $0x15c] sm:$0xf]
    %v11788 = vld [vmem:[#allocation13 + $0x160] sm:$0xf]
    %v11789 = vld [vmem:[#allocation13 + $0x164] sm:$0xf]
    %v11790 = vld [vmem:[#allocation13 + $0x168] sm:$0xf]
    %v11791 = vld [vmem:[#allocation13 + $0x16c] sm:$0xf]
    %v11792 = vld [vmem:[#allocation13 + $0x170] sm:$0xf]
    %v11793 = vld [vmem:[#allocation13 + $0x174] sm:$0xf]
    %v11794 = vld [vmem:[#allocation13 + $0x178] sm:$0xf]
    %v11795 = vld [vmem:[#allocation13 + $0x17c] sm:$0xf]
    %v11796 = vld [vmem:[#allocation13 + $0x180] sm:$0xf]
    %v11797 = vld [vmem:[#allocation13 + $0x184] sm:$0xf]
    %v11798 = vld [vmem:[#allocation13 + $0x188] sm:$0xf]
    %v11799 = vld [vmem:[#allocation13 + $0x18c] sm:$0xf]
    %v11800 = vld [vmem:[#allocation13 + $0x190] sm:$0xf]
    %v11801 = vld [vmem:[#allocation13 + $0x194] sm:$0xf]
    %v11802 = vld [vmem:[#allocation13 + $0x198] sm:$0xf]
    %v11803 = vld [vmem:[#allocation13 + $0x19c] sm:$0xf]
    %v11804 = vld [vmem:[#allocation13 + $0x1a0] sm:$0xf]
    %v11805 = vld [vmem:[#allocation13 + $0x1a4] sm:$0xf]
    %v11806 = vld [vmem:[#allocation13 + $0x1a8] sm:$0xf]
    %v11807 = vld [vmem:[#allocation13 + $0x1ac] sm:$0xf]
    %v11808 = vld [vmem:[#allocation13 + $0x1b0] sm:$0xf]
    %v11809 = vld [vmem:[#allocation13 + $0x1b4] sm:$0xf]
    %v11810 = vld [vmem:[#allocation13 + $0x1b8] sm:$0xf]
    %v11811 = vld [vmem:[#allocation13 + $0x1bc] sm:$0xf]
    %v11812 = vld [vmem:[#allocation13 + $0x1c0] sm:$0xf]
    %v11813 = vld [vmem:[#allocation13 + $0x1c4] sm:$0xf]
    %v11814 = vld [vmem:[#allocation13 + $0x1c8] sm:$0xf]
    %v11815 = vld [vmem:[#allocation13 + $0x1cc] sm:$0xf]
    %v11816 = vld [vmem:[#allocation13 + $0x1d0] sm:$0xf]
    %v11817 = vld [vmem:[#allocation13 + $0x1d4] sm:$0xf]
    %v11818 = vld [vmem:[#allocation13 + $0x1d8] sm:$0xf]
    %v11819 = vld [vmem:[#allocation13 + $0x1dc] sm:$0xf]
    %v11820 = vld [vmem:[#allocation13 + $0x1e0] sm:$0xf]
    %v11821 = vld [vmem:[#allocation13 + $0x1e4] sm:$0xf]
    %v11822 = vld [vmem:[#allocation13 + $0x1e8] sm:$0xf]
    %v11823 = vld [vmem:[#allocation13 + $0x1ec] sm:$0xf]
    %v11824 = vld [vmem:[#allocation13 + $0x1f0] sm:$0xf]
    %v11825 = vld [vmem:[#allocation13 + $0x1f4] sm:$0xf]
    %v11826 = vld [vmem:[#allocation13 + $0x1f8] sm:$0xf]
    %v11827 = vld [vmem:[#allocation13 + $0x1fc] sm:$0xf]
    %v11828 = vld [vmem:[#allocation14] sm:$0x1]
    %v11830 = vperm.slane %v11828, 0
    %v11960 = vunpack.c.l.b16 %v11700
    %v11961 = vunpack.c.l.b16 %v11701
    %v11962 = vunpack.c.l.b16 %v11702
    %v11963 = vunpack.c.l.b16 %v11703
    %v11964 = vunpack.c.l.b16 %v11704
    %v11965 = vunpack.c.l.b16 %v11705
    %v11966 = vunpack.c.l.b16 %v11706
    %v11967 = vunpack.c.l.b16 %v11707
    %v11968 = vunpack.c.l.b16 %v11708
    %v11969 = vunpack.c.l.b16 %v11709
    %v11970 = vunpack.c.l.b16 %v11710
    %v11971 = vunpack.c.l.b16 %v11711
    %v11972 = vunpack.c.l.b16 %v11712
    %v11973 = vunpack.c.l.b16 %v11713
    %v11974 = vunpack.c.l.b16 %v11714
    %v11975 = vunpack.c.l.b16 %v11715
    %v11976 = vunpack.c.l.b16 %v11716
    %v11977 = vunpack.c.l.b16 %v11717
    %v11978 = vunpack.c.l.b16 %v11718
    %v11979 = vunpack.c.l.b16 %v11719
    %v11980 = vunpack.c.l.b16 %v11720
    %v11981 = vunpack.c.l.b16 %v11721
    %v11982 = vunpack.c.l.b16 %v11722
    %v11983 = vunpack.c.l.b16 %v11723
    %v11984 = vunpack.c.l.b16 %v11724
    %v11985 = vunpack.c.l.b16 %v11725
    %v11986 = vunpack.c.l.b16 %v11726
    %v11987 = vunpack.c.l.b16 %v11727
    %v11988 = vunpack.c.l.b16 %v11728
    %v11989 = vunpack.c.l.b16 %v11729
    %v11990 = vunpack.c.l.b16 %v11730
    %v11991 = vunpack.c.l.b16 %v11731
    %v11992 = vunpack.c.l.b16 %v11732
    %v11993 = vunpack.c.l.b16 %v11733
    %v11994 = vunpack.c.l.b16 %v11734
    %v11995 = vunpack.c.l.b16 %v11735
    %v11996 = vunpack.c.l.b16 %v11736
    %v11997 = vunpack.c.l.b16 %v11737
    %v11998 = vunpack.c.l.b16 %v11738
    %v11999 = vunpack.c.l.b16 %v11739
    %v12000 = vunpack.c.l.b16 %v11740
    %v12001 = vunpack.c.l.b16 %v11741
    %v12002 = vunpack.c.l.b16 %v11742
    %v12003 = vunpack.c.l.b16 %v11743
    %v12004 = vunpack.c.l.b16 %v11744
    %v12005 = vunpack.c.l.b16 %v11745
    %v12006 = vunpack.c.l.b16 %v11746
    %v12007 = vunpack.c.l.b16 %v11747
    %v12008 = vunpack.c.l.b16 %v11748
    %v12009 = vunpack.c.l.b16 %v11749
    %v12010 = vunpack.c.l.b16 %v11750
    %v12011 = vunpack.c.l.b16 %v11751
    %v12012 = vunpack.c.l.b16 %v11752
    %v12013 = vunpack.c.l.b16 %v11753
    %v12014 = vunpack.c.l.b16 %v11754
    %v12015 = vunpack.c.l.b16 %v11755
    %v12016 = vunpack.c.l.b16 %v11756
    %v12017 = vunpack.c.l.b16 %v11757
    %v12018 = vunpack.c.l.b16 %v11758
    %v12019 = vunpack.c.l.b16 %v11759
    %v12020 = vunpack.c.l.b16 %v11760
    %v12021 = vunpack.c.l.b16 %v11761
    %v12022 = vunpack.c.l.b16 %v11762
    %v12023 = vunpack.c.l.b16 %v11763
    %v12024 = vunpack.c.l.b16 %v11764
    %v12025 = vunpack.c.l.b16 %v11765
    %v12026 = vunpack.c.l.b16 %v11766
    %v12027 = vunpack.c.l.b16 %v11767
    %v12028 = vunpack.c.l.b16 %v11768
    %v12029 = vunpack.c.l.b16 %v11769
    %v12030 = vunpack.c.l.b16 %v11770
    %v12031 = vunpack.c.l.b16 %v11771
    %v12032 = vunpack.c.l.b16 %v11772
    %v12033 = vunpack.c.l.b16 %v11773
    %v12034 = vunpack.c.l.b16 %v11774
    %v12035 = vunpack.c.l.b16 %v11775
    %v12036 = vunpack.c.l.b16 %v11776
    %v12037 = vunpack.c.l.b16 %v11777
    %v12038 = vunpack.c.l.b16 %v11778
    %v12039 = vunpack.c.l.b16 %v11779
    %v12040 = vunpack.c.l.b16 %v11780
    %v12041 = vunpack.c.l.b16 %v11781
    %v12042 = vunpack.c.l.b16 %v11782
    %v12043 = vunpack.c.l.b16 %v11783
    %v12044 = vunpack.c.l.b16 %v11784
    %v12045 = vunpack.c.l.b16 %v11785
    %v12046 = vunpack.c.l.b16 %v11786
    %v12047 = vunpack.c.l.b16 %v11787
    %v12048 = vunpack.c.l.b16 %v11788
    %v12049 = vunpack.c.l.b16 %v11789
    %v12050 = vunpack.c.l.b16 %v11790
    %v12051 = vunpack.c.l.b16 %v11791
    %v12052 = vunpack.c.l.b16 %v11792
    %v12053 = vunpack.c.l.b16 %v11793
    %v12054 = vunpack.c.l.b16 %v11794
    %v12055 = vunpack.c.l.b16 %v11795
    %v12056 = vunpack.c.l.b16 %v11796
    %v12057 = vunpack.c.l.b16 %v11797
    %v12058 = vunpack.c.l.b16 %v11798
    %v12059 = vunpack.c.l.b16 %v11799
    %v12060 = vunpack.c.l.b16 %v11800
    %v12061 = vunpack.c.l.b16 %v11801
    %v12062 = vunpack.c.l.b16 %v11802
    %v12063 = vunpack.c.l.b16 %v11803
    %v12064 = vunpack.c.l.b16 %v11804
    %v12065 = vunpack.c.l.b16 %v11805
    %v12066 = vunpack.c.l.b16 %v11806
    %v12067 = vunpack.c.l.b16 %v11807
    %v12068 = vunpack.c.l.b16 %v11808
    %v12069 = vunpack.c.l.b16 %v11809
    %v12070 = vunpack.c.l.b16 %v11810
    %v12071 = vunpack.c.l.b16 %v11811
    %v12072 = vunpack.c.l.b16 %v11812
    %v12073 = vunpack.c.l.b16 %v11813
    %v12074 = vunpack.c.l.b16 %v11814
    %v12075 = vunpack.c.l.b16 %v11815
    %v12076 = vunpack.c.l.b16 %v11816
    %v12077 = vunpack.c.l.b16 %v11817
    %v12078 = vunpack.c.l.b16 %v11818
    %v12079 = vunpack.c.l.b16 %v11819
    %v12080 = vunpack.c.l.b16 %v11820
    %v12081 = vunpack.c.l.b16 %v11821
    %v12082 = vunpack.c.l.b16 %v11822
    %v12083 = vunpack.c.l.b16 %v11823
    %v12084 = vunpack.c.l.b16 %v11824
    %v12085 = vunpack.c.l.b16 %v11825
    %v12086 = vunpack.c.l.b16 %v11826
    %v12087 = vunpack.c.l.b16 %v11827
    %v12088 = vpack.c.b16 %v11961, %v11960
    %v12089 = vpack.c.b16 %v11963, %v11962
    %v12090 = vpack.c.b16 %v11965, %v11964
    %v12091 = vpack.c.b16 %v11967, %v11966
    %v12092 = vpack.c.b16 %v11969, %v11968
    %v12093 = vpack.c.b16 %v11971, %v11970
    %v12094 = vpack.c.b16 %v11973, %v11972
    %v12095 = vpack.c.b16 %v11975, %v11974
    %v12096 = vpack.c.b16 %v11977, %v11976
    %v12097 = vpack.c.b16 %v11979, %v11978
    %v12098 = vpack.c.b16 %v11981, %v11980
    %v12099 = vpack.c.b16 %v11983, %v11982
    %v12100 = vpack.c.b16 %v11985, %v11984
    %v12101 = vpack.c.b16 %v11987, %v11986
    %v12102 = vpack.c.b16 %v11989, %v11988
    %v12103 = vpack.c.b16 %v11991, %v11990
    %v12104 = vpack.c.b16 %v11993, %v11992
    %v12105 = vpack.c.b16 %v11995, %v11994
    %v12106 = vpack.c.b16 %v11997, %v11996
    %v12107 = vpack.c.b16 %v11999, %v11998
    %v12108 = vpack.c.b16 %v12001, %v12000
    %v12109 = vpack.c.b16 %v12003, %v12002
    %v12110 = vpack.c.b16 %v12005, %v12004
    %v12111 = vpack.c.b16 %v12007, %v12006
    %v12112 = vpack.c.b16 %v12009, %v12008
    %v12113 = vpack.c.b16 %v12011, %v12010
    %v12114 = vpack.c.b16 %v12013, %v12012
    %v12115 = vpack.c.b16 %v12015, %v12014
    %v12116 = vpack.c.b16 %v12017, %v12016
    %v12117 = vpack.c.b16 %v12019, %v12018
    %v12118 = vpack.c.b16 %v12021, %v12020
    %v12119 = vpack.c.b16 %v12023, %v12022
    %v12120 = vpack.c.b16 %v12025, %v12024
    %v12121 = vpack.c.b16 %v12027, %v12026
    %v12122 = vpack.c.b16 %v12029, %v12028
    %v12123 = vpack.c.b16 %v12031, %v12030
    %v12124 = vpack.c.b16 %v12033, %v12032
    %v12125 = vpack.c.b16 %v12035, %v12034
    %v12126 = vpack.c.b16 %v12037, %v12036
    %v12127 = vpack.c.b16 %v12039, %v12038
    %v12128 = vpack.c.b16 %v12041, %v12040
    %v12129 = vpack.c.b16 %v12043, %v12042
    %v12130 = vpack.c.b16 %v12045, %v12044
    %v12131 = vpack.c.b16 %v12047, %v12046
    %v12132 = vpack.c.b16 %v12049, %v12048
    %v12133 = vpack.c.b16 %v12051, %v12050
    %v12134 = vpack.c.b16 %v12053, %v12052
    %v12135 = vpack.c.b16 %v12055, %v12054
    %v12136 = vpack.c.b16 %v12057, %v12056
    %v12137 = vpack.c.b16 %v12059, %v12058
    %v12138 = vpack.c.b16 %v12061, %v12060
    %v12139 = vpack.c.b16 %v12063, %v12062
    %v12140 = vpack.c.b16 %v12065, %v12064
    %v12141 = vpack.c.b16 %v12067, %v12066
    %v12142 = vpack.c.b16 %v12069, %v12068
    %v12143 = vpack.c.b16 %v12071, %v12070
    %v12144 = vpack.c.b16 %v12073, %v12072
    %v12145 = vpack.c.b16 %v12075, %v12074
    %v12146 = vpack.c.b16 %v12077, %v12076
    %v12147 = vpack.c.b16 %v12079, %v12078
    %v12148 = vpack.c.b16 %v12081, %v12080
    %v12149 = vpack.c.b16 %v12083, %v12082
    %v12150 = vpack.c.b16 %v12085, %v12084
    %v12151 = vpack.c.b16 %v12087, %v12086
    %12216 = vmatpush.bf16.msra.mxu0 %v12095
    %12217 = vmatpush.bf16.msra.mxu0 %v12094
    %12218 = vmatpush.bf16.msra.mxu0 %v12093
    %12219 = vmatpush.bf16.msra.mxu0 %v12092
    %12220 = vmatpush.bf16.msra.mxu0 %v12091
    %12221 = vmatpush.bf16.msra.mxu0 %v12090
    %12222 = vmatpush.bf16.msra.mxu0 %v12089
    %12223 = vmatpush.bf16.msra.mxu0 %v12088
    %12224 = vmatmul.bf16.gmra.mxu0 %v11660
    %v12225 = vpop.f32.mrf.mxu0
    %v12226 = vadd.f32 %v11830, %v12225
    %v12227 = vpop.f32.mrf.mxu0
    %v12228 = vadd.f32 %v11830, %v12227
    %12229 = vmatmul.bf16.gmra.mxu0 %v11668
    %v12230 = vpop.f32.mrf.mxu0
    %v12231 = vadd.f32 %v11830, %v12230
    %v12232 = vpop.f32.mrf.mxu0
    %v12233 = vadd.f32 %v11830, %v12232
    %12234 = vmatmul.bf16.gmra.mxu0 %v11676
    %v12235 = vpop.f32.mrf.mxu0
    %v12236 = vadd.f32 %v11830, %v12235
    %v12237 = vpop.f32.mrf.mxu0
    %v12238 = vadd.f32 %v11830, %v12237
    %12239 = vmatmul.bf16.gmra.mxu0 %v11684
    %v12240 = vpop.f32.mrf.mxu0
    %v12241 = vadd.f32 %v11830, %v12240
    %v12242 = vpop.f32.mrf.mxu0
    %v12243 = vadd.f32 %v11830, %v12242
    %12244 = vmatmul.bf16.gmra.mxu0 %v11692
    %v12245 = vpop.f32.mrf.mxu0
    %v12246 = vadd.f32 %v11830, %v12245
    %v12247 = vpop.f32.mrf.mxu0
    %12248 = vdwg.mxu0
    %12249 = vmatpush.bf16.msra.mxu0 %v12103
    %12250 = vmatpush.bf16.msra.mxu0 %v12102
    %12251 = vmatpush.bf16.msra.mxu0 %v12101
    %12252 = vmatpush.bf16.msra.mxu0 %v12100
    %12253 = vmatpush.bf16.msra.mxu0 %v12099
    %12254 = vmatpush.bf16.msra.mxu0 %v12098
    %12255 = vmatpush.bf16.msra.mxu0 %v12097
    %12256 = vmatpush.bf16.msra.mxu0 %v12096
    %12257 = vmatmul.bf16.gmra.mxu0 %v11661
    %v12258 = vpop.f32.mrf.mxu0
    %v12259 = vadd.f32 %v12226, %v12258
    %v12260 = vpop.f32.mrf.mxu0
    %v12261 = vadd.f32 %v12228, %v12260
    %12262 = vmatmul.bf16.gmra.mxu0 %v11669
    %v12263 = vpop.f32.mrf.mxu0
    %v12264 = vadd.f32 %v12231, %v12263
    %v12265 = vpop.f32.mrf.mxu0
    %v12266 = vadd.f32 %v12233, %v12265
    %12267 = vmatmul.bf16.gmra.mxu0 %v11677
    %v12268 = vpop.f32.mrf.mxu0
    %v12269 = vadd.f32 %v12236, %v12268
    %v12270 = vpop.f32.mrf.mxu0
    %v12271 = vadd.f32 %v12238, %v12270
    %12272 = vmatmul.bf16.gmra.mxu0 %v11685
    %v12273 = vpop.f32.mrf.mxu0
    %v12274 = vadd.f32 %v12241, %v12273
    %v12275 = vpop.f32.mrf.mxu0
    %v12276 = vadd.f32 %v12243, %v12275
    %12277 = vmatmul.bf16.gmra.mxu0 %v11693
    %v12278 = vpop.f32.mrf.mxu0
    %v12279 = vadd.f32 %v12246, %v12278
    %v12280 = vpop.f32.mrf.mxu0
    %12281 = vdwg.mxu0
    %12282 = vmatpush.bf16.msra.mxu0 %v12111
    %12283 = vmatpush.bf16.msra.mxu0 %v12110
    %12284 = vmatpush.bf16.msra.mxu0 %v12109
    %12285 = vmatpush.bf16.msra.mxu0 %v12108
    %12286 = vmatpush.bf16.msra.mxu0 %v12107
    %12287 = vmatpush.bf16.msra.mxu0 %v12106
    %12288 = vmatpush.bf16.msra.mxu0 %v12105
    %12289 = vmatpush.bf16.msra.mxu0 %v12104
    %12290 = vmatmul.bf16.gmra.mxu0 %v11662
    %v12291 = vpop.f32.mrf.mxu0
    %v12292 = vadd.f32 %v12259, %v12291
    %v12293 = vpop.f32.mrf.mxu0
    %v12294 = vadd.f32 %v12261, %v12293
    %12295 = vmatmul.bf16.gmra.mxu0 %v11670
    %v12296 = vpop.f32.mrf.mxu0
    %v12297 = vadd.f32 %v12264, %v12296
    %v12298 = vpop.f32.mrf.mxu0
    %v12299 = vadd.f32 %v12266, %v12298
    %12300 = vmatmul.bf16.gmra.mxu0 %v11678
    %v12301 = vpop.f32.mrf.mxu0
    %v12302 = vadd.f32 %v12269, %v12301
    %v12303 = vpop.f32.mrf.mxu0
    %v12304 = vadd.f32 %v12271, %v12303
    %12305 = vmatmul.bf16.gmra.mxu0 %v11686
    %v12306 = vpop.f32.mrf.mxu0
    %v12307 = vadd.f32 %v12274, %v12306
    %v12308 = vpop.f32.mrf.mxu0
    %v12309 = vadd.f32 %v12276, %v12308
    %12310 = vmatmul.bf16.gmra.mxu0 %v11694
    %v12311 = vpop.f32.mrf.mxu0
    %v12312 = vadd.f32 %v12279, %v12311
    %v12313 = vpop.f32.mrf.mxu0
    %12314 = vdwg.mxu0
    %12315 = vmatpush.bf16.msra.mxu0 %v12119
    %12316 = vmatpush.bf16.msra.mxu0 %v12118
    %12317 = vmatpush.bf16.msra.mxu0 %v12117
    %12318 = vmatpush.bf16.msra.mxu0 %v12116
    %12319 = vmatpush.bf16.msra.mxu0 %v12115
    %12320 = vmatpush.bf16.msra.mxu0 %v12114
    %12321 = vmatpush.bf16.msra.mxu0 %v12113
    %12322 = vmatpush.bf16.msra.mxu0 %v12112
    %12323 = vmatmul.bf16.gmra.mxu0 %v11663
    %v12324 = vpop.f32.mrf.mxu0
    %v12325 = vadd.f32 %v12292, %v12324
    %v12326 = vpop.f32.mrf.mxu0
    %v12327 = vadd.f32 %v12294, %v12326
    %12328 = vmatmul.bf16.gmra.mxu0 %v11671
    %v12329 = vpop.f32.mrf.mxu0
    %v12330 = vadd.f32 %v12297, %v12329
    %v12331 = vpop.f32.mrf.mxu0
    %v12332 = vadd.f32 %v12299, %v12331
    %12333 = vmatmul.bf16.gmra.mxu0 %v11679
    %v12334 = vpop.f32.mrf.mxu0
    %v12335 = vadd.f32 %v12302, %v12334
    %v12336 = vpop.f32.mrf.mxu0
    %v12337 = vadd.f32 %v12304, %v12336
    %12338 = vmatmul.bf16.gmra.mxu0 %v11687
    %v12339 = vpop.f32.mrf.mxu0
    %v12340 = vadd.f32 %v12307, %v12339
    %v12341 = vpop.f32.mrf.mxu0
    %v12342 = vadd.f32 %v12309, %v12341
    %12343 = vmatmul.bf16.gmra.mxu0 %v11695
    %v12344 = vpop.f32.mrf.mxu0
    %v12345 = vadd.f32 %v12312, %v12344
    %v12346 = vpop.f32.mrf.mxu0
    %12347 = vdwg.mxu0
    %12348 = vmatpush.bf16.msra.mxu0 %v12127
    %12349 = vmatpush.bf16.msra.mxu0 %v12126
    %12350 = vmatpush.bf16.msra.mxu0 %v12125
    %12351 = vmatpush.bf16.msra.mxu0 %v12124
    %12352 = vmatpush.bf16.msra.mxu0 %v12123
    %12353 = vmatpush.bf16.msra.mxu0 %v12122
    %12354 = vmatpush.bf16.msra.mxu0 %v12121
    %12355 = vmatpush.bf16.msra.mxu0 %v12120
    %12356 = vmatmul.bf16.gmra.mxu0 %v11664
    %v12357 = vpop.f32.mrf.mxu0
    %v12358 = vadd.f32 %v12325, %v12357
    %v12359 = vpop.f32.mrf.mxu0
    %v12360 = vadd.f32 %v12327, %v12359
    %12361 = vmatmul.bf16.gmra.mxu0 %v11672
    %v12362 = vpop.f32.mrf.mxu0
    %v12363 = vadd.f32 %v12330, %v12362
    %v12364 = vpop.f32.mrf.mxu0
    %v12365 = vadd.f32 %v12332, %v12364
    %12366 = vmatmul.bf16.gmra.mxu0 %v11680
    %v12367 = vpop.f32.mrf.mxu0
    %v12368 = vadd.f32 %v12335, %v12367
    %v12369 = vpop.f32.mrf.mxu0
    %v12370 = vadd.f32 %v12337, %v12369
    %12371 = vmatmul.bf16.gmra.mxu0 %v11688
    %v12372 = vpop.f32.mrf.mxu0
    %v12373 = vadd.f32 %v12340, %v12372
    %v12374 = vpop.f32.mrf.mxu0
    %v12375 = vadd.f32 %v12342, %v12374
    %12376 = vmatmul.bf16.gmra.mxu0 %v11696
    %v12377 = vpop.f32.mrf.mxu0
    %v12378 = vadd.f32 %v12345, %v12377
    %v12379 = vpop.f32.mrf.mxu0
    %12380 = vdwg.mxu0
    %12381 = vmatpush.bf16.msra.mxu0 %v12135
    %12382 = vmatpush.bf16.msra.mxu0 %v12134
    %12383 = vmatpush.bf16.msra.mxu0 %v12133
    %12384 = vmatpush.bf16.msra.mxu0 %v12132
    %12385 = vmatpush.bf16.msra.mxu0 %v12131
    %12386 = vmatpush.bf16.msra.mxu0 %v12130
    %12387 = vmatpush.bf16.msra.mxu0 %v12129
    %12388 = vmatpush.bf16.msra.mxu0 %v12128
    %12389 = vmatmul.bf16.gmra.mxu0 %v11665
    %v12390 = vpop.f32.mrf.mxu0
    %v12391 = vadd.f32 %v12358, %v12390
    %v12392 = vpop.f32.mrf.mxu0
    %v12393 = vadd.f32 %v12360, %v12392
    %12394 = vmatmul.bf16.gmra.mxu0 %v11673
    %v12395 = vpop.f32.mrf.mxu0
    %v12396 = vadd.f32 %v12363, %v12395
    %v12397 = vpop.f32.mrf.mxu0
    %v12398 = vadd.f32 %v12365, %v12397
    %12399 = vmatmul.bf16.gmra.mxu0 %v11681
    %v12400 = vpop.f32.mrf.mxu0
    %v12401 = vadd.f32 %v12368, %v12400
    %v12402 = vpop.f32.mrf.mxu0
    %v12403 = vadd.f32 %v12370, %v12402
    %12404 = vmatmul.bf16.gmra.mxu0 %v11689
    %v12405 = vpop.f32.mrf.mxu0
    %v12406 = vadd.f32 %v12373, %v12405
    %v12407 = vpop.f32.mrf.mxu0
    %v12408 = vadd.f32 %v12375, %v12407
    %12409 = vmatmul.bf16.gmra.mxu0 %v11697
    %v12410 = vpop.f32.mrf.mxu0
    %v12411 = vadd.f32 %v12378, %v12410
    %v12412 = vpop.f32.mrf.mxu0
    %12413 = vdwg.mxu0
    %12414 = vmatpush.bf16.msra.mxu0 %v12143
    %12415 = vmatpush.bf16.msra.mxu0 %v12142
    %12416 = vmatpush.bf16.msra.mxu0 %v12141
    %12417 = vmatpush.bf16.msra.mxu0 %v12140
    %12418 = vmatpush.bf16.msra.mxu0 %v12139
    %12419 = vmatpush.bf16.msra.mxu0 %v12138
    %12420 = vmatpush.bf16.msra.mxu0 %v12137
    %12421 = vmatpush.bf16.msra.mxu0 %v12136
    %12422 = vmatmul.bf16.gmra.mxu0 %v11666
    %v12423 = vpop.f32.mrf.mxu0
    %v12424 = vadd.f32 %v12391, %v12423
    %v12425 = vpop.f32.mrf.mxu0
    %v12426 = vadd.f32 %v12393, %v12425
    %12427 = vmatmul.bf16.gmra.mxu0 %v11674
    %v12428 = vpop.f32.mrf.mxu0
    %v12429 = vadd.f32 %v12396, %v12428
    %v12430 = vpop.f32.mrf.mxu0
    %v12431 = vadd.f32 %v12398, %v12430
    %12432 = vmatmul.bf16.gmra.mxu0 %v11682
    %v12433 = vpop.f32.mrf.mxu0
    %v12434 = vadd.f32 %v12401, %v12433
    %v12435 = vpop.f32.mrf.mxu0
    %v12436 = vadd.f32 %v12403, %v12435
    %12437 = vmatmul.bf16.gmra.mxu0 %v11690
    %v12438 = vpop.f32.mrf.mxu0
    %v12439 = vadd.f32 %v12406, %v12438
    %v12440 = vpop.f32.mrf.mxu0
    %v12441 = vadd.f32 %v12408, %v12440
    %12442 = vmatmul.bf16.gmra.mxu0 %v11698
    %v12443 = vpop.f32.mrf.mxu0
    %v12444 = vadd.f32 %v12411, %v12443
    %v12445 = vpop.f32.mrf.mxu0
    %12446 = vdwg.mxu0
    %12447 = vmatpush.bf16.msra.mxu0 %v12151
    %12448 = vmatpush.bf16.msra.mxu0 %v12150
    %12449 = vmatpush.bf16.msra.mxu0 %v12149
    %12450 = vmatpush.bf16.msra.mxu0 %v12148
    %12451 = vmatpush.bf16.msra.mxu0 %v12147
    %12452 = vmatpush.bf16.msra.mxu0 %v12146
    %12453 = vmatpush.bf16.msra.mxu0 %v12145
    %12454 = vmatpush.bf16.msra.mxu0 %v12144
    %12455 = vmatmul.bf16.gmra.mxu0 %v11667
    %v12456 = vpop.f32.mrf.mxu0
    %v12457 = vadd.f32 %v12424, %v12456
    %v12458 = vpop.f32.mrf.mxu0
    %v12459 = vadd.f32 %v12426, %v12458
    %12460 = vmatmul.bf16.gmra.mxu0 %v11675
    %v12461 = vpop.f32.mrf.mxu0
    %v12462 = vadd.f32 %v12429, %v12461
    %v12463 = vpop.f32.mrf.mxu0
    %v12464 = vadd.f32 %v12431, %v12463
    %12465 = vmatmul.bf16.gmra.mxu0 %v11683
    %v12466 = vpop.f32.mrf.mxu0
    %v12467 = vadd.f32 %v12434, %v12466
    %v12468 = vpop.f32.mrf.mxu0
    %v12469 = vadd.f32 %v12436, %v12468
    %12470 = vmatmul.bf16.gmra.mxu0 %v11691
    %v12471 = vpop.f32.mrf.mxu0
    %v12472 = vadd.f32 %v12439, %v12471
    %v12473 = vpop.f32.mrf.mxu0
    %v12474 = vadd.f32 %v12441, %v12473
    %12475 = vmatmul.bf16.gmra.mxu0 %v11699
    %v12476 = vpop.f32.mrf.mxu0
    %v12477 = vadd.f32 %v12444, %v12476
    %v12478 = vpop.f32.mrf.mxu0
    %12479 = vdwg.mxu0
    %12480 = vst [vmem:[#allocation16] sm:$0xff] %v12457
    %12481 = vst [vmem:[#allocation16 + $0x8] sm:$0xff] %v12459
    %12482 = vst [vmem:[#allocation16 + $0x10] sm:$0xff] %v12462
    %12483 = vst [vmem:[#allocation16 + $0x18] sm:$0xff] %v12464
    %12484 = vst [vmem:[#allocation16 + $0x20] sm:$0xff] %v12467
    %12485 = vst [vmem:[#allocation16 + $0x28] sm:$0xff] %v12469
    %12486 = vst [vmem:[#allocation16 + $0x30] sm:$0xff] %v12472
    %12487 = vst [vmem:[#allocation16 + $0x38] sm:$0xff] %v12474
    %12488 = vst [vmem:[#allocation16 + $0x40] sm:$0xff] %v12477
    // Predicated region
    $region70: #{tpu_custom_call.1} parent=1 // pred_check
      _
    $region71: #{tpu_custom_call.1} parent=1 // pred_check_branch
      %12490 = sbr.rel (0) target = $region73
    $region72: #{tpu_custom_call.1} parent=1 // pred_region
      %12492 = vsyncadd [#allocation4], 0
      %s12493 = sshll.u32 [#allocation16], 4
      %s12494 = int_to_ptr.vmem [resolvable:$true] %s12493
      %s12495 = sshll.u32 %s9, 4
      %s12496 = int_to_ptr.hbm [resolvable:$true] %s12495
      %12501 = dma.vmem_to_hbm [thread:$0]  %s12494, 1152, %s12496, [#allocation4], 128, 128, 8
    $region73: #{tpu_custom_call.1} parent=1 // pred_fallthru
      _
    // Predicated region
    $region74: #{tpu_custom_call.1} parent=1 // pred_check
      _
    $region75: #{tpu_custom_call.1} parent=1 // pred_check_branch
      %12503 = sbr.rel (0) target = $region77
    $region76: #{tpu_custom_call.1} parent=1 // pred_region
      %12505 = dma.done [#allocation4], 1152
    $region77: #{tpu_custom_call.1} parent=1 // pred_fallthru
      _
    %12506 = vsyncpa [#allocation3], 1
    %12507 = vsyncpa [#allocation6], 1
    %12508 = vsyncpa [#allocation9], 1
    %12509 = vsyncpa [#allocation12], 1
    %12510 = vsyncpa [#allocation15], 1
    %12511 = vsyncpa [#allocation4], 1

</llo_original>
